<compile_context>
chip_gen: v7x
topology: tpu7x:2x2x1
jax: 0.10.0
libtpu: 0.0.40
codegen_flags: <defaults>
</compile_context>

<pallas_src>
import jax
import jax.numpy as jnp
import numpy as np
from jax import lax
from jax.experimental import pallas as pl
from jax.experimental.pallas import tpu as pltpu

LATENT_DIM = 20
INPUT_DIM = 32

# (stride, padding, output_padding, relu) for each decoder ConvTranspose2d
_DECODER_CFG = [
    (1, 0, 0, True),   # ConvTranspose2d(128,128,k=2)              1x1  -> 2x2
    (2, 1, 1, True),   # ConvTranspose2d(128,128,k=3,s2,p1,op1)    2x2  -> 4x4
    (2, 1, 0, True),   # ConvTranspose2d(128, 64,k=3,s2,p1)        4x4  -> 7x7
    (2, 1, 1, True),   # ConvTranspose2d( 64, 32,k=3,s2,p1,op1)    7x7  -> 14x14
    (2, 1, 1, False),  # ConvTranspose2d( 32,  1,k=3,s2,p1,op1)    14x14-> 28x28
]
_N_LAYERS = len(_DECODER_CFG)

_VMEM_SPEC = pl.BlockSpec(memory_space=pltpu.MemorySpace.VMEM)


# --------------------------------------------------------------------------
# The single fused kernel
# --------------------------------------------------------------------------
def _fused_vae_kernel(*refs):
    """Encoder + reparameterize + fc_decode + 5 transposed convs.

    Activation layout throughout the decoder: 2D (B*H, W*C)  (NHWC flattened,
    channels on the 128-lane axis).  Per decoder layer l and kernel row kh:
        out = sum_kh (S_l[kh] @ a) @ M_l[kh]  + bias_tiled_l    (+ ReLU)
    where S_l folds the height dilation/pad/patch-shift and M_l folds the
    width dilation/pad/patch-shift and the channel contraction.
    """
    x_ref, eps_ref, wenc_ref, benc_ref, wdec_ref, bdec_ref = refs[:6]
    layer_refs = refs[6:6 + 3 * _N_LAYERS]
    mu_ref, lv_ref, rec_ref = refs[6 + 3 * _N_LAYERS:]

    # ---- encoder: fc_mu | fc_logvar fused into one (32, 40) matmul ----
    x = x_ref[...]
    enc = jnp.dot(x, wenc_ref[...],
                  preferred_element_type=jnp.float32) + benc_ref[...]
    mu = enc[:, :LATENT_DIM]
    logvar = enc[:, LATENT_DIM:]
    mu_ref[...] = mu
    lv_ref[...] = logvar

    # ---- reparameterize + fc_decode ----
    z = mu + jnp.exp(0.5 * logvar) * eps_ref[...]
    a = jnp.dot(z, wdec_ref[...],
                preferred_element_type=jnp.float32) + bdec_ref[...]
    # a == NHWC (B,1,1,128) flattened as (B*1, 1*128)

    # ---- decoder: 5 transposed convolutions ----
    for li in range(_N_LAYERS):
        s_ref, m_ref, c_ref = layer_refs[3 * li: 3 * li + 3]
        relu = _DECODER_CFG[li][3]
        kh_count = s_ref.shape[0]
        acc = None
        for kh in range(kh_count):
            t = jnp.dot(s_ref[kh], a, preferred_element_type=jnp.float32)
            part = jnp.dot(t, m_ref[kh], preferred_element_type=jnp.float32)
            acc = part if acc is None else acc + part
        a = acc + c_ref[...]
        if relu:
            a = jnp.maximum(a, 0.0)

    # Final activation is (B*28, 28*1): byte-identical to NCHW (B,1,28,28).
    rec_ref[...] = a


# --------------------------------------------------------------------------
# One-time parameter preparation (outside jit)
# --------------------------------------------------------------------------
def _deconv_prep(w_t, bias, h_in, stride, pad, out_pad, batch):
    """Fold one PyTorch ConvTranspose2d into (S, M, tiled-bias) matrices."""
    w_np = np.asarray(w_t, dtype=np.float32)          # (Cin, Cout, k, k)
    cin, cout, k, _ = w_np.shape
    plo = k - 1 - pad                                  # low zero pad
    hp = (h_in - 1) * stride + 1 + 2 * plo + out_pad   # dilated+padded size
    oh = hp - k + 1                                    # output spatial size

    # stride-1 conv of the dilated/padded input with the flipped kernel
    wf = np.transpose(w_np[:, :, ::-1, ::-1], (2, 3, 0, 1))   # (kh,kw,cin,cout)

    # Banded width-folded weight:  M[kh, (w, ci), (ow, co)] = wf[kh, kw, ci, co]
    # with kw = plo + w*stride - ow  (zero outside the kernel-width band).
    m = np.zeros((k, h_in, cin, oh, cout), np.float32)
    for w in range(h_in):                              # square: W == H
        for ow in range(oh):
            kw = plo + w * stride - ow
            if 0 <= kw < k:
                m[:, w, :, ow, :] = wf[:, kw, :, :]
    m = m.reshape(k, h_in * cin, oh * cout)

    # Row-select matrices: S[kh, (b,oh), (b,h)] = 1  iff  plo + h*stride == oh+kh
    s_sel = np.zeros((k, batch * oh, batch * h_in), np.float32)
    for kh in range(k):
        for oo in range(oh):
            hh, rem = divmod(oo + kh - plo, stride)
            if rem == 0 and 0 <= hh < h_in:
                for b in range(batch):
                    s_sel[kh, b * oh + oo, b * h_in + hh] = 1.0

    # bias tiled over ow so it adds directly onto the (B*OH, OW*Cout) slab
    c = np.tile(np.asarray(bias, np.float32).reshape(1, cout), (1, oh))
    return (jnp.asarray(s_sel), jnp.asarray(m), jnp.asarray(c)), oh


def prepare_params(params, batch):
    """Pre-transform parameters once (call outside jit)."""
    wmu, bmu, wlv, blv, wd, bd = params["fc"]
    w_enc = jnp.concatenate([wmu, wlv], axis=1)        # (32, 40)
    b_enc = jnp.concatenate([bmu, blv], axis=1)        # (1, 40)

    layers = []
    h = 1
    for (w_t, b), (s, p, op, _relu) in zip(params["deconv"], _DECODER_CFG):
        (s_sel, m, c), h = _deconv_prep(w_t, b, h, s, p, op, batch)
        layers.append((s_sel, m, c))
    return {"enc": (w_enc, b_enc, wd, bd), "layers": layers}


# --------------------------------------------------------------------------
# Forward wrapper (single pallas_call)
# --------------------------------------------------------------------------
def latent_vae_forward(x, prep, eps):
    w_enc, b_enc, wd, bd = prep["enc"]
    layers = prep["layers"]
    b = x.shape[0]
    ohw = layers[-1][2].shape[1]          # final OW * Cout, Cout == 1  -> 28

    inputs = [x, eps, w_enc, b_enc, wd, bd]
    for trio in layers:
        inputs.extend(trio)

    mu, logvar, rec = pl.pallas_call(
        _fused_vae_kernel,
        out_shape=(jax.ShapeDtypeStruct((b, LATENT_DIM), jnp.float32),
                   jax.ShapeDtypeStruct((b, LATENT_DIM), jnp.float32),
                   jax.ShapeDtypeStruct((b * ohw, ohw), jnp.float32)),
        in_specs=[_VMEM_SPEC] * len(inputs),
        out_specs=(_VMEM_SPEC, _VMEM_SPEC, _VMEM_SPEC),
        compiler_params=pltpu.CompilerParams(
            vmem_limit_bytes=32 * 1024 * 1024),
    )(*inputs)

    # (B*28, 28) has exactly NCHW (B, 1, 28, 28) memory order (C == 1).
    recon = rec.reshape(b, 1, ohw, ohw)
    return recon, mu, logvar


# --------------------------------------------------------------------------
# Deterministic synthetic parameters (mirror the module's shapes / init)
# --------------------------------------------------------------------------
def init_params(key):
    keys = jax.random.split(key, 11)

    def linear(kw, kb, fan_in, fan_out, zero_w=False):
        bound = 1.0 / float(fan_in) ** 0.5
        if zero_w:
            w = jnp.zeros((fan_in, fan_out), jnp.float32)
        else:
            w = jax.random.uniform(kw, (fan_in, fan_out), jnp.float32,
                                   -bound, bound)
        b = jax.random.uniform(kb, (1, fan_out), jnp.float32, -bound, bound)
        return w, b

    # fc_mu / fc_logvar weights are zero-filled in the reference __init__.
    wmu, bmu = linear(keys[0], keys[1], INPUT_DIM, LATENT_DIM, zero_w=True)
    wlv, blv = linear(keys[2], keys[3], INPUT_DIM, LATENT_DIM, zero_w=True)
    wd, bd = linear(keys[4], keys[5], LATENT_DIM, 128)
    fc = (wmu, bmu, wlv, blv, wd, bd)

    deconv_shapes = [(128, 128, 2), (128, 128, 3), (128, 64, 3),
                     (64, 32, 3), (32, 1, 3)]
    deconv = []
    for i, (cin, cout, k) in enumerate(deconv_shapes):
        kw_, kb_ = jax.random.split(keys[6 + i])
        bound = 1.0 / float(cin * k * k) ** 0.5
        w = jax.random.uniform(kw_, (cin, cout, k, k), jnp.float32,
                               -bound, bound)   # PyTorch ConvTranspose2d layout
        b = jax.random.uniform(kb_, (cout,), jnp.float32, -bound, bound)
        deconv.append((w, b))
    return {"fc": fc, "deconv": deconv}


# --------------------------------------------------------------------------
# Pure-JAX reference (validates the whole Pallas transformation)
# --------------------------------------------------------------------------
def _conv_transpose_ref(x, w_t, bias, stride, pad, out_pad, relu):
    cin, cout, k, _ = w_t.shape
    plo = k - 1 - pad
    phi = k - 1 - pad + out_pad
    w_hwio = jnp.transpose(w_t[:, :, ::-1, ::-1], (2, 3, 0, 1))
    y = lax.conv_general_dilated(
        x, w_hwio, window_strides=(1, 1),
        padding=((plo, phi), (plo, phi)),
        lhs_dilation=(stride, stride),
        dimension_numbers=("NHWC", "HWIO", "NHWC"))
    y = y + bias.reshape(1, 1, 1, cout)
    if relu:
        y = jnp.maximum(y, 0.0)
    return y


def forward_ref(x, params, eps):
    wmu, bmu, wlv, blv, wd, bd = params["fc"]
    mu = x @ wmu + bmu
    lv = x @ wlv + blv
    z = mu + jnp.exp(0.5 * lv) * eps
    h = z @ wd + bd
    y = h.reshape(h.shape[0], 1, 1, 128)
    for (w, bias), (s, p, op, relu) in zip(params["deconv"], _DECODER_CFG):
        y = _conv_transpose_ref(y, w, bias, s, p, op, relu)
    return jnp.transpose(y, (0, 3, 1, 2)), mu, lv


# --------------------------------------------------------------------------
if __name__ == "__main__":
    key = jax.random.PRNGKey(0)
    kp, kx, ke = jax.random.split(key, 3)

    batch = 2
    params = init_params(kp)
    x = jax.random.normal(kx, (batch, INPUT_DIM), dtype=jnp.float32)
    # TODO(synk): torch.normal is drawn outside the kernel with jax.random.
    eps = jax.random.normal(ke, (batch, LATENT_DIM), dtype=jnp.float32)

    prep = prepare_params(params, batch)          # one-time weight transform
    fwd = jax.jit(latent_vae_forward)

    recon, mu, logvar = jax.block_until_ready(fwd(x, prep, eps))

    assert recon.shape == (batch, 1, 28, 28), recon.shape
    assert mu.shape == (batch, LATENT_DIM) and logvar.shape == (batch, LATENT_DIM)

    recon_r, mu_r, lv_r = forward_ref(x, params, eps)
    assert jnp.allclose(mu, mu_r, atol=1e-4, rtol=1e-4)
    assert jnp.allclose(logvar, lv_r, atol=1e-4, rtol=1e-4)
    assert jnp.allclose(recon, recon_r, atol=1e-3, rtol=1e-3)

    print("KERNEL_OK")
</pallas_src>

<mosaic_0001>
module attributes {stable_mosaic.version = 11 : i64} {
  func.func @_fused_vae_kernel(%arg0: memref<2x32xf32, #tpu.memory_space<vmem>>, %arg1: memref<2x20xf32, #tpu.memory_space<vmem>>, %arg2: memref<32x40xf32, #tpu.memory_space<vmem>>, %arg3: memref<1x40xf32, #tpu.memory_space<vmem>>, %arg4: memref<20x128xf32, #tpu.memory_space<vmem>>, %arg5: memref<1x128xf32, #tpu.memory_space<vmem>>, %arg6: memref<2x4x2xf32, #tpu.memory_space<vmem>>, %arg7: memref<2x128x256xf32, #tpu.memory_space<vmem>>, %arg8: memref<1x256xf32, #tpu.memory_space<vmem>>, %arg9: memref<3x8x4xf32, #tpu.memory_space<vmem>>, %arg10: memref<3x256x512xf32, #tpu.memory_space<vmem>>, %arg11: memref<1x512xf32, #tpu.memory_space<vmem>>, %arg12: memref<3x14x8xf32, #tpu.memory_space<vmem>>, %arg13: memref<3x512x448xf32, #tpu.memory_space<vmem>>, %arg14: memref<1x448xf32, #tpu.memory_space<vmem>>, %arg15: memref<3x28x14xf32, #tpu.memory_space<vmem>>, %arg16: memref<3x448x448xf32, #tpu.memory_space<vmem>>, %arg17: memref<1x448xf32, #tpu.memory_space<vmem>>, %arg18: memref<3x56x28xf32, #tpu.memory_space<vmem>>, %arg19: memref<3x448x28xf32, #tpu.memory_space<vmem>>, %arg20: memref<1x28xf32, #tpu.memory_space<vmem>>, %arg21: memref<2x20xf32, #tpu.memory_space<vmem>>, %arg22: memref<2x20xf32, #tpu.memory_space<vmem>>, %arg23: memref<56x28xf32, #tpu.memory_space<vmem>>) attributes {dimension_semantics = [], scalar_prefetch = 0 : i64, scratch_operands = 0 : i64, tpu.core_type = #tpu.core_type<tc>} {
    %c0 = arith.constant 0 : index
    %c0_0 = arith.constant 0 : index
    %0 = vector.load %arg0[%c0, %c0_0] : memref<2x32xf32, #tpu.memory_space<vmem>>, vector<2x32xf32>
    %c0_1 = arith.constant 0 : index
    %c0_2 = arith.constant 0 : index
    %1 = vector.load %arg2[%c0_1, %c0_2] : memref<32x40xf32, #tpu.memory_space<vmem>>, vector<32x40xf32>
    %cst = arith.constant dense<0.000000e+00> : vector<2x40xf32>
    %2 = tpu.matmul %0, %1, %cst {dimension_numbers = #tpu.dot_dimension_numbers<[1], [0], [0], [1], [0, 0, 1, 1], [], []>} : vector<2x32xf32>, vector<32x40xf32>, vector<2x40xf32> -> vector<2x40xf32>
    %c0_3 = arith.constant 0 : index
    %c0_4 = arith.constant 0 : index
    %3 = vector.load %arg3[%c0_3, %c0_4] : memref<1x40xf32, #tpu.memory_space<vmem>>, vector<1x40xf32>
    %4 = vector.broadcast %3 : vector<1x40xf32> to vector<2x40xf32>
    %5 = arith.addf %2, %4 : vector<2x40xf32>
    %6 = vector.extract_strided_slice %5 {offsets = [0, 0], sizes = [2, 20], strides = [1, 1]} : vector<2x40xf32> to vector<2x20xf32>
    %7 = vector.extract_strided_slice %5 {offsets = [0, 20], sizes = [2, 20], strides = [1, 1]} : vector<2x40xf32> to vector<2x20xf32>
    %c0_5 = arith.constant 0 : index
    %c0_6 = arith.constant 0 : index
    %8 = vector.load %arg21[%c0_5, %c0_6] : memref<2x20xf32, #tpu.memory_space<vmem>>, vector<2x20xf32>
    tpu.vector_store %arg21[%c0_5, %c0_6], %6 {strides = array<i32>} : memref<2x20xf32, #tpu.memory_space<vmem>>, vector<2x20xf32>,
    %c0_7 = arith.constant 0 : index
    %c0_8 = arith.constant 0 : index
    %9 = vector.load %arg22[%c0_7, %c0_8] : memref<2x20xf32, #tpu.memory_space<vmem>>, vector<2x20xf32>
    tpu.vector_store %arg22[%c0_7, %c0_8], %7 {strides = array<i32>} : memref<2x20xf32, #tpu.memory_space<vmem>>, vector<2x20xf32>,
    %cst_9 = arith.constant 5.000000e-01 : f32
    %10 = vector.broadcast %cst_9 : f32 to vector<2x20xf32>
    %11 = arith.mulf %10, %7 : vector<2x20xf32>
    %12 = math.exp %11 : vector<2x20xf32>
    %c0_10 = arith.constant 0 : index
    %c0_11 = arith.constant 0 : index
    %13 = vector.load %arg1[%c0_10, %c0_11] : memref<2x20xf32, #tpu.memory_space<vmem>>, vector<2x20xf32>
    %14 = arith.mulf %12, %13 : vector<2x20xf32>
    %15 = arith.addf %6, %14 : vector<2x20xf32>
    %c0_12 = arith.constant 0 : index
    %c0_13 = arith.constant 0 : index
    %16 = vector.load %arg4[%c0_12, %c0_13] : memref<20x128xf32, #tpu.memory_space<vmem>>, vector<20x128xf32>
    %cst_14 = arith.constant dense<0.000000e+00> : vector<2x128xf32>
    %17 = tpu.matmul %15, %16, %cst_14 {dimension_numbers = #tpu.dot_dimension_numbers<[1], [0], [0], [1], [0, 0, 1, 1], [], []>} : vector<2x20xf32>, vector<20x128xf32>, vector<2x128xf32> -> vector<2x128xf32>
    %c0_15 = arith.constant 0 : index
    %c0_16 = arith.constant 0 : index
    %18 = vector.load %arg5[%c0_15, %c0_16] : memref<1x128xf32, #tpu.memory_space<vmem>>, vector<1x128xf32>
    %19 = vector.broadcast %18 : vector<1x128xf32> to vector<2x128xf32>
    %20 = arith.addf %17, %19 : vector<2x128xf32>
    %c0_17 = arith.constant 0 : index
    %c0_18 = arith.constant 0 : index
    %c0_19 = arith.constant 0 : index
    %21 = vector.load %arg6[%c0_17, %c0_18, %c0_19] : memref<2x4x2xf32, #tpu.memory_space<vmem>>, vector<1x4x2xf32>
    %22 = vector.shape_cast %21 : vector<1x4x2xf32> to vector<4x2xf32>
    %cst_20 = arith.constant dense<0.000000e+00> : vector<4x128xf32>
    %23 = tpu.matmul %22, %20, %cst_20 {dimension_numbers = #tpu.dot_dimension_numbers<[1], [0], [0], [1], [0, 0, 1, 1], [], []>} : vector<4x2xf32>, vector<2x128xf32>, vector<4x128xf32> -> vector<4x128xf32>
    %c0_21 = arith.constant 0 : index
    %c0_22 = arith.constant 0 : index
    %c0_23 = arith.constant 0 : index
    %24 = vector.load %arg7[%c0_21, %c0_22, %c0_23] : memref<2x128x256xf32, #tpu.memory_space<vmem>>, vector<1x128x256xf32>
    %25 = vector.shape_cast %24 : vector<1x128x256xf32> to vector<128x256xf32>
    %cst_24 = arith.constant dense<0.000000e+00> : vector<4x256xf32>
    %26 = tpu.matmul %23, %25, %cst_24 {dimension_numbers = #tpu.dot_dimension_numbers<[1], [0], [0], [1], [0, 0, 1, 1], [], []>} : vector<4x128xf32>, vector<128x256xf32>, vector<4x256xf32> -> vector<4x256xf32>
    %c1 = arith.constant 1 : index
    %c0_25 = arith.constant 0 : index
    %c0_26 = arith.constant 0 : index
    %27 = vector.load %arg6[%c1, %c0_25, %c0_26] : memref<2x4x2xf32, #tpu.memory_space<vmem>>, vector<1x4x2xf32>
    %28 = vector.shape_cast %27 : vector<1x4x2xf32> to vector<4x2xf32>
    %cst_27 = arith.constant dense<0.000000e+00> : vector<4x128xf32>
    %29 = tpu.matmul %28, %20, %cst_27 {dimension_numbers = #tpu.dot_dimension_numbers<[1], [0], [0], [1], [0, 0, 1, 1], [], []>} : vector<4x2xf32>, vector<2x128xf32>, vector<4x128xf32> -> vector<4x128xf32>
    %c1_28 = arith.constant 1 : index
    %c0_29 = arith.constant 0 : index
    %c0_30 = arith.constant 0 : index
    %30 = vector.load %arg7[%c1_28, %c0_29, %c0_30] : memref<2x128x256xf32, #tpu.memory_space<vmem>>, vector<1x128x256xf32>
    %31 = vector.shape_cast %30 : vector<1x128x256xf32> to vector<128x256xf32>
    %cst_31 = arith.constant dense<0.000000e+00> : vector<4x256xf32>
    %32 = tpu.matmul %29, %31, %cst_31 {dimension_numbers = #tpu.dot_dimension_numbers<[1], [0], [0], [1], [0, 0, 1, 1], [], []>} : vector<4x128xf32>, vector<128x256xf32>, vector<4x256xf32> -> vector<4x256xf32>
    %33 = arith.addf %26, %32 : vector<4x256xf32>
    %c0_32 = arith.constant 0 : index
    %c0_33 = arith.constant 0 : index
    %34 = vector.load %arg8[%c0_32, %c0_33] : memref<1x256xf32, #tpu.memory_space<vmem>>, vector<1x256xf32>
    %35 = vector.broadcast %34 : vector<1x256xf32> to vector<4x256xf32>
    %36 = arith.addf %33, %35 : vector<4x256xf32>
    %cst_34 = arith.constant 0.000000e+00 : f32
    %37 = vector.broadcast %cst_34 : f32 to vector<4x256xf32>
    %38 = arith.maximumf %36, %37 : vector<4x256xf32>
    %c0_35 = arith.constant 0 : index
    %c0_36 = arith.constant 0 : index
    %c0_37 = arith.constant 0 : index
    %39 = vector.load %arg9[%c0_35, %c0_36, %c0_37] : memref<3x8x4xf32, #tpu.memory_space<vmem>>, vector<1x8x4xf32>
    %40 = vector.shape_cast %39 : vector<1x8x4xf32> to vector<8x4xf32>
    %cst_38 = arith.constant dense<0.000000e+00> : vector<8x256xf32>
    %41 = tpu.matmul %40, %38, %cst_38 {dimension_numbers = #tpu.dot_dimension_numbers<[1], [0], [0], [1], [0, 0, 1, 1], [], []>} : vector<8x4xf32>, vector<4x256xf32>, vector<8x256xf32> -> vector<8x256xf32>
    %c0_39 = arith.constant 0 : index
    %c0_40 = arith.constant 0 : index
    %c0_41 = arith.constant 0 : index
    %42 = vector.load %arg10[%c0_39, %c0_40, %c0_41] : memref<3x256x512xf32, #tpu.memory_space<vmem>>, vector<1x256x512xf32>
    %43 = vector.shape_cast %42 : vector<1x256x512xf32> to vector<256x512xf32>
    %cst_42 = arith.constant dense<0.000000e+00> : vector<8x512xf32>
    %44 = tpu.matmul %41, %43, %cst_42 {dimension_numbers = #tpu.dot_dimension_numbers<[1], [0], [0], [1], [0, 0, 1, 1], [], []>} : vector<8x256xf32>, vector<256x512xf32>, vector<8x512xf32> -> vector<8x512xf32>
    %c1_43 = arith.constant 1 : index
    %c0_44 = arith.constant 0 : index
    %c0_45 = arith.constant 0 : index
    %45 = vector.load %arg9[%c1_43, %c0_44, %c0_45] : memref<3x8x4xf32, #tpu.memory_space<vmem>>, vector<1x8x4xf32>
    %46 = vector.shape_cast %45 : vector<1x8x4xf32> to vector<8x4xf32>
    %cst_46 = arith.constant dense<0.000000e+00> : vector<8x256xf32>
    %47 = tpu.matmul %46, %38, %cst_46 {dimension_numbers = #tpu.dot_dimension_numbers<[1], [0], [0], [1], [0, 0, 1, 1], [], []>} : vector<8x4xf32>, vector<4x256xf32>, vector<8x256xf32> -> vector<8x256xf32>
    %c1_47 = arith.constant 1 : index
    %c0_48 = arith.constant 0 : index
    %c0_49 = arith.constant 0 : index
    %48 = vector.load %arg10[%c1_47, %c0_48, %c0_49] : memref<3x256x512xf32, #tpu.memory_space<vmem>>, vector<1x256x512xf32>
    %49 = vector.shape_cast %48 : vector<1x256x512xf32> to vector<256x512xf32>
    %cst_50 = arith.constant dense<0.000000e+00> : vector<8x512xf32>
    %50 = tpu.matmul %47, %49, %cst_50 {dimension_numbers = #tpu.dot_dimension_numbers<[1], [0], [0], [1], [0, 0, 1, 1], [], []>} : vector<8x256xf32>, vector<256x512xf32>, vector<8x512xf32> -> vector<8x512xf32>
    %51 = arith.addf %44, %50 : vector<8x512xf32>
    %c2 = arith.constant 2 : index
    %c0_51 = arith.constant 0 : index
    %c0_52 = arith.constant 0 : index
    %52 = vector.load %arg9[%c2, %c0_51, %c0_52] : memref<3x8x4xf32, #tpu.memory_space<vmem>>, vector<1x8x4xf32>
    %53 = vector.shape_cast %52 : vector<1x8x4xf32> to vector<8x4xf32>
    %cst_53 = arith.constant dense<0.000000e+00> : vector<8x256xf32>
    %54 = tpu.matmul %53, %38, %cst_53 {dimension_numbers = #tpu.dot_dimension_numbers<[1], [0], [0], [1], [0, 0, 1, 1], [], []>} : vector<8x4xf32>, vector<4x256xf32>, vector<8x256xf32> -> vector<8x256xf32>
    %c2_54 = arith.constant 2 : index
    %c0_55 = arith.constant 0 : index
    %c0_56 = arith.constant 0 : index
    %55 = vector.load %arg10[%c2_54, %c0_55, %c0_56] : memref<3x256x512xf32, #tpu.memory_space<vmem>>, vector<1x256x512xf32>
    %56 = vector.shape_cast %55 : vector<1x256x512xf32> to vector<256x512xf32>
    %cst_57 = arith.constant dense<0.000000e+00> : vector<8x512xf32>
    %57 = tpu.matmul %54, %56, %cst_57 {dimension_numbers = #tpu.dot_dimension_numbers<[1], [0], [0], [1], [0, 0, 1, 1], [], []>} : vector<8x256xf32>, vector<256x512xf32>, vector<8x512xf32> -> vector<8x512xf32>
    %58 = arith.addf %51, %57 : vector<8x512xf32>
    %c0_58 = arith.constant 0 : index
    %c0_59 = arith.constant 0 : index
    %59 = vector.load %arg11[%c0_58, %c0_59] : memref<1x512xf32, #tpu.memory_space<vmem>>, vector<1x512xf32>
    %60 = vector.broadcast %59 : vector<1x512xf32> to vector<8x512xf32>
    %61 = arith.addf %58, %60 : vector<8x512xf32>
    %cst_60 = arith.constant 0.000000e+00 : f32
    %62 = vector.broadcast %cst_60 : f32 to vector<8x512xf32>
    %63 = arith.maximumf %61, %62 : vector<8x512xf32>
    %c0_61 = arith.constant 0 : index
    %c0_62 = arith.constant 0 : index
    %c0_63 = arith.constant 0 : index
    %64 = vector.load %arg12[%c0_61, %c0_62, %c0_63] : memref<3x14x8xf32, #tpu.memory_space<vmem>>, vector<1x14x8xf32>
    %65 = vector.shape_cast %64 : vector<1x14x8xf32> to vector<14x8xf32>
    %cst_64 = arith.constant dense<0.000000e+00> : vector<14x512xf32>
    %66 = tpu.matmul %65, %63, %cst_64 {dimension_numbers = #tpu.dot_dimension_numbers<[1], [0], [0], [1], [0, 0, 1, 1], [], []>} : vector<14x8xf32>, vector<8x512xf32>, vector<14x512xf32> -> vector<14x512xf32>
    %c0_65 = arith.constant 0 : index
    %c0_66 = arith.constant 0 : index
    %c0_67 = arith.constant 0 : index
    %67 = vector.load %arg13[%c0_65, %c0_66, %c0_67] : memref<3x512x448xf32, #tpu.memory_space<vmem>>, vector<1x512x448xf32>
    %68 = vector.shape_cast %67 : vector<1x512x448xf32> to vector<512x448xf32>
    %cst_68 = arith.constant dense<0.000000e+00> : vector<14x448xf32>
    %69 = tpu.matmul %66, %68, %cst_68 {dimension_numbers = #tpu.dot_dimension_numbers<[1], [0], [0], [1], [0, 0, 1, 1], [], []>} : vector<14x512xf32>, vector<512x448xf32>, vector<14x448xf32> -> vector<14x448xf32>
    %c1_69 = arith.constant 1 : index
    %c0_70 = arith.constant 0 : index
    %c0_71 = arith.constant 0 : index
    %70 = vector.load %arg12[%c1_69, %c0_70, %c0_71] : memref<3x14x8xf32, #tpu.memory_space<vmem>>, vector<1x14x8xf32>
    %71 = vector.shape_cast %70 : vector<1x14x8xf32> to vector<14x8xf32>
    %cst_72 = arith.constant dense<0.000000e+00> : vector<14x512xf32>
    %72 = tpu.matmul %71, %63, %cst_72 {dimension_numbers = #tpu.dot_dimension_numbers<[1], [0], [0], [1], [0, 0, 1, 1], [], []>} : vector<14x8xf32>, vector<8x512xf32>, vector<14x512xf32> -> vector<14x512xf32>
    %c1_73 = arith.constant 1 : index
    %c0_74 = arith.constant 0 : index
    %c0_75 = arith.constant 0 : index
    %73 = vector.load %arg13[%c1_73, %c0_74, %c0_75] : memref<3x512x448xf32, #tpu.memory_space<vmem>>, vector<1x512x448xf32>
    %74 = vector.shape_cast %73 : vector<1x512x448xf32> to vector<512x448xf32>
    %cst_76 = arith.constant dense<0.000000e+00> : vector<14x448xf32>
    %75 = tpu.matmul %72, %74, %cst_76 {dimension_numbers = #tpu.dot_dimension_numbers<[1], [0], [0], [1], [0, 0, 1, 1], [], []>} : vector<14x512xf32>, vector<512x448xf32>, vector<14x448xf32> -> vector<14x448xf32>
    %76 = arith.addf %69, %75 : vector<14x448xf32>
    %c2_77 = arith.constant 2 : index
    %c0_78 = arith.constant 0 : index
    %c0_79 = arith.constant 0 : index
    %77 = vector.load %arg12[%c2_77, %c0_78, %c0_79] : memref<3x14x8xf32, #tpu.memory_space<vmem>>, vector<1x14x8xf32>
    %78 = vector.shape_cast %77 : vector<1x14x8xf32> to vector<14x8xf32>
    %cst_80 = arith.constant dense<0.000000e+00> : vector<14x512xf32>
    %79 = tpu.matmul %78, %63, %cst_80 {dimension_numbers = #tpu.dot_dimension_numbers<[1], [0], [0], [1], [0, 0, 1, 1], [], []>} : vector<14x8xf32>, vector<8x512xf32>, vector<14x512xf32> -> vector<14x512xf32>
    %c2_81 = arith.constant 2 : index
    %c0_82 = arith.constant 0 : index
    %c0_83 = arith.constant 0 : index
    %80 = vector.load %arg13[%c2_81, %c0_82, %c0_83] : memref<3x512x448xf32, #tpu.memory_space<vmem>>, vector<1x512x448xf32>
    %81 = vector.shape_cast %80 : vector<1x512x448xf32> to vector<512x448xf32>
    %cst_84 = arith.constant dense<0.000000e+00> : vector<14x448xf32>
    %82 = tpu.matmul %79, %81, %cst_84 {dimension_numbers = #tpu.dot_dimension_numbers<[1], [0], [0], [1], [0, 0, 1, 1], [], []>} : vector<14x512xf32>, vector<512x448xf32>, vector<14x448xf32> -> vector<14x448xf32>
    %83 = arith.addf %76, %82 : vector<14x448xf32>
    %c0_85 = arith.constant 0 : index
    %c0_86 = arith.constant 0 : index
    %84 = vector.load %arg14[%c0_85, %c0_86] : memref<1x448xf32, #tpu.memory_space<vmem>>, vector<1x448xf32>
    %85 = vector.broadcast %84 : vector<1x448xf32> to vector<14x448xf32>
    %86 = arith.addf %83, %85 : vector<14x448xf32>
    %cst_87 = arith.constant 0.000000e+00 : f32
    %87 = vector.broadcast %cst_87 : f32 to vector<14x448xf32>
    %88 = arith.maximumf %86, %87 : vector<14x448xf32>
    %c0_88 = arith.constant 0 : index
    %c0_89 = arith.constant 0 : index
    %c0_90 = arith.constant 0 : index
    %89 = vector.load %arg15[%c0_88, %c0_89, %c0_90] : memref<3x28x14xf32, #tpu.memory_space<vmem>>, vector<1x28x14xf32>
    %90 = vector.shape_cast %89 : vector<1x28x14xf32> to vector<28x14xf32>
    %cst_91 = arith.constant dense<0.000000e+00> : vector<28x448xf32>
    %91 = tpu.matmul %90, %88, %cst_91 {dimension_numbers = #tpu.dot_dimension_numbers<[1], [0], [0], [1], [0, 0, 1, 1], [], []>} : vector<28x14xf32>, vector<14x448xf32>, vector<28x448xf32> -> vector<28x448xf32>
    %c0_92 = arith.constant 0 : index
    %c0_93 = arith.constant 0 : index
    %c0_94 = arith.constant 0 : index
    %92 = vector.load %arg16[%c0_92, %c0_93, %c0_94] : memref<3x448x448xf32, #tpu.memory_space<vmem>>, vector<1x448x448xf32>
    %93 = vector.shape_cast %92 : vector<1x448x448xf32> to vector<448x448xf32>
    %cst_95 = arith.constant dense<0.000000e+00> : vector<28x448xf32>
    %94 = tpu.matmul %91, %93, %cst_95 {dimension_numbers = #tpu.dot_dimension_numbers<[1], [0], [0], [1], [0, 0, 1, 1], [], []>} : vector<28x448xf32>, vector<448x448xf32>, vector<28x448xf32> -> vector<28x448xf32>
    %c1_96 = arith.constant 1 : index
    %c0_97 = arith.constant 0 : index
    %c0_98 = arith.constant 0 : index
    %95 = vector.load %arg15[%c1_96, %c0_97, %c0_98] : memref<3x28x14xf32, #tpu.memory_space<vmem>>, vector<1x28x14xf32>
    %96 = vector.shape_cast %95 : vector<1x28x14xf32> to vector<28x14xf32>
    %cst_99 = arith.constant dense<0.000000e+00> : vector<28x448xf32>
    %97 = tpu.matmul %96, %88, %cst_99 {dimension_numbers = #tpu.dot_dimension_numbers<[1], [0], [0], [1], [0, 0, 1, 1], [], []>} : vector<28x14xf32>, vector<14x448xf32>, vector<28x448xf32> -> vector<28x448xf32>
    %c1_100 = arith.constant 1 : index
    %c0_101 = arith.constant 0 : index
    %c0_102 = arith.constant 0 : index
    %98 = vector.load %arg16[%c1_100, %c0_101, %c0_102] : memref<3x448x448xf32, #tpu.memory_space<vmem>>, vector<1x448x448xf32>
    %99 = vector.shape_cast %98 : vector<1x448x448xf32> to vector<448x448xf32>
    %cst_103 = arith.constant dense<0.000000e+00> : vector<28x448xf32>
    %100 = tpu.matmul %97, %99, %cst_103 {dimension_numbers = #tpu.dot_dimension_numbers<[1], [0], [0], [1], [0, 0, 1, 1], [], []>} : vector<28x448xf32>, vector<448x448xf32>, vector<28x448xf32> -> vector<28x448xf32>
    %101 = arith.addf %94, %100 : vector<28x448xf32>
    %c2_104 = arith.constant 2 : index
    %c0_105 = arith.constant 0 : index
    %c0_106 = arith.constant 0 : index
    %102 = vector.load %arg15[%c2_104, %c0_105, %c0_106] : memref<3x28x14xf32, #tpu.memory_space<vmem>>, vector<1x28x14xf32>
    %103 = vector.shape_cast %102 : vector<1x28x14xf32> to vector<28x14xf32>
    %cst_107 = arith.constant dense<0.000000e+00> : vector<28x448xf32>
    %104 = tpu.matmul %103, %88, %cst_107 {dimension_numbers = #tpu.dot_dimension_numbers<[1], [0], [0], [1], [0, 0, 1, 1], [], []>} : vector<28x14xf32>, vector<14x448xf32>, vector<28x448xf32> -> vector<28x448xf32>
    %c2_108 = arith.constant 2 : index
    %c0_109 = arith.constant 0 : index
    %c0_110 = arith.constant 0 : index
    %105 = vector.load %arg16[%c2_108, %c0_109, %c0_110] : memref<3x448x448xf32, #tpu.memory_space<vmem>>, vector<1x448x448xf32>
    %106 = vector.shape_cast %105 : vector<1x448x448xf32> to vector<448x448xf32>
    %cst_111 = arith.constant dense<0.000000e+00> : vector<28x448xf32>
    %107 = tpu.matmul %104, %106, %cst_111 {dimension_numbers = #tpu.dot_dimension_numbers<[1], [0], [0], [1], [0, 0, 1, 1], [], []>} : vector<28x448xf32>, vector<448x448xf32>, vector<28x448xf32> -> vector<28x448xf32>
    %108 = arith.addf %101, %107 : vector<28x448xf32>
    %c0_112 = arith.constant 0 : index
    %c0_113 = arith.constant 0 : index
    %109 = vector.load %arg17[%c0_112, %c0_113] : memref<1x448xf32, #tpu.memory_space<vmem>>, vector<1x448xf32>
    %110 = vector.broadcast %109 : vector<1x448xf32> to vector<28x448xf32>
    %111 = arith.addf %108, %110 : vector<28x448xf32>
    %cst_114 = arith.constant 0.000000e+00 : f32
    %112 = vector.broadcast %cst_114 : f32 to vector<28x448xf32>
    %113 = arith.maximumf %111, %112 : vector<28x448xf32>
    %c0_115 = arith.constant 0 : index
    %c0_116 = arith.constant 0 : index
    %c0_117 = arith.constant 0 : index
    %114 = vector.load %arg18[%c0_115, %c0_116, %c0_117] : memref<3x56x28xf32, #tpu.memory_space<vmem>>, vector<1x56x28xf32>
    %115 = vector.shape_cast %114 : vector<1x56x28xf32> to vector<56x28xf32>
    %cst_118 = arith.constant dense<0.000000e+00> : vector<56x448xf32>
    %116 = tpu.matmul %115, %113, %cst_118 {dimension_numbers = #tpu.dot_dimension_numbers<[1], [0], [0], [1], [0, 0, 1, 1], [], []>} : vector<56x28xf32>, vector<28x448xf32>, vector<56x448xf32> -> vector<56x448xf32>
    %c0_119 = arith.constant 0 : index
    %c0_120 = arith.constant 0 : index
    %c0_121 = arith.constant 0 : index
    %117 = vector.load %arg19[%c0_119, %c0_120, %c0_121] : memref<3x448x28xf32, #tpu.memory_space<vmem>>, vector<1x448x28xf32>
    %118 = vector.shape_cast %117 : vector<1x448x28xf32> to vector<448x28xf32>
    %cst_122 = arith.constant dense<0.000000e+00> : vector<56x28xf32>
    %119 = tpu.matmul %116, %118, %cst_122 {dimension_numbers = #tpu.dot_dimension_numbers<[1], [0], [0], [1], [0, 0, 1, 1], [], []>} : vector<56x448xf32>, vector<448x28xf32>, vector<56x28xf32> -> vector<56x28xf32>
    %c1_123 = arith.constant 1 : index
    %c0_124 = arith.constant 0 : index
    %c0_125 = arith.constant 0 : index
    %120 = vector.load %arg18[%c1_123, %c0_124, %c0_125] : memref<3x56x28xf32, #tpu.memory_space<vmem>>, vector<1x56x28xf32>
    %121 = vector.shape_cast %120 : vector<1x56x28xf32> to vector<56x28xf32>
    %cst_126 = arith.constant dense<0.000000e+00> : vector<56x448xf32>
    %122 = tpu.matmul %121, %113, %cst_126 {dimension_numbers = #tpu.dot_dimension_numbers<[1], [0], [0], [1], [0, 0, 1, 1], [], []>} : vector<56x28xf32>, vector<28x448xf32>, vector<56x448xf32> -> vector<56x448xf32>
    %c1_127 = arith.constant 1 : index
    %c0_128 = arith.constant 0 : index
    %c0_129 = arith.constant 0 : index
    %123 = vector.load %arg19[%c1_127, %c0_128, %c0_129] : memref<3x448x28xf32, #tpu.memory_space<vmem>>, vector<1x448x28xf32>
    %124 = vector.shape_cast %123 : vector<1x448x28xf32> to vector<448x28xf32>
    %cst_130 = arith.constant dense<0.000000e+00> : vector<56x28xf32>
    %125 = tpu.matmul %122, %124, %cst_130 {dimension_numbers = #tpu.dot_dimension_numbers<[1], [0], [0], [1], [0, 0, 1, 1], [], []>} : vector<56x448xf32>, vector<448x28xf32>, vector<56x28xf32> -> vector<56x28xf32>
    %126 = arith.addf %119, %125 : vector<56x28xf32>
    %c2_131 = arith.constant 2 : index
    %c0_132 = arith.constant 0 : index
    %c0_133 = arith.constant 0 : index
    %127 = vector.load %arg18[%c2_131, %c0_132, %c0_133] : memref<3x56x28xf32, #tpu.memory_space<vmem>>, vector<1x56x28xf32>
    %128 = vector.shape_cast %127 : vector<1x56x28xf32> to vector<56x28xf32>
    %cst_134 = arith.constant dense<0.000000e+00> : vector<56x448xf32>
    %129 = tpu.matmul %128, %113, %cst_134 {dimension_numbers = #tpu.dot_dimension_numbers<[1], [0], [0], [1], [0, 0, 1, 1], [], []>} : vector<56x28xf32>, vector<28x448xf32>, vector<56x448xf32> -> vector<56x448xf32>
    %c2_135 = arith.constant 2 : index
    %c0_136 = arith.constant 0 : index
    %c0_137 = arith.constant 0 : index
    %130 = vector.load %arg19[%c2_135, %c0_136, %c0_137] : memref<3x448x28xf32, #tpu.memory_space<vmem>>, vector<1x448x28xf32>
    %131 = vector.shape_cast %130 : vector<1x448x28xf32> to vector<448x28xf32>
    %cst_138 = arith.constant dense<0.000000e+00> : vector<56x28xf32>
    %132 = tpu.matmul %129, %131, %cst_138 {dimension_numbers = #tpu.dot_dimension_numbers<[1], [0], [0], [1], [0, 0, 1, 1], [], []>} : vector<56x448xf32>, vector<448x28xf32>, vector<56x28xf32> -> vector<56x28xf32>
    %133 = arith.addf %126, %132 : vector<56x28xf32>
    %c0_139 = arith.constant 0 : index
    %c0_140 = arith.constant 0 : index
    %134 = vector.load %arg20[%c0_139, %c0_140] : memref<1x28xf32, #tpu.memory_space<vmem>>, vector<1x28xf32>
    %135 = vector.broadcast %134 : vector<1x28xf32> to vector<56x28xf32>
    %136 = arith.addf %133, %135 : vector<56x28xf32>
    %c0_141 = arith.constant 0 : index
    %c0_142 = arith.constant 0 : index
    %137 = vector.load %arg23[%c0_141, %c0_142] : memref<56x28xf32, #tpu.memory_space<vmem>>, vector<56x28xf32>
    tpu.vector_store %arg23[%c0_141, %c0_142], %136 {strides = array<i32>} : memref<56x28xf32, #tpu.memory_space<vmem>>, vector<56x28xf32>,
    return
  }
}

</mosaic_0001>

<llo_original>
// kernel: latent_vae_forward.1
$region0: #{latent_vae_forward.1}
  #allocation0 [shape = 'u32[]', space=smem, size = 0x4, offset = 0x4, fixed_abs, tag = 'smem constant byte address 0x4 - core index']
  #allocation1 [shape = 'u32[144,128]{1,0:T(1,128)}', space=vmem, size = 0x12000, scoped, tag = 'internal scratch']
  %s0 = inlined_call_operand.vmem [shape: f32[2,32], index: 0, kind: input, shape index: {}]
  %s1 = inlined_call_operand.vmem [shape: f32[2,20], index: 1, kind: input, shape index: {}]
  %s2 = inlined_call_operand.vmem [shape: f32[32,40], index: 2, kind: input, shape index: {}]
  %s3 = inlined_call_operand.vmem [shape: f32[1,40], index: 3, kind: input, shape index: {}]
  %s4 = inlined_call_operand.vmem [shape: f32[20,128], index: 4, kind: input, shape index: {}]
  %s5 = inlined_call_operand.vmem [shape: f32[1,128], index: 5, kind: input, shape index: {}]
  %s6 = inlined_call_operand.vmem [shape: f32[2,4,2], index: 6, kind: input, shape index: {}]
  %s7 = inlined_call_operand.vmem [shape: f32[2,128,256], index: 7, kind: input, shape index: {}]
  %s8 = inlined_call_operand.vmem [shape: f32[1,256], index: 8, kind: input, shape index: {}]
  %s9 = inlined_call_operand.vmem [shape: f32[3,8,4], index: 9, kind: input, shape index: {}]
  %s10 = inlined_call_operand.vmem [shape: f32[3,256,512], index: 10, kind: input, shape index: {}]
  %s11 = inlined_call_operand.vmem [shape: f32[1,512], index: 11, kind: input, shape index: {}]
  %s12 = inlined_call_operand.vmem [shape: f32[3,14,8], index: 12, kind: input, shape index: {}]
  %s13 = inlined_call_operand.vmem [shape: f32[3,512,448], index: 13, kind: input, shape index: {}]
  %s14 = inlined_call_operand.vmem [shape: f32[1,448], index: 14, kind: input, shape index: {}]
  %s15 = inlined_call_operand.vmem [shape: f32[3,28,14], index: 15, kind: input, shape index: {}]
  %s16 = inlined_call_operand.vmem [shape: f32[3,448,448], index: 16, kind: input, shape index: {}]
  %s17 = inlined_call_operand.vmem [shape: f32[1,448], index: 17, kind: input, shape index: {}]
  %s18 = inlined_call_operand.vmem [shape: f32[3,56,28], index: 18, kind: input, shape index: {}]
  %s19 = inlined_call_operand.vmem [shape: f32[3,448,28], index: 19, kind: input, shape index: {}]
  %s20 = inlined_call_operand.vmem [shape: f32[1,28], index: 20, kind: input, shape index: {}]
  %s21 = inlined_call_operand.hbm [shape: f32[2,20], index: 21, kind: output, shape index: {0}]
  %s22 = inlined_call_operand.hbm [shape: f32[2,20], index: 22, kind: output, shape index: {1}]
  %s23 = inlined_call_operand.hbm [shape: f32[56,28], index: 23, kind: output, shape index: {2}]
  %24 = xla_tuple %s21, %s22, %s23
  %s25 = sld [smem:[#allocation0]]
  $region110: #{latent_vae_forward.1} parent=0
    _
  %s27 = ssub.s32 1, %s25
  %s28 = scalar_select 0, %s27, %s25
  $region1: #{latent_vae_forward.1} parent=0
    #allocation2 [shape = 'u8[1024]{0}', space=vmem, size = 0x400, scoped, tag = 'output window, operand 0, single buffered']
    #allocation3 [shape = 's32[1]{0}', space=sflag, size = 0x4, scoped, tag = 'scoped memory for latent_vae_forward.1']
    #allocation4 [shape = 'u8[1024]{0}', space=vmem, size = 0x400, scoped, tag = 'output window, operand 1, single buffered']
    #allocation5 [shape = 's32[1]{0}', space=sflag, size = 0x4, scoped, tag = 'scoped memory for latent_vae_forward.1']
    #allocation6 [shape = 'u8[28672]{0}', space=vmem, size = 0x7000, scoped, tag = 'output window, operand 2, single buffered']
    %29 = vsyncpa [#allocation3], 0
    %30 = vsyncpa [#allocation5], 0
    // Predicated region
    $region2: #{latent_vae_forward.1} parent=1 // pred_check
      _
    $region3: #{latent_vae_forward.1} parent=1 // pred_check_branch
      %32 = sbr.rel (0) target = $region5
    $region4: #{latent_vae_forward.1} parent=1 // pred_region
      _
    $region5: #{latent_vae_forward.1} parent=1 // pred_fallthru
      _
    // Predicated region
    $region6: #{latent_vae_forward.1} parent=1 // pred_check
      _
    $region7: #{latent_vae_forward.1} parent=1 // pred_check_branch
      %34 = sbr.rel (0) target = $region9
    $region8: #{latent_vae_forward.1} parent=1 // pred_region
      _
    $region9: #{latent_vae_forward.1} parent=1 // pred_fallthru
      _
    // Predicated region
    $region10: #{latent_vae_forward.1} parent=1 // pred_check
      _
    $region11: #{latent_vae_forward.1} parent=1 // pred_check_branch
      %36 = sbr.rel (0) target = $region13
    $region12: #{latent_vae_forward.1} parent=1 // pred_region
      _
    $region13: #{latent_vae_forward.1} parent=1 // pred_fallthru
      _
    // Predicated region
    $region14: #{latent_vae_forward.1} parent=1 // pred_check
      _
    $region15: #{latent_vae_forward.1} parent=1 // pred_check_branch
      %38 = sbr.rel (0) target = $region17
    $region16: #{latent_vae_forward.1} parent=1 // pred_region
      _
    $region17: #{latent_vae_forward.1} parent=1 // pred_fallthru
      _
    // Predicated region
    $region18: #{latent_vae_forward.1} parent=1 // pred_check
      _
    $region19: #{latent_vae_forward.1} parent=1 // pred_check_branch
      %40 = sbr.rel (0) target = $region21
    $region20: #{latent_vae_forward.1} parent=1 // pred_region
      _
    $region21: #{latent_vae_forward.1} parent=1 // pred_fallthru
      _
    // Predicated region
    $region22: #{latent_vae_forward.1} parent=1 // pred_check
      _
    $region23: #{latent_vae_forward.1} parent=1 // pred_check_branch
      %42 = sbr.rel (0) target = $region25
    $region24: #{latent_vae_forward.1} parent=1 // pred_region
      _
    $region25: #{latent_vae_forward.1} parent=1 // pred_fallthru
      _
    // Predicated region
    $region26: #{latent_vae_forward.1} parent=1 // pred_check
      _
    $region27: #{latent_vae_forward.1} parent=1 // pred_check_branch
      %44 = sbr.rel (0) target = $region29
    $region28: #{latent_vae_forward.1} parent=1 // pred_region
      _
    $region29: #{latent_vae_forward.1} parent=1 // pred_fallthru
      _
    // Predicated region
    $region30: #{latent_vae_forward.1} parent=1 // pred_check
      _
    $region31: #{latent_vae_forward.1} parent=1 // pred_check_branch
      %46 = sbr.rel (0) target = $region33
    $region32: #{latent_vae_forward.1} parent=1 // pred_region
      _
    $region33: #{latent_vae_forward.1} parent=1 // pred_fallthru
      _
    // Predicated region
    $region34: #{latent_vae_forward.1} parent=1 // pred_check
      _
    $region35: #{latent_vae_forward.1} parent=1 // pred_check_branch
      %48 = sbr.rel (0) target = $region37
    $region36: #{latent_vae_forward.1} parent=1 // pred_region
      _
    $region37: #{latent_vae_forward.1} parent=1 // pred_fallthru
      _
    // Predicated region
    $region38: #{latent_vae_forward.1} parent=1 // pred_check
      _
    $region39: #{latent_vae_forward.1} parent=1 // pred_check_branch
      %50 = sbr.rel (0) target = $region41
    $region40: #{latent_vae_forward.1} parent=1 // pred_region
      _
    $region41: #{latent_vae_forward.1} parent=1 // pred_fallthru
      _
    // Predicated region
    $region42: #{latent_vae_forward.1} parent=1 // pred_check
      _
    $region43: #{latent_vae_forward.1} parent=1 // pred_check_branch
      %52 = sbr.rel (0) target = $region45
    $region44: #{latent_vae_forward.1} parent=1 // pred_region
      _
    $region45: #{latent_vae_forward.1} parent=1 // pred_fallthru
      _
    // Predicated region
    $region46: #{latent_vae_forward.1} parent=1 // pred_check
      _
    $region47: #{latent_vae_forward.1} parent=1 // pred_check_branch
      %54 = sbr.rel (0) target = $region49
    $region48: #{latent_vae_forward.1} parent=1 // pred_region
      _
    $region49: #{latent_vae_forward.1} parent=1 // pred_fallthru
      _
    // Predicated region
    $region50: #{latent_vae_forward.1} parent=1 // pred_check
      _
    $region51: #{latent_vae_forward.1} parent=1 // pred_check_branch
      %56 = sbr.rel (0) target = $region53
    $region52: #{latent_vae_forward.1} parent=1 // pred_region
      _
    $region53: #{latent_vae_forward.1} parent=1 // pred_fallthru
      _
    // Predicated region
    $region54: #{latent_vae_forward.1} parent=1 // pred_check
      _
    $region55: #{latent_vae_forward.1} parent=1 // pred_check_branch
      %58 = sbr.rel (0) target = $region57
    $region56: #{latent_vae_forward.1} parent=1 // pred_region
      _
    $region57: #{latent_vae_forward.1} parent=1 // pred_fallthru
      _
    // Predicated region
    $region58: #{latent_vae_forward.1} parent=1 // pred_check
      _
    $region59: #{latent_vae_forward.1} parent=1 // pred_check_branch
      %60 = sbr.rel (0) target = $region61
    $region60: #{latent_vae_forward.1} parent=1 // pred_region
      _
    $region61: #{latent_vae_forward.1} parent=1 // pred_fallthru
      _
    // Predicated region
    $region62: #{latent_vae_forward.1} parent=1 // pred_check
      _
    $region63: #{latent_vae_forward.1} parent=1 // pred_check_branch
      %62 = sbr.rel (0) target = $region65
    $region64: #{latent_vae_forward.1} parent=1 // pred_region
      _
    $region65: #{latent_vae_forward.1} parent=1 // pred_fallthru
      _
    // Predicated region
    $region66: #{latent_vae_forward.1} parent=1 // pred_check
      _
    $region67: #{latent_vae_forward.1} parent=1 // pred_check_branch
      %64 = sbr.rel (0) target = $region69
    $region68: #{latent_vae_forward.1} parent=1 // pred_region
      _
    $region69: #{latent_vae_forward.1} parent=1 // pred_fallthru
      _
    // Predicated region
    $region70: #{latent_vae_forward.1} parent=1 // pred_check
      _
    $region71: #{latent_vae_forward.1} parent=1 // pred_check_branch
      %66 = sbr.rel (0) target = $region73
    $region72: #{latent_vae_forward.1} parent=1 // pred_region
      _
    $region73: #{latent_vae_forward.1} parent=1 // pred_fallthru
      _
    // Predicated region
    $region74: #{latent_vae_forward.1} parent=1 // pred_check
      _
    $region75: #{latent_vae_forward.1} parent=1 // pred_check_branch
      %68 = sbr.rel (0) target = $region77
    $region76: #{latent_vae_forward.1} parent=1 // pred_region
      _
    $region77: #{latent_vae_forward.1} parent=1 // pred_fallthru
      _
    // Predicated region
    $region78: #{latent_vae_forward.1} parent=1 // pred_check
      _
    $region79: #{latent_vae_forward.1} parent=1 // pred_check_branch
      %70 = sbr.rel (0) target = $region81
    $region80: #{latent_vae_forward.1} parent=1 // pred_region
      _
    $region81: #{latent_vae_forward.1} parent=1 // pred_fallthru
      _
    // Predicated region
    $region82: #{latent_vae_forward.1} parent=1 // pred_check
      _
    $region83: #{latent_vae_forward.1} parent=1 // pred_check_branch
      %72 = sbr.rel (0) target = $region85
    $region84: #{latent_vae_forward.1} parent=1 // pred_region
      _
    $region85: #{latent_vae_forward.1} parent=1 // pred_fallthru
      _
    %v73 = vld [vmem:[%s0] sm:$0x3]
    %v74 = vld [vmem:[%s2] sm:$0xff]
    %v75 = vld [vmem:[%s2 + $0x8] sm:$0xff]
    %v76 = vld [vmem:[%s2 + $0x10] sm:$0xff]
    %v77 = vld [vmem:[%s2 + $0x18] sm:$0xff]
    %v78 = vld [vmem:[%s3] sm:$0x1]
    %v80 = vlaneseq
    %v81 = vshrl.u32 %v80, 7
    %v82 = vsub.s32 0, %v81
    %v83 = vrot.slane %v78, %v82
    %vm85 = vcmask 261120
    %v87 = vsel %vm85, %v73, 0
    %89 = vmatprep.subr.mxu0 0.0
    %90 = vmatpush1.msra.mxu0 %v74
    %91 = vmatprep.subr.mxu0 0.0
    %92 = vmatpush1.msra.mxu0 %v75
    %93 = vmatprep.subr.mxu0 0.0
    %94 = vmatpush1.msra.mxu0 %v76
    %95 = vmatprep.subr.mxu0 0.0
    %96 = vmatpush1.msra.mxu0 %v77
    %97 = vmatprep.subr.mxu0 0.0
    %98 = vmatpush1.msra.mxu0 0.0
    %99 = vmatprep.subr.mxu0 0.0
    %100 = vmatpush1.msra.mxu0 0.0
    %101 = vmatprep.subr.mxu0 0.0
    %102 = vmatpush1.msra.mxu0 0.0
    %103 = vmatprep.subr.mxu0 0.0
    %104 = vmatpush1.msra.mxu0 0.0
    %105 = vmatprep.subr.mxu0 0.0
    %106 = vmatpush1.msra.mxu0 0.0
    %107 = vmatprep.subr.mxu0 0.0
    %108 = vmatpush1.msra.mxu0 0.0
    %109 = vmatprep.subr.mxu0 0.0
    %110 = vmatpush1.msra.mxu0 0.0
    %111 = vmatprep.subr.mxu0 0.0
    %112 = vmatpush1.msra.mxu0 0.0
    %113 = vmatprep.subr.mxu0 0.0
    %114 = vmatpush1.msra.mxu0 0.0
    %115 = vmatprep.subr.mxu0 0.0
    %116 = vmatpush1.msra.mxu0 0.0
    %117 = vmatprep.subr.mxu0 0.0
    %118 = vmatpush1.msra.mxu0 0.0
    %119 = vmatprep.subr.mxu0 0.0
    %120 = vmatpush1.msra.mxu0 0.0
    %121 = vmatprep.subr.mxu0 0.0
    %122 = vmatpush1.msra.mxu0 0.0
    %123 = vmatprep.subr.mxu0 0.0
    %124 = vmatpush1.msra.mxu0 0.0
    %125 = vmatprep.subr.mxu0 0.0
    %126 = vmatpush1.msra.mxu0 0.0
    %127 = vmatprep.subr.mxu0 0.0
    %128 = vmatpush1.msra.mxu0 0.0
    %129 = vmatprep.subr.mxu0 0.0
    %130 = vmatpush1.msra.mxu0 0.0
    %131 = vmatprep.subr.mxu0 0.0
    %132 = vmatpush1.msra.mxu0 0.0
    %133 = vmatprep.subr.mxu0 0.0
    %134 = vmatpush1.msra.mxu0 0.0
    %135 = vmatprep.subr.mxu0 0.0
    %136 = vmatpush1.msra.mxu0 0.0
    %137 = vmatprep.subr.mxu0 0.0
    %138 = vmatpush1.msra.mxu0 0.0
    %139 = vmatprep.subr.mxu0 0.0
    %140 = vmatpush1.msra.mxu0 0.0
    %141 = vmatprep.subr.mxu0 0.0
    %142 = vmatpush1.msra.mxu0 0.0
    %143 = vmatprep.subr.mxu0 0.0
    %144 = vmatpush1.msra.mxu0 0.0
    %145 = vmatprep.subr.mxu0 0.0
    %146 = vmatpush1.msra.mxu0 0.0
    %147 = vmatprep.subr.mxu0 0.0
    %148 = vmatpush1.msra.mxu0 0.0
    %149 = vmatprep.subr.mxu0 0.0
    %150 = vmatpush1.msra.mxu0 0.0
    %151 = vmatprep.subr.mxu0 0.0
    %152 = vmatpush1.msra.mxu0 0.0
    %153 = vmatprep.mubr.f32.mxu0 0.0
    %154 = vmatmul.mubr.f32.gmra.mrb[0].mxu0 %v87
    %v155 = vpop.f32.mrb[0].mxu0
    %v156 = vadd.f32 %v83, %v155
    %v157 = vpop.f32.mrb[0].mxu0
    %158 = vdwg.mxu0
    %vm159 = vcmask 156672
    %160 = vst.msk [vmem:[#allocation2] sm:$0x3] %vm159, %v156
    %162 = vrot.lane.b32.xlu0 %v156, 108
    %v163 = vpop.permute.xlu0 %162
    %165 = vst.msk [vmem:[#allocation4] sm:$0x3] %vm159, %v163
    %v166 = vmul.f32 %v156, 0.5
    %v167 = vmul.f32 %v166, 1.442695
    %v168 = vpow.pop %v167
    %v169 = vld [vmem:[%s1] sm:$0x3]
    %171 = vrot.lane.b32.xlu0 %v169, 20
    %v172 = vpop.permute.xlu0 %171
    %v174 = vmul.f32 %v168, %v172
    %176 = vrot.lane.b32.xlu0 %v174, 108
    %v177 = vpop.permute.xlu0 %176
    %v179 = vadd.f32 %v156, %v177
    %v180 = vld [vmem:[%s4] sm:$0xff]
    %v181 = vld [vmem:[%s4 + $0x8] sm:$0xff]
    %v182 = vld [vmem:[%s4 + $0x10] sm:$0xf]
    %v183 = vld [vmem:[%s5] sm:$0x1]
    %v185 = vlaneseq
    %v186 = vshrl.u32 %v185, 7
    %v187 = vsub.s32 0, %v186
    %v188 = vrot.slane %v183, %v187
    %vm190 = vcmask 162816
    %v192 = vsel %vm190, %v179, 0
    %vm194 = vcmask 1043456
    %v196 = vsel %vm194, %v182, 0
    %198 = vmatprep.subr.mxu0 0.0
    %199 = vmatpush1.msra.mxu0 %v180
    %200 = vmatprep.subr.mxu0 0.0
    %201 = vmatpush1.msra.mxu0 %v181
    %202 = vmatprep.subr.mxu0 0.0
    %203 = vmatpush1.msra.mxu0 %v196
    %204 = vmatprep.subr.mxu0 0.0
    %205 = vmatpush1.msra.mxu0 0.0
    %206 = vmatprep.subr.mxu0 0.0
    %207 = vmatpush1.msra.mxu0 0.0
    %208 = vmatprep.subr.mxu0 0.0
    %209 = vmatpush1.msra.mxu0 0.0
    %210 = vmatprep.subr.mxu0 0.0
    %211 = vmatpush1.msra.mxu0 0.0
    %212 = vmatprep.subr.mxu0 0.0
    %213 = vmatpush1.msra.mxu0 0.0
    %214 = vmatprep.subr.mxu0 0.0
    %215 = vmatpush1.msra.mxu0 0.0
    %216 = vmatprep.subr.mxu0 0.0
    %217 = vmatpush1.msra.mxu0 0.0
    %218 = vmatprep.subr.mxu0 0.0
    %219 = vmatpush1.msra.mxu0 0.0
    %220 = vmatprep.subr.mxu0 0.0
    %221 = vmatpush1.msra.mxu0 0.0
    %222 = vmatprep.subr.mxu0 0.0
    %223 = vmatpush1.msra.mxu0 0.0
    %224 = vmatprep.subr.mxu0 0.0
    %225 = vmatpush1.msra.mxu0 0.0
    %226 = vmatprep.subr.mxu0 0.0
    %227 = vmatpush1.msra.mxu0 0.0
    %228 = vmatprep.subr.mxu0 0.0
    %229 = vmatpush1.msra.mxu0 0.0
    %230 = vmatprep.subr.mxu0 0.0
    %231 = vmatpush1.msra.mxu0 0.0
    %232 = vmatprep.subr.mxu0 0.0
    %233 = vmatpush1.msra.mxu0 0.0
    %234 = vmatprep.subr.mxu0 0.0
    %235 = vmatpush1.msra.mxu0 0.0
    %236 = vmatprep.subr.mxu0 0.0
    %237 = vmatpush1.msra.mxu0 0.0
    %238 = vmatprep.subr.mxu0 0.0
    %239 = vmatpush1.msra.mxu0 0.0
    %240 = vmatprep.subr.mxu0 0.0
    %241 = vmatpush1.msra.mxu0 0.0
    %242 = vmatprep.subr.mxu0 0.0
    %243 = vmatpush1.msra.mxu0 0.0
    %244 = vmatprep.subr.mxu0 0.0
    %245 = vmatpush1.msra.mxu0 0.0
    %246 = vmatprep.subr.mxu0 0.0
    %247 = vmatpush1.msra.mxu0 0.0
    %248 = vmatprep.subr.mxu0 0.0
    %249 = vmatpush1.msra.mxu0 0.0
    %250 = vmatprep.subr.mxu0 0.0
    %251 = vmatpush1.msra.mxu0 0.0
    %252 = vmatprep.subr.mxu0 0.0
    %253 = vmatpush1.msra.mxu0 0.0
    %254 = vmatprep.subr.mxu0 0.0
    %255 = vmatpush1.msra.mxu0 0.0
    %256 = vmatprep.subr.mxu0 0.0
    %257 = vmatpush1.msra.mxu0 0.0
    %258 = vmatprep.subr.mxu0 0.0
    %259 = vmatpush1.msra.mxu0 0.0
    %260 = vmatprep.subr.mxu0 0.0
    %261 = vmatpush1.msra.mxu0 0.0
    %262 = vmatprep.mubr.f32.mxu0 0.0
    %263 = vmatmul.mubr.f32.gmra.mrb[0].mxu0 %v192
    %v264 = vpop.f32.mrb[0].mxu0
    %v265 = vadd.f32 %v188, %v264
    %v266 = vpop.f32.mrb[0].mxu0
    %267 = vdwg.mxu0
    %v268 = vld [vmem:[%s6] sm:$0xf]
    %vm269 = vcmask 15360
    %v271 = vsel %vm269, %v268, 0
    %vm273 = vcmask 1041408
    %v275 = vsel %vm273, %v265, 0
    %277 = vmatprep.subr.mxu0 0.0
    %278 = vmatpush1.msra.mxu0 %v275
    %279 = vmatprep.subr.mxu0 0.0
    %280 = vmatpush1.msra.mxu0 0.0
    %281 = vmatprep.subr.mxu0 0.0
    %282 = vmatpush1.msra.mxu0 0.0
    %283 = vmatprep.subr.mxu0 0.0
    %284 = vmatpush1.msra.mxu0 0.0
    %285 = vmatprep.subr.mxu0 0.0
    %286 = vmatpush1.msra.mxu0 0.0
    %287 = vmatprep.subr.mxu0 0.0
    %288 = vmatpush1.msra.mxu0 0.0
    %289 = vmatprep.subr.mxu0 0.0
    %290 = vmatpush1.msra.mxu0 0.0
    %291 = vmatprep.subr.mxu0 0.0
    %292 = vmatpush1.msra.mxu0 0.0
    %293 = vmatprep.subr.mxu0 0.0
    %294 = vmatpush1.msra.mxu0 0.0
    %295 = vmatprep.subr.mxu0 0.0
    %296 = vmatpush1.msra.mxu0 0.0
    %297 = vmatprep.subr.mxu0 0.0
    %298 = vmatpush1.msra.mxu0 0.0
    %299 = vmatprep.subr.mxu0 0.0
    %300 = vmatpush1.msra.mxu0 0.0
    %301 = vmatprep.subr.mxu0 0.0
    %302 = vmatpush1.msra.mxu0 0.0
    %303 = vmatprep.subr.mxu0 0.0
    %304 = vmatpush1.msra.mxu0 0.0
    %305 = vmatprep.subr.mxu0 0.0
    %306 = vmatpush1.msra.mxu0 0.0
    %307 = vmatprep.subr.mxu0 0.0
    %308 = vmatpush1.msra.mxu0 0.0
    %309 = vmatprep.subr.mxu0 0.0
    %310 = vmatpush1.msra.mxu0 0.0
    %311 = vmatprep.subr.mxu0 0.0
    %312 = vmatpush1.msra.mxu0 0.0
    %313 = vmatprep.subr.mxu0 0.0
    %314 = vmatpush1.msra.mxu0 0.0
    %315 = vmatprep.subr.mxu0 0.0
    %316 = vmatpush1.msra.mxu0 0.0
    %317 = vmatprep.subr.mxu0 0.0
    %318 = vmatpush1.msra.mxu0 0.0
    %319 = vmatprep.subr.mxu0 0.0
    %320 = vmatpush1.msra.mxu0 0.0
    %321 = vmatprep.subr.mxu0 0.0
    %322 = vmatpush1.msra.mxu0 0.0
    %323 = vmatprep.subr.mxu0 0.0
    %324 = vmatpush1.msra.mxu0 0.0
    %325 = vmatprep.subr.mxu0 0.0
    %326 = vmatpush1.msra.mxu0 0.0
    %327 = vmatprep.subr.mxu0 0.0
    %328 = vmatpush1.msra.mxu0 0.0
    %329 = vmatprep.subr.mxu0 0.0
    %330 = vmatpush1.msra.mxu0 0.0
    %331 = vmatprep.subr.mxu0 0.0
    %332 = vmatpush1.msra.mxu0 0.0
    %333 = vmatprep.subr.mxu0 0.0
    %334 = vmatpush1.msra.mxu0 0.0
    %335 = vmatprep.subr.mxu0 0.0
    %336 = vmatpush1.msra.mxu0 0.0
    %337 = vmatprep.subr.mxu0 0.0
    %338 = vmatpush1.msra.mxu0 0.0
    %339 = vmatprep.subr.mxu0 0.0
    %340 = vmatpush1.msra.mxu0 0.0
    %341 = vmatprep.mubr.f32.mxu0 0.0
    %342 = vmatmul.mubr.f32.gmra.mrb[0].mxu0 %v271
    %v343 = vpop.f32.mrb[0].mxu0
    %v344 = vadd.f32 0.0, %v343
    %v345 = vpop.f32.mrb[0].mxu0
    %346 = vdwg.mxu0
    %v347 = vld [vmem:[%s7] sm:$0xff]
    %v348 = vld [vmem:[%s7 + $0x8] sm:$0xff]
    %v349 = vld [vmem:[%s7 + $0x10] sm:$0xff]
    %v350 = vld [vmem:[%s7 + $0x18] sm:$0xff]
    %v351 = vld [vmem:[%s7 + $0x20] sm:$0xff]
    %v352 = vld [vmem:[%s7 + $0x28] sm:$0xff]
    %v353 = vld [vmem:[%s7 + $0x30] sm:$0xff]
    %v354 = vld [vmem:[%s7 + $0x38] sm:$0xff]
    %v355 = vld [vmem:[%s7 + $0x40] sm:$0xff]
    %v356 = vld [vmem:[%s7 + $0x48] sm:$0xff]
    %v357 = vld [vmem:[%s7 + $0x50] sm:$0xff]
    %v358 = vld [vmem:[%s7 + $0x58] sm:$0xff]
    %v359 = vld [vmem:[%s7 + $0x60] sm:$0xff]
    %v360 = vld [vmem:[%s7 + $0x68] sm:$0xff]
    %v361 = vld [vmem:[%s7 + $0x70] sm:$0xff]
    %v362 = vld [vmem:[%s7 + $0x78] sm:$0xff]
    %v363 = vld [vmem:[%s7 + $0x80] sm:$0xff]
    %v364 = vld [vmem:[%s7 + $0x88] sm:$0xff]
    %v365 = vld [vmem:[%s7 + $0x90] sm:$0xff]
    %v366 = vld [vmem:[%s7 + $0x98] sm:$0xff]
    %v367 = vld [vmem:[%s7 + $0xa0] sm:$0xff]
    %v368 = vld [vmem:[%s7 + $0xa8] sm:$0xff]
    %v369 = vld [vmem:[%s7 + $0xb0] sm:$0xff]
    %v370 = vld [vmem:[%s7 + $0xb8] sm:$0xff]
    %v371 = vld [vmem:[%s7 + $0xc0] sm:$0xff]
    %v372 = vld [vmem:[%s7 + $0xc8] sm:$0xff]
    %v373 = vld [vmem:[%s7 + $0xd0] sm:$0xff]
    %v374 = vld [vmem:[%s7 + $0xd8] sm:$0xff]
    %v375 = vld [vmem:[%s7 + $0xe0] sm:$0xff]
    %v376 = vld [vmem:[%s7 + $0xe8] sm:$0xff]
    %v377 = vld [vmem:[%s7 + $0xf0] sm:$0xff]
    %v378 = vld [vmem:[%s7 + $0xf8] sm:$0xff]
    %s379 = scalar_lea.vmem %s6, 4
    %v380 = vld [vmem:[%s379] sm:$0xf]
    %v382 = vsel %vm269, %v380, 0
    %384 = vmatprep.subr.mxu0 0.0
    %385 = vmatpush1.msra.mxu0 %v275
    %386 = vmatprep.subr.mxu0 0.0
    %387 = vmatpush1.msra.mxu0 0.0
    %388 = vmatprep.subr.mxu0 0.0
    %389 = vmatpush1.msra.mxu0 0.0
    %390 = vmatprep.subr.mxu0 0.0
    %391 = vmatpush1.msra.mxu0 0.0
    %392 = vmatprep.subr.mxu0 0.0
    %393 = vmatpush1.msra.mxu0 0.0
    %394 = vmatprep.subr.mxu0 0.0
    %395 = vmatpush1.msra.mxu0 0.0
    %396 = vmatprep.subr.mxu0 0.0
    %397 = vmatpush1.msra.mxu0 0.0
    %398 = vmatprep.subr.mxu0 0.0
    %399 = vmatpush1.msra.mxu0 0.0
    %400 = vmatprep.subr.mxu0 0.0
    %401 = vmatpush1.msra.mxu0 0.0
    %402 = vmatprep.subr.mxu0 0.0
    %403 = vmatpush1.msra.mxu0 0.0
    %404 = vmatprep.subr.mxu0 0.0
    %405 = vmatpush1.msra.mxu0 0.0
    %406 = vmatprep.subr.mxu0 0.0
    %407 = vmatpush1.msra.mxu0 0.0
    %408 = vmatprep.subr.mxu0 0.0
    %409 = vmatpush1.msra.mxu0 0.0
    %410 = vmatprep.subr.mxu0 0.0
    %411 = vmatpush1.msra.mxu0 0.0
    %412 = vmatprep.subr.mxu0 0.0
    %413 = vmatpush1.msra.mxu0 0.0
    %414 = vmatprep.subr.mxu0 0.0
    %415 = vmatpush1.msra.mxu0 0.0
    %416 = vmatprep.subr.mxu0 0.0
    %417 = vmatpush1.msra.mxu0 0.0
    %418 = vmatprep.subr.mxu0 0.0
    %419 = vmatpush1.msra.mxu0 0.0
    %420 = vmatprep.subr.mxu0 0.0
    %421 = vmatpush1.msra.mxu0 0.0
    %422 = vmatprep.subr.mxu0 0.0
    %423 = vmatpush1.msra.mxu0 0.0
    %424 = vmatprep.subr.mxu0 0.0
    %425 = vmatpush1.msra.mxu0 0.0
    %426 = vmatprep.subr.mxu0 0.0
    %427 = vmatpush1.msra.mxu0 0.0
    %428 = vmatprep.subr.mxu0 0.0
    %429 = vmatpush1.msra.mxu0 0.0
    %430 = vmatprep.subr.mxu0 0.0
    %431 = vmatpush1.msra.mxu0 0.0
    %432 = vmatprep.subr.mxu0 0.0
    %433 = vmatpush1.msra.mxu0 0.0
    %434 = vmatprep.subr.mxu0 0.0
    %435 = vmatpush1.msra.mxu0 0.0
    %436 = vmatprep.subr.mxu0 0.0
    %437 = vmatpush1.msra.mxu0 0.0
    %438 = vmatprep.subr.mxu0 0.0
    %439 = vmatpush1.msra.mxu0 0.0
    %440 = vmatprep.subr.mxu0 0.0
    %441 = vmatpush1.msra.mxu0 0.0
    %442 = vmatprep.subr.mxu0 0.0
    %443 = vmatpush1.msra.mxu0 0.0
    %444 = vmatprep.subr.mxu0 0.0
    %445 = vmatpush1.msra.mxu0 0.0
    %446 = vmatprep.subr.mxu0 0.0
    %447 = vmatpush1.msra.mxu0 0.0
    %448 = vmatprep.mubr.f32.mxu0 0.0
    %449 = vmatmul.mubr.f32.gmra.mrb[0].mxu0 %v382
    %v450 = vpop.f32.mrb[0].mxu0
    %v451 = vadd.f32 0.0, %v450
    %v452 = vpop.f32.mrb[0].mxu0
    %453 = vdwg.mxu0
    %s454 = scalar_lea.vmem %s7, 256
    %v455 = vld [vmem:[%s454] sm:$0xff]
    %v456 = vld [vmem:[%s454 + $0x8] sm:$0xff]
    %v457 = vld [vmem:[%s454 + $0x10] sm:$0xff]
    %v458 = vld [vmem:[%s454 + $0x18] sm:$0xff]
    %v459 = vld [vmem:[%s454 + $0x20] sm:$0xff]
    %v460 = vld [vmem:[%s454 + $0x28] sm:$0xff]
    %v461 = vld [vmem:[%s454 + $0x30] sm:$0xff]
    %v462 = vld [vmem:[%s454 + $0x38] sm:$0xff]
    %v463 = vld [vmem:[%s454 + $0x40] sm:$0xff]
    %v464 = vld [vmem:[%s454 + $0x48] sm:$0xff]
    %v465 = vld [vmem:[%s454 + $0x50] sm:$0xff]
    %v466 = vld [vmem:[%s454 + $0x58] sm:$0xff]
    %v467 = vld [vmem:[%s454 + $0x60] sm:$0xff]
    %v468 = vld [vmem:[%s454 + $0x68] sm:$0xff]
    %v469 = vld [vmem:[%s454 + $0x70] sm:$0xff]
    %v470 = vld [vmem:[%s454 + $0x78] sm:$0xff]
    %v471 = vld [vmem:[%s454 + $0x80] sm:$0xff]
    %v472 = vld [vmem:[%s454 + $0x88] sm:$0xff]
    %v473 = vld [vmem:[%s454 + $0x90] sm:$0xff]
    %v474 = vld [vmem:[%s454 + $0x98] sm:$0xff]
    %v475 = vld [vmem:[%s454 + $0xa0] sm:$0xff]
    %v476 = vld [vmem:[%s454 + $0xa8] sm:$0xff]
    %v477 = vld [vmem:[%s454 + $0xb0] sm:$0xff]
    %v478 = vld [vmem:[%s454 + $0xb8] sm:$0xff]
    %v479 = vld [vmem:[%s454 + $0xc0] sm:$0xff]
    %v480 = vld [vmem:[%s454 + $0xc8] sm:$0xff]
    %v481 = vld [vmem:[%s454 + $0xd0] sm:$0xff]
    %v482 = vld [vmem:[%s454 + $0xd8] sm:$0xff]
    %v483 = vld [vmem:[%s454 + $0xe0] sm:$0xff]
    %v484 = vld [vmem:[%s454 + $0xe8] sm:$0xff]
    %v485 = vld [vmem:[%s454 + $0xf0] sm:$0xff]
    %v486 = vld [vmem:[%s454 + $0xf8] sm:$0xff]
    %487 = vmatprep.subr.mxu0 %v456
    %488 = vmatpush1.msra.mxu0 %v455
    %489 = vmatprep.subr.mxu0 %v458
    %490 = vmatpush1.msra.mxu0 %v457
    %491 = vmatprep.subr.mxu0 %v460
    %492 = vmatpush1.msra.mxu0 %v459
    %493 = vmatprep.subr.mxu0 %v462
    %494 = vmatpush1.msra.mxu0 %v461
    %495 = vmatprep.subr.mxu0 %v464
    %496 = vmatpush1.msra.mxu0 %v463
    %497 = vmatprep.subr.mxu0 %v466
    %498 = vmatpush1.msra.mxu0 %v465
    %499 = vmatprep.subr.mxu0 %v468
    %500 = vmatpush1.msra.mxu0 %v467
    %501 = vmatprep.subr.mxu0 %v470
    %502 = vmatpush1.msra.mxu0 %v469
    %503 = vmatprep.subr.mxu0 %v472
    %504 = vmatpush1.msra.mxu0 %v471
    %505 = vmatprep.subr.mxu0 %v474
    %506 = vmatpush1.msra.mxu0 %v473
    %507 = vmatprep.subr.mxu0 %v476
    %508 = vmatpush1.msra.mxu0 %v475
    %509 = vmatprep.subr.mxu0 %v478
    %510 = vmatpush1.msra.mxu0 %v477
    %511 = vmatprep.subr.mxu0 %v480
    %512 = vmatpush1.msra.mxu0 %v479
    %513 = vmatprep.subr.mxu0 %v482
    %514 = vmatpush1.msra.mxu0 %v481
    %515 = vmatprep.subr.mxu0 %v484
    %516 = vmatpush1.msra.mxu0 %v483
    %517 = vmatprep.subr.mxu0 %v486
    %518 = vmatpush1.msra.mxu0 %v485
    %519 = vmatprep.subr.mxu0 0.0
    %520 = vmatpush1.msra.mxu0 0.0
    %521 = vmatprep.subr.mxu0 0.0
    %522 = vmatpush1.msra.mxu0 0.0
    %523 = vmatprep.subr.mxu0 0.0
    %524 = vmatpush1.msra.mxu0 0.0
    %525 = vmatprep.subr.mxu0 0.0
    %526 = vmatpush1.msra.mxu0 0.0
    %527 = vmatprep.subr.mxu0 0.0
    %528 = vmatpush1.msra.mxu0 0.0
    %529 = vmatprep.subr.mxu0 0.0
    %530 = vmatpush1.msra.mxu0 0.0
    %531 = vmatprep.subr.mxu0 0.0
    %532 = vmatpush1.msra.mxu0 0.0
    %533 = vmatprep.subr.mxu0 0.0
    %534 = vmatpush1.msra.mxu0 0.0
    %535 = vmatprep.subr.mxu0 0.0
    %536 = vmatpush1.msra.mxu0 0.0
    %537 = vmatprep.subr.mxu0 0.0
    %538 = vmatpush1.msra.mxu0 0.0
    %539 = vmatprep.subr.mxu0 0.0
    %540 = vmatpush1.msra.mxu0 0.0
    %541 = vmatprep.subr.mxu0 0.0
    %542 = vmatpush1.msra.mxu0 0.0
    %543 = vmatprep.subr.mxu0 0.0
    %544 = vmatpush1.msra.mxu0 0.0
    %545 = vmatprep.subr.mxu0 0.0
    %546 = vmatpush1.msra.mxu0 0.0
    %547 = vmatprep.subr.mxu0 0.0
    %548 = vmatpush1.msra.mxu0 0.0
    %549 = vmatprep.subr.mxu0 0.0
    %550 = vmatpush1.msra.mxu0 0.0
    %551 = vmatprep.mubr.f32.mxu0 0.0
    %552 = vmatmul.mubr.f32.gmra.mrb[0].mxu0 %v451
    %v553 = vpop.f32.mrb[0].mxu0
    %v554 = vadd.f32 0.0, %v553
    %v555 = vpop.f32.mrb[0].mxu0
    %v556 = vadd.f32 0.0, %v555
    %557 = vdwg.mxu0
    %558 = vmatprep.subr.mxu0 %v348
    %559 = vmatpush1.msra.mxu0 %v347
    %560 = vmatprep.subr.mxu0 %v350
    %561 = vmatpush1.msra.mxu0 %v349
    %562 = vmatprep.subr.mxu0 %v352
    %563 = vmatpush1.msra.mxu0 %v351
    %564 = vmatprep.subr.mxu0 %v354
    %565 = vmatpush1.msra.mxu0 %v353
    %566 = vmatprep.subr.mxu0 %v356
    %567 = vmatpush1.msra.mxu0 %v355
    %568 = vmatprep.subr.mxu0 %v358
    %569 = vmatpush1.msra.mxu0 %v357
    %570 = vmatprep.subr.mxu0 %v360
    %571 = vmatpush1.msra.mxu0 %v359
    %572 = vmatprep.subr.mxu0 %v362
    %573 = vmatpush1.msra.mxu0 %v361
    %574 = vmatprep.subr.mxu0 %v364
    %575 = vmatpush1.msra.mxu0 %v363
    %576 = vmatprep.subr.mxu0 %v366
    %577 = vmatpush1.msra.mxu0 %v365
    %578 = vmatprep.subr.mxu0 %v368
    %579 = vmatpush1.msra.mxu0 %v367
    %580 = vmatprep.subr.mxu0 %v370
    %581 = vmatpush1.msra.mxu0 %v369
    %582 = vmatprep.subr.mxu0 %v372
    %583 = vmatpush1.msra.mxu0 %v371
    %584 = vmatprep.subr.mxu0 %v374
    %585 = vmatpush1.msra.mxu0 %v373
    %586 = vmatprep.subr.mxu0 %v376
    %587 = vmatpush1.msra.mxu0 %v375
    %588 = vmatprep.subr.mxu0 %v378
    %589 = vmatpush1.msra.mxu0 %v377
    %590 = vmatprep.subr.mxu0 0.0
    %591 = vmatpush1.msra.mxu0 0.0
    %592 = vmatprep.subr.mxu0 0.0
    %593 = vmatpush1.msra.mxu0 0.0
    %594 = vmatprep.subr.mxu0 0.0
    %595 = vmatpush1.msra.mxu0 0.0
    %596 = vmatprep.subr.mxu0 0.0
    %597 = vmatpush1.msra.mxu0 0.0
    %598 = vmatprep.subr.mxu0 0.0
    %599 = vmatpush1.msra.mxu0 0.0
    %600 = vmatprep.subr.mxu0 0.0
    %601 = vmatpush1.msra.mxu0 0.0
    %602 = vmatprep.subr.mxu0 0.0
    %603 = vmatpush1.msra.mxu0 0.0
    %604 = vmatprep.subr.mxu0 0.0
    %605 = vmatpush1.msra.mxu0 0.0
    %606 = vmatprep.subr.mxu0 0.0
    %607 = vmatpush1.msra.mxu0 0.0
    %608 = vmatprep.subr.mxu0 0.0
    %609 = vmatpush1.msra.mxu0 0.0
    %610 = vmatprep.subr.mxu0 0.0
    %611 = vmatpush1.msra.mxu0 0.0
    %612 = vmatprep.subr.mxu0 0.0
    %613 = vmatpush1.msra.mxu0 0.0
    %614 = vmatprep.subr.mxu0 0.0
    %615 = vmatpush1.msra.mxu0 0.0
    %616 = vmatprep.subr.mxu0 0.0
    %617 = vmatpush1.msra.mxu0 0.0
    %618 = vmatprep.subr.mxu0 0.0
    %619 = vmatpush1.msra.mxu0 0.0
    %620 = vmatprep.subr.mxu0 0.0
    %621 = vmatpush1.msra.mxu0 0.0
    %622 = vmatprep.mubr.f32.mxu0 0.0
    %623 = vmatmul.mubr.f32.gmra.mrb[0].mxu0 %v344
    %v624 = vpop.f32.mrb[0].mxu0
    %v625 = vadd.f32 %v554, %v624
    %v626 = vpop.f32.mrb[0].mxu0
    %v627 = vadd.f32 %v556, %v626
    %628 = vdwg.mxu0
    %v629 = vld [vmem:[%s8] sm:$0x3]
    %v631 = vlaneseq
    %v632 = vshrl.u32 %v631, 7
    %v633 = vsub.s32 0, %v632
    %v634 = vrot.slane %v629, %v633
    %v635 = vlaneseq
    %v636 = vshrl.u32 %v635, 7
    %v637 = vsub.s32 1, %v636
    %v638 = vrot.slane %v629, %v637
    %v641 = vadd.f32 %v625, %v634
    %v642 = vadd.f32 %v627, %v638
    %v643 = vmax.f32 %v641, 0.0
    %v644 = vmax.f32 %v642, 0.0
    %v645 = vld [vmem:[%s9] sm:$0xff]
    %vm646 = vcmask 31744
    %v648 = vsel %vm646, %v645, 0
    %v651 = vsel %vm194, %v643, 0
    %v654 = vsel %vm194, %v644, 0
    %656 = vmatprep.subr.mxu0 %v654
    %657 = vmatpush1.msra.mxu0 %v651
    %658 = vmatprep.subr.mxu0 0.0
    %659 = vmatpush1.msra.mxu0 0.0
    %660 = vmatprep.subr.mxu0 0.0
    %661 = vmatpush1.msra.mxu0 0.0
    %662 = vmatprep.subr.mxu0 0.0
    %663 = vmatpush1.msra.mxu0 0.0
    %664 = vmatprep.subr.mxu0 0.0
    %665 = vmatpush1.msra.mxu0 0.0
    %666 = vmatprep.subr.mxu0 0.0
    %667 = vmatpush1.msra.mxu0 0.0
    %668 = vmatprep.subr.mxu0 0.0
    %669 = vmatpush1.msra.mxu0 0.0
    %670 = vmatprep.subr.mxu0 0.0
    %671 = vmatpush1.msra.mxu0 0.0
    %672 = vmatprep.subr.mxu0 0.0
    %673 = vmatpush1.msra.mxu0 0.0
    %674 = vmatprep.subr.mxu0 0.0
    %675 = vmatpush1.msra.mxu0 0.0
    %676 = vmatprep.subr.mxu0 0.0
    %677 = vmatpush1.msra.mxu0 0.0
    %678 = vmatprep.subr.mxu0 0.0
    %679 = vmatpush1.msra.mxu0 0.0
    %680 = vmatprep.subr.mxu0 0.0
    %681 = vmatpush1.msra.mxu0 0.0
    %682 = vmatprep.subr.mxu0 0.0
    %683 = vmatpush1.msra.mxu0 0.0
    %684 = vmatprep.subr.mxu0 0.0
    %685 = vmatpush1.msra.mxu0 0.0
    %686 = vmatprep.subr.mxu0 0.0
    %687 = vmatpush1.msra.mxu0 0.0
    %688 = vmatprep.subr.mxu0 0.0
    %689 = vmatpush1.msra.mxu0 0.0
    %690 = vmatprep.subr.mxu0 0.0
    %691 = vmatpush1.msra.mxu0 0.0
    %692 = vmatprep.subr.mxu0 0.0
    %693 = vmatpush1.msra.mxu0 0.0
    %694 = vmatprep.subr.mxu0 0.0
    %695 = vmatpush1.msra.mxu0 0.0
    %696 = vmatprep.subr.mxu0 0.0
    %697 = vmatpush1.msra.mxu0 0.0
    %698 = vmatprep.subr.mxu0 0.0
    %699 = vmatpush1.msra.mxu0 0.0
    %700 = vmatprep.subr.mxu0 0.0
    %701 = vmatpush1.msra.mxu0 0.0
    %702 = vmatprep.subr.mxu0 0.0
    %703 = vmatpush1.msra.mxu0 0.0
    %704 = vmatprep.subr.mxu0 0.0
    %705 = vmatpush1.msra.mxu0 0.0
    %706 = vmatprep.subr.mxu0 0.0
    %707 = vmatpush1.msra.mxu0 0.0
    %708 = vmatprep.subr.mxu0 0.0
    %709 = vmatpush1.msra.mxu0 0.0
    %710 = vmatprep.subr.mxu0 0.0
    %711 = vmatpush1.msra.mxu0 0.0
    %712 = vmatprep.subr.mxu0 0.0
    %713 = vmatpush1.msra.mxu0 0.0
    %714 = vmatprep.subr.mxu0 0.0
    %715 = vmatpush1.msra.mxu0 0.0
    %716 = vmatprep.subr.mxu0 0.0
    %717 = vmatpush1.msra.mxu0 0.0
    %718 = vmatprep.subr.mxu0 0.0
    %719 = vmatpush1.msra.mxu0 0.0
    %720 = vmatprep.mubr.f32.mxu0 0.0
    %721 = vmatmul.mubr.f32.gmra.mrb[0].mxu0 %v648
    %v722 = vpop.f32.mrb[0].mxu0
    %v723 = vadd.f32 0.0, %v722
    %v724 = vpop.f32.mrb[0].mxu0
    %v725 = vadd.f32 0.0, %v724
    %726 = vdwg.mxu0
    %v727 = vld [vmem:[%s10] sm:$0xff]
    %v728 = vld [vmem:[%s10 + $0x8] sm:$0xff]
    %v729 = vld [vmem:[%s10 + $0x10] sm:$0xff]
    %v730 = vld [vmem:[%s10 + $0x18] sm:$0xff]
    %v731 = vld [vmem:[%s10 + $0x20] sm:$0xff]
    %v732 = vld [vmem:[%s10 + $0x28] sm:$0xff]
    %v733 = vld [vmem:[%s10 + $0x30] sm:$0xff]
    %v734 = vld [vmem:[%s10 + $0x38] sm:$0xff]
    %v735 = vld [vmem:[%s10 + $0x40] sm:$0xff]
    %v736 = vld [vmem:[%s10 + $0x48] sm:$0xff]
    %v737 = vld [vmem:[%s10 + $0x50] sm:$0xff]
    %v738 = vld [vmem:[%s10 + $0x58] sm:$0xff]
    %v739 = vld [vmem:[%s10 + $0x60] sm:$0xff]
    %v740 = vld [vmem:[%s10 + $0x68] sm:$0xff]
    %v741 = vld [vmem:[%s10 + $0x70] sm:$0xff]
    %v742 = vld [vmem:[%s10 + $0x78] sm:$0xff]
    %v743 = vld [vmem:[%s10 + $0x80] sm:$0xff]
    %v744 = vld [vmem:[%s10 + $0x88] sm:$0xff]
    %v745 = vld [vmem:[%s10 + $0x90] sm:$0xff]
    %v746 = vld [vmem:[%s10 + $0x98] sm:$0xff]
    %v747 = vld [vmem:[%s10 + $0xa0] sm:$0xff]
    %v748 = vld [vmem:[%s10 + $0xa8] sm:$0xff]
    %v749 = vld [vmem:[%s10 + $0xb0] sm:$0xff]
    %v750 = vld [vmem:[%s10 + $0xb8] sm:$0xff]
    %v751 = vld [vmem:[%s10 + $0xc0] sm:$0xff]
    %v752 = vld [vmem:[%s10 + $0xc8] sm:$0xff]
    %v753 = vld [vmem:[%s10 + $0xd0] sm:$0xff]
    %v754 = vld [vmem:[%s10 + $0xd8] sm:$0xff]
    %v755 = vld [vmem:[%s10 + $0xe0] sm:$0xff]
    %v756 = vld [vmem:[%s10 + $0xe8] sm:$0xff]
    %v757 = vld [vmem:[%s10 + $0xf0] sm:$0xff]
    %v758 = vld [vmem:[%s10 + $0xf8] sm:$0xff]
    %v759 = vld [vmem:[%s10 + $0x100] sm:$0xff]
    %v760 = vld [vmem:[%s10 + $0x108] sm:$0xff]
    %v761 = vld [vmem:[%s10 + $0x110] sm:$0xff]
    %v762 = vld [vmem:[%s10 + $0x118] sm:$0xff]
    %v763 = vld [vmem:[%s10 + $0x120] sm:$0xff]
    %v764 = vld [vmem:[%s10 + $0x128] sm:$0xff]
    %v765 = vld [vmem:[%s10 + $0x130] sm:$0xff]
    %v766 = vld [vmem:[%s10 + $0x138] sm:$0xff]
    %v767 = vld [vmem:[%s10 + $0x140] sm:$0xff]
    %v768 = vld [vmem:[%s10 + $0x148] sm:$0xff]
    %v769 = vld [vmem:[%s10 + $0x150] sm:$0xff]
    %v770 = vld [vmem:[%s10 + $0x158] sm:$0xff]
    %v771 = vld [vmem:[%s10 + $0x160] sm:$0xff]
    %v772 = vld [vmem:[%s10 + $0x168] sm:$0xff]
    %v773 = vld [vmem:[%s10 + $0x170] sm:$0xff]
    %v774 = vld [vmem:[%s10 + $0x178] sm:$0xff]
    %v775 = vld [vmem:[%s10 + $0x180] sm:$0xff]
    %v776 = vld [vmem:[%s10 + $0x188] sm:$0xff]
    %v777 = vld [vmem:[%s10 + $0x190] sm:$0xff]
    %v778 = vld [vmem:[%s10 + $0x198] sm:$0xff]
    %v779 = vld [vmem:[%s10 + $0x1a0] sm:$0xff]
    %v780 = vld [vmem:[%s10 + $0x1a8] sm:$0xff]
    %v781 = vld [vmem:[%s10 + $0x1b0] sm:$0xff]
    %v782 = vld [vmem:[%s10 + $0x1b8] sm:$0xff]
    %v783 = vld [vmem:[%s10 + $0x1c0] sm:$0xff]
    %v784 = vld [vmem:[%s10 + $0x1c8] sm:$0xff]
    %v785 = vld [vmem:[%s10 + $0x1d0] sm:$0xff]
    %v786 = vld [vmem:[%s10 + $0x1d8] sm:$0xff]
    %v787 = vld [vmem:[%s10 + $0x1e0] sm:$0xff]
    %v788 = vld [vmem:[%s10 + $0x1e8] sm:$0xff]
    %v789 = vld [vmem:[%s10 + $0x1f0] sm:$0xff]
    %v790 = vld [vmem:[%s10 + $0x1f8] sm:$0xff]
    %v791 = vld [vmem:[%s10 + $0x200] sm:$0xff]
    %v792 = vld [vmem:[%s10 + $0x208] sm:$0xff]
    %v793 = vld [vmem:[%s10 + $0x210] sm:$0xff]
    %v794 = vld [vmem:[%s10 + $0x218] sm:$0xff]
    %v795 = vld [vmem:[%s10 + $0x220] sm:$0xff]
    %v796 = vld [vmem:[%s10 + $0x228] sm:$0xff]
    %v797 = vld [vmem:[%s10 + $0x230] sm:$0xff]
    %v798 = vld [vmem:[%s10 + $0x238] sm:$0xff]
    %v799 = vld [vmem:[%s10 + $0x240] sm:$0xff]
    %v800 = vld [vmem:[%s10 + $0x248] sm:$0xff]
    %v801 = vld [vmem:[%s10 + $0x250] sm:$0xff]
    %v802 = vld [vmem:[%s10 + $0x258] sm:$0xff]
    %v803 = vld [vmem:[%s10 + $0x260] sm:$0xff]
    %v804 = vld [vmem:[%s10 + $0x268] sm:$0xff]
    %v805 = vld [vmem:[%s10 + $0x270] sm:$0xff]
    %v806 = vld [vmem:[%s10 + $0x278] sm:$0xff]
    %v807 = vld [vmem:[%s10 + $0x280] sm:$0xff]
    %v808 = vld [vmem:[%s10 + $0x288] sm:$0xff]
    %v809 = vld [vmem:[%s10 + $0x290] sm:$0xff]
    %v810 = vld [vmem:[%s10 + $0x298] sm:$0xff]
    %v811 = vld [vmem:[%s10 + $0x2a0] sm:$0xff]
    %v812 = vld [vmem:[%s10 + $0x2a8] sm:$0xff]
    %v813 = vld [vmem:[%s10 + $0x2b0] sm:$0xff]
    %v814 = vld [vmem:[%s10 + $0x2b8] sm:$0xff]
    %v815 = vld [vmem:[%s10 + $0x2c0] sm:$0xff]
    %v816 = vld [vmem:[%s10 + $0x2c8] sm:$0xff]
    %v817 = vld [vmem:[%s10 + $0x2d0] sm:$0xff]
    %v818 = vld [vmem:[%s10 + $0x2d8] sm:$0xff]
    %v819 = vld [vmem:[%s10 + $0x2e0] sm:$0xff]
    %v820 = vld [vmem:[%s10 + $0x2e8] sm:$0xff]
    %v821 = vld [vmem:[%s10 + $0x2f0] sm:$0xff]
    %v822 = vld [vmem:[%s10 + $0x2f8] sm:$0xff]
    %v823 = vld [vmem:[%s10 + $0x300] sm:$0xff]
    %v824 = vld [vmem:[%s10 + $0x308] sm:$0xff]
    %v825 = vld [vmem:[%s10 + $0x310] sm:$0xff]
    %v826 = vld [vmem:[%s10 + $0x318] sm:$0xff]
    %v827 = vld [vmem:[%s10 + $0x320] sm:$0xff]
    %v828 = vld [vmem:[%s10 + $0x328] sm:$0xff]
    %v829 = vld [vmem:[%s10 + $0x330] sm:$0xff]
    %v830 = vld [vmem:[%s10 + $0x338] sm:$0xff]
    %v831 = vld [vmem:[%s10 + $0x340] sm:$0xff]
    %v832 = vld [vmem:[%s10 + $0x348] sm:$0xff]
    %v833 = vld [vmem:[%s10 + $0x350] sm:$0xff]
    %v834 = vld [vmem:[%s10 + $0x358] sm:$0xff]
    %v835 = vld [vmem:[%s10 + $0x360] sm:$0xff]
    %v836 = vld [vmem:[%s10 + $0x368] sm:$0xff]
    %v837 = vld [vmem:[%s10 + $0x370] sm:$0xff]
    %v838 = vld [vmem:[%s10 + $0x378] sm:$0xff]
    %v839 = vld [vmem:[%s10 + $0x380] sm:$0xff]
    %v840 = vld [vmem:[%s10 + $0x388] sm:$0xff]
    %v841 = vld [vmem:[%s10 + $0x390] sm:$0xff]
    %v842 = vld [vmem:[%s10 + $0x398] sm:$0xff]
    %v843 = vld [vmem:[%s10 + $0x3a0] sm:$0xff]
    %v844 = vld [vmem:[%s10 + $0x3a8] sm:$0xff]
    %v845 = vld [vmem:[%s10 + $0x3b0] sm:$0xff]
    %v846 = vld [vmem:[%s10 + $0x3b8] sm:$0xff]
    %v847 = vld [vmem:[%s10 + $0x3c0] sm:$0xff]
    %v848 = vld [vmem:[%s10 + $0x3c8] sm:$0xff]
    %v849 = vld [vmem:[%s10 + $0x3d0] sm:$0xff]
    %v850 = vld [vmem:[%s10 + $0x3d8] sm:$0xff]
    %v851 = vld [vmem:[%s10 + $0x3e0] sm:$0xff]
    %v852 = vld [vmem:[%s10 + $0x3e8] sm:$0xff]
    %v853 = vld [vmem:[%s10 + $0x3f0] sm:$0xff]
    %v854 = vld [vmem:[%s10 + $0x3f8] sm:$0xff]
    %s855 = scalar_lea.vmem %s9, 8
    %v856 = vld [vmem:[%s855] sm:$0xff]
    %v858 = vsel %vm646, %v856, 0
    %860 = vmatprep.subr.mxu0 %v654
    %861 = vmatpush1.msra.mxu0 %v651
    %862 = vmatprep.subr.mxu0 0.0
    %863 = vmatpush1.msra.mxu0 0.0
    %864 = vmatprep.subr.mxu0 0.0
    %865 = vmatpush1.msra.mxu0 0.0
    %866 = vmatprep.subr.mxu0 0.0
    %867 = vmatpush1.msra.mxu0 0.0
    %868 = vmatprep.subr.mxu0 0.0
    %869 = vmatpush1.msra.mxu0 0.0
    %870 = vmatprep.subr.mxu0 0.0
    %871 = vmatpush1.msra.mxu0 0.0
    %872 = vmatprep.subr.mxu0 0.0
    %873 = vmatpush1.msra.mxu0 0.0
    %874 = vmatprep.subr.mxu0 0.0
    %875 = vmatpush1.msra.mxu0 0.0
    %876 = vmatprep.subr.mxu0 0.0
    %877 = vmatpush1.msra.mxu0 0.0
    %878 = vmatprep.subr.mxu0 0.0
    %879 = vmatpush1.msra.mxu0 0.0
    %880 = vmatprep.subr.mxu0 0.0
    %881 = vmatpush1.msra.mxu0 0.0
    %882 = vmatprep.subr.mxu0 0.0
    %883 = vmatpush1.msra.mxu0 0.0
    %884 = vmatprep.subr.mxu0 0.0
    %885 = vmatpush1.msra.mxu0 0.0
    %886 = vmatprep.subr.mxu0 0.0
    %887 = vmatpush1.msra.mxu0 0.0
    %888 = vmatprep.subr.mxu0 0.0
    %889 = vmatpush1.msra.mxu0 0.0
    %890 = vmatprep.subr.mxu0 0.0
    %891 = vmatpush1.msra.mxu0 0.0
    %892 = vmatprep.subr.mxu0 0.0
    %893 = vmatpush1.msra.mxu0 0.0
    %894 = vmatprep.subr.mxu0 0.0
    %895 = vmatpush1.msra.mxu0 0.0
    %896 = vmatprep.subr.mxu0 0.0
    %897 = vmatpush1.msra.mxu0 0.0
    %898 = vmatprep.subr.mxu0 0.0
    %899 = vmatpush1.msra.mxu0 0.0
    %900 = vmatprep.subr.mxu0 0.0
    %901 = vmatpush1.msra.mxu0 0.0
    %902 = vmatprep.subr.mxu0 0.0
    %903 = vmatpush1.msra.mxu0 0.0
    %904 = vmatprep.subr.mxu0 0.0
    %905 = vmatpush1.msra.mxu0 0.0
    %906 = vmatprep.subr.mxu0 0.0
    %907 = vmatpush1.msra.mxu0 0.0
    %908 = vmatprep.subr.mxu0 0.0
    %909 = vmatpush1.msra.mxu0 0.0
    %910 = vmatprep.subr.mxu0 0.0
    %911 = vmatpush1.msra.mxu0 0.0
    %912 = vmatprep.subr.mxu0 0.0
    %913 = vmatpush1.msra.mxu0 0.0
    %914 = vmatprep.subr.mxu0 0.0
    %915 = vmatpush1.msra.mxu0 0.0
    %916 = vmatprep.subr.mxu0 0.0
    %917 = vmatpush1.msra.mxu0 0.0
    %918 = vmatprep.subr.mxu0 0.0
    %919 = vmatpush1.msra.mxu0 0.0
    %920 = vmatprep.subr.mxu0 0.0
    %921 = vmatpush1.msra.mxu0 0.0
    %922 = vmatprep.subr.mxu0 0.0
    %923 = vmatpush1.msra.mxu0 0.0
    %924 = vmatprep.mubr.f32.mxu0 0.0
    %925 = vmatmul.mubr.f32.gmra.mrb[0].mxu0 %v858
    %v926 = vpop.f32.mrb[0].mxu0
    %v927 = vadd.f32 0.0, %v926
    %v928 = vpop.f32.mrb[0].mxu0
    %v929 = vadd.f32 0.0, %v928
    %930 = vdwg.mxu0
    %s931 = scalar_lea.vmem %s10, 1024
    %v932 = vld [vmem:[%s931] sm:$0xff]
    %v933 = vld [vmem:[%s931 + $0x8] sm:$0xff]
    %v934 = vld [vmem:[%s931 + $0x10] sm:$0xff]
    %v935 = vld [vmem:[%s931 + $0x18] sm:$0xff]
    %v936 = vld [vmem:[%s931 + $0x20] sm:$0xff]
    %v937 = vld [vmem:[%s931 + $0x28] sm:$0xff]
    %v938 = vld [vmem:[%s931 + $0x30] sm:$0xff]
    %v939 = vld [vmem:[%s931 + $0x38] sm:$0xff]
    %v940 = vld [vmem:[%s931 + $0x40] sm:$0xff]
    %v941 = vld [vmem:[%s931 + $0x48] sm:$0xff]
    %v942 = vld [vmem:[%s931 + $0x50] sm:$0xff]
    %v943 = vld [vmem:[%s931 + $0x58] sm:$0xff]
    %v944 = vld [vmem:[%s931 + $0x60] sm:$0xff]
    %v945 = vld [vmem:[%s931 + $0x68] sm:$0xff]
    %v946 = vld [vmem:[%s931 + $0x70] sm:$0xff]
    %v947 = vld [vmem:[%s931 + $0x78] sm:$0xff]
    %v948 = vld [vmem:[%s931 + $0x80] sm:$0xff]
    %v949 = vld [vmem:[%s931 + $0x88] sm:$0xff]
    %v950 = vld [vmem:[%s931 + $0x90] sm:$0xff]
    %v951 = vld [vmem:[%s931 + $0x98] sm:$0xff]
    %v952 = vld [vmem:[%s931 + $0xa0] sm:$0xff]
    %v953 = vld [vmem:[%s931 + $0xa8] sm:$0xff]
    %v954 = vld [vmem:[%s931 + $0xb0] sm:$0xff]
    %v955 = vld [vmem:[%s931 + $0xb8] sm:$0xff]
    %v956 = vld [vmem:[%s931 + $0xc0] sm:$0xff]
    %v957 = vld [vmem:[%s931 + $0xc8] sm:$0xff]
    %v958 = vld [vmem:[%s931 + $0xd0] sm:$0xff]
    %v959 = vld [vmem:[%s931 + $0xd8] sm:$0xff]
    %v960 = vld [vmem:[%s931 + $0xe0] sm:$0xff]
    %v961 = vld [vmem:[%s931 + $0xe8] sm:$0xff]
    %v962 = vld [vmem:[%s931 + $0xf0] sm:$0xff]
    %v963 = vld [vmem:[%s931 + $0xf8] sm:$0xff]
    %v964 = vld [vmem:[%s931 + $0x100] sm:$0xff]
    %v965 = vld [vmem:[%s931 + $0x108] sm:$0xff]
    %v966 = vld [vmem:[%s931 + $0x110] sm:$0xff]
    %v967 = vld [vmem:[%s931 + $0x118] sm:$0xff]
    %v968 = vld [vmem:[%s931 + $0x120] sm:$0xff]
    %v969 = vld [vmem:[%s931 + $0x128] sm:$0xff]
    %v970 = vld [vmem:[%s931 + $0x130] sm:$0xff]
    %v971 = vld [vmem:[%s931 + $0x138] sm:$0xff]
    %v972 = vld [vmem:[%s931 + $0x140] sm:$0xff]
    %v973 = vld [vmem:[%s931 + $0x148] sm:$0xff]
    %v974 = vld [vmem:[%s931 + $0x150] sm:$0xff]
    %v975 = vld [vmem:[%s931 + $0x158] sm:$0xff]
    %v976 = vld [vmem:[%s931 + $0x160] sm:$0xff]
    %v977 = vld [vmem:[%s931 + $0x168] sm:$0xff]
    %v978 = vld [vmem:[%s931 + $0x170] sm:$0xff]
    %v979 = vld [vmem:[%s931 + $0x178] sm:$0xff]
    %v980 = vld [vmem:[%s931 + $0x180] sm:$0xff]
    %v981 = vld [vmem:[%s931 + $0x188] sm:$0xff]
    %v982 = vld [vmem:[%s931 + $0x190] sm:$0xff]
    %v983 = vld [vmem:[%s931 + $0x198] sm:$0xff]
    %v984 = vld [vmem:[%s931 + $0x1a0] sm:$0xff]
    %v985 = vld [vmem:[%s931 + $0x1a8] sm:$0xff]
    %v986 = vld [vmem:[%s931 + $0x1b0] sm:$0xff]
    %v987 = vld [vmem:[%s931 + $0x1b8] sm:$0xff]
    %v988 = vld [vmem:[%s931 + $0x1c0] sm:$0xff]
    %v989 = vld [vmem:[%s931 + $0x1c8] sm:$0xff]
    %v990 = vld [vmem:[%s931 + $0x1d0] sm:$0xff]
    %v991 = vld [vmem:[%s931 + $0x1d8] sm:$0xff]
    %v992 = vld [vmem:[%s931 + $0x1e0] sm:$0xff]
    %v993 = vld [vmem:[%s931 + $0x1e8] sm:$0xff]
    %v994 = vld [vmem:[%s931 + $0x1f0] sm:$0xff]
    %v995 = vld [vmem:[%s931 + $0x1f8] sm:$0xff]
    %v996 = vld [vmem:[%s931 + $0x200] sm:$0xff]
    %v997 = vld [vmem:[%s931 + $0x208] sm:$0xff]
    %v998 = vld [vmem:[%s931 + $0x210] sm:$0xff]
    %v999 = vld [vmem:[%s931 + $0x218] sm:$0xff]
    %v1000 = vld [vmem:[%s931 + $0x220] sm:$0xff]
    %v1001 = vld [vmem:[%s931 + $0x228] sm:$0xff]
    %v1002 = vld [vmem:[%s931 + $0x230] sm:$0xff]
    %v1003 = vld [vmem:[%s931 + $0x238] sm:$0xff]
    %v1004 = vld [vmem:[%s931 + $0x240] sm:$0xff]
    %v1005 = vld [vmem:[%s931 + $0x248] sm:$0xff]
    %v1006 = vld [vmem:[%s931 + $0x250] sm:$0xff]
    %v1007 = vld [vmem:[%s931 + $0x258] sm:$0xff]
    %v1008 = vld [vmem:[%s931 + $0x260] sm:$0xff]
    %v1009 = vld [vmem:[%s931 + $0x268] sm:$0xff]
    %v1010 = vld [vmem:[%s931 + $0x270] sm:$0xff]
    %v1011 = vld [vmem:[%s931 + $0x278] sm:$0xff]
    %v1012 = vld [vmem:[%s931 + $0x280] sm:$0xff]
    %v1013 = vld [vmem:[%s931 + $0x288] sm:$0xff]
    %v1014 = vld [vmem:[%s931 + $0x290] sm:$0xff]
    %v1015 = vld [vmem:[%s931 + $0x298] sm:$0xff]
    %v1016 = vld [vmem:[%s931 + $0x2a0] sm:$0xff]
    %v1017 = vld [vmem:[%s931 + $0x2a8] sm:$0xff]
    %v1018 = vld [vmem:[%s931 + $0x2b0] sm:$0xff]
    %v1019 = vld [vmem:[%s931 + $0x2b8] sm:$0xff]
    %v1020 = vld [vmem:[%s931 + $0x2c0] sm:$0xff]
    %v1021 = vld [vmem:[%s931 + $0x2c8] sm:$0xff]
    %v1022 = vld [vmem:[%s931 + $0x2d0] sm:$0xff]
    %v1023 = vld [vmem:[%s931 + $0x2d8] sm:$0xff]
    %v1024 = vld [vmem:[%s931 + $0x2e0] sm:$0xff]
    %v1025 = vld [vmem:[%s931 + $0x2e8] sm:$0xff]
    %v1026 = vld [vmem:[%s931 + $0x2f0] sm:$0xff]
    %v1027 = vld [vmem:[%s931 + $0x2f8] sm:$0xff]
    %v1028 = vld [vmem:[%s931 + $0x300] sm:$0xff]
    %v1029 = vld [vmem:[%s931 + $0x308] sm:$0xff]
    %v1030 = vld [vmem:[%s931 + $0x310] sm:$0xff]
    %v1031 = vld [vmem:[%s931 + $0x318] sm:$0xff]
    %v1032 = vld [vmem:[%s931 + $0x320] sm:$0xff]
    %v1033 = vld [vmem:[%s931 + $0x328] sm:$0xff]
    %v1034 = vld [vmem:[%s931 + $0x330] sm:$0xff]
    %v1035 = vld [vmem:[%s931 + $0x338] sm:$0xff]
    %v1036 = vld [vmem:[%s931 + $0x340] sm:$0xff]
    %v1037 = vld [vmem:[%s931 + $0x348] sm:$0xff]
    %v1038 = vld [vmem:[%s931 + $0x350] sm:$0xff]
    %v1039 = vld [vmem:[%s931 + $0x358] sm:$0xff]
    %v1040 = vld [vmem:[%s931 + $0x360] sm:$0xff]
    %v1041 = vld [vmem:[%s931 + $0x368] sm:$0xff]
    %v1042 = vld [vmem:[%s931 + $0x370] sm:$0xff]
    %v1043 = vld [vmem:[%s931 + $0x378] sm:$0xff]
    %v1044 = vld [vmem:[%s931 + $0x380] sm:$0xff]
    %v1045 = vld [vmem:[%s931 + $0x388] sm:$0xff]
    %v1046 = vld [vmem:[%s931 + $0x390] sm:$0xff]
    %v1047 = vld [vmem:[%s931 + $0x398] sm:$0xff]
    %v1048 = vld [vmem:[%s931 + $0x3a0] sm:$0xff]
    %v1049 = vld [vmem:[%s931 + $0x3a8] sm:$0xff]
    %v1050 = vld [vmem:[%s931 + $0x3b0] sm:$0xff]
    %v1051 = vld [vmem:[%s931 + $0x3b8] sm:$0xff]
    %v1052 = vld [vmem:[%s931 + $0x3c0] sm:$0xff]
    %v1053 = vld [vmem:[%s931 + $0x3c8] sm:$0xff]
    %v1054 = vld [vmem:[%s931 + $0x3d0] sm:$0xff]
    %v1055 = vld [vmem:[%s931 + $0x3d8] sm:$0xff]
    %v1056 = vld [vmem:[%s931 + $0x3e0] sm:$0xff]
    %v1057 = vld [vmem:[%s931 + $0x3e8] sm:$0xff]
    %v1058 = vld [vmem:[%s931 + $0x3f0] sm:$0xff]
    %v1059 = vld [vmem:[%s931 + $0x3f8] sm:$0xff]
    %1060 = vmatprep.subr.mxu0 %v933
    %1061 = vmatpush1.msra.mxu0 %v932
    %1062 = vmatprep.subr.mxu0 %v937
    %1063 = vmatpush1.msra.mxu0 %v936
    %1064 = vmatprep.subr.mxu0 %v941
    %1065 = vmatpush1.msra.mxu0 %v940
    %1066 = vmatprep.subr.mxu0 %v945
    %1067 = vmatpush1.msra.mxu0 %v944
    %1068 = vmatprep.subr.mxu0 %v949
    %1069 = vmatpush1.msra.mxu0 %v948
    %1070 = vmatprep.subr.mxu0 %v953
    %1071 = vmatpush1.msra.mxu0 %v952
    %1072 = vmatprep.subr.mxu0 %v957
    %1073 = vmatpush1.msra.mxu0 %v956
    %1074 = vmatprep.subr.mxu0 %v961
    %1075 = vmatpush1.msra.mxu0 %v960
    %1076 = vmatprep.subr.mxu0 %v965
    %1077 = vmatpush1.msra.mxu0 %v964
    %1078 = vmatprep.subr.mxu0 %v969
    %1079 = vmatpush1.msra.mxu0 %v968
    %1080 = vmatprep.subr.mxu0 %v973
    %1081 = vmatpush1.msra.mxu0 %v972
    %1082 = vmatprep.subr.mxu0 %v977
    %1083 = vmatpush1.msra.mxu0 %v976
    %1084 = vmatprep.subr.mxu0 %v981
    %1085 = vmatpush1.msra.mxu0 %v980
    %1086 = vmatprep.subr.mxu0 %v985
    %1087 = vmatpush1.msra.mxu0 %v984
    %1088 = vmatprep.subr.mxu0 %v989
    %1089 = vmatpush1.msra.mxu0 %v988
    %1090 = vmatprep.subr.mxu0 %v993
    %1091 = vmatpush1.msra.mxu0 %v992
    %1092 = vmatprep.subr.mxu0 %v997
    %1093 = vmatpush1.msra.mxu0 %v996
    %1094 = vmatprep.subr.mxu0 %v1001
    %1095 = vmatpush1.msra.mxu0 %v1000
    %1096 = vmatprep.subr.mxu0 %v1005
    %1097 = vmatpush1.msra.mxu0 %v1004
    %1098 = vmatprep.subr.mxu0 %v1009
    %1099 = vmatpush1.msra.mxu0 %v1008
    %1100 = vmatprep.subr.mxu0 %v1013
    %1101 = vmatpush1.msra.mxu0 %v1012
    %1102 = vmatprep.subr.mxu0 %v1017
    %1103 = vmatpush1.msra.mxu0 %v1016
    %1104 = vmatprep.subr.mxu0 %v1021
    %1105 = vmatpush1.msra.mxu0 %v1020
    %1106 = vmatprep.subr.mxu0 %v1025
    %1107 = vmatpush1.msra.mxu0 %v1024
    %1108 = vmatprep.subr.mxu0 %v1029
    %1109 = vmatpush1.msra.mxu0 %v1028
    %1110 = vmatprep.subr.mxu0 %v1033
    %1111 = vmatpush1.msra.mxu0 %v1032
    %1112 = vmatprep.subr.mxu0 %v1037
    %1113 = vmatpush1.msra.mxu0 %v1036
    %1114 = vmatprep.subr.mxu0 %v1041
    %1115 = vmatpush1.msra.mxu0 %v1040
    %1116 = vmatprep.subr.mxu0 %v1045
    %1117 = vmatpush1.msra.mxu0 %v1044
    %1118 = vmatprep.subr.mxu0 %v1049
    %1119 = vmatpush1.msra.mxu0 %v1048
    %1120 = vmatprep.subr.mxu0 %v1053
    %1121 = vmatpush1.msra.mxu0 %v1052
    %1122 = vmatprep.subr.mxu0 %v1057
    %1123 = vmatpush1.msra.mxu0 %v1056
    %1124 = vmatprep.mubr.f32.mxu0 %v929
    %1125 = vmatmul.mubr.f32.gmra.mrb[0].mxu0 %v927
    %v1126 = vpop.f32.mrb[0].mxu0
    %v1127 = vadd.f32 0.0, %v1126
    %v1128 = vpop.f32.mrb[0].mxu0
    %v1129 = vadd.f32 0.0, %v1128
    %1130 = vdwg.mxu0
    %1131 = vmatprep.subr.mxu0 %v935
    %1132 = vmatpush1.msra.mxu0 %v934
    %1133 = vmatprep.subr.mxu0 %v939
    %1134 = vmatpush1.msra.mxu0 %v938
    %1135 = vmatprep.subr.mxu0 %v943
    %1136 = vmatpush1.msra.mxu0 %v942
    %1137 = vmatprep.subr.mxu0 %v947
    %1138 = vmatpush1.msra.mxu0 %v946
    %1139 = vmatprep.subr.mxu0 %v951
    %1140 = vmatpush1.msra.mxu0 %v950
    %1141 = vmatprep.subr.mxu0 %v955
    %1142 = vmatpush1.msra.mxu0 %v954
    %1143 = vmatprep.subr.mxu0 %v959
    %1144 = vmatpush1.msra.mxu0 %v958
    %1145 = vmatprep.subr.mxu0 %v963
    %1146 = vmatpush1.msra.mxu0 %v962
    %1147 = vmatprep.subr.mxu0 %v967
    %1148 = vmatpush1.msra.mxu0 %v966
    %1149 = vmatprep.subr.mxu0 %v971
    %1150 = vmatpush1.msra.mxu0 %v970
    %1151 = vmatprep.subr.mxu0 %v975
    %1152 = vmatpush1.msra.mxu0 %v974
    %1153 = vmatprep.subr.mxu0 %v979
    %1154 = vmatpush1.msra.mxu0 %v978
    %1155 = vmatprep.subr.mxu0 %v983
    %1156 = vmatpush1.msra.mxu0 %v982
    %1157 = vmatprep.subr.mxu0 %v987
    %1158 = vmatpush1.msra.mxu0 %v986
    %1159 = vmatprep.subr.mxu0 %v991
    %1160 = vmatpush1.msra.mxu0 %v990
    %1161 = vmatprep.subr.mxu0 %v995
    %1162 = vmatpush1.msra.mxu0 %v994
    %1163 = vmatprep.subr.mxu0 %v999
    %1164 = vmatpush1.msra.mxu0 %v998
    %1165 = vmatprep.subr.mxu0 %v1003
    %1166 = vmatpush1.msra.mxu0 %v1002
    %1167 = vmatprep.subr.mxu0 %v1007
    %1168 = vmatpush1.msra.mxu0 %v1006
    %1169 = vmatprep.subr.mxu0 %v1011
    %1170 = vmatpush1.msra.mxu0 %v1010
    %1171 = vmatprep.subr.mxu0 %v1015
    %1172 = vmatpush1.msra.mxu0 %v1014
    %1173 = vmatprep.subr.mxu0 %v1019
    %1174 = vmatpush1.msra.mxu0 %v1018
    %1175 = vmatprep.subr.mxu0 %v1023
    %1176 = vmatpush1.msra.mxu0 %v1022
    %1177 = vmatprep.subr.mxu0 %v1027
    %1178 = vmatpush1.msra.mxu0 %v1026
    %1179 = vmatprep.subr.mxu0 %v1031
    %1180 = vmatpush1.msra.mxu0 %v1030
    %1181 = vmatprep.subr.mxu0 %v1035
    %1182 = vmatpush1.msra.mxu0 %v1034
    %1183 = vmatprep.subr.mxu0 %v1039
    %1184 = vmatpush1.msra.mxu0 %v1038
    %1185 = vmatprep.subr.mxu0 %v1043
    %1186 = vmatpush1.msra.mxu0 %v1042
    %1187 = vmatprep.subr.mxu0 %v1047
    %1188 = vmatpush1.msra.mxu0 %v1046
    %1189 = vmatprep.subr.mxu0 %v1051
    %1190 = vmatpush1.msra.mxu0 %v1050
    %1191 = vmatprep.subr.mxu0 %v1055
    %1192 = vmatpush1.msra.mxu0 %v1054
    %1193 = vmatprep.subr.mxu0 %v1059
    %1194 = vmatpush1.msra.mxu0 %v1058
    %1195 = vmatprep.mubr.f32.mxu0 %v929
    %1196 = vmatmul.mubr.f32.gmra.mrb[0].mxu0 %v927
    %v1197 = vpop.f32.mrb[0].mxu0
    %v1198 = vadd.f32 0.0, %v1197
    %v1199 = vpop.f32.mrb[0].mxu0
    %v1200 = vadd.f32 0.0, %v1199
    %1201 = vdwg.mxu0
    %1202 = vmatprep.subr.mxu0 %v728
    %1203 = vmatpush1.msra.mxu0 %v727
    %1204 = vmatprep.subr.mxu0 %v732
    %1205 = vmatpush1.msra.mxu0 %v731
    %1206 = vmatprep.subr.mxu0 %v736
    %1207 = vmatpush1.msra.mxu0 %v735
    %1208 = vmatprep.subr.mxu0 %v740
    %1209 = vmatpush1.msra.mxu0 %v739
    %1210 = vmatprep.subr.mxu0 %v744
    %1211 = vmatpush1.msra.mxu0 %v743
    %1212 = vmatprep.subr.mxu0 %v748
    %1213 = vmatpush1.msra.mxu0 %v747
    %1214 = vmatprep.subr.mxu0 %v752
    %1215 = vmatpush1.msra.mxu0 %v751
    %1216 = vmatprep.subr.mxu0 %v756
    %1217 = vmatpush1.msra.mxu0 %v755
    %1218 = vmatprep.subr.mxu0 %v760
    %1219 = vmatpush1.msra.mxu0 %v759
    %1220 = vmatprep.subr.mxu0 %v764
    %1221 = vmatpush1.msra.mxu0 %v763
    %1222 = vmatprep.subr.mxu0 %v768
    %1223 = vmatpush1.msra.mxu0 %v767
    %1224 = vmatprep.subr.mxu0 %v772
    %1225 = vmatpush1.msra.mxu0 %v771
    %1226 = vmatprep.subr.mxu0 %v776
    %1227 = vmatpush1.msra.mxu0 %v775
    %1228 = vmatprep.subr.mxu0 %v780
    %1229 = vmatpush1.msra.mxu0 %v779
    %1230 = vmatprep.subr.mxu0 %v784
    %1231 = vmatpush1.msra.mxu0 %v783
    %1232 = vmatprep.subr.mxu0 %v788
    %1233 = vmatpush1.msra.mxu0 %v787
    %1234 = vmatprep.subr.mxu0 %v792
    %1235 = vmatpush1.msra.mxu0 %v791
    %1236 = vmatprep.subr.mxu0 %v796
    %1237 = vmatpush1.msra.mxu0 %v795
    %1238 = vmatprep.subr.mxu0 %v800
    %1239 = vmatpush1.msra.mxu0 %v799
    %1240 = vmatprep.subr.mxu0 %v804
    %1241 = vmatpush1.msra.mxu0 %v803
    %1242 = vmatprep.subr.mxu0 %v808
    %1243 = vmatpush1.msra.mxu0 %v807
    %1244 = vmatprep.subr.mxu0 %v812
    %1245 = vmatpush1.msra.mxu0 %v811
    %1246 = vmatprep.subr.mxu0 %v816
    %1247 = vmatpush1.msra.mxu0 %v815
    %1248 = vmatprep.subr.mxu0 %v820
    %1249 = vmatpush1.msra.mxu0 %v819
    %1250 = vmatprep.subr.mxu0 %v824
    %1251 = vmatpush1.msra.mxu0 %v823
    %1252 = vmatprep.subr.mxu0 %v828
    %1253 = vmatpush1.msra.mxu0 %v827
    %1254 = vmatprep.subr.mxu0 %v832
    %1255 = vmatpush1.msra.mxu0 %v831
    %1256 = vmatprep.subr.mxu0 %v836
    %1257 = vmatpush1.msra.mxu0 %v835
    %1258 = vmatprep.subr.mxu0 %v840
    %1259 = vmatpush1.msra.mxu0 %v839
    %1260 = vmatprep.subr.mxu0 %v844
    %1261 = vmatpush1.msra.mxu0 %v843
    %1262 = vmatprep.subr.mxu0 %v848
    %1263 = vmatpush1.msra.mxu0 %v847
    %1264 = vmatprep.subr.mxu0 %v852
    %1265 = vmatpush1.msra.mxu0 %v851
    %1266 = vmatprep.mubr.f32.mxu0 %v725
    %1267 = vmatmul.mubr.f32.gmra.mrb[0].mxu0 %v723
    %v1268 = vpop.f32.mrb[0].mxu0
    %v1269 = vadd.f32 %v1127, %v1268
    %v1270 = vpop.f32.mrb[0].mxu0
    %v1271 = vadd.f32 %v1129, %v1270
    %1272 = vdwg.mxu0
    %1273 = vmatprep.subr.mxu0 %v730
    %1274 = vmatpush1.msra.mxu0 %v729
    %1275 = vmatprep.subr.mxu0 %v734
    %1276 = vmatpush1.msra.mxu0 %v733
    %1277 = vmatprep.subr.mxu0 %v738
    %1278 = vmatpush1.msra.mxu0 %v737
    %1279 = vmatprep.subr.mxu0 %v742
    %1280 = vmatpush1.msra.mxu0 %v741
    %1281 = vmatprep.subr.mxu0 %v746
    %1282 = vmatpush1.msra.mxu0 %v745
    %1283 = vmatprep.subr.mxu0 %v750
    %1284 = vmatpush1.msra.mxu0 %v749
    %1285 = vmatprep.subr.mxu0 %v754
    %1286 = vmatpush1.msra.mxu0 %v753
    %1287 = vmatprep.subr.mxu0 %v758
    %1288 = vmatpush1.msra.mxu0 %v757
    %1289 = vmatprep.subr.mxu0 %v762
    %1290 = vmatpush1.msra.mxu0 %v761
    %1291 = vmatprep.subr.mxu0 %v766
    %1292 = vmatpush1.msra.mxu0 %v765
    %1293 = vmatprep.subr.mxu0 %v770
    %1294 = vmatpush1.msra.mxu0 %v769
    %1295 = vmatprep.subr.mxu0 %v774
    %1296 = vmatpush1.msra.mxu0 %v773
    %1297 = vmatprep.subr.mxu0 %v778
    %1298 = vmatpush1.msra.mxu0 %v777
    %1299 = vmatprep.subr.mxu0 %v782
    %1300 = vmatpush1.msra.mxu0 %v781
    %1301 = vmatprep.subr.mxu0 %v786
    %1302 = vmatpush1.msra.mxu0 %v785
    %1303 = vmatprep.subr.mxu0 %v790
    %1304 = vmatpush1.msra.mxu0 %v789
    %1305 = vmatprep.subr.mxu0 %v794
    %1306 = vmatpush1.msra.mxu0 %v793
    %1307 = vmatprep.subr.mxu0 %v798
    %1308 = vmatpush1.msra.mxu0 %v797
    %1309 = vmatprep.subr.mxu0 %v802
    %1310 = vmatpush1.msra.mxu0 %v801
    %1311 = vmatprep.subr.mxu0 %v806
    %1312 = vmatpush1.msra.mxu0 %v805
    %1313 = vmatprep.subr.mxu0 %v810
    %1314 = vmatpush1.msra.mxu0 %v809
    %1315 = vmatprep.subr.mxu0 %v814
    %1316 = vmatpush1.msra.mxu0 %v813
    %1317 = vmatprep.subr.mxu0 %v818
    %1318 = vmatpush1.msra.mxu0 %v817
    %1319 = vmatprep.subr.mxu0 %v822
    %1320 = vmatpush1.msra.mxu0 %v821
    %1321 = vmatprep.subr.mxu0 %v826
    %1322 = vmatpush1.msra.mxu0 %v825
    %1323 = vmatprep.subr.mxu0 %v830
    %1324 = vmatpush1.msra.mxu0 %v829
    %1325 = vmatprep.subr.mxu0 %v834
    %1326 = vmatpush1.msra.mxu0 %v833
    %1327 = vmatprep.subr.mxu0 %v838
    %1328 = vmatpush1.msra.mxu0 %v837
    %1329 = vmatprep.subr.mxu0 %v842
    %1330 = vmatpush1.msra.mxu0 %v841
    %1331 = vmatprep.subr.mxu0 %v846
    %1332 = vmatpush1.msra.mxu0 %v845
    %1333 = vmatprep.subr.mxu0 %v850
    %1334 = vmatpush1.msra.mxu0 %v849
    %1335 = vmatprep.subr.mxu0 %v854
    %1336 = vmatpush1.msra.mxu0 %v853
    %1337 = vmatprep.mubr.f32.mxu0 %v725
    %1338 = vmatmul.mubr.f32.gmra.mrb[0].mxu0 %v723
    %v1339 = vpop.f32.mrb[0].mxu0
    %v1340 = vadd.f32 %v1198, %v1339
    %v1341 = vpop.f32.mrb[0].mxu0
    %v1342 = vadd.f32 %v1200, %v1341
    %1343 = vdwg.mxu0
    %s1344 = scalar_lea.vmem %s9, 16
    %v1345 = vld [vmem:[%s1344] sm:$0xff]
    %v1347 = vsel %vm646, %v1345, 0
    %1349 = vmatprep.subr.mxu0 %v654
    %1350 = vmatpush1.msra.mxu0 %v651
    %1351 = vmatprep.subr.mxu0 0.0
    %1352 = vmatpush1.msra.mxu0 0.0
    %1353 = vmatprep.subr.mxu0 0.0
    %1354 = vmatpush1.msra.mxu0 0.0
    %1355 = vmatprep.subr.mxu0 0.0
    %1356 = vmatpush1.msra.mxu0 0.0
    %1357 = vmatprep.subr.mxu0 0.0
    %1358 = vmatpush1.msra.mxu0 0.0
    %1359 = vmatprep.subr.mxu0 0.0
    %1360 = vmatpush1.msra.mxu0 0.0
    %1361 = vmatprep.subr.mxu0 0.0
    %1362 = vmatpush1.msra.mxu0 0.0
    %1363 = vmatprep.subr.mxu0 0.0
    %1364 = vmatpush1.msra.mxu0 0.0
    %1365 = vmatprep.subr.mxu0 0.0
    %1366 = vmatpush1.msra.mxu0 0.0
    %1367 = vmatprep.subr.mxu0 0.0
    %1368 = vmatpush1.msra.mxu0 0.0
    %1369 = vmatprep.subr.mxu0 0.0
    %1370 = vmatpush1.msra.mxu0 0.0
    %1371 = vmatprep.subr.mxu0 0.0
    %1372 = vmatpush1.msra.mxu0 0.0
    %1373 = vmatprep.subr.mxu0 0.0
    %1374 = vmatpush1.msra.mxu0 0.0
    %1375 = vmatprep.subr.mxu0 0.0
    %1376 = vmatpush1.msra.mxu0 0.0
    %1377 = vmatprep.subr.mxu0 0.0
    %1378 = vmatpush1.msra.mxu0 0.0
    %1379 = vmatprep.subr.mxu0 0.0
    %1380 = vmatpush1.msra.mxu0 0.0
    %1381 = vmatprep.subr.mxu0 0.0
    %1382 = vmatpush1.msra.mxu0 0.0
    %1383 = vmatprep.subr.mxu0 0.0
    %1384 = vmatpush1.msra.mxu0 0.0
    %1385 = vmatprep.subr.mxu0 0.0
    %1386 = vmatpush1.msra.mxu0 0.0
    %1387 = vmatprep.subr.mxu0 0.0
    %1388 = vmatpush1.msra.mxu0 0.0
    %1389 = vmatprep.subr.mxu0 0.0
    %1390 = vmatpush1.msra.mxu0 0.0
    %1391 = vmatprep.subr.mxu0 0.0
    %1392 = vmatpush1.msra.mxu0 0.0
    %1393 = vmatprep.subr.mxu0 0.0
    %1394 = vmatpush1.msra.mxu0 0.0
    %1395 = vmatprep.subr.mxu0 0.0
    %1396 = vmatpush1.msra.mxu0 0.0
    %1397 = vmatprep.subr.mxu0 0.0
    %1398 = vmatpush1.msra.mxu0 0.0
    %1399 = vmatprep.subr.mxu0 0.0
    %1400 = vmatpush1.msra.mxu0 0.0
    %1401 = vmatprep.subr.mxu0 0.0
    %1402 = vmatpush1.msra.mxu0 0.0
    %1403 = vmatprep.subr.mxu0 0.0
    %1404 = vmatpush1.msra.mxu0 0.0
    %1405 = vmatprep.subr.mxu0 0.0
    %1406 = vmatpush1.msra.mxu0 0.0
    %1407 = vmatprep.subr.mxu0 0.0
    %1408 = vmatpush1.msra.mxu0 0.0
    %1409 = vmatprep.subr.mxu0 0.0
    %1410 = vmatpush1.msra.mxu0 0.0
    %1411 = vmatprep.subr.mxu0 0.0
    %1412 = vmatpush1.msra.mxu0 0.0
    %1413 = vmatprep.mubr.f32.mxu0 0.0
    %1414 = vmatmul.mubr.f32.gmra.mrb[0].mxu0 %v1347
    %v1415 = vpop.f32.mrb[0].mxu0
    %v1416 = vadd.f32 0.0, %v1415
    %v1417 = vpop.f32.mrb[0].mxu0
    %v1418 = vadd.f32 0.0, %v1417
    %1419 = vdwg.mxu0
    %s1420 = scalar_lea.vmem %s10, 2048
    %v1421 = vld [vmem:[%s1420] sm:$0xff]
    %v1422 = vld [vmem:[%s1420 + $0x8] sm:$0xff]
    %v1423 = vld [vmem:[%s1420 + $0x10] sm:$0xff]
    %v1424 = vld [vmem:[%s1420 + $0x18] sm:$0xff]
    %v1425 = vld [vmem:[%s1420 + $0x20] sm:$0xff]
    %v1426 = vld [vmem:[%s1420 + $0x28] sm:$0xff]
    %v1427 = vld [vmem:[%s1420 + $0x30] sm:$0xff]
    %v1428 = vld [vmem:[%s1420 + $0x38] sm:$0xff]
    %v1429 = vld [vmem:[%s1420 + $0x40] sm:$0xff]
    %v1430 = vld [vmem:[%s1420 + $0x48] sm:$0xff]
    %v1431 = vld [vmem:[%s1420 + $0x50] sm:$0xff]
    %v1432 = vld [vmem:[%s1420 + $0x58] sm:$0xff]
    %v1433 = vld [vmem:[%s1420 + $0x60] sm:$0xff]
    %v1434 = vld [vmem:[%s1420 + $0x68] sm:$0xff]
    %v1435 = vld [vmem:[%s1420 + $0x70] sm:$0xff]
    %v1436 = vld [vmem:[%s1420 + $0x78] sm:$0xff]
    %v1437 = vld [vmem:[%s1420 + $0x80] sm:$0xff]
    %v1438 = vld [vmem:[%s1420 + $0x88] sm:$0xff]
    %v1439 = vld [vmem:[%s1420 + $0x90] sm:$0xff]
    %v1440 = vld [vmem:[%s1420 + $0x98] sm:$0xff]
    %v1441 = vld [vmem:[%s1420 + $0xa0] sm:$0xff]
    %v1442 = vld [vmem:[%s1420 + $0xa8] sm:$0xff]
    %v1443 = vld [vmem:[%s1420 + $0xb0] sm:$0xff]
    %v1444 = vld [vmem:[%s1420 + $0xb8] sm:$0xff]
    %v1445 = vld [vmem:[%s1420 + $0xc0] sm:$0xff]
    %v1446 = vld [vmem:[%s1420 + $0xc8] sm:$0xff]
    %v1447 = vld [vmem:[%s1420 + $0xd0] sm:$0xff]
    %v1448 = vld [vmem:[%s1420 + $0xd8] sm:$0xff]
    %v1449 = vld [vmem:[%s1420 + $0xe0] sm:$0xff]
    %v1450 = vld [vmem:[%s1420 + $0xe8] sm:$0xff]
    %v1451 = vld [vmem:[%s1420 + $0xf0] sm:$0xff]
    %v1452 = vld [vmem:[%s1420 + $0xf8] sm:$0xff]
    %v1453 = vld [vmem:[%s1420 + $0x100] sm:$0xff]
    %v1454 = vld [vmem:[%s1420 + $0x108] sm:$0xff]
    %v1455 = vld [vmem:[%s1420 + $0x110] sm:$0xff]
    %v1456 = vld [vmem:[%s1420 + $0x118] sm:$0xff]
    %v1457 = vld [vmem:[%s1420 + $0x120] sm:$0xff]
    %v1458 = vld [vmem:[%s1420 + $0x128] sm:$0xff]
    %v1459 = vld [vmem:[%s1420 + $0x130] sm:$0xff]
    %v1460 = vld [vmem:[%s1420 + $0x138] sm:$0xff]
    %v1461 = vld [vmem:[%s1420 + $0x140] sm:$0xff]
    %v1462 = vld [vmem:[%s1420 + $0x148] sm:$0xff]
    %v1463 = vld [vmem:[%s1420 + $0x150] sm:$0xff]
    %v1464 = vld [vmem:[%s1420 + $0x158] sm:$0xff]
    %v1465 = vld [vmem:[%s1420 + $0x160] sm:$0xff]
    %v1466 = vld [vmem:[%s1420 + $0x168] sm:$0xff]
    %v1467 = vld [vmem:[%s1420 + $0x170] sm:$0xff]
    %v1468 = vld [vmem:[%s1420 + $0x178] sm:$0xff]
    %v1469 = vld [vmem:[%s1420 + $0x180] sm:$0xff]
    %v1470 = vld [vmem:[%s1420 + $0x188] sm:$0xff]
    %v1471 = vld [vmem:[%s1420 + $0x190] sm:$0xff]
    %v1472 = vld [vmem:[%s1420 + $0x198] sm:$0xff]
    %v1473 = vld [vmem:[%s1420 + $0x1a0] sm:$0xff]
    %v1474 = vld [vmem:[%s1420 + $0x1a8] sm:$0xff]
    %v1475 = vld [vmem:[%s1420 + $0x1b0] sm:$0xff]
    %v1476 = vld [vmem:[%s1420 + $0x1b8] sm:$0xff]
    %v1477 = vld [vmem:[%s1420 + $0x1c0] sm:$0xff]
    %v1478 = vld [vmem:[%s1420 + $0x1c8] sm:$0xff]
    %v1479 = vld [vmem:[%s1420 + $0x1d0] sm:$0xff]
    %v1480 = vld [vmem:[%s1420 + $0x1d8] sm:$0xff]
    %v1481 = vld [vmem:[%s1420 + $0x1e0] sm:$0xff]
    %v1482 = vld [vmem:[%s1420 + $0x1e8] sm:$0xff]
    %v1483 = vld [vmem:[%s1420 + $0x1f0] sm:$0xff]
    %v1484 = vld [vmem:[%s1420 + $0x1f8] sm:$0xff]
    %v1485 = vld [vmem:[%s1420 + $0x200] sm:$0xff]
    %v1486 = vld [vmem:[%s1420 + $0x208] sm:$0xff]
    %v1487 = vld [vmem:[%s1420 + $0x210] sm:$0xff]
    %v1488 = vld [vmem:[%s1420 + $0x218] sm:$0xff]
    %v1489 = vld [vmem:[%s1420 + $0x220] sm:$0xff]
    %v1490 = vld [vmem:[%s1420 + $0x228] sm:$0xff]
    %v1491 = vld [vmem:[%s1420 + $0x230] sm:$0xff]
    %v1492 = vld [vmem:[%s1420 + $0x238] sm:$0xff]
    %v1493 = vld [vmem:[%s1420 + $0x240] sm:$0xff]
    %v1494 = vld [vmem:[%s1420 + $0x248] sm:$0xff]
    %v1495 = vld [vmem:[%s1420 + $0x250] sm:$0xff]
    %v1496 = vld [vmem:[%s1420 + $0x258] sm:$0xff]
    %v1497 = vld [vmem:[%s1420 + $0x260] sm:$0xff]
    %v1498 = vld [vmem:[%s1420 + $0x268] sm:$0xff]
    %v1499 = vld [vmem:[%s1420 + $0x270] sm:$0xff]
    %v1500 = vld [vmem:[%s1420 + $0x278] sm:$0xff]
    %v1501 = vld [vmem:[%s1420 + $0x280] sm:$0xff]
    %v1502 = vld [vmem:[%s1420 + $0x288] sm:$0xff]
    %v1503 = vld [vmem:[%s1420 + $0x290] sm:$0xff]
    %v1504 = vld [vmem:[%s1420 + $0x298] sm:$0xff]
    %v1505 = vld [vmem:[%s1420 + $0x2a0] sm:$0xff]
    %v1506 = vld [vmem:[%s1420 + $0x2a8] sm:$0xff]
    %v1507 = vld [vmem:[%s1420 + $0x2b0] sm:$0xff]
    %v1508 = vld [vmem:[%s1420 + $0x2b8] sm:$0xff]
    %v1509 = vld [vmem:[%s1420 + $0x2c0] sm:$0xff]
    %v1510 = vld [vmem:[%s1420 + $0x2c8] sm:$0xff]
    %v1511 = vld [vmem:[%s1420 + $0x2d0] sm:$0xff]
    %v1512 = vld [vmem:[%s1420 + $0x2d8] sm:$0xff]
    %v1513 = vld [vmem:[%s1420 + $0x2e0] sm:$0xff]
    %v1514 = vld [vmem:[%s1420 + $0x2e8] sm:$0xff]
    %v1515 = vld [vmem:[%s1420 + $0x2f0] sm:$0xff]
    %v1516 = vld [vmem:[%s1420 + $0x2f8] sm:$0xff]
    %v1517 = vld [vmem:[%s1420 + $0x300] sm:$0xff]
    %v1518 = vld [vmem:[%s1420 + $0x308] sm:$0xff]
    %v1519 = vld [vmem:[%s1420 + $0x310] sm:$0xff]
    %v1520 = vld [vmem:[%s1420 + $0x318] sm:$0xff]
    %v1521 = vld [vmem:[%s1420 + $0x320] sm:$0xff]
    %v1522 = vld [vmem:[%s1420 + $0x328] sm:$0xff]
    %v1523 = vld [vmem:[%s1420 + $0x330] sm:$0xff]
    %v1524 = vld [vmem:[%s1420 + $0x338] sm:$0xff]
    %v1525 = vld [vmem:[%s1420 + $0x340] sm:$0xff]
    %v1526 = vld [vmem:[%s1420 + $0x348] sm:$0xff]
    %v1527 = vld [vmem:[%s1420 + $0x350] sm:$0xff]
    %v1528 = vld [vmem:[%s1420 + $0x358] sm:$0xff]
    %v1529 = vld [vmem:[%s1420 + $0x360] sm:$0xff]
    %v1530 = vld [vmem:[%s1420 + $0x368] sm:$0xff]
    %v1531 = vld [vmem:[%s1420 + $0x370] sm:$0xff]
    %v1532 = vld [vmem:[%s1420 + $0x378] sm:$0xff]
    %v1533 = vld [vmem:[%s1420 + $0x380] sm:$0xff]
    %v1534 = vld [vmem:[%s1420 + $0x388] sm:$0xff]
    %v1535 = vld [vmem:[%s1420 + $0x390] sm:$0xff]
    %v1536 = vld [vmem:[%s1420 + $0x398] sm:$0xff]
    %v1537 = vld [vmem:[%s1420 + $0x3a0] sm:$0xff]
    %v1538 = vld [vmem:[%s1420 + $0x3a8] sm:$0xff]
    %v1539 = vld [vmem:[%s1420 + $0x3b0] sm:$0xff]
    %v1540 = vld [vmem:[%s1420 + $0x3b8] sm:$0xff]
    %v1541 = vld [vmem:[%s1420 + $0x3c0] sm:$0xff]
    %v1542 = vld [vmem:[%s1420 + $0x3c8] sm:$0xff]
    %v1543 = vld [vmem:[%s1420 + $0x3d0] sm:$0xff]
    %v1544 = vld [vmem:[%s1420 + $0x3d8] sm:$0xff]
    %v1545 = vld [vmem:[%s1420 + $0x3e0] sm:$0xff]
    %v1546 = vld [vmem:[%s1420 + $0x3e8] sm:$0xff]
    %v1547 = vld [vmem:[%s1420 + $0x3f0] sm:$0xff]
    %v1548 = vld [vmem:[%s1420 + $0x3f8] sm:$0xff]
    %1549 = vmatprep.subr.mxu0 %v1422
    %1550 = vmatpush1.msra.mxu0 %v1421
    %1551 = vmatprep.subr.mxu0 %v1426
    %1552 = vmatpush1.msra.mxu0 %v1425
    %1553 = vmatprep.subr.mxu0 %v1430
    %1554 = vmatpush1.msra.mxu0 %v1429
    %1555 = vmatprep.subr.mxu0 %v1434
    %1556 = vmatpush1.msra.mxu0 %v1433
    %1557 = vmatprep.subr.mxu0 %v1438
    %1558 = vmatpush1.msra.mxu0 %v1437
    %1559 = vmatprep.subr.mxu0 %v1442
    %1560 = vmatpush1.msra.mxu0 %v1441
    %1561 = vmatprep.subr.mxu0 %v1446
    %1562 = vmatpush1.msra.mxu0 %v1445
    %1563 = vmatprep.subr.mxu0 %v1450
    %1564 = vmatpush1.msra.mxu0 %v1449
    %1565 = vmatprep.subr.mxu0 %v1454
    %1566 = vmatpush1.msra.mxu0 %v1453
    %1567 = vmatprep.subr.mxu0 %v1458
    %1568 = vmatpush1.msra.mxu0 %v1457
    %1569 = vmatprep.subr.mxu0 %v1462
    %1570 = vmatpush1.msra.mxu0 %v1461
    %1571 = vmatprep.subr.mxu0 %v1466
    %1572 = vmatpush1.msra.mxu0 %v1465
    %1573 = vmatprep.subr.mxu0 %v1470
    %1574 = vmatpush1.msra.mxu0 %v1469
    %1575 = vmatprep.subr.mxu0 %v1474
    %1576 = vmatpush1.msra.mxu0 %v1473
    %1577 = vmatprep.subr.mxu0 %v1478
    %1578 = vmatpush1.msra.mxu0 %v1477
    %1579 = vmatprep.subr.mxu0 %v1482
    %1580 = vmatpush1.msra.mxu0 %v1481
    %1581 = vmatprep.subr.mxu0 %v1486
    %1582 = vmatpush1.msra.mxu0 %v1485
    %1583 = vmatprep.subr.mxu0 %v1490
    %1584 = vmatpush1.msra.mxu0 %v1489
    %1585 = vmatprep.subr.mxu0 %v1494
    %1586 = vmatpush1.msra.mxu0 %v1493
    %1587 = vmatprep.subr.mxu0 %v1498
    %1588 = vmatpush1.msra.mxu0 %v1497
    %1589 = vmatprep.subr.mxu0 %v1502
    %1590 = vmatpush1.msra.mxu0 %v1501
    %1591 = vmatprep.subr.mxu0 %v1506
    %1592 = vmatpush1.msra.mxu0 %v1505
    %1593 = vmatprep.subr.mxu0 %v1510
    %1594 = vmatpush1.msra.mxu0 %v1509
    %1595 = vmatprep.subr.mxu0 %v1514
    %1596 = vmatpush1.msra.mxu0 %v1513
    %1597 = vmatprep.subr.mxu0 %v1518
    %1598 = vmatpush1.msra.mxu0 %v1517
    %1599 = vmatprep.subr.mxu0 %v1522
    %1600 = vmatpush1.msra.mxu0 %v1521
    %1601 = vmatprep.subr.mxu0 %v1526
    %1602 = vmatpush1.msra.mxu0 %v1525
    %1603 = vmatprep.subr.mxu0 %v1530
    %1604 = vmatpush1.msra.mxu0 %v1529
    %1605 = vmatprep.subr.mxu0 %v1534
    %1606 = vmatpush1.msra.mxu0 %v1533
    %1607 = vmatprep.subr.mxu0 %v1538
    %1608 = vmatpush1.msra.mxu0 %v1537
    %1609 = vmatprep.subr.mxu0 %v1542
    %1610 = vmatpush1.msra.mxu0 %v1541
    %1611 = vmatprep.subr.mxu0 %v1546
    %1612 = vmatpush1.msra.mxu0 %v1545
    %1613 = vmatprep.mubr.f32.mxu0 %v1418
    %1614 = vmatmul.mubr.f32.gmra.mrb[0].mxu0 %v1416
    %v1615 = vpop.f32.mrb[0].mxu0
    %v1616 = vadd.f32 0.0, %v1615
    %v1617 = vpop.f32.mrb[0].mxu0
    %v1618 = vadd.f32 0.0, %v1617
    %1619 = vdwg.mxu0
    %1620 = vmatprep.subr.mxu0 %v1424
    %1621 = vmatpush1.msra.mxu0 %v1423
    %1622 = vmatprep.subr.mxu0 %v1428
    %1623 = vmatpush1.msra.mxu0 %v1427
    %1624 = vmatprep.subr.mxu0 %v1432
    %1625 = vmatpush1.msra.mxu0 %v1431
    %1626 = vmatprep.subr.mxu0 %v1436
    %1627 = vmatpush1.msra.mxu0 %v1435
    %1628 = vmatprep.subr.mxu0 %v1440
    %1629 = vmatpush1.msra.mxu0 %v1439
    %1630 = vmatprep.subr.mxu0 %v1444
    %1631 = vmatpush1.msra.mxu0 %v1443
    %1632 = vmatprep.subr.mxu0 %v1448
    %1633 = vmatpush1.msra.mxu0 %v1447
    %1634 = vmatprep.subr.mxu0 %v1452
    %1635 = vmatpush1.msra.mxu0 %v1451
    %1636 = vmatprep.subr.mxu0 %v1456
    %1637 = vmatpush1.msra.mxu0 %v1455
    %1638 = vmatprep.subr.mxu0 %v1460
    %1639 = vmatpush1.msra.mxu0 %v1459
    %1640 = vmatprep.subr.mxu0 %v1464
    %1641 = vmatpush1.msra.mxu0 %v1463
    %1642 = vmatprep.subr.mxu0 %v1468
    %1643 = vmatpush1.msra.mxu0 %v1467
    %1644 = vmatprep.subr.mxu0 %v1472
    %1645 = vmatpush1.msra.mxu0 %v1471
    %1646 = vmatprep.subr.mxu0 %v1476
    %1647 = vmatpush1.msra.mxu0 %v1475
    %1648 = vmatprep.subr.mxu0 %v1480
    %1649 = vmatpush1.msra.mxu0 %v1479
    %1650 = vmatprep.subr.mxu0 %v1484
    %1651 = vmatpush1.msra.mxu0 %v1483
    %1652 = vmatprep.subr.mxu0 %v1488
    %1653 = vmatpush1.msra.mxu0 %v1487
    %1654 = vmatprep.subr.mxu0 %v1492
    %1655 = vmatpush1.msra.mxu0 %v1491
    %1656 = vmatprep.subr.mxu0 %v1496
    %1657 = vmatpush1.msra.mxu0 %v1495
    %1658 = vmatprep.subr.mxu0 %v1500
    %1659 = vmatpush1.msra.mxu0 %v1499
    %1660 = vmatprep.subr.mxu0 %v1504
    %1661 = vmatpush1.msra.mxu0 %v1503
    %1662 = vmatprep.subr.mxu0 %v1508
    %1663 = vmatpush1.msra.mxu0 %v1507
    %1664 = vmatprep.subr.mxu0 %v1512
    %1665 = vmatpush1.msra.mxu0 %v1511
    %1666 = vmatprep.subr.mxu0 %v1516
    %1667 = vmatpush1.msra.mxu0 %v1515
    %1668 = vmatprep.subr.mxu0 %v1520
    %1669 = vmatpush1.msra.mxu0 %v1519
    %1670 = vmatprep.subr.mxu0 %v1524
    %1671 = vmatpush1.msra.mxu0 %v1523
    %1672 = vmatprep.subr.mxu0 %v1528
    %1673 = vmatpush1.msra.mxu0 %v1527
    %1674 = vmatprep.subr.mxu0 %v1532
    %1675 = vmatpush1.msra.mxu0 %v1531
    %1676 = vmatprep.subr.mxu0 %v1536
    %1677 = vmatpush1.msra.mxu0 %v1535
    %1678 = vmatprep.subr.mxu0 %v1540
    %1679 = vmatpush1.msra.mxu0 %v1539
    %1680 = vmatprep.subr.mxu0 %v1544
    %1681 = vmatpush1.msra.mxu0 %v1543
    %1682 = vmatprep.subr.mxu0 %v1548
    %1683 = vmatpush1.msra.mxu0 %v1547
    %1684 = vmatprep.mubr.f32.mxu0 %v1418
    %1685 = vmatmul.mubr.f32.gmra.mrb[0].mxu0 %v1416
    %v1686 = vpop.f32.mrb[0].mxu0
    %v1687 = vadd.f32 0.0, %v1686
    %v1688 = vpop.f32.mrb[0].mxu0
    %v1689 = vadd.f32 0.0, %v1688
    %1690 = vdwg.mxu0
    %v1691 = vadd.f32 %v1269, %v1616
    %v1692 = vadd.f32 %v1271, %v1618
    %v1693 = vadd.f32 %v1340, %v1687
    %v1694 = vadd.f32 %v1342, %v1689
    %v1695 = vld [vmem:[%s11] sm:$0xf]
    %v1697 = vlaneseq
    %v1698 = vshrl.u32 %v1697, 7
    %v1699 = vsub.s32 0, %v1698
    %v1700 = vrot.slane %v1695, %v1699
    %v1701 = vlaneseq
    %v1702 = vshrl.u32 %v1701, 7
    %v1703 = vsub.s32 1, %v1702
    %v1704 = vrot.slane %v1695, %v1703
    %v1705 = vlaneseq
    %v1706 = vshrl.u32 %v1705, 7
    %v1707 = vsub.s32 2, %v1706
    %v1708 = vrot.slane %v1695, %v1707
    %v1709 = vlaneseq
    %v1710 = vshrl.u32 %v1709, 7
    %v1711 = vsub.s32 3, %v1710
    %v1712 = vrot.slane %v1695, %v1711
    %v1717 = vadd.f32 %v1691, %v1700
    %v1718 = vadd.f32 %v1692, %v1704
    %v1719 = vadd.f32 %v1693, %v1708
    %v1720 = vadd.f32 %v1694, %v1712
    %v1721 = vmax.f32 %v1717, 0.0
    %v1722 = vmax.f32 %v1718, 0.0
    %v1723 = vmax.f32 %v1719, 0.0
    %v1724 = vmax.f32 %v1720, 0.0
    %v1725 = vld [vmem:[%s12] sm:$0xff]
    %v1726 = vld [vmem:[%s12 + $0x8] sm:$0x3f]
    %vm1727 = vcmask 64512
    %v1729 = vsel %vm1727, %v1725, 0
    %v1732 = vsel %vm1727, %v1726, 0
    %1734 = vmatprep.subr.mxu0 %v1722
    %1735 = vmatpush1.msra.mxu0 %v1721
    %1736 = vmatprep.subr.mxu0 0.0
    %1737 = vmatpush1.msra.mxu0 0.0
    %1738 = vmatprep.subr.mxu0 0.0
    %1739 = vmatpush1.msra.mxu0 0.0
    %1740 = vmatprep.subr.mxu0 0.0
    %1741 = vmatpush1.msra.mxu0 0.0
    %1742 = vmatprep.subr.mxu0 0.0
    %1743 = vmatpush1.msra.mxu0 0.0
    %1744 = vmatprep.subr.mxu0 0.0
    %1745 = vmatpush1.msra.mxu0 0.0
    %1746 = vmatprep.subr.mxu0 0.0
    %1747 = vmatpush1.msra.mxu0 0.0
    %1748 = vmatprep.subr.mxu0 0.0
    %1749 = vmatpush1.msra.mxu0 0.0
    %1750 = vmatprep.subr.mxu0 0.0
    %1751 = vmatpush1.msra.mxu0 0.0
    %1752 = vmatprep.subr.mxu0 0.0
    %1753 = vmatpush1.msra.mxu0 0.0
    %1754 = vmatprep.subr.mxu0 0.0
    %1755 = vmatpush1.msra.mxu0 0.0
    %1756 = vmatprep.subr.mxu0 0.0
    %1757 = vmatpush1.msra.mxu0 0.0
    %1758 = vmatprep.subr.mxu0 0.0
    %1759 = vmatpush1.msra.mxu0 0.0
    %1760 = vmatprep.subr.mxu0 0.0
    %1761 = vmatpush1.msra.mxu0 0.0
    %1762 = vmatprep.subr.mxu0 0.0
    %1763 = vmatpush1.msra.mxu0 0.0
    %1764 = vmatprep.subr.mxu0 0.0
    %1765 = vmatpush1.msra.mxu0 0.0
    %1766 = vmatprep.subr.mxu0 0.0
    %1767 = vmatpush1.msra.mxu0 0.0
    %1768 = vmatprep.subr.mxu0 0.0
    %1769 = vmatpush1.msra.mxu0 0.0
    %1770 = vmatprep.subr.mxu0 0.0
    %1771 = vmatpush1.msra.mxu0 0.0
    %1772 = vmatprep.subr.mxu0 0.0
    %1773 = vmatpush1.msra.mxu0 0.0
    %1774 = vmatprep.subr.mxu0 0.0
    %1775 = vmatpush1.msra.mxu0 0.0
    %1776 = vmatprep.subr.mxu0 0.0
    %1777 = vmatpush1.msra.mxu0 0.0
    %1778 = vmatprep.subr.mxu0 0.0
    %1779 = vmatpush1.msra.mxu0 0.0
    %1780 = vmatprep.subr.mxu0 0.0
    %1781 = vmatpush1.msra.mxu0 0.0
    %1782 = vmatprep.subr.mxu0 0.0
    %1783 = vmatpush1.msra.mxu0 0.0
    %1784 = vmatprep.subr.mxu0 0.0
    %1785 = vmatpush1.msra.mxu0 0.0
    %1786 = vmatprep.subr.mxu0 0.0
    %1787 = vmatpush1.msra.mxu0 0.0
    %1788 = vmatprep.subr.mxu0 0.0
    %1789 = vmatpush1.msra.mxu0 0.0
    %1790 = vmatprep.subr.mxu0 0.0
    %1791 = vmatpush1.msra.mxu0 0.0
    %1792 = vmatprep.subr.mxu0 0.0
    %1793 = vmatpush1.msra.mxu0 0.0
    %1794 = vmatprep.subr.mxu0 0.0
    %1795 = vmatpush1.msra.mxu0 0.0
    %1796 = vmatprep.subr.mxu0 0.0
    %1797 = vmatpush1.msra.mxu0 0.0
    %1798 = vmatprep.mubr.f32.mxu0 0.0
    %1799 = vmatmul.mubr.f32.gmra.mrb[0].mxu0 %v1729
    %v1800 = vpop.f32.mrb[0].mxu0
    %v1801 = vadd.f32 0.0, %v1800
    %v1802 = vpop.f32.mrb[0].mxu0
    %v1803 = vadd.f32 0.0, %v1802
    %1804 = vmatprep.mubr.f32.mxu0 0.0
    %1805 = vmatmul.mubr.f32.gmra.mrb[0].mxu0 %v1732
    %v1806 = vpop.f32.mrb[0].mxu0
    %v1807 = vadd.f32 0.0, %v1806
    %v1808 = vpop.f32.mrb[0].mxu0
    %v1809 = vadd.f32 0.0, %v1808
    %1810 = vdwg.mxu0
    %1811 = vmatprep.subr.mxu0 %v1724
    %1812 = vmatpush1.msra.mxu0 %v1723
    %1813 = vmatprep.subr.mxu0 0.0
    %1814 = vmatpush1.msra.mxu0 0.0
    %1815 = vmatprep.subr.mxu0 0.0
    %1816 = vmatpush1.msra.mxu0 0.0
    %1817 = vmatprep.subr.mxu0 0.0
    %1818 = vmatpush1.msra.mxu0 0.0
    %1819 = vmatprep.subr.mxu0 0.0
    %1820 = vmatpush1.msra.mxu0 0.0
    %1821 = vmatprep.subr.mxu0 0.0
    %1822 = vmatpush1.msra.mxu0 0.0
    %1823 = vmatprep.subr.mxu0 0.0
    %1824 = vmatpush1.msra.mxu0 0.0
    %1825 = vmatprep.subr.mxu0 0.0
    %1826 = vmatpush1.msra.mxu0 0.0
    %1827 = vmatprep.subr.mxu0 0.0
    %1828 = vmatpush1.msra.mxu0 0.0
    %1829 = vmatprep.subr.mxu0 0.0
    %1830 = vmatpush1.msra.mxu0 0.0
    %1831 = vmatprep.subr.mxu0 0.0
    %1832 = vmatpush1.msra.mxu0 0.0
    %1833 = vmatprep.subr.mxu0 0.0
    %1834 = vmatpush1.msra.mxu0 0.0
    %1835 = vmatprep.subr.mxu0 0.0
    %1836 = vmatpush1.msra.mxu0 0.0
    %1837 = vmatprep.subr.mxu0 0.0
    %1838 = vmatpush1.msra.mxu0 0.0
    %1839 = vmatprep.subr.mxu0 0.0
    %1840 = vmatpush1.msra.mxu0 0.0
    %1841 = vmatprep.subr.mxu0 0.0
    %1842 = vmatpush1.msra.mxu0 0.0
    %1843 = vmatprep.subr.mxu0 0.0
    %1844 = vmatpush1.msra.mxu0 0.0
    %1845 = vmatprep.subr.mxu0 0.0
    %1846 = vmatpush1.msra.mxu0 0.0
    %1847 = vmatprep.subr.mxu0 0.0
    %1848 = vmatpush1.msra.mxu0 0.0
    %1849 = vmatprep.subr.mxu0 0.0
    %1850 = vmatpush1.msra.mxu0 0.0
    %1851 = vmatprep.subr.mxu0 0.0
    %1852 = vmatpush1.msra.mxu0 0.0
    %1853 = vmatprep.subr.mxu0 0.0
    %1854 = vmatpush1.msra.mxu0 0.0
    %1855 = vmatprep.subr.mxu0 0.0
    %1856 = vmatpush1.msra.mxu0 0.0
    %1857 = vmatprep.subr.mxu0 0.0
    %1858 = vmatpush1.msra.mxu0 0.0
    %1859 = vmatprep.subr.mxu0 0.0
    %1860 = vmatpush1.msra.mxu0 0.0
    %1861 = vmatprep.subr.mxu0 0.0
    %1862 = vmatpush1.msra.mxu0 0.0
    %1863 = vmatprep.subr.mxu0 0.0
    %1864 = vmatpush1.msra.mxu0 0.0
    %1865 = vmatprep.subr.mxu0 0.0
    %1866 = vmatpush1.msra.mxu0 0.0
    %1867 = vmatprep.subr.mxu0 0.0
    %1868 = vmatpush1.msra.mxu0 0.0
    %1869 = vmatprep.subr.mxu0 0.0
    %1870 = vmatpush1.msra.mxu0 0.0
    %1871 = vmatprep.subr.mxu0 0.0
    %1872 = vmatpush1.msra.mxu0 0.0
    %1873 = vmatprep.subr.mxu0 0.0
    %1874 = vmatpush1.msra.mxu0 0.0
    %1875 = vmatprep.mubr.f32.mxu0 0.0
    %1876 = vmatmul.mubr.f32.gmra.mrb[0].mxu0 %v1729
    %v1877 = vpop.f32.mrb[0].mxu0
    %v1878 = vadd.f32 0.0, %v1877
    %v1879 = vpop.f32.mrb[0].mxu0
    %v1880 = vadd.f32 0.0, %v1879
    %1881 = vmatprep.mubr.f32.mxu0 0.0
    %1882 = vmatmul.mubr.f32.gmra.mrb[0].mxu0 %v1732
    %v1883 = vpop.f32.mrb[0].mxu0
    %v1884 = vadd.f32 0.0, %v1883
    %v1885 = vpop.f32.mrb[0].mxu0
    %v1886 = vadd.f32 0.0, %v1885
    %1887 = vdwg.mxu0
    %v1888 = vld [vmem:[%s13] sm:$0xff]
    %v1889 = vld [vmem:[%s13 + $0x8] sm:$0xff]
    %v1890 = vld [vmem:[%s13 + $0x10] sm:$0xff]
    %v1891 = vld [vmem:[%s13 + $0x18] sm:$0xff]
    %v1892 = vld [vmem:[%s13 + $0x20] sm:$0xff]
    %v1893 = vld [vmem:[%s13 + $0x28] sm:$0xff]
    %v1894 = vld [vmem:[%s13 + $0x30] sm:$0xff]
    %v1895 = vld [vmem:[%s13 + $0x38] sm:$0xff]
    %v1896 = vld [vmem:[%s13 + $0x40] sm:$0xff]
    %v1897 = vld [vmem:[%s13 + $0x48] sm:$0xff]
    %v1898 = vld [vmem:[%s13 + $0x50] sm:$0xff]
    %v1899 = vld [vmem:[%s13 + $0x58] sm:$0xff]
    %v1900 = vld [vmem:[%s13 + $0x60] sm:$0xff]
    %v1901 = vld [vmem:[%s13 + $0x68] sm:$0xff]
    %v1902 = vld [vmem:[%s13 + $0x70] sm:$0xff]
    %v1903 = vld [vmem:[%s13 + $0x78] sm:$0xff]
    %v1904 = vld [vmem:[%s13 + $0x80] sm:$0xff]
    %v1905 = vld [vmem:[%s13 + $0x88] sm:$0xff]
    %v1906 = vld [vmem:[%s13 + $0x90] sm:$0xff]
    %v1907 = vld [vmem:[%s13 + $0x98] sm:$0xff]
    %v1908 = vld [vmem:[%s13 + $0xa0] sm:$0xff]
    %v1909 = vld [vmem:[%s13 + $0xa8] sm:$0xff]
    %v1910 = vld [vmem:[%s13 + $0xb0] sm:$0xff]
    %v1911 = vld [vmem:[%s13 + $0xb8] sm:$0xff]
    %v1912 = vld [vmem:[%s13 + $0xc0] sm:$0xff]
    %v1913 = vld [vmem:[%s13 + $0xc8] sm:$0xff]
    %v1914 = vld [vmem:[%s13 + $0xd0] sm:$0xff]
    %v1915 = vld [vmem:[%s13 + $0xd8] sm:$0xff]
    %v1916 = vld [vmem:[%s13 + $0xe0] sm:$0xff]
    %v1917 = vld [vmem:[%s13 + $0xe8] sm:$0xff]
    %v1918 = vld [vmem:[%s13 + $0xf0] sm:$0xff]
    %v1919 = vld [vmem:[%s13 + $0xf8] sm:$0xff]
    %v1920 = vld [vmem:[%s13 + $0x100] sm:$0xff]
    %v1921 = vld [vmem:[%s13 + $0x108] sm:$0xff]
    %v1922 = vld [vmem:[%s13 + $0x110] sm:$0xff]
    %v1923 = vld [vmem:[%s13 + $0x118] sm:$0xff]
    %v1924 = vld [vmem:[%s13 + $0x120] sm:$0xff]
    %v1925 = vld [vmem:[%s13 + $0x128] sm:$0xff]
    %v1926 = vld [vmem:[%s13 + $0x130] sm:$0xff]
    %v1927 = vld [vmem:[%s13 + $0x138] sm:$0xff]
    %v1928 = vld [vmem:[%s13 + $0x140] sm:$0xff]
    %v1929 = vld [vmem:[%s13 + $0x148] sm:$0xff]
    %v1930 = vld [vmem:[%s13 + $0x150] sm:$0xff]
    %v1931 = vld [vmem:[%s13 + $0x158] sm:$0xff]
    %v1932 = vld [vmem:[%s13 + $0x160] sm:$0xff]
    %v1933 = vld [vmem:[%s13 + $0x168] sm:$0xff]
    %v1934 = vld [vmem:[%s13 + $0x170] sm:$0xff]
    %v1935 = vld [vmem:[%s13 + $0x178] sm:$0xff]
    %v1936 = vld [vmem:[%s13 + $0x180] sm:$0xff]
    %v1937 = vld [vmem:[%s13 + $0x188] sm:$0xff]
    %v1938 = vld [vmem:[%s13 + $0x190] sm:$0xff]
    %v1939 = vld [vmem:[%s13 + $0x198] sm:$0xff]
    %v1940 = vld [vmem:[%s13 + $0x1a0] sm:$0xff]
    %v1941 = vld [vmem:[%s13 + $0x1a8] sm:$0xff]
    %v1942 = vld [vmem:[%s13 + $0x1b0] sm:$0xff]
    %v1943 = vld [vmem:[%s13 + $0x1b8] sm:$0xff]
    %v1944 = vld [vmem:[%s13 + $0x1c0] sm:$0xff]
    %v1945 = vld [vmem:[%s13 + $0x1c8] sm:$0xff]
    %v1946 = vld [vmem:[%s13 + $0x1d0] sm:$0xff]
    %v1947 = vld [vmem:[%s13 + $0x1d8] sm:$0xff]
    %v1948 = vld [vmem:[%s13 + $0x1e0] sm:$0xff]
    %v1949 = vld [vmem:[%s13 + $0x1e8] sm:$0xff]
    %v1950 = vld [vmem:[%s13 + $0x1f0] sm:$0xff]
    %v1951 = vld [vmem:[%s13 + $0x1f8] sm:$0xff]
    %v1952 = vld [vmem:[%s13 + $0x200] sm:$0xff]
    %v1953 = vld [vmem:[%s13 + $0x208] sm:$0xff]
    %v1954 = vld [vmem:[%s13 + $0x210] sm:$0xff]
    %v1955 = vld [vmem:[%s13 + $0x218] sm:$0xff]
    %v1956 = vld [vmem:[%s13 + $0x220] sm:$0xff]
    %v1957 = vld [vmem:[%s13 + $0x228] sm:$0xff]
    %v1958 = vld [vmem:[%s13 + $0x230] sm:$0xff]
    %v1959 = vld [vmem:[%s13 + $0x238] sm:$0xff]
    %v1960 = vld [vmem:[%s13 + $0x240] sm:$0xff]
    %v1961 = vld [vmem:[%s13 + $0x248] sm:$0xff]
    %v1962 = vld [vmem:[%s13 + $0x250] sm:$0xff]
    %v1963 = vld [vmem:[%s13 + $0x258] sm:$0xff]
    %v1964 = vld [vmem:[%s13 + $0x260] sm:$0xff]
    %v1965 = vld [vmem:[%s13 + $0x268] sm:$0xff]
    %v1966 = vld [vmem:[%s13 + $0x270] sm:$0xff]
    %v1967 = vld [vmem:[%s13 + $0x278] sm:$0xff]
    %v1968 = vld [vmem:[%s13 + $0x280] sm:$0xff]
    %v1969 = vld [vmem:[%s13 + $0x288] sm:$0xff]
    %v1970 = vld [vmem:[%s13 + $0x290] sm:$0xff]
    %v1971 = vld [vmem:[%s13 + $0x298] sm:$0xff]
    %v1972 = vld [vmem:[%s13 + $0x2a0] sm:$0xff]
    %v1973 = vld [vmem:[%s13 + $0x2a8] sm:$0xff]
    %v1974 = vld [vmem:[%s13 + $0x2b0] sm:$0xff]
    %v1975 = vld [vmem:[%s13 + $0x2b8] sm:$0xff]
    %v1976 = vld [vmem:[%s13 + $0x2c0] sm:$0xff]
    %v1977 = vld [vmem:[%s13 + $0x2c8] sm:$0xff]
    %v1978 = vld [vmem:[%s13 + $0x2d0] sm:$0xff]
    %v1979 = vld [vmem:[%s13 + $0x2d8] sm:$0xff]
    %v1980 = vld [vmem:[%s13 + $0x2e0] sm:$0xff]
    %v1981 = vld [vmem:[%s13 + $0x2e8] sm:$0xff]
    %v1982 = vld [vmem:[%s13 + $0x2f0] sm:$0xff]
    %v1983 = vld [vmem:[%s13 + $0x2f8] sm:$0xff]
    %v1984 = vld [vmem:[%s13 + $0x300] sm:$0xff]
    %v1985 = vld [vmem:[%s13 + $0x308] sm:$0xff]
    %v1986 = vld [vmem:[%s13 + $0x310] sm:$0xff]
    %v1987 = vld [vmem:[%s13 + $0x318] sm:$0xff]
    %v1988 = vld [vmem:[%s13 + $0x320] sm:$0xff]
    %v1989 = vld [vmem:[%s13 + $0x328] sm:$0xff]
    %v1990 = vld [vmem:[%s13 + $0x330] sm:$0xff]
    %v1991 = vld [vmem:[%s13 + $0x338] sm:$0xff]
    %v1992 = vld [vmem:[%s13 + $0x340] sm:$0xff]
    %v1993 = vld [vmem:[%s13 + $0x348] sm:$0xff]
    %v1994 = vld [vmem:[%s13 + $0x350] sm:$0xff]
    %v1995 = vld [vmem:[%s13 + $0x358] sm:$0xff]
    %v1996 = vld [vmem:[%s13 + $0x360] sm:$0xff]
    %v1997 = vld [vmem:[%s13 + $0x368] sm:$0xff]
    %v1998 = vld [vmem:[%s13 + $0x370] sm:$0xff]
    %v1999 = vld [vmem:[%s13 + $0x378] sm:$0xff]
    %v2000 = vld [vmem:[%s13 + $0x380] sm:$0xff]
    %v2001 = vld [vmem:[%s13 + $0x388] sm:$0xff]
    %v2002 = vld [vmem:[%s13 + $0x390] sm:$0xff]
    %v2003 = vld [vmem:[%s13 + $0x398] sm:$0xff]
    %v2004 = vld [vmem:[%s13 + $0x3a0] sm:$0xff]
    %v2005 = vld [vmem:[%s13 + $0x3a8] sm:$0xff]
    %v2006 = vld [vmem:[%s13 + $0x3b0] sm:$0xff]
    %v2007 = vld [vmem:[%s13 + $0x3b8] sm:$0xff]
    %v2008 = vld [vmem:[%s13 + $0x3c0] sm:$0xff]
    %v2009 = vld [vmem:[%s13 + $0x3c8] sm:$0xff]
    %v2010 = vld [vmem:[%s13 + $0x3d0] sm:$0xff]
    %v2011 = vld [vmem:[%s13 + $0x3d8] sm:$0xff]
    %v2012 = vld [vmem:[%s13 + $0x3e0] sm:$0xff]
    %v2013 = vld [vmem:[%s13 + $0x3e8] sm:$0xff]
    %v2014 = vld [vmem:[%s13 + $0x3f0] sm:$0xff]
    %v2015 = vld [vmem:[%s13 + $0x3f8] sm:$0xff]
    %v2016 = vld [vmem:[%s13 + $0x400] sm:$0xff]
    %v2017 = vld [vmem:[%s13 + $0x408] sm:$0xff]
    %v2018 = vld [vmem:[%s13 + $0x410] sm:$0xff]
    %v2019 = vld [vmem:[%s13 + $0x418] sm:$0xff]
    %v2020 = vld [vmem:[%s13 + $0x420] sm:$0xff]
    %v2021 = vld [vmem:[%s13 + $0x428] sm:$0xff]
    %v2022 = vld [vmem:[%s13 + $0x430] sm:$0xff]
    %v2023 = vld [vmem:[%s13 + $0x438] sm:$0xff]
    %v2024 = vld [vmem:[%s13 + $0x440] sm:$0xff]
    %v2025 = vld [vmem:[%s13 + $0x448] sm:$0xff]
    %v2026 = vld [vmem:[%s13 + $0x450] sm:$0xff]
    %v2027 = vld [vmem:[%s13 + $0x458] sm:$0xff]
    %v2028 = vld [vmem:[%s13 + $0x460] sm:$0xff]
    %v2029 = vld [vmem:[%s13 + $0x468] sm:$0xff]
    %v2030 = vld [vmem:[%s13 + $0x470] sm:$0xff]
    %v2031 = vld [vmem:[%s13 + $0x478] sm:$0xff]
    %v2032 = vld [vmem:[%s13 + $0x480] sm:$0xff]
    %v2033 = vld [vmem:[%s13 + $0x488] sm:$0xff]
    %v2034 = vld [vmem:[%s13 + $0x490] sm:$0xff]
    %v2035 = vld [vmem:[%s13 + $0x498] sm:$0xff]
    %v2036 = vld [vmem:[%s13 + $0x4a0] sm:$0xff]
    %v2037 = vld [vmem:[%s13 + $0x4a8] sm:$0xff]
    %v2038 = vld [vmem:[%s13 + $0x4b0] sm:$0xff]
    %v2039 = vld [vmem:[%s13 + $0x4b8] sm:$0xff]
    %v2040 = vld [vmem:[%s13 + $0x4c0] sm:$0xff]
    %v2041 = vld [vmem:[%s13 + $0x4c8] sm:$0xff]
    %v2042 = vld [vmem:[%s13 + $0x4d0] sm:$0xff]
    %v2043 = vld [vmem:[%s13 + $0x4d8] sm:$0xff]
    %v2044 = vld [vmem:[%s13 + $0x4e0] sm:$0xff]
    %v2045 = vld [vmem:[%s13 + $0x4e8] sm:$0xff]
    %v2046 = vld [vmem:[%s13 + $0x4f0] sm:$0xff]
    %v2047 = vld [vmem:[%s13 + $0x4f8] sm:$0xff]
    %v2048 = vld [vmem:[%s13 + $0x500] sm:$0xff]
    %v2049 = vld [vmem:[%s13 + $0x508] sm:$0xff]
    %v2050 = vld [vmem:[%s13 + $0x510] sm:$0xff]
    %v2051 = vld [vmem:[%s13 + $0x518] sm:$0xff]
    %v2052 = vld [vmem:[%s13 + $0x520] sm:$0xff]
    %v2053 = vld [vmem:[%s13 + $0x528] sm:$0xff]
    %v2054 = vld [vmem:[%s13 + $0x530] sm:$0xff]
    %v2055 = vld [vmem:[%s13 + $0x538] sm:$0xff]
    %v2056 = vld [vmem:[%s13 + $0x540] sm:$0xff]
    %v2057 = vld [vmem:[%s13 + $0x548] sm:$0xff]
    %v2058 = vld [vmem:[%s13 + $0x550] sm:$0xff]
    %v2059 = vld [vmem:[%s13 + $0x558] sm:$0xff]
    %v2060 = vld [vmem:[%s13 + $0x560] sm:$0xff]
    %v2061 = vld [vmem:[%s13 + $0x568] sm:$0xff]
    %v2062 = vld [vmem:[%s13 + $0x570] sm:$0xff]
    %v2063 = vld [vmem:[%s13 + $0x578] sm:$0xff]
    %v2064 = vld [vmem:[%s13 + $0x580] sm:$0xff]
    %v2065 = vld [vmem:[%s13 + $0x588] sm:$0xff]
    %v2066 = vld [vmem:[%s13 + $0x590] sm:$0xff]
    %v2067 = vld [vmem:[%s13 + $0x598] sm:$0xff]
    %v2068 = vld [vmem:[%s13 + $0x5a0] sm:$0xff]
    %v2069 = vld [vmem:[%s13 + $0x5a8] sm:$0xff]
    %v2070 = vld [vmem:[%s13 + $0x5b0] sm:$0xff]
    %v2071 = vld [vmem:[%s13 + $0x5b8] sm:$0xff]
    %v2072 = vld [vmem:[%s13 + $0x5c0] sm:$0xff]
    %v2073 = vld [vmem:[%s13 + $0x5c8] sm:$0xff]
    %v2074 = vld [vmem:[%s13 + $0x5d0] sm:$0xff]
    %v2075 = vld [vmem:[%s13 + $0x5d8] sm:$0xff]
    %v2076 = vld [vmem:[%s13 + $0x5e0] sm:$0xff]
    %v2077 = vld [vmem:[%s13 + $0x5e8] sm:$0xff]
    %v2078 = vld [vmem:[%s13 + $0x5f0] sm:$0xff]
    %v2079 = vld [vmem:[%s13 + $0x5f8] sm:$0xff]
    %v2080 = vld [vmem:[%s13 + $0x600] sm:$0xff]
    %v2081 = vld [vmem:[%s13 + $0x608] sm:$0xff]
    %v2082 = vld [vmem:[%s13 + $0x610] sm:$0xff]
    %v2083 = vld [vmem:[%s13 + $0x618] sm:$0xff]
    %v2084 = vld [vmem:[%s13 + $0x620] sm:$0xff]
    %v2085 = vld [vmem:[%s13 + $0x628] sm:$0xff]
    %v2086 = vld [vmem:[%s13 + $0x630] sm:$0xff]
    %v2087 = vld [vmem:[%s13 + $0x638] sm:$0xff]
    %v2088 = vld [vmem:[%s13 + $0x640] sm:$0xff]
    %v2089 = vld [vmem:[%s13 + $0x648] sm:$0xff]
    %v2090 = vld [vmem:[%s13 + $0x650] sm:$0xff]
    %v2091 = vld [vmem:[%s13 + $0x658] sm:$0xff]
    %v2092 = vld [vmem:[%s13 + $0x660] sm:$0xff]
    %v2093 = vld [vmem:[%s13 + $0x668] sm:$0xff]
    %v2094 = vld [vmem:[%s13 + $0x670] sm:$0xff]
    %v2095 = vld [vmem:[%s13 + $0x678] sm:$0xff]
    %v2096 = vld [vmem:[%s13 + $0x680] sm:$0xff]
    %v2097 = vld [vmem:[%s13 + $0x688] sm:$0xff]
    %v2098 = vld [vmem:[%s13 + $0x690] sm:$0xff]
    %v2099 = vld [vmem:[%s13 + $0x698] sm:$0xff]
    %v2100 = vld [vmem:[%s13 + $0x6a0] sm:$0xff]
    %v2101 = vld [vmem:[%s13 + $0x6a8] sm:$0xff]
    %v2102 = vld [vmem:[%s13 + $0x6b0] sm:$0xff]
    %v2103 = vld [vmem:[%s13 + $0x6b8] sm:$0xff]
    %v2104 = vld [vmem:[%s13 + $0x6c0] sm:$0xff]
    %v2105 = vld [vmem:[%s13 + $0x6c8] sm:$0xff]
    %v2106 = vld [vmem:[%s13 + $0x6d0] sm:$0xff]
    %v2107 = vld [vmem:[%s13 + $0x6d8] sm:$0xff]
    %v2108 = vld [vmem:[%s13 + $0x6e0] sm:$0xff]
    %v2109 = vld [vmem:[%s13 + $0x6e8] sm:$0xff]
    %v2110 = vld [vmem:[%s13 + $0x6f0] sm:$0xff]
    %v2111 = vld [vmem:[%s13 + $0x6f8] sm:$0xff]
    %v2112 = vld [vmem:[%s13 + $0x700] sm:$0xff]
    %v2113 = vld [vmem:[%s13 + $0x708] sm:$0xff]
    %v2114 = vld [vmem:[%s13 + $0x710] sm:$0xff]
    %v2115 = vld [vmem:[%s13 + $0x718] sm:$0xff]
    %v2116 = vld [vmem:[%s13 + $0x720] sm:$0xff]
    %v2117 = vld [vmem:[%s13 + $0x728] sm:$0xff]
    %v2118 = vld [vmem:[%s13 + $0x730] sm:$0xff]
    %v2119 = vld [vmem:[%s13 + $0x738] sm:$0xff]
    %v2120 = vld [vmem:[%s13 + $0x740] sm:$0xff]
    %v2121 = vld [vmem:[%s13 + $0x748] sm:$0xff]
    %v2122 = vld [vmem:[%s13 + $0x750] sm:$0xff]
    %v2123 = vld [vmem:[%s13 + $0x758] sm:$0xff]
    %v2124 = vld [vmem:[%s13 + $0x760] sm:$0xff]
    %v2125 = vld [vmem:[%s13 + $0x768] sm:$0xff]
    %v2126 = vld [vmem:[%s13 + $0x770] sm:$0xff]
    %v2127 = vld [vmem:[%s13 + $0x778] sm:$0xff]
    %v2128 = vld [vmem:[%s13 + $0x780] sm:$0xff]
    %v2129 = vld [vmem:[%s13 + $0x788] sm:$0xff]
    %v2130 = vld [vmem:[%s13 + $0x790] sm:$0xff]
    %v2131 = vld [vmem:[%s13 + $0x798] sm:$0xff]
    %v2132 = vld [vmem:[%s13 + $0x7a0] sm:$0xff]
    %v2133 = vld [vmem:[%s13 + $0x7a8] sm:$0xff]
    %v2134 = vld [vmem:[%s13 + $0x7b0] sm:$0xff]
    %v2135 = vld [vmem:[%s13 + $0x7b8] sm:$0xff]
    %v2136 = vld [vmem:[%s13 + $0x7c0] sm:$0xff]
    %v2137 = vld [vmem:[%s13 + $0x7c8] sm:$0xff]
    %v2138 = vld [vmem:[%s13 + $0x7d0] sm:$0xff]
    %v2139 = vld [vmem:[%s13 + $0x7d8] sm:$0xff]
    %v2140 = vld [vmem:[%s13 + $0x7e0] sm:$0xff]
    %v2141 = vld [vmem:[%s13 + $0x7e8] sm:$0xff]
    %v2142 = vld [vmem:[%s13 + $0x7f0] sm:$0xff]
    %v2143 = vld [vmem:[%s13 + $0x7f8] sm:$0xff]
    %s2144 = scalar_lea.vmem %s12, 16
    %v2145 = vld [vmem:[%s2144] sm:$0xff]
    %v2146 = vld [vmem:[%s2144 + $0x8] sm:$0x3f]
    %v2148 = vsel %vm1727, %v2145, 0
    %v2151 = vsel %vm1727, %v2146, 0
    %2153 = vmatprep.subr.mxu0 %v1722
    %2154 = vmatpush1.msra.mxu0 %v1721
    %2155 = vmatprep.subr.mxu0 0.0
    %2156 = vmatpush1.msra.mxu0 0.0
    %2157 = vmatprep.subr.mxu0 0.0
    %2158 = vmatpush1.msra.mxu0 0.0
    %2159 = vmatprep.subr.mxu0 0.0
    %2160 = vmatpush1.msra.mxu0 0.0
    %2161 = vmatprep.subr.mxu0 0.0
    %2162 = vmatpush1.msra.mxu0 0.0
    %2163 = vmatprep.subr.mxu0 0.0
    %2164 = vmatpush1.msra.mxu0 0.0
    %2165 = vmatprep.subr.mxu0 0.0
    %2166 = vmatpush1.msra.mxu0 0.0
    %2167 = vmatprep.subr.mxu0 0.0
    %2168 = vmatpush1.msra.mxu0 0.0
    %2169 = vmatprep.subr.mxu0 0.0
    %2170 = vmatpush1.msra.mxu0 0.0
    %2171 = vmatprep.subr.mxu0 0.0
    %2172 = vmatpush1.msra.mxu0 0.0
    %2173 = vmatprep.subr.mxu0 0.0
    %2174 = vmatpush1.msra.mxu0 0.0
    %2175 = vmatprep.subr.mxu0 0.0
    %2176 = vmatpush1.msra.mxu0 0.0
    %2177 = vmatprep.subr.mxu0 0.0
    %2178 = vmatpush1.msra.mxu0 0.0
    %2179 = vmatprep.subr.mxu0 0.0
    %2180 = vmatpush1.msra.mxu0 0.0
    %2181 = vmatprep.subr.mxu0 0.0
    %2182 = vmatpush1.msra.mxu0 0.0
    %2183 = vmatprep.subr.mxu0 0.0
    %2184 = vmatpush1.msra.mxu0 0.0
    %2185 = vmatprep.subr.mxu0 0.0
    %2186 = vmatpush1.msra.mxu0 0.0
    %2187 = vmatprep.subr.mxu0 0.0
    %2188 = vmatpush1.msra.mxu0 0.0
    %2189 = vmatprep.subr.mxu0 0.0
    %2190 = vmatpush1.msra.mxu0 0.0
    %2191 = vmatprep.subr.mxu0 0.0
    %2192 = vmatpush1.msra.mxu0 0.0
    %2193 = vmatprep.subr.mxu0 0.0
    %2194 = vmatpush1.msra.mxu0 0.0
    %2195 = vmatprep.subr.mxu0 0.0
    %2196 = vmatpush1.msra.mxu0 0.0
    %2197 = vmatprep.subr.mxu0 0.0
    %2198 = vmatpush1.msra.mxu0 0.0
    %2199 = vmatprep.subr.mxu0 0.0
    %2200 = vmatpush1.msra.mxu0 0.0
    %2201 = vmatprep.subr.mxu0 0.0
    %2202 = vmatpush1.msra.mxu0 0.0
    %2203 = vmatprep.subr.mxu0 0.0
    %2204 = vmatpush1.msra.mxu0 0.0
    %2205 = vmatprep.subr.mxu0 0.0
    %2206 = vmatpush1.msra.mxu0 0.0
    %2207 = vmatprep.subr.mxu0 0.0
    %2208 = vmatpush1.msra.mxu0 0.0
    %2209 = vmatprep.subr.mxu0 0.0
    %2210 = vmatpush1.msra.mxu0 0.0
    %2211 = vmatprep.subr.mxu0 0.0
    %2212 = vmatpush1.msra.mxu0 0.0
    %2213 = vmatprep.subr.mxu0 0.0
    %2214 = vmatpush1.msra.mxu0 0.0
    %2215 = vmatprep.subr.mxu0 0.0
    %2216 = vmatpush1.msra.mxu0 0.0
    %2217 = vmatprep.mubr.f32.mxu0 0.0
    %2218 = vmatmul.mubr.f32.gmra.mrb[0].mxu0 %v2148
    %v2219 = vpop.f32.mrb[0].mxu0
    %v2220 = vadd.f32 0.0, %v2219
    %v2221 = vpop.f32.mrb[0].mxu0
    %v2222 = vadd.f32 0.0, %v2221
    %2223 = vmatprep.mubr.f32.mxu0 0.0
    %2224 = vmatmul.mubr.f32.gmra.mrb[0].mxu0 %v2151
    %v2225 = vpop.f32.mrb[0].mxu0
    %v2226 = vadd.f32 0.0, %v2225
    %v2227 = vpop.f32.mrb[0].mxu0
    %v2228 = vadd.f32 0.0, %v2227
    %2229 = vdwg.mxu0
    %2230 = vmatprep.subr.mxu0 %v1724
    %2231 = vmatpush1.msra.mxu0 %v1723
    %2232 = vmatprep.subr.mxu0 0.0
    %2233 = vmatpush1.msra.mxu0 0.0
    %2234 = vmatprep.subr.mxu0 0.0
    %2235 = vmatpush1.msra.mxu0 0.0
    %2236 = vmatprep.subr.mxu0 0.0
    %2237 = vmatpush1.msra.mxu0 0.0
    %2238 = vmatprep.subr.mxu0 0.0
    %2239 = vmatpush1.msra.mxu0 0.0
    %2240 = vmatprep.subr.mxu0 0.0
    %2241 = vmatpush1.msra.mxu0 0.0
    %2242 = vmatprep.subr.mxu0 0.0
    %2243 = vmatpush1.msra.mxu0 0.0
    %2244 = vmatprep.subr.mxu0 0.0
    %2245 = vmatpush1.msra.mxu0 0.0
    %2246 = vmatprep.subr.mxu0 0.0
    %2247 = vmatpush1.msra.mxu0 0.0
    %2248 = vmatprep.subr.mxu0 0.0
    %2249 = vmatpush1.msra.mxu0 0.0
    %2250 = vmatprep.subr.mxu0 0.0
    %2251 = vmatpush1.msra.mxu0 0.0
    %2252 = vmatprep.subr.mxu0 0.0
    %2253 = vmatpush1.msra.mxu0 0.0
    %2254 = vmatprep.subr.mxu0 0.0
    %2255 = vmatpush1.msra.mxu0 0.0
    %2256 = vmatprep.subr.mxu0 0.0
    %2257 = vmatpush1.msra.mxu0 0.0
    %2258 = vmatprep.subr.mxu0 0.0
    %2259 = vmatpush1.msra.mxu0 0.0
    %2260 = vmatprep.subr.mxu0 0.0
    %2261 = vmatpush1.msra.mxu0 0.0
    %2262 = vmatprep.subr.mxu0 0.0
    %2263 = vmatpush1.msra.mxu0 0.0
    %2264 = vmatprep.subr.mxu0 0.0
    %2265 = vmatpush1.msra.mxu0 0.0
    %2266 = vmatprep.subr.mxu0 0.0
    %2267 = vmatpush1.msra.mxu0 0.0
    %2268 = vmatprep.subr.mxu0 0.0
    %2269 = vmatpush1.msra.mxu0 0.0
    %2270 = vmatprep.subr.mxu0 0.0
    %2271 = vmatpush1.msra.mxu0 0.0
    %2272 = vmatprep.subr.mxu0 0.0
    %2273 = vmatpush1.msra.mxu0 0.0
    %2274 = vmatprep.subr.mxu0 0.0
    %2275 = vmatpush1.msra.mxu0 0.0
    %2276 = vmatprep.subr.mxu0 0.0
    %2277 = vmatpush1.msra.mxu0 0.0
    %2278 = vmatprep.subr.mxu0 0.0
    %2279 = vmatpush1.msra.mxu0 0.0
    %2280 = vmatprep.subr.mxu0 0.0
    %2281 = vmatpush1.msra.mxu0 0.0
    %2282 = vmatprep.subr.mxu0 0.0
    %2283 = vmatpush1.msra.mxu0 0.0
    %2284 = vmatprep.subr.mxu0 0.0
    %2285 = vmatpush1.msra.mxu0 0.0
    %2286 = vmatprep.subr.mxu0 0.0
    %2287 = vmatpush1.msra.mxu0 0.0
    %2288 = vmatprep.subr.mxu0 0.0
    %2289 = vmatpush1.msra.mxu0 0.0
    %2290 = vmatprep.subr.mxu0 0.0
    %2291 = vmatpush1.msra.mxu0 0.0
    %2292 = vmatprep.subr.mxu0 0.0
    %2293 = vmatpush1.msra.mxu0 0.0
    %2294 = vmatprep.mubr.f32.mxu0 0.0
    %2295 = vmatmul.mubr.f32.gmra.mrb[0].mxu0 %v2148
    %v2296 = vpop.f32.mrb[0].mxu0
    %v2297 = vadd.f32 0.0, %v2296
    %v2298 = vpop.f32.mrb[0].mxu0
    %v2299 = vadd.f32 0.0, %v2298
    %2300 = vmatprep.mubr.f32.mxu0 0.0
    %2301 = vmatmul.mubr.f32.gmra.mrb[0].mxu0 %v2151
    %v2302 = vpop.f32.mrb[0].mxu0
    %v2303 = vadd.f32 0.0, %v2302
    %v2304 = vpop.f32.mrb[0].mxu0
    %v2305 = vadd.f32 0.0, %v2304
    %2306 = vdwg.mxu0
    %s2307 = scalar_lea.vmem %s13, 2048
    %v2308 = vld [vmem:[%s2307] sm:$0xff]
    %v2309 = vld [vmem:[%s2307 + $0x8] sm:$0xff]
    %v2310 = vld [vmem:[%s2307 + $0x10] sm:$0xff]
    %v2311 = vld [vmem:[%s2307 + $0x18] sm:$0xff]
    %v2312 = vld [vmem:[%s2307 + $0x20] sm:$0xff]
    %v2313 = vld [vmem:[%s2307 + $0x28] sm:$0xff]
    %v2314 = vld [vmem:[%s2307 + $0x30] sm:$0xff]
    %v2315 = vld [vmem:[%s2307 + $0x38] sm:$0xff]
    %v2316 = vld [vmem:[%s2307 + $0x40] sm:$0xff]
    %v2317 = vld [vmem:[%s2307 + $0x48] sm:$0xff]
    %v2318 = vld [vmem:[%s2307 + $0x50] sm:$0xff]
    %v2319 = vld [vmem:[%s2307 + $0x58] sm:$0xff]
    %v2320 = vld [vmem:[%s2307 + $0x60] sm:$0xff]
    %v2321 = vld [vmem:[%s2307 + $0x68] sm:$0xff]
    %v2322 = vld [vmem:[%s2307 + $0x70] sm:$0xff]
    %v2323 = vld [vmem:[%s2307 + $0x78] sm:$0xff]
    %v2324 = vld [vmem:[%s2307 + $0x80] sm:$0xff]
    %v2325 = vld [vmem:[%s2307 + $0x88] sm:$0xff]
    %v2326 = vld [vmem:[%s2307 + $0x90] sm:$0xff]
    %v2327 = vld [vmem:[%s2307 + $0x98] sm:$0xff]
    %v2328 = vld [vmem:[%s2307 + $0xa0] sm:$0xff]
    %v2329 = vld [vmem:[%s2307 + $0xa8] sm:$0xff]
    %v2330 = vld [vmem:[%s2307 + $0xb0] sm:$0xff]
    %v2331 = vld [vmem:[%s2307 + $0xb8] sm:$0xff]
    %v2332 = vld [vmem:[%s2307 + $0xc0] sm:$0xff]
    %v2333 = vld [vmem:[%s2307 + $0xc8] sm:$0xff]
    %v2334 = vld [vmem:[%s2307 + $0xd0] sm:$0xff]
    %v2335 = vld [vmem:[%s2307 + $0xd8] sm:$0xff]
    %v2336 = vld [vmem:[%s2307 + $0xe0] sm:$0xff]
    %v2337 = vld [vmem:[%s2307 + $0xe8] sm:$0xff]
    %v2338 = vld [vmem:[%s2307 + $0xf0] sm:$0xff]
    %v2339 = vld [vmem:[%s2307 + $0xf8] sm:$0xff]
    %v2340 = vld [vmem:[%s2307 + $0x100] sm:$0xff]
    %v2341 = vld [vmem:[%s2307 + $0x108] sm:$0xff]
    %v2342 = vld [vmem:[%s2307 + $0x110] sm:$0xff]
    %v2343 = vld [vmem:[%s2307 + $0x118] sm:$0xff]
    %v2344 = vld [vmem:[%s2307 + $0x120] sm:$0xff]
    %v2345 = vld [vmem:[%s2307 + $0x128] sm:$0xff]
    %v2346 = vld [vmem:[%s2307 + $0x130] sm:$0xff]
    %v2347 = vld [vmem:[%s2307 + $0x138] sm:$0xff]
    %v2348 = vld [vmem:[%s2307 + $0x140] sm:$0xff]
    %v2349 = vld [vmem:[%s2307 + $0x148] sm:$0xff]
    %v2350 = vld [vmem:[%s2307 + $0x150] sm:$0xff]
    %v2351 = vld [vmem:[%s2307 + $0x158] sm:$0xff]
    %v2352 = vld [vmem:[%s2307 + $0x160] sm:$0xff]
    %v2353 = vld [vmem:[%s2307 + $0x168] sm:$0xff]
    %v2354 = vld [vmem:[%s2307 + $0x170] sm:$0xff]
    %v2355 = vld [vmem:[%s2307 + $0x178] sm:$0xff]
    %v2356 = vld [vmem:[%s2307 + $0x180] sm:$0xff]
    %v2357 = vld [vmem:[%s2307 + $0x188] sm:$0xff]
    %v2358 = vld [vmem:[%s2307 + $0x190] sm:$0xff]
    %v2359 = vld [vmem:[%s2307 + $0x198] sm:$0xff]
    %v2360 = vld [vmem:[%s2307 + $0x1a0] sm:$0xff]
    %v2361 = vld [vmem:[%s2307 + $0x1a8] sm:$0xff]
    %v2362 = vld [vmem:[%s2307 + $0x1b0] sm:$0xff]
    %v2363 = vld [vmem:[%s2307 + $0x1b8] sm:$0xff]
    %v2364 = vld [vmem:[%s2307 + $0x1c0] sm:$0xff]
    %v2365 = vld [vmem:[%s2307 + $0x1c8] sm:$0xff]
    %v2366 = vld [vmem:[%s2307 + $0x1d0] sm:$0xff]
    %v2367 = vld [vmem:[%s2307 + $0x1d8] sm:$0xff]
    %v2368 = vld [vmem:[%s2307 + $0x1e0] sm:$0xff]
    %v2369 = vld [vmem:[%s2307 + $0x1e8] sm:$0xff]
    %v2370 = vld [vmem:[%s2307 + $0x1f0] sm:$0xff]
    %v2371 = vld [vmem:[%s2307 + $0x1f8] sm:$0xff]
    %v2372 = vld [vmem:[%s2307 + $0x200] sm:$0xff]
    %v2373 = vld [vmem:[%s2307 + $0x208] sm:$0xff]
    %v2374 = vld [vmem:[%s2307 + $0x210] sm:$0xff]
    %v2375 = vld [vmem:[%s2307 + $0x218] sm:$0xff]
    %v2376 = vld [vmem:[%s2307 + $0x220] sm:$0xff]
    %v2377 = vld [vmem:[%s2307 + $0x228] sm:$0xff]
    %v2378 = vld [vmem:[%s2307 + $0x230] sm:$0xff]
    %v2379 = vld [vmem:[%s2307 + $0x238] sm:$0xff]
    %v2380 = vld [vmem:[%s2307 + $0x240] sm:$0xff]
    %v2381 = vld [vmem:[%s2307 + $0x248] sm:$0xff]
    %v2382 = vld [vmem:[%s2307 + $0x250] sm:$0xff]
    %v2383 = vld [vmem:[%s2307 + $0x258] sm:$0xff]
    %v2384 = vld [vmem:[%s2307 + $0x260] sm:$0xff]
    %v2385 = vld [vmem:[%s2307 + $0x268] sm:$0xff]
    %v2386 = vld [vmem:[%s2307 + $0x270] sm:$0xff]
    %v2387 = vld [vmem:[%s2307 + $0x278] sm:$0xff]
    %v2388 = vld [vmem:[%s2307 + $0x280] sm:$0xff]
    %v2389 = vld [vmem:[%s2307 + $0x288] sm:$0xff]
    %v2390 = vld [vmem:[%s2307 + $0x290] sm:$0xff]
    %v2391 = vld [vmem:[%s2307 + $0x298] sm:$0xff]
    %v2392 = vld [vmem:[%s2307 + $0x2a0] sm:$0xff]
    %v2393 = vld [vmem:[%s2307 + $0x2a8] sm:$0xff]
    %v2394 = vld [vmem:[%s2307 + $0x2b0] sm:$0xff]
    %v2395 = vld [vmem:[%s2307 + $0x2b8] sm:$0xff]
    %v2396 = vld [vmem:[%s2307 + $0x2c0] sm:$0xff]
    %v2397 = vld [vmem:[%s2307 + $0x2c8] sm:$0xff]
    %v2398 = vld [vmem:[%s2307 + $0x2d0] sm:$0xff]
    %v2399 = vld [vmem:[%s2307 + $0x2d8] sm:$0xff]
    %v2400 = vld [vmem:[%s2307 + $0x2e0] sm:$0xff]
    %v2401 = vld [vmem:[%s2307 + $0x2e8] sm:$0xff]
    %v2402 = vld [vmem:[%s2307 + $0x2f0] sm:$0xff]
    %v2403 = vld [vmem:[%s2307 + $0x2f8] sm:$0xff]
    %v2404 = vld [vmem:[%s2307 + $0x300] sm:$0xff]
    %v2405 = vld [vmem:[%s2307 + $0x308] sm:$0xff]
    %v2406 = vld [vmem:[%s2307 + $0x310] sm:$0xff]
    %v2407 = vld [vmem:[%s2307 + $0x318] sm:$0xff]
    %v2408 = vld [vmem:[%s2307 + $0x320] sm:$0xff]
    %v2409 = vld [vmem:[%s2307 + $0x328] sm:$0xff]
    %v2410 = vld [vmem:[%s2307 + $0x330] sm:$0xff]
    %v2411 = vld [vmem:[%s2307 + $0x338] sm:$0xff]
    %v2412 = vld [vmem:[%s2307 + $0x340] sm:$0xff]
    %v2413 = vld [vmem:[%s2307 + $0x348] sm:$0xff]
    %v2414 = vld [vmem:[%s2307 + $0x350] sm:$0xff]
    %v2415 = vld [vmem:[%s2307 + $0x358] sm:$0xff]
    %v2416 = vld [vmem:[%s2307 + $0x360] sm:$0xff]
    %v2417 = vld [vmem:[%s2307 + $0x368] sm:$0xff]
    %v2418 = vld [vmem:[%s2307 + $0x370] sm:$0xff]
    %v2419 = vld [vmem:[%s2307 + $0x378] sm:$0xff]
    %v2420 = vld [vmem:[%s2307 + $0x380] sm:$0xff]
    %v2421 = vld [vmem:[%s2307 + $0x388] sm:$0xff]
    %v2422 = vld [vmem:[%s2307 + $0x390] sm:$0xff]
    %v2423 = vld [vmem:[%s2307 + $0x398] sm:$0xff]
    %v2424 = vld [vmem:[%s2307 + $0x3a0] sm:$0xff]
    %v2425 = vld [vmem:[%s2307 + $0x3a8] sm:$0xff]
    %v2426 = vld [vmem:[%s2307 + $0x3b0] sm:$0xff]
    %v2427 = vld [vmem:[%s2307 + $0x3b8] sm:$0xff]
    %v2428 = vld [vmem:[%s2307 + $0x3c0] sm:$0xff]
    %v2429 = vld [vmem:[%s2307 + $0x3c8] sm:$0xff]
    %v2430 = vld [vmem:[%s2307 + $0x3d0] sm:$0xff]
    %v2431 = vld [vmem:[%s2307 + $0x3d8] sm:$0xff]
    %v2432 = vld [vmem:[%s2307 + $0x3e0] sm:$0xff]
    %v2433 = vld [vmem:[%s2307 + $0x3e8] sm:$0xff]
    %v2434 = vld [vmem:[%s2307 + $0x3f0] sm:$0xff]
    %v2435 = vld [vmem:[%s2307 + $0x3f8] sm:$0xff]
    %v2436 = vld [vmem:[%s2307 + $0x400] sm:$0xff]
    %v2437 = vld [vmem:[%s2307 + $0x408] sm:$0xff]
    %v2438 = vld [vmem:[%s2307 + $0x410] sm:$0xff]
    %v2439 = vld [vmem:[%s2307 + $0x418] sm:$0xff]
    %v2440 = vld [vmem:[%s2307 + $0x420] sm:$0xff]
    %v2441 = vld [vmem:[%s2307 + $0x428] sm:$0xff]
    %v2442 = vld [vmem:[%s2307 + $0x430] sm:$0xff]
    %v2443 = vld [vmem:[%s2307 + $0x438] sm:$0xff]
    %v2444 = vld [vmem:[%s2307 + $0x440] sm:$0xff]
    %v2445 = vld [vmem:[%s2307 + $0x448] sm:$0xff]
    %v2446 = vld [vmem:[%s2307 + $0x450] sm:$0xff]
    %v2447 = vld [vmem:[%s2307 + $0x458] sm:$0xff]
    %v2448 = vld [vmem:[%s2307 + $0x460] sm:$0xff]
    %v2449 = vld [vmem:[%s2307 + $0x468] sm:$0xff]
    %v2450 = vld [vmem:[%s2307 + $0x470] sm:$0xff]
    %v2451 = vld [vmem:[%s2307 + $0x478] sm:$0xff]
    %v2452 = vld [vmem:[%s2307 + $0x480] sm:$0xff]
    %v2453 = vld [vmem:[%s2307 + $0x488] sm:$0xff]
    %v2454 = vld [vmem:[%s2307 + $0x490] sm:$0xff]
    %v2455 = vld [vmem:[%s2307 + $0x498] sm:$0xff]
    %v2456 = vld [vmem:[%s2307 + $0x4a0] sm:$0xff]
    %v2457 = vld [vmem:[%s2307 + $0x4a8] sm:$0xff]
    %v2458 = vld [vmem:[%s2307 + $0x4b0] sm:$0xff]
    %v2459 = vld [vmem:[%s2307 + $0x4b8] sm:$0xff]
    %v2460 = vld [vmem:[%s2307 + $0x4c0] sm:$0xff]
    %v2461 = vld [vmem:[%s2307 + $0x4c8] sm:$0xff]
    %v2462 = vld [vmem:[%s2307 + $0x4d0] sm:$0xff]
    %v2463 = vld [vmem:[%s2307 + $0x4d8] sm:$0xff]
    %v2464 = vld [vmem:[%s2307 + $0x4e0] sm:$0xff]
    %v2465 = vld [vmem:[%s2307 + $0x4e8] sm:$0xff]
    %v2466 = vld [vmem:[%s2307 + $0x4f0] sm:$0xff]
    %v2467 = vld [vmem:[%s2307 + $0x4f8] sm:$0xff]
    %v2468 = vld [vmem:[%s2307 + $0x500] sm:$0xff]
    %v2469 = vld [vmem:[%s2307 + $0x508] sm:$0xff]
    %v2470 = vld [vmem:[%s2307 + $0x510] sm:$0xff]
    %v2471 = vld [vmem:[%s2307 + $0x518] sm:$0xff]
    %v2472 = vld [vmem:[%s2307 + $0x520] sm:$0xff]
    %v2473 = vld [vmem:[%s2307 + $0x528] sm:$0xff]
    %v2474 = vld [vmem:[%s2307 + $0x530] sm:$0xff]
    %v2475 = vld [vmem:[%s2307 + $0x538] sm:$0xff]
    %v2476 = vld [vmem:[%s2307 + $0x540] sm:$0xff]
    %v2477 = vld [vmem:[%s2307 + $0x548] sm:$0xff]
    %v2478 = vld [vmem:[%s2307 + $0x550] sm:$0xff]
    %v2479 = vld [vmem:[%s2307 + $0x558] sm:$0xff]
    %v2480 = vld [vmem:[%s2307 + $0x560] sm:$0xff]
    %v2481 = vld [vmem:[%s2307 + $0x568] sm:$0xff]
    %v2482 = vld [vmem:[%s2307 + $0x570] sm:$0xff]
    %v2483 = vld [vmem:[%s2307 + $0x578] sm:$0xff]
    %v2484 = vld [vmem:[%s2307 + $0x580] sm:$0xff]
    %v2485 = vld [vmem:[%s2307 + $0x588] sm:$0xff]
    %v2486 = vld [vmem:[%s2307 + $0x590] sm:$0xff]
    %v2487 = vld [vmem:[%s2307 + $0x598] sm:$0xff]
    %v2488 = vld [vmem:[%s2307 + $0x5a0] sm:$0xff]
    %v2489 = vld [vmem:[%s2307 + $0x5a8] sm:$0xff]
    %v2490 = vld [vmem:[%s2307 + $0x5b0] sm:$0xff]
    %v2491 = vld [vmem:[%s2307 + $0x5b8] sm:$0xff]
    %v2492 = vld [vmem:[%s2307 + $0x5c0] sm:$0xff]
    %v2493 = vld [vmem:[%s2307 + $0x5c8] sm:$0xff]
    %v2494 = vld [vmem:[%s2307 + $0x5d0] sm:$0xff]
    %v2495 = vld [vmem:[%s2307 + $0x5d8] sm:$0xff]
    %v2496 = vld [vmem:[%s2307 + $0x5e0] sm:$0xff]
    %v2497 = vld [vmem:[%s2307 + $0x5e8] sm:$0xff]
    %v2498 = vld [vmem:[%s2307 + $0x5f0] sm:$0xff]
    %v2499 = vld [vmem:[%s2307 + $0x5f8] sm:$0xff]
    %v2500 = vld [vmem:[%s2307 + $0x600] sm:$0xff]
    %v2501 = vld [vmem:[%s2307 + $0x608] sm:$0xff]
    %v2502 = vld [vmem:[%s2307 + $0x610] sm:$0xff]
    %v2503 = vld [vmem:[%s2307 + $0x618] sm:$0xff]
    %v2504 = vld [vmem:[%s2307 + $0x620] sm:$0xff]
    %v2505 = vld [vmem:[%s2307 + $0x628] sm:$0xff]
    %v2506 = vld [vmem:[%s2307 + $0x630] sm:$0xff]
    %v2507 = vld [vmem:[%s2307 + $0x638] sm:$0xff]
    %v2508 = vld [vmem:[%s2307 + $0x640] sm:$0xff]
    %v2509 = vld [vmem:[%s2307 + $0x648] sm:$0xff]
    %v2510 = vld [vmem:[%s2307 + $0x650] sm:$0xff]
    %v2511 = vld [vmem:[%s2307 + $0x658] sm:$0xff]
    %v2512 = vld [vmem:[%s2307 + $0x660] sm:$0xff]
    %v2513 = vld [vmem:[%s2307 + $0x668] sm:$0xff]
    %v2514 = vld [vmem:[%s2307 + $0x670] sm:$0xff]
    %v2515 = vld [vmem:[%s2307 + $0x678] sm:$0xff]
    %v2516 = vld [vmem:[%s2307 + $0x680] sm:$0xff]
    %v2517 = vld [vmem:[%s2307 + $0x688] sm:$0xff]
    %v2518 = vld [vmem:[%s2307 + $0x690] sm:$0xff]
    %v2519 = vld [vmem:[%s2307 + $0x698] sm:$0xff]
    %v2520 = vld [vmem:[%s2307 + $0x6a0] sm:$0xff]
    %v2521 = vld [vmem:[%s2307 + $0x6a8] sm:$0xff]
    %v2522 = vld [vmem:[%s2307 + $0x6b0] sm:$0xff]
    %v2523 = vld [vmem:[%s2307 + $0x6b8] sm:$0xff]
    %v2524 = vld [vmem:[%s2307 + $0x6c0] sm:$0xff]
    %v2525 = vld [vmem:[%s2307 + $0x6c8] sm:$0xff]
    %v2526 = vld [vmem:[%s2307 + $0x6d0] sm:$0xff]
    %v2527 = vld [vmem:[%s2307 + $0x6d8] sm:$0xff]
    %v2528 = vld [vmem:[%s2307 + $0x6e0] sm:$0xff]
    %v2529 = vld [vmem:[%s2307 + $0x6e8] sm:$0xff]
    %v2530 = vld [vmem:[%s2307 + $0x6f0] sm:$0xff]
    %v2531 = vld [vmem:[%s2307 + $0x6f8] sm:$0xff]
    %v2532 = vld [vmem:[%s2307 + $0x700] sm:$0xff]
    %v2533 = vld [vmem:[%s2307 + $0x708] sm:$0xff]
    %v2534 = vld [vmem:[%s2307 + $0x710] sm:$0xff]
    %v2535 = vld [vmem:[%s2307 + $0x718] sm:$0xff]
    %v2536 = vld [vmem:[%s2307 + $0x720] sm:$0xff]
    %v2537 = vld [vmem:[%s2307 + $0x728] sm:$0xff]
    %v2538 = vld [vmem:[%s2307 + $0x730] sm:$0xff]
    %v2539 = vld [vmem:[%s2307 + $0x738] sm:$0xff]
    %v2540 = vld [vmem:[%s2307 + $0x740] sm:$0xff]
    %v2541 = vld [vmem:[%s2307 + $0x748] sm:$0xff]
    %v2542 = vld [vmem:[%s2307 + $0x750] sm:$0xff]
    %v2543 = vld [vmem:[%s2307 + $0x758] sm:$0xff]
    %v2544 = vld [vmem:[%s2307 + $0x760] sm:$0xff]
    %v2545 = vld [vmem:[%s2307 + $0x768] sm:$0xff]
    %v2546 = vld [vmem:[%s2307 + $0x770] sm:$0xff]
    %v2547 = vld [vmem:[%s2307 + $0x778] sm:$0xff]
    %v2548 = vld [vmem:[%s2307 + $0x780] sm:$0xff]
    %v2549 = vld [vmem:[%s2307 + $0x788] sm:$0xff]
    %v2550 = vld [vmem:[%s2307 + $0x790] sm:$0xff]
    %v2551 = vld [vmem:[%s2307 + $0x798] sm:$0xff]
    %v2552 = vld [vmem:[%s2307 + $0x7a0] sm:$0xff]
    %v2553 = vld [vmem:[%s2307 + $0x7a8] sm:$0xff]
    %v2554 = vld [vmem:[%s2307 + $0x7b0] sm:$0xff]
    %v2555 = vld [vmem:[%s2307 + $0x7b8] sm:$0xff]
    %v2556 = vld [vmem:[%s2307 + $0x7c0] sm:$0xff]
    %v2557 = vld [vmem:[%s2307 + $0x7c8] sm:$0xff]
    %v2558 = vld [vmem:[%s2307 + $0x7d0] sm:$0xff]
    %v2559 = vld [vmem:[%s2307 + $0x7d8] sm:$0xff]
    %v2560 = vld [vmem:[%s2307 + $0x7e0] sm:$0xff]
    %v2561 = vld [vmem:[%s2307 + $0x7e8] sm:$0xff]
    %v2562 = vld [vmem:[%s2307 + $0x7f0] sm:$0xff]
    %v2563 = vld [vmem:[%s2307 + $0x7f8] sm:$0xff]
    %2564 = vmatprep.subr.mxu0 %v2309
    %2565 = vmatpush1.msra.mxu0 %v2308
    %2566 = vmatprep.subr.mxu0 %v2313
    %2567 = vmatpush1.msra.mxu0 %v2312
    %2568 = vmatprep.subr.mxu0 %v2317
    %2569 = vmatpush1.msra.mxu0 %v2316
    %2570 = vmatprep.subr.mxu0 %v2321
    %2571 = vmatpush1.msra.mxu0 %v2320
    %2572 = vmatprep.subr.mxu0 %v2325
    %2573 = vmatpush1.msra.mxu0 %v2324
    %2574 = vmatprep.subr.mxu0 %v2329
    %2575 = vmatpush1.msra.mxu0 %v2328
    %2576 = vmatprep.subr.mxu0 %v2333
    %2577 = vmatpush1.msra.mxu0 %v2332
    %2578 = vmatprep.subr.mxu0 %v2337
    %2579 = vmatpush1.msra.mxu0 %v2336
    %2580 = vmatprep.subr.mxu0 %v2341
    %2581 = vmatpush1.msra.mxu0 %v2340
    %2582 = vmatprep.subr.mxu0 %v2345
    %2583 = vmatpush1.msra.mxu0 %v2344
    %2584 = vmatprep.subr.mxu0 %v2349
    %2585 = vmatpush1.msra.mxu0 %v2348
    %2586 = vmatprep.subr.mxu0 %v2353
    %2587 = vmatpush1.msra.mxu0 %v2352
    %2588 = vmatprep.subr.mxu0 %v2357
    %2589 = vmatpush1.msra.mxu0 %v2356
    %2590 = vmatprep.subr.mxu0 %v2361
    %2591 = vmatpush1.msra.mxu0 %v2360
    %2592 = vmatprep.subr.mxu0 %v2365
    %2593 = vmatpush1.msra.mxu0 %v2364
    %2594 = vmatprep.subr.mxu0 %v2369
    %2595 = vmatpush1.msra.mxu0 %v2368
    %2596 = vmatprep.subr.mxu0 %v2373
    %2597 = vmatpush1.msra.mxu0 %v2372
    %2598 = vmatprep.subr.mxu0 %v2377
    %2599 = vmatpush1.msra.mxu0 %v2376
    %2600 = vmatprep.subr.mxu0 %v2381
    %2601 = vmatpush1.msra.mxu0 %v2380
    %2602 = vmatprep.subr.mxu0 %v2385
    %2603 = vmatpush1.msra.mxu0 %v2384
    %2604 = vmatprep.subr.mxu0 %v2389
    %2605 = vmatpush1.msra.mxu0 %v2388
    %2606 = vmatprep.subr.mxu0 %v2393
    %2607 = vmatpush1.msra.mxu0 %v2392
    %2608 = vmatprep.subr.mxu0 %v2397
    %2609 = vmatpush1.msra.mxu0 %v2396
    %2610 = vmatprep.subr.mxu0 %v2401
    %2611 = vmatpush1.msra.mxu0 %v2400
    %2612 = vmatprep.subr.mxu0 %v2405
    %2613 = vmatpush1.msra.mxu0 %v2404
    %2614 = vmatprep.subr.mxu0 %v2409
    %2615 = vmatpush1.msra.mxu0 %v2408
    %2616 = vmatprep.subr.mxu0 %v2413
    %2617 = vmatpush1.msra.mxu0 %v2412
    %2618 = vmatprep.subr.mxu0 %v2417
    %2619 = vmatpush1.msra.mxu0 %v2416
    %2620 = vmatprep.subr.mxu0 %v2421
    %2621 = vmatpush1.msra.mxu0 %v2420
    %2622 = vmatprep.subr.mxu0 %v2425
    %2623 = vmatpush1.msra.mxu0 %v2424
    %2624 = vmatprep.subr.mxu0 %v2429
    %2625 = vmatpush1.msra.mxu0 %v2428
    %2626 = vmatprep.subr.mxu0 %v2433
    %2627 = vmatpush1.msra.mxu0 %v2432
    %2628 = vmatprep.mubr.f32.mxu0 %v2222
    %2629 = vmatmul.mubr.f32.gmra.mrb[0].mxu0 %v2220
    %v2630 = vpop.f32.mrb[0].mxu0
    %v2631 = vadd.f32 0.0, %v2630
    %v2632 = vpop.f32.mrb[0].mxu0
    %v2633 = vadd.f32 0.0, %v2632
    %2634 = vmatprep.mubr.f32.mxu0 %v2228
    %2635 = vmatmul.mubr.f32.gmra.mrb[0].mxu0 %v2226
    %v2636 = vpop.f32.mrb[0].mxu0
    %v2637 = vadd.f32 0.0, %v2636
    %v2638 = vpop.f32.mrb[0].mxu0
    %v2639 = vadd.f32 0.0, %v2638
    %2640 = vdwg.mxu0
    %2641 = vmatprep.subr.mxu0 %v2437
    %2642 = vmatpush1.msra.mxu0 %v2436
    %2643 = vmatprep.subr.mxu0 %v2441
    %2644 = vmatpush1.msra.mxu0 %v2440
    %2645 = vmatprep.subr.mxu0 %v2445
    %2646 = vmatpush1.msra.mxu0 %v2444
    %2647 = vmatprep.subr.mxu0 %v2449
    %2648 = vmatpush1.msra.mxu0 %v2448
    %2649 = vmatprep.subr.mxu0 %v2453
    %2650 = vmatpush1.msra.mxu0 %v2452
    %2651 = vmatprep.subr.mxu0 %v2457
    %2652 = vmatpush1.msra.mxu0 %v2456
    %2653 = vmatprep.subr.mxu0 %v2461
    %2654 = vmatpush1.msra.mxu0 %v2460
    %2655 = vmatprep.subr.mxu0 %v2465
    %2656 = vmatpush1.msra.mxu0 %v2464
    %2657 = vmatprep.subr.mxu0 %v2469
    %2658 = vmatpush1.msra.mxu0 %v2468
    %2659 = vmatprep.subr.mxu0 %v2473
    %2660 = vmatpush1.msra.mxu0 %v2472
    %2661 = vmatprep.subr.mxu0 %v2477
    %2662 = vmatpush1.msra.mxu0 %v2476
    %2663 = vmatprep.subr.mxu0 %v2481
    %2664 = vmatpush1.msra.mxu0 %v2480
    %2665 = vmatprep.subr.mxu0 %v2485
    %2666 = vmatpush1.msra.mxu0 %v2484
    %2667 = vmatprep.subr.mxu0 %v2489
    %2668 = vmatpush1.msra.mxu0 %v2488
    %2669 = vmatprep.subr.mxu0 %v2493
    %2670 = vmatpush1.msra.mxu0 %v2492
    %2671 = vmatprep.subr.mxu0 %v2497
    %2672 = vmatpush1.msra.mxu0 %v2496
    %2673 = vmatprep.subr.mxu0 %v2501
    %2674 = vmatpush1.msra.mxu0 %v2500
    %2675 = vmatprep.subr.mxu0 %v2505
    %2676 = vmatpush1.msra.mxu0 %v2504
    %2677 = vmatprep.subr.mxu0 %v2509
    %2678 = vmatpush1.msra.mxu0 %v2508
    %2679 = vmatprep.subr.mxu0 %v2513
    %2680 = vmatpush1.msra.mxu0 %v2512
    %2681 = vmatprep.subr.mxu0 %v2517
    %2682 = vmatpush1.msra.mxu0 %v2516
    %2683 = vmatprep.subr.mxu0 %v2521
    %2684 = vmatpush1.msra.mxu0 %v2520
    %2685 = vmatprep.subr.mxu0 %v2525
    %2686 = vmatpush1.msra.mxu0 %v2524
    %2687 = vmatprep.subr.mxu0 %v2529
    %2688 = vmatpush1.msra.mxu0 %v2528
    %2689 = vmatprep.subr.mxu0 %v2533
    %2690 = vmatpush1.msra.mxu0 %v2532
    %2691 = vmatprep.subr.mxu0 %v2537
    %2692 = vmatpush1.msra.mxu0 %v2536
    %2693 = vmatprep.subr.mxu0 %v2541
    %2694 = vmatpush1.msra.mxu0 %v2540
    %2695 = vmatprep.subr.mxu0 %v2545
    %2696 = vmatpush1.msra.mxu0 %v2544
    %2697 = vmatprep.subr.mxu0 %v2549
    %2698 = vmatpush1.msra.mxu0 %v2548
    %2699 = vmatprep.subr.mxu0 %v2553
    %2700 = vmatpush1.msra.mxu0 %v2552
    %2701 = vmatprep.subr.mxu0 %v2557
    %2702 = vmatpush1.msra.mxu0 %v2556
    %2703 = vmatprep.subr.mxu0 %v2561
    %2704 = vmatpush1.msra.mxu0 %v2560
    %2705 = vmatprep.mubr.f32.mxu0 %v2299
    %2706 = vmatmul.mubr.f32.gmra.mrb[0].mxu0 %v2297
    %v2707 = vpop.f32.mrb[0].mxu0
    %v2708 = vadd.f32 %v2631, %v2707
    %v2709 = vpop.f32.mrb[0].mxu0
    %v2710 = vadd.f32 %v2633, %v2709
    %2711 = vmatprep.mubr.f32.mxu0 %v2305
    %2712 = vmatmul.mubr.f32.gmra.mrb[0].mxu0 %v2303
    %v2713 = vpop.f32.mrb[0].mxu0
    %v2714 = vadd.f32 %v2637, %v2713
    %v2715 = vpop.f32.mrb[0].mxu0
    %v2716 = vadd.f32 %v2639, %v2715
    %2717 = vdwg.mxu0
    %2718 = vmatprep.subr.mxu0 %v2311
    %2719 = vmatpush1.msra.mxu0 %v2310
    %2720 = vmatprep.subr.mxu0 %v2315
    %2721 = vmatpush1.msra.mxu0 %v2314
    %2722 = vmatprep.subr.mxu0 %v2319
    %2723 = vmatpush1.msra.mxu0 %v2318
    %2724 = vmatprep.subr.mxu0 %v2323
    %2725 = vmatpush1.msra.mxu0 %v2322
    %2726 = vmatprep.subr.mxu0 %v2327
    %2727 = vmatpush1.msra.mxu0 %v2326
    %2728 = vmatprep.subr.mxu0 %v2331
    %2729 = vmatpush1.msra.mxu0 %v2330
    %2730 = vmatprep.subr.mxu0 %v2335
    %2731 = vmatpush1.msra.mxu0 %v2334
    %2732 = vmatprep.subr.mxu0 %v2339
    %2733 = vmatpush1.msra.mxu0 %v2338
    %2734 = vmatprep.subr.mxu0 %v2343
    %2735 = vmatpush1.msra.mxu0 %v2342
    %2736 = vmatprep.subr.mxu0 %v2347
    %2737 = vmatpush1.msra.mxu0 %v2346
    %2738 = vmatprep.subr.mxu0 %v2351
    %2739 = vmatpush1.msra.mxu0 %v2350
    %2740 = vmatprep.subr.mxu0 %v2355
    %2741 = vmatpush1.msra.mxu0 %v2354
    %2742 = vmatprep.subr.mxu0 %v2359
    %2743 = vmatpush1.msra.mxu0 %v2358
    %2744 = vmatprep.subr.mxu0 %v2363
    %2745 = vmatpush1.msra.mxu0 %v2362
    %2746 = vmatprep.subr.mxu0 %v2367
    %2747 = vmatpush1.msra.mxu0 %v2366
    %2748 = vmatprep.subr.mxu0 %v2371
    %2749 = vmatpush1.msra.mxu0 %v2370
    %2750 = vmatprep.subr.mxu0 %v2375
    %2751 = vmatpush1.msra.mxu0 %v2374
    %2752 = vmatprep.subr.mxu0 %v2379
    %2753 = vmatpush1.msra.mxu0 %v2378
    %2754 = vmatprep.subr.mxu0 %v2383
    %2755 = vmatpush1.msra.mxu0 %v2382
    %2756 = vmatprep.subr.mxu0 %v2387
    %2757 = vmatpush1.msra.mxu0 %v2386
    %2758 = vmatprep.subr.mxu0 %v2391
    %2759 = vmatpush1.msra.mxu0 %v2390
    %2760 = vmatprep.subr.mxu0 %v2395
    %2761 = vmatpush1.msra.mxu0 %v2394
    %2762 = vmatprep.subr.mxu0 %v2399
    %2763 = vmatpush1.msra.mxu0 %v2398
    %2764 = vmatprep.subr.mxu0 %v2403
    %2765 = vmatpush1.msra.mxu0 %v2402
    %2766 = vmatprep.subr.mxu0 %v2407
    %2767 = vmatpush1.msra.mxu0 %v2406
    %2768 = vmatprep.subr.mxu0 %v2411
    %2769 = vmatpush1.msra.mxu0 %v2410
    %2770 = vmatprep.subr.mxu0 %v2415
    %2771 = vmatpush1.msra.mxu0 %v2414
    %2772 = vmatprep.subr.mxu0 %v2419
    %2773 = vmatpush1.msra.mxu0 %v2418
    %2774 = vmatprep.subr.mxu0 %v2423
    %2775 = vmatpush1.msra.mxu0 %v2422
    %2776 = vmatprep.subr.mxu0 %v2427
    %2777 = vmatpush1.msra.mxu0 %v2426
    %2778 = vmatprep.subr.mxu0 %v2431
    %2779 = vmatpush1.msra.mxu0 %v2430
    %2780 = vmatprep.subr.mxu0 %v2435
    %2781 = vmatpush1.msra.mxu0 %v2434
    %2782 = vmatprep.mubr.f32.mxu0 %v2222
    %2783 = vmatmul.mubr.f32.gmra.mrb[0].mxu0 %v2220
    %v2784 = vpop.f32.mrb[0].mxu0
    %v2785 = vadd.f32 0.0, %v2784
    %v2786 = vpop.f32.mrb[0].mxu0
    %v2787 = vadd.f32 0.0, %v2786
    %2788 = vmatprep.mubr.f32.mxu0 %v2228
    %2789 = vmatmul.mubr.f32.gmra.mrb[0].mxu0 %v2226
    %v2790 = vpop.f32.mrb[0].mxu0
    %v2791 = vadd.f32 0.0, %v2790
    %v2792 = vpop.f32.mrb[0].mxu0
    %v2793 = vadd.f32 0.0, %v2792
    %2794 = vdwg.mxu0
    %2795 = vmatprep.subr.mxu0 %v2439
    %2796 = vmatpush1.msra.mxu0 %v2438
    %2797 = vmatprep.subr.mxu0 %v2443
    %2798 = vmatpush1.msra.mxu0 %v2442
    %2799 = vmatprep.subr.mxu0 %v2447
    %2800 = vmatpush1.msra.mxu0 %v2446
    %2801 = vmatprep.subr.mxu0 %v2451
    %2802 = vmatpush1.msra.mxu0 %v2450
    %2803 = vmatprep.subr.mxu0 %v2455
    %2804 = vmatpush1.msra.mxu0 %v2454
    %2805 = vmatprep.subr.mxu0 %v2459
    %2806 = vmatpush1.msra.mxu0 %v2458
    %2807 = vmatprep.subr.mxu0 %v2463
    %2808 = vmatpush1.msra.mxu0 %v2462
    %2809 = vmatprep.subr.mxu0 %v2467
    %2810 = vmatpush1.msra.mxu0 %v2466
    %2811 = vmatprep.subr.mxu0 %v2471
    %2812 = vmatpush1.msra.mxu0 %v2470
    %2813 = vmatprep.subr.mxu0 %v2475
    %2814 = vmatpush1.msra.mxu0 %v2474
    %2815 = vmatprep.subr.mxu0 %v2479
    %2816 = vmatpush1.msra.mxu0 %v2478
    %2817 = vmatprep.subr.mxu0 %v2483
    %2818 = vmatpush1.msra.mxu0 %v2482
    %2819 = vmatprep.subr.mxu0 %v2487
    %2820 = vmatpush1.msra.mxu0 %v2486
    %2821 = vmatprep.subr.mxu0 %v2491
    %2822 = vmatpush1.msra.mxu0 %v2490
    %2823 = vmatprep.subr.mxu0 %v2495
    %2824 = vmatpush1.msra.mxu0 %v2494
    %2825 = vmatprep.subr.mxu0 %v2499
    %2826 = vmatpush1.msra.mxu0 %v2498
    %2827 = vmatprep.subr.mxu0 %v2503
    %2828 = vmatpush1.msra.mxu0 %v2502
    %2829 = vmatprep.subr.mxu0 %v2507
    %2830 = vmatpush1.msra.mxu0 %v2506
    %2831 = vmatprep.subr.mxu0 %v2511
    %2832 = vmatpush1.msra.mxu0 %v2510
    %2833 = vmatprep.subr.mxu0 %v2515
    %2834 = vmatpush1.msra.mxu0 %v2514
    %2835 = vmatprep.subr.mxu0 %v2519
    %2836 = vmatpush1.msra.mxu0 %v2518
    %2837 = vmatprep.subr.mxu0 %v2523
    %2838 = vmatpush1.msra.mxu0 %v2522
    %2839 = vmatprep.subr.mxu0 %v2527
    %2840 = vmatpush1.msra.mxu0 %v2526
    %2841 = vmatprep.subr.mxu0 %v2531
    %2842 = vmatpush1.msra.mxu0 %v2530
    %2843 = vmatprep.subr.mxu0 %v2535
    %2844 = vmatpush1.msra.mxu0 %v2534
    %2845 = vmatprep.subr.mxu0 %v2539
    %2846 = vmatpush1.msra.mxu0 %v2538
    %2847 = vmatprep.subr.mxu0 %v2543
    %2848 = vmatpush1.msra.mxu0 %v2542
    %2849 = vmatprep.subr.mxu0 %v2547
    %2850 = vmatpush1.msra.mxu0 %v2546
    %2851 = vmatprep.subr.mxu0 %v2551
    %2852 = vmatpush1.msra.mxu0 %v2550
    %2853 = vmatprep.subr.mxu0 %v2555
    %2854 = vmatpush1.msra.mxu0 %v2554
    %2855 = vmatprep.subr.mxu0 %v2559
    %2856 = vmatpush1.msra.mxu0 %v2558
    %2857 = vmatprep.subr.mxu0 %v2563
    %2858 = vmatpush1.msra.mxu0 %v2562
    %2859 = vmatprep.mubr.f32.mxu0 %v2299
    %2860 = vmatmul.mubr.f32.gmra.mrb[0].mxu0 %v2297
    %v2861 = vpop.f32.mrb[0].mxu0
    %v2862 = vadd.f32 %v2785, %v2861
    %v2863 = vpop.f32.mrb[0].mxu0
    %v2864 = vadd.f32 %v2787, %v2863
    %2865 = vmatprep.mubr.f32.mxu0 %v2305
    %2866 = vmatmul.mubr.f32.gmra.mrb[0].mxu0 %v2303
    %v2867 = vpop.f32.mrb[0].mxu0
    %v2868 = vadd.f32 %v2791, %v2867
    %v2869 = vpop.f32.mrb[0].mxu0
    %v2870 = vadd.f32 %v2793, %v2869
    %2871 = vdwg.mxu0
    %2872 = vmatprep.subr.mxu0 %v1889
    %2873 = vmatpush1.msra.mxu0 %v1888
    %2874 = vmatprep.subr.mxu0 %v1893
    %2875 = vmatpush1.msra.mxu0 %v1892
    %2876 = vmatprep.subr.mxu0 %v1897
    %2877 = vmatpush1.msra.mxu0 %v1896
    %2878 = vmatprep.subr.mxu0 %v1901
    %2879 = vmatpush1.msra.mxu0 %v1900
    %2880 = vmatprep.subr.mxu0 %v1905
    %2881 = vmatpush1.msra.mxu0 %v1904
    %2882 = vmatprep.subr.mxu0 %v1909
    %2883 = vmatpush1.msra.mxu0 %v1908
    %2884 = vmatprep.subr.mxu0 %v1913
    %2885 = vmatpush1.msra.mxu0 %v1912
    %2886 = vmatprep.subr.mxu0 %v1917
    %2887 = vmatpush1.msra.mxu0 %v1916
    %2888 = vmatprep.subr.mxu0 %v1921
    %2889 = vmatpush1.msra.mxu0 %v1920
    %2890 = vmatprep.subr.mxu0 %v1925
    %2891 = vmatpush1.msra.mxu0 %v1924
    %2892 = vmatprep.subr.mxu0 %v1929
    %2893 = vmatpush1.msra.mxu0 %v1928
    %2894 = vmatprep.subr.mxu0 %v1933
    %2895 = vmatpush1.msra.mxu0 %v1932
    %2896 = vmatprep.subr.mxu0 %v1937
    %2897 = vmatpush1.msra.mxu0 %v1936
    %2898 = vmatprep.subr.mxu0 %v1941
    %2899 = vmatpush1.msra.mxu0 %v1940
    %2900 = vmatprep.subr.mxu0 %v1945
    %2901 = vmatpush1.msra.mxu0 %v1944
    %2902 = vmatprep.subr.mxu0 %v1949
    %2903 = vmatpush1.msra.mxu0 %v1948
    %2904 = vmatprep.subr.mxu0 %v1953
    %2905 = vmatpush1.msra.mxu0 %v1952
    %2906 = vmatprep.subr.mxu0 %v1957
    %2907 = vmatpush1.msra.mxu0 %v1956
    %2908 = vmatprep.subr.mxu0 %v1961
    %2909 = vmatpush1.msra.mxu0 %v1960
    %2910 = vmatprep.subr.mxu0 %v1965
    %2911 = vmatpush1.msra.mxu0 %v1964
    %2912 = vmatprep.subr.mxu0 %v1969
    %2913 = vmatpush1.msra.mxu0 %v1968
    %2914 = vmatprep.subr.mxu0 %v1973
    %2915 = vmatpush1.msra.mxu0 %v1972
    %2916 = vmatprep.subr.mxu0 %v1977
    %2917 = vmatpush1.msra.mxu0 %v1976
    %2918 = vmatprep.subr.mxu0 %v1981
    %2919 = vmatpush1.msra.mxu0 %v1980
    %2920 = vmatprep.subr.mxu0 %v1985
    %2921 = vmatpush1.msra.mxu0 %v1984
    %2922 = vmatprep.subr.mxu0 %v1989
    %2923 = vmatpush1.msra.mxu0 %v1988
    %2924 = vmatprep.subr.mxu0 %v1993
    %2925 = vmatpush1.msra.mxu0 %v1992
    %2926 = vmatprep.subr.mxu0 %v1997
    %2927 = vmatpush1.msra.mxu0 %v1996
    %2928 = vmatprep.subr.mxu0 %v2001
    %2929 = vmatpush1.msra.mxu0 %v2000
    %2930 = vmatprep.subr.mxu0 %v2005
    %2931 = vmatpush1.msra.mxu0 %v2004
    %2932 = vmatprep.subr.mxu0 %v2009
    %2933 = vmatpush1.msra.mxu0 %v2008
    %2934 = vmatprep.subr.mxu0 %v2013
    %2935 = vmatpush1.msra.mxu0 %v2012
    %2936 = vmatprep.mubr.f32.mxu0 %v1803
    %2937 = vmatmul.mubr.f32.gmra.mrb[0].mxu0 %v1801
    %v2938 = vpop.f32.mrb[0].mxu0
    %v2939 = vadd.f32 %v2708, %v2938
    %v2940 = vpop.f32.mrb[0].mxu0
    %v2941 = vadd.f32 %v2710, %v2940
    %2942 = vmatprep.mubr.f32.mxu0 %v1809
    %2943 = vmatmul.mubr.f32.gmra.mrb[0].mxu0 %v1807
    %v2944 = vpop.f32.mrb[0].mxu0
    %v2945 = vadd.f32 %v2714, %v2944
    %v2946 = vpop.f32.mrb[0].mxu0
    %v2947 = vadd.f32 %v2716, %v2946
    %2948 = vdwg.mxu0
    %2949 = vmatprep.subr.mxu0 %v2017
    %2950 = vmatpush1.msra.mxu0 %v2016
    %2951 = vmatprep.subr.mxu0 %v2021
    %2952 = vmatpush1.msra.mxu0 %v2020
    %2953 = vmatprep.subr.mxu0 %v2025
    %2954 = vmatpush1.msra.mxu0 %v2024
    %2955 = vmatprep.subr.mxu0 %v2029
    %2956 = vmatpush1.msra.mxu0 %v2028
    %2957 = vmatprep.subr.mxu0 %v2033
    %2958 = vmatpush1.msra.mxu0 %v2032
    %2959 = vmatprep.subr.mxu0 %v2037
    %2960 = vmatpush1.msra.mxu0 %v2036
    %2961 = vmatprep.subr.mxu0 %v2041
    %2962 = vmatpush1.msra.mxu0 %v2040
    %2963 = vmatprep.subr.mxu0 %v2045
    %2964 = vmatpush1.msra.mxu0 %v2044
    %2965 = vmatprep.subr.mxu0 %v2049
    %2966 = vmatpush1.msra.mxu0 %v2048
    %2967 = vmatprep.subr.mxu0 %v2053
    %2968 = vmatpush1.msra.mxu0 %v2052
    %2969 = vmatprep.subr.mxu0 %v2057
    %2970 = vmatpush1.msra.mxu0 %v2056
    %2971 = vmatprep.subr.mxu0 %v2061
    %2972 = vmatpush1.msra.mxu0 %v2060
    %2973 = vmatprep.subr.mxu0 %v2065
    %2974 = vmatpush1.msra.mxu0 %v2064
    %2975 = vmatprep.subr.mxu0 %v2069
    %2976 = vmatpush1.msra.mxu0 %v2068
    %2977 = vmatprep.subr.mxu0 %v2073
    %2978 = vmatpush1.msra.mxu0 %v2072
    %2979 = vmatprep.subr.mxu0 %v2077
    %2980 = vmatpush1.msra.mxu0 %v2076
    %2981 = vmatprep.subr.mxu0 %v2081
    %2982 = vmatpush1.msra.mxu0 %v2080
    %2983 = vmatprep.subr.mxu0 %v2085
    %2984 = vmatpush1.msra.mxu0 %v2084
    %2985 = vmatprep.subr.mxu0 %v2089
    %2986 = vmatpush1.msra.mxu0 %v2088
    %2987 = vmatprep.subr.mxu0 %v2093
    %2988 = vmatpush1.msra.mxu0 %v2092
    %2989 = vmatprep.subr.mxu0 %v2097
    %2990 = vmatpush1.msra.mxu0 %v2096
    %2991 = vmatprep.subr.mxu0 %v2101
    %2992 = vmatpush1.msra.mxu0 %v2100
    %2993 = vmatprep.subr.mxu0 %v2105
    %2994 = vmatpush1.msra.mxu0 %v2104
    %2995 = vmatprep.subr.mxu0 %v2109
    %2996 = vmatpush1.msra.mxu0 %v2108
    %2997 = vmatprep.subr.mxu0 %v2113
    %2998 = vmatpush1.msra.mxu0 %v2112
    %2999 = vmatprep.subr.mxu0 %v2117
    %3000 = vmatpush1.msra.mxu0 %v2116
    %3001 = vmatprep.subr.mxu0 %v2121
    %3002 = vmatpush1.msra.mxu0 %v2120
    %3003 = vmatprep.subr.mxu0 %v2125
    %3004 = vmatpush1.msra.mxu0 %v2124
    %3005 = vmatprep.subr.mxu0 %v2129
    %3006 = vmatpush1.msra.mxu0 %v2128
    %3007 = vmatprep.subr.mxu0 %v2133
    %3008 = vmatpush1.msra.mxu0 %v2132
    %3009 = vmatprep.subr.mxu0 %v2137
    %3010 = vmatpush1.msra.mxu0 %v2136
    %3011 = vmatprep.subr.mxu0 %v2141
    %3012 = vmatpush1.msra.mxu0 %v2140
    %3013 = vmatprep.mubr.f32.mxu0 %v1880
    %3014 = vmatmul.mubr.f32.gmra.mrb[0].mxu0 %v1878
    %v3015 = vpop.f32.mrb[0].mxu0
    %v3016 = vadd.f32 %v2939, %v3015
    %v3017 = vpop.f32.mrb[0].mxu0
    %v3018 = vadd.f32 %v2941, %v3017
    %3019 = vmatprep.mubr.f32.mxu0 %v1886
    %3020 = vmatmul.mubr.f32.gmra.mrb[0].mxu0 %v1884
    %v3021 = vpop.f32.mrb[0].mxu0
    %v3022 = vadd.f32 %v2945, %v3021
    %v3023 = vpop.f32.mrb[0].mxu0
    %v3024 = vadd.f32 %v2947, %v3023
    %3025 = vdwg.mxu0
    %3026 = vmatprep.subr.mxu0 %v1891
    %3027 = vmatpush1.msra.mxu0 %v1890
    %3028 = vmatprep.subr.mxu0 %v1895
    %3029 = vmatpush1.msra.mxu0 %v1894
    %3030 = vmatprep.subr.mxu0 %v1899
    %3031 = vmatpush1.msra.mxu0 %v1898
    %3032 = vmatprep.subr.mxu0 %v1903
    %3033 = vmatpush1.msra.mxu0 %v1902
    %3034 = vmatprep.subr.mxu0 %v1907
    %3035 = vmatpush1.msra.mxu0 %v1906
    %3036 = vmatprep.subr.mxu0 %v1911
    %3037 = vmatpush1.msra.mxu0 %v1910
    %3038 = vmatprep.subr.mxu0 %v1915
    %3039 = vmatpush1.msra.mxu0 %v1914
    %3040 = vmatprep.subr.mxu0 %v1919
    %3041 = vmatpush1.msra.mxu0 %v1918
    %3042 = vmatprep.subr.mxu0 %v1923
    %3043 = vmatpush1.msra.mxu0 %v1922
    %3044 = vmatprep.subr.mxu0 %v1927
    %3045 = vmatpush1.msra.mxu0 %v1926
    %3046 = vmatprep.subr.mxu0 %v1931
    %3047 = vmatpush1.msra.mxu0 %v1930
    %3048 = vmatprep.subr.mxu0 %v1935
    %3049 = vmatpush1.msra.mxu0 %v1934
    %3050 = vmatprep.subr.mxu0 %v1939
    %3051 = vmatpush1.msra.mxu0 %v1938
    %3052 = vmatprep.subr.mxu0 %v1943
    %3053 = vmatpush1.msra.mxu0 %v1942
    %3054 = vmatprep.subr.mxu0 %v1947
    %3055 = vmatpush1.msra.mxu0 %v1946
    %3056 = vmatprep.subr.mxu0 %v1951
    %3057 = vmatpush1.msra.mxu0 %v1950
    %3058 = vmatprep.subr.mxu0 %v1955
    %3059 = vmatpush1.msra.mxu0 %v1954
    %3060 = vmatprep.subr.mxu0 %v1959
    %3061 = vmatpush1.msra.mxu0 %v1958
    %3062 = vmatprep.subr.mxu0 %v1963
    %3063 = vmatpush1.msra.mxu0 %v1962
    %3064 = vmatprep.subr.mxu0 %v1967
    %3065 = vmatpush1.msra.mxu0 %v1966
    %3066 = vmatprep.subr.mxu0 %v1971
    %3067 = vmatpush1.msra.mxu0 %v1970
    %3068 = vmatprep.subr.mxu0 %v1975
    %3069 = vmatpush1.msra.mxu0 %v1974
    %3070 = vmatprep.subr.mxu0 %v1979
    %3071 = vmatpush1.msra.mxu0 %v1978
    %3072 = vmatprep.subr.mxu0 %v1983
    %3073 = vmatpush1.msra.mxu0 %v1982
    %3074 = vmatprep.subr.mxu0 %v1987
    %3075 = vmatpush1.msra.mxu0 %v1986
    %3076 = vmatprep.subr.mxu0 %v1991
    %3077 = vmatpush1.msra.mxu0 %v1990
    %3078 = vmatprep.subr.mxu0 %v1995
    %3079 = vmatpush1.msra.mxu0 %v1994
    %3080 = vmatprep.subr.mxu0 %v1999
    %3081 = vmatpush1.msra.mxu0 %v1998
    %3082 = vmatprep.subr.mxu0 %v2003
    %3083 = vmatpush1.msra.mxu0 %v2002
    %3084 = vmatprep.subr.mxu0 %v2007
    %3085 = vmatpush1.msra.mxu0 %v2006
    %3086 = vmatprep.subr.mxu0 %v2011
    %3087 = vmatpush1.msra.mxu0 %v2010
    %3088 = vmatprep.subr.mxu0 %v2015
    %3089 = vmatpush1.msra.mxu0 %v2014
    %3090 = vmatprep.mubr.f32.mxu0 %v1803
    %3091 = vmatmul.mubr.f32.gmra.mrb[0].mxu0 %v1801
    %v3092 = vpop.f32.mrb[0].mxu0
    %v3093 = vadd.f32 %v2862, %v3092
    %v3094 = vpop.f32.mrb[0].mxu0
    %v3095 = vadd.f32 %v2864, %v3094
    %3096 = vmatprep.mubr.f32.mxu0 %v1809
    %3097 = vmatmul.mubr.f32.gmra.mrb[0].mxu0 %v1807
    %v3098 = vpop.f32.mrb[0].mxu0
    %v3099 = vadd.f32 %v2868, %v3098
    %v3100 = vpop.f32.mrb[0].mxu0
    %v3101 = vadd.f32 %v2870, %v3100
    %3102 = vdwg.mxu0
    %3103 = vmatprep.subr.mxu0 %v2019
    %3104 = vmatpush1.msra.mxu0 %v2018
    %3105 = vmatprep.subr.mxu0 %v2023
    %3106 = vmatpush1.msra.mxu0 %v2022
    %3107 = vmatprep.subr.mxu0 %v2027
    %3108 = vmatpush1.msra.mxu0 %v2026
    %3109 = vmatprep.subr.mxu0 %v2031
    %3110 = vmatpush1.msra.mxu0 %v2030
    %3111 = vmatprep.subr.mxu0 %v2035
    %3112 = vmatpush1.msra.mxu0 %v2034
    %3113 = vmatprep.subr.mxu0 %v2039
    %3114 = vmatpush1.msra.mxu0 %v2038
    %3115 = vmatprep.subr.mxu0 %v2043
    %3116 = vmatpush1.msra.mxu0 %v2042
    %3117 = vmatprep.subr.mxu0 %v2047
    %3118 = vmatpush1.msra.mxu0 %v2046
    %3119 = vmatprep.subr.mxu0 %v2051
    %3120 = vmatpush1.msra.mxu0 %v2050
    %3121 = vmatprep.subr.mxu0 %v2055
    %3122 = vmatpush1.msra.mxu0 %v2054
    %3123 = vmatprep.subr.mxu0 %v2059
    %3124 = vmatpush1.msra.mxu0 %v2058
    %3125 = vmatprep.subr.mxu0 %v2063
    %3126 = vmatpush1.msra.mxu0 %v2062
    %3127 = vmatprep.subr.mxu0 %v2067
    %3128 = vmatpush1.msra.mxu0 %v2066
    %3129 = vmatprep.subr.mxu0 %v2071
    %3130 = vmatpush1.msra.mxu0 %v2070
    %3131 = vmatprep.subr.mxu0 %v2075
    %3132 = vmatpush1.msra.mxu0 %v2074
    %3133 = vmatprep.subr.mxu0 %v2079
    %3134 = vmatpush1.msra.mxu0 %v2078
    %3135 = vmatprep.subr.mxu0 %v2083
    %3136 = vmatpush1.msra.mxu0 %v2082
    %3137 = vmatprep.subr.mxu0 %v2087
    %3138 = vmatpush1.msra.mxu0 %v2086
    %3139 = vmatprep.subr.mxu0 %v2091
    %3140 = vmatpush1.msra.mxu0 %v2090
    %3141 = vmatprep.subr.mxu0 %v2095
    %3142 = vmatpush1.msra.mxu0 %v2094
    %3143 = vmatprep.subr.mxu0 %v2099
    %3144 = vmatpush1.msra.mxu0 %v2098
    %3145 = vmatprep.subr.mxu0 %v2103
    %3146 = vmatpush1.msra.mxu0 %v2102
    %3147 = vmatprep.subr.mxu0 %v2107
    %3148 = vmatpush1.msra.mxu0 %v2106
    %3149 = vmatprep.subr.mxu0 %v2111
    %3150 = vmatpush1.msra.mxu0 %v2110
    %3151 = vmatprep.subr.mxu0 %v2115
    %3152 = vmatpush1.msra.mxu0 %v2114
    %3153 = vmatprep.subr.mxu0 %v2119
    %3154 = vmatpush1.msra.mxu0 %v2118
    %3155 = vmatprep.subr.mxu0 %v2123
    %3156 = vmatpush1.msra.mxu0 %v2122
    %3157 = vmatprep.subr.mxu0 %v2127
    %3158 = vmatpush1.msra.mxu0 %v2126
    %3159 = vmatprep.subr.mxu0 %v2131
    %3160 = vmatpush1.msra.mxu0 %v2130
    %3161 = vmatprep.subr.mxu0 %v2135
    %3162 = vmatpush1.msra.mxu0 %v2134
    %3163 = vmatprep.subr.mxu0 %v2139
    %3164 = vmatpush1.msra.mxu0 %v2138
    %3165 = vmatprep.subr.mxu0 %v2143
    %3166 = vmatpush1.msra.mxu0 %v2142
    %3167 = vmatprep.mubr.f32.mxu0 %v1880
    %3168 = vmatmul.mubr.f32.gmra.mrb[0].mxu0 %v1878
    %v3169 = vpop.f32.mrb[0].mxu0
    %v3170 = vadd.f32 %v3093, %v3169
    %v3171 = vpop.f32.mrb[0].mxu0
    %v3172 = vadd.f32 %v3095, %v3171
    %3173 = vmatprep.mubr.f32.mxu0 %v1886
    %3174 = vmatmul.mubr.f32.gmra.mrb[0].mxu0 %v1884
    %v3175 = vpop.f32.mrb[0].mxu0
    %v3176 = vadd.f32 %v3099, %v3175
    %v3177 = vpop.f32.mrb[0].mxu0
    %v3178 = vadd.f32 %v3101, %v3177
    %3179 = vdwg.mxu0
    %s3180 = scalar_lea.vmem %s12, 32
    %v3181 = vld [vmem:[%s3180] sm:$0xff]
    %v3182 = vld [vmem:[%s3180 + $0x8] sm:$0x3f]
    %v3184 = vsel %vm1727, %v3181, 0
    %v3187 = vsel %vm1727, %v3182, 0
    %3189 = vmatprep.subr.mxu0 %v1722
    %3190 = vmatpush1.msra.mxu0 %v1721
    %3191 = vmatprep.subr.mxu0 0.0
    %3192 = vmatpush1.msra.mxu0 0.0
    %3193 = vmatprep.subr.mxu0 0.0
    %3194 = vmatpush1.msra.mxu0 0.0
    %3195 = vmatprep.subr.mxu0 0.0
    %3196 = vmatpush1.msra.mxu0 0.0
    %3197 = vmatprep.subr.mxu0 0.0
    %3198 = vmatpush1.msra.mxu0 0.0
    %3199 = vmatprep.subr.mxu0 0.0
    %3200 = vmatpush1.msra.mxu0 0.0
    %3201 = vmatprep.subr.mxu0 0.0
    %3202 = vmatpush1.msra.mxu0 0.0
    %3203 = vmatprep.subr.mxu0 0.0
    %3204 = vmatpush1.msra.mxu0 0.0
    %3205 = vmatprep.subr.mxu0 0.0
    %3206 = vmatpush1.msra.mxu0 0.0
    %3207 = vmatprep.subr.mxu0 0.0
    %3208 = vmatpush1.msra.mxu0 0.0
    %3209 = vmatprep.subr.mxu0 0.0
    %3210 = vmatpush1.msra.mxu0 0.0
    %3211 = vmatprep.subr.mxu0 0.0
    %3212 = vmatpush1.msra.mxu0 0.0
    %3213 = vmatprep.subr.mxu0 0.0
    %3214 = vmatpush1.msra.mxu0 0.0
    %3215 = vmatprep.subr.mxu0 0.0
    %3216 = vmatpush1.msra.mxu0 0.0
    %3217 = vmatprep.subr.mxu0 0.0
    %3218 = vmatpush1.msra.mxu0 0.0
    %3219 = vmatprep.subr.mxu0 0.0
    %3220 = vmatpush1.msra.mxu0 0.0
    %3221 = vmatprep.subr.mxu0 0.0
    %3222 = vmatpush1.msra.mxu0 0.0
    %3223 = vmatprep.subr.mxu0 0.0
    %3224 = vmatpush1.msra.mxu0 0.0
    %3225 = vmatprep.subr.mxu0 0.0
    %3226 = vmatpush1.msra.mxu0 0.0
    %3227 = vmatprep.subr.mxu0 0.0
    %3228 = vmatpush1.msra.mxu0 0.0
    %3229 = vmatprep.subr.mxu0 0.0
    %3230 = vmatpush1.msra.mxu0 0.0
    %3231 = vmatprep.subr.mxu0 0.0
    %3232 = vmatpush1.msra.mxu0 0.0
    %3233 = vmatprep.subr.mxu0 0.0
    %3234 = vmatpush1.msra.mxu0 0.0
    %3235 = vmatprep.subr.mxu0 0.0
    %3236 = vmatpush1.msra.mxu0 0.0
    %3237 = vmatprep.subr.mxu0 0.0
    %3238 = vmatpush1.msra.mxu0 0.0
    %3239 = vmatprep.subr.mxu0 0.0
    %3240 = vmatpush1.msra.mxu0 0.0
    %3241 = vmatprep.subr.mxu0 0.0
    %3242 = vmatpush1.msra.mxu0 0.0
    %3243 = vmatprep.subr.mxu0 0.0
    %3244 = vmatpush1.msra.mxu0 0.0
    %3245 = vmatprep.subr.mxu0 0.0
    %3246 = vmatpush1.msra.mxu0 0.0
    %3247 = vmatprep.subr.mxu0 0.0
    %3248 = vmatpush1.msra.mxu0 0.0
    %3249 = vmatprep.subr.mxu0 0.0
    %3250 = vmatpush1.msra.mxu0 0.0
    %3251 = vmatprep.subr.mxu0 0.0
    %3252 = vmatpush1.msra.mxu0 0.0
    %3253 = vmatprep.mubr.f32.mxu0 0.0
    %3254 = vmatmul.mubr.f32.gmra.mrb[0].mxu0 %v3184
    %v3255 = vpop.f32.mrb[0].mxu0
    %v3256 = vadd.f32 0.0, %v3255
    %v3257 = vpop.f32.mrb[0].mxu0
    %v3258 = vadd.f32 0.0, %v3257
    %3259 = vmatprep.mubr.f32.mxu0 0.0
    %3260 = vmatmul.mubr.f32.gmra.mrb[0].mxu0 %v3187
    %v3261 = vpop.f32.mrb[0].mxu0
    %v3262 = vadd.f32 0.0, %v3261
    %v3263 = vpop.f32.mrb[0].mxu0
    %v3264 = vadd.f32 0.0, %v3263
    %3265 = vdwg.mxu0
    %3266 = vmatprep.subr.mxu0 %v1724
    %3267 = vmatpush1.msra.mxu0 %v1723
    %3268 = vmatprep.subr.mxu0 0.0
    %3269 = vmatpush1.msra.mxu0 0.0
    %3270 = vmatprep.subr.mxu0 0.0
    %3271 = vmatpush1.msra.mxu0 0.0
    %3272 = vmatprep.subr.mxu0 0.0
    %3273 = vmatpush1.msra.mxu0 0.0
    %3274 = vmatprep.subr.mxu0 0.0
    %3275 = vmatpush1.msra.mxu0 0.0
    %3276 = vmatprep.subr.mxu0 0.0
    %3277 = vmatpush1.msra.mxu0 0.0
    %3278 = vmatprep.subr.mxu0 0.0
    %3279 = vmatpush1.msra.mxu0 0.0
    %3280 = vmatprep.subr.mxu0 0.0
    %3281 = vmatpush1.msra.mxu0 0.0
    %3282 = vmatprep.subr.mxu0 0.0
    %3283 = vmatpush1.msra.mxu0 0.0
    %3284 = vmatprep.subr.mxu0 0.0
    %3285 = vmatpush1.msra.mxu0 0.0
    %3286 = vmatprep.subr.mxu0 0.0
    %3287 = vmatpush1.msra.mxu0 0.0
    %3288 = vmatprep.subr.mxu0 0.0
    %3289 = vmatpush1.msra.mxu0 0.0
    %3290 = vmatprep.subr.mxu0 0.0
    %3291 = vmatpush1.msra.mxu0 0.0
    %3292 = vmatprep.subr.mxu0 0.0
    %3293 = vmatpush1.msra.mxu0 0.0
    %3294 = vmatprep.subr.mxu0 0.0
    %3295 = vmatpush1.msra.mxu0 0.0
    %3296 = vmatprep.subr.mxu0 0.0
    %3297 = vmatpush1.msra.mxu0 0.0
    %3298 = vmatprep.subr.mxu0 0.0
    %3299 = vmatpush1.msra.mxu0 0.0
    %3300 = vmatprep.subr.mxu0 0.0
    %3301 = vmatpush1.msra.mxu0 0.0
    %3302 = vmatprep.subr.mxu0 0.0
    %3303 = vmatpush1.msra.mxu0 0.0
    %3304 = vmatprep.subr.mxu0 0.0
    %3305 = vmatpush1.msra.mxu0 0.0
    %3306 = vmatprep.subr.mxu0 0.0
    %3307 = vmatpush1.msra.mxu0 0.0
    %3308 = vmatprep.subr.mxu0 0.0
    %3309 = vmatpush1.msra.mxu0 0.0
    %3310 = vmatprep.subr.mxu0 0.0
    %3311 = vmatpush1.msra.mxu0 0.0
    %3312 = vmatprep.subr.mxu0 0.0
    %3313 = vmatpush1.msra.mxu0 0.0
    %3314 = vmatprep.subr.mxu0 0.0
    %3315 = vmatpush1.msra.mxu0 0.0
    %3316 = vmatprep.subr.mxu0 0.0
    %3317 = vmatpush1.msra.mxu0 0.0
    %3318 = vmatprep.subr.mxu0 0.0
    %3319 = vmatpush1.msra.mxu0 0.0
    %3320 = vmatprep.subr.mxu0 0.0
    %3321 = vmatpush1.msra.mxu0 0.0
    %3322 = vmatprep.subr.mxu0 0.0
    %3323 = vmatpush1.msra.mxu0 0.0
    %3324 = vmatprep.subr.mxu0 0.0
    %3325 = vmatpush1.msra.mxu0 0.0
    %3326 = vmatprep.subr.mxu0 0.0
    %3327 = vmatpush1.msra.mxu0 0.0
    %3328 = vmatprep.subr.mxu0 0.0
    %3329 = vmatpush1.msra.mxu0 0.0
    %3330 = vmatprep.mubr.f32.mxu0 0.0
    %3331 = vmatmul.mubr.f32.gmra.mrb[0].mxu0 %v3184
    %v3332 = vpop.f32.mrb[0].mxu0
    %v3333 = vadd.f32 0.0, %v3332
    %v3334 = vpop.f32.mrb[0].mxu0
    %v3335 = vadd.f32 0.0, %v3334
    %3336 = vmatprep.mubr.f32.mxu0 0.0
    %3337 = vmatmul.mubr.f32.gmra.mrb[0].mxu0 %v3187
    %v3338 = vpop.f32.mrb[0].mxu0
    %v3339 = vadd.f32 0.0, %v3338
    %v3340 = vpop.f32.mrb[0].mxu0
    %v3341 = vadd.f32 0.0, %v3340
    %3342 = vdwg.mxu0
    %s3343 = scalar_lea.vmem %s13, 4096
    %v3344 = vld [vmem:[%s3343] sm:$0xff]
    %v3345 = vld [vmem:[%s3343 + $0x8] sm:$0xff]
    %v3346 = vld [vmem:[%s3343 + $0x10] sm:$0xff]
    %v3347 = vld [vmem:[%s3343 + $0x18] sm:$0xff]
    %v3348 = vld [vmem:[%s3343 + $0x20] sm:$0xff]
    %v3349 = vld [vmem:[%s3343 + $0x28] sm:$0xff]
    %v3350 = vld [vmem:[%s3343 + $0x30] sm:$0xff]
    %v3351 = vld [vmem:[%s3343 + $0x38] sm:$0xff]
    %v3352 = vld [vmem:[%s3343 + $0x40] sm:$0xff]
    %v3353 = vld [vmem:[%s3343 + $0x48] sm:$0xff]
    %v3354 = vld [vmem:[%s3343 + $0x50] sm:$0xff]
    %v3355 = vld [vmem:[%s3343 + $0x58] sm:$0xff]
    %v3356 = vld [vmem:[%s3343 + $0x60] sm:$0xff]
    %v3357 = vld [vmem:[%s3343 + $0x68] sm:$0xff]
    %v3358 = vld [vmem:[%s3343 + $0x70] sm:$0xff]
    %v3359 = vld [vmem:[%s3343 + $0x78] sm:$0xff]
    %v3360 = vld [vmem:[%s3343 + $0x80] sm:$0xff]
    %v3361 = vld [vmem:[%s3343 + $0x88] sm:$0xff]
    %v3362 = vld [vmem:[%s3343 + $0x90] sm:$0xff]
    %v3363 = vld [vmem:[%s3343 + $0x98] sm:$0xff]
    %v3364 = vld [vmem:[%s3343 + $0xa0] sm:$0xff]
    %v3365 = vld [vmem:[%s3343 + $0xa8] sm:$0xff]
    %v3366 = vld [vmem:[%s3343 + $0xb0] sm:$0xff]
    %v3367 = vld [vmem:[%s3343 + $0xb8] sm:$0xff]
    %v3368 = vld [vmem:[%s3343 + $0xc0] sm:$0xff]
    %v3369 = vld [vmem:[%s3343 + $0xc8] sm:$0xff]
    %v3370 = vld [vmem:[%s3343 + $0xd0] sm:$0xff]
    %v3371 = vld [vmem:[%s3343 + $0xd8] sm:$0xff]
    %v3372 = vld [vmem:[%s3343 + $0xe0] sm:$0xff]
    %v3373 = vld [vmem:[%s3343 + $0xe8] sm:$0xff]
    %v3374 = vld [vmem:[%s3343 + $0xf0] sm:$0xff]
    %v3375 = vld [vmem:[%s3343 + $0xf8] sm:$0xff]
    %v3376 = vld [vmem:[%s3343 + $0x100] sm:$0xff]
    %v3377 = vld [vmem:[%s3343 + $0x108] sm:$0xff]
    %v3378 = vld [vmem:[%s3343 + $0x110] sm:$0xff]
    %v3379 = vld [vmem:[%s3343 + $0x118] sm:$0xff]
    %v3380 = vld [vmem:[%s3343 + $0x120] sm:$0xff]
    %v3381 = vld [vmem:[%s3343 + $0x128] sm:$0xff]
    %v3382 = vld [vmem:[%s3343 + $0x130] sm:$0xff]
    %v3383 = vld [vmem:[%s3343 + $0x138] sm:$0xff]
    %v3384 = vld [vmem:[%s3343 + $0x140] sm:$0xff]
    %v3385 = vld [vmem:[%s3343 + $0x148] sm:$0xff]
    %v3386 = vld [vmem:[%s3343 + $0x150] sm:$0xff]
    %v3387 = vld [vmem:[%s3343 + $0x158] sm:$0xff]
    %v3388 = vld [vmem:[%s3343 + $0x160] sm:$0xff]
    %v3389 = vld [vmem:[%s3343 + $0x168] sm:$0xff]
    %v3390 = vld [vmem:[%s3343 + $0x170] sm:$0xff]
    %v3391 = vld [vmem:[%s3343 + $0x178] sm:$0xff]
    %v3392 = vld [vmem:[%s3343 + $0x180] sm:$0xff]
    %v3393 = vld [vmem:[%s3343 + $0x188] sm:$0xff]
    %v3394 = vld [vmem:[%s3343 + $0x190] sm:$0xff]
    %v3395 = vld [vmem:[%s3343 + $0x198] sm:$0xff]
    %v3396 = vld [vmem:[%s3343 + $0x1a0] sm:$0xff]
    %v3397 = vld [vmem:[%s3343 + $0x1a8] sm:$0xff]
    %v3398 = vld [vmem:[%s3343 + $0x1b0] sm:$0xff]
    %v3399 = vld [vmem:[%s3343 + $0x1b8] sm:$0xff]
    %v3400 = vld [vmem:[%s3343 + $0x1c0] sm:$0xff]
    %v3401 = vld [vmem:[%s3343 + $0x1c8] sm:$0xff]
    %v3402 = vld [vmem:[%s3343 + $0x1d0] sm:$0xff]
    %v3403 = vld [vmem:[%s3343 + $0x1d8] sm:$0xff]
    %v3404 = vld [vmem:[%s3343 + $0x1e0] sm:$0xff]
    %v3405 = vld [vmem:[%s3343 + $0x1e8] sm:$0xff]
    %v3406 = vld [vmem:[%s3343 + $0x1f0] sm:$0xff]
    %v3407 = vld [vmem:[%s3343 + $0x1f8] sm:$0xff]
    %v3408 = vld [vmem:[%s3343 + $0x200] sm:$0xff]
    %v3409 = vld [vmem:[%s3343 + $0x208] sm:$0xff]
    %v3410 = vld [vmem:[%s3343 + $0x210] sm:$0xff]
    %v3411 = vld [vmem:[%s3343 + $0x218] sm:$0xff]
    %v3412 = vld [vmem:[%s3343 + $0x220] sm:$0xff]
    %v3413 = vld [vmem:[%s3343 + $0x228] sm:$0xff]
    %v3414 = vld [vmem:[%s3343 + $0x230] sm:$0xff]
    %v3415 = vld [vmem:[%s3343 + $0x238] sm:$0xff]
    %v3416 = vld [vmem:[%s3343 + $0x240] sm:$0xff]
    %v3417 = vld [vmem:[%s3343 + $0x248] sm:$0xff]
    %v3418 = vld [vmem:[%s3343 + $0x250] sm:$0xff]
    %v3419 = vld [vmem:[%s3343 + $0x258] sm:$0xff]
    %v3420 = vld [vmem:[%s3343 + $0x260] sm:$0xff]
    %v3421 = vld [vmem:[%s3343 + $0x268] sm:$0xff]
    %v3422 = vld [vmem:[%s3343 + $0x270] sm:$0xff]
    %v3423 = vld [vmem:[%s3343 + $0x278] sm:$0xff]
    %v3424 = vld [vmem:[%s3343 + $0x280] sm:$0xff]
    %v3425 = vld [vmem:[%s3343 + $0x288] sm:$0xff]
    %v3426 = vld [vmem:[%s3343 + $0x290] sm:$0xff]
    %v3427 = vld [vmem:[%s3343 + $0x298] sm:$0xff]
    %v3428 = vld [vmem:[%s3343 + $0x2a0] sm:$0xff]
    %v3429 = vld [vmem:[%s3343 + $0x2a8] sm:$0xff]
    %v3430 = vld [vmem:[%s3343 + $0x2b0] sm:$0xff]
    %v3431 = vld [vmem:[%s3343 + $0x2b8] sm:$0xff]
    %v3432 = vld [vmem:[%s3343 + $0x2c0] sm:$0xff]
    %v3433 = vld [vmem:[%s3343 + $0x2c8] sm:$0xff]
    %v3434 = vld [vmem:[%s3343 + $0x2d0] sm:$0xff]
    %v3435 = vld [vmem:[%s3343 + $0x2d8] sm:$0xff]
    %v3436 = vld [vmem:[%s3343 + $0x2e0] sm:$0xff]
    %v3437 = vld [vmem:[%s3343 + $0x2e8] sm:$0xff]
    %v3438 = vld [vmem:[%s3343 + $0x2f0] sm:$0xff]
    %v3439 = vld [vmem:[%s3343 + $0x2f8] sm:$0xff]
    %v3440 = vld [vmem:[%s3343 + $0x300] sm:$0xff]
    %v3441 = vld [vmem:[%s3343 + $0x308] sm:$0xff]
    %v3442 = vld [vmem:[%s3343 + $0x310] sm:$0xff]
    %v3443 = vld [vmem:[%s3343 + $0x318] sm:$0xff]
    %v3444 = vld [vmem:[%s3343 + $0x320] sm:$0xff]
    %v3445 = vld [vmem:[%s3343 + $0x328] sm:$0xff]
    %v3446 = vld [vmem:[%s3343 + $0x330] sm:$0xff]
    %v3447 = vld [vmem:[%s3343 + $0x338] sm:$0xff]
    %v3448 = vld [vmem:[%s3343 + $0x340] sm:$0xff]
    %v3449 = vld [vmem:[%s3343 + $0x348] sm:$0xff]
    %v3450 = vld [vmem:[%s3343 + $0x350] sm:$0xff]
    %v3451 = vld [vmem:[%s3343 + $0x358] sm:$0xff]
    %v3452 = vld [vmem:[%s3343 + $0x360] sm:$0xff]
    %v3453 = vld [vmem:[%s3343 + $0x368] sm:$0xff]
    %v3454 = vld [vmem:[%s3343 + $0x370] sm:$0xff]
    %v3455 = vld [vmem:[%s3343 + $0x378] sm:$0xff]
    %v3456 = vld [vmem:[%s3343 + $0x380] sm:$0xff]
    %v3457 = vld [vmem:[%s3343 + $0x388] sm:$0xff]
    %v3458 = vld [vmem:[%s3343 + $0x390] sm:$0xff]
    %v3459 = vld [vmem:[%s3343 + $0x398] sm:$0xff]
    %v3460 = vld [vmem:[%s3343 + $0x3a0] sm:$0xff]
    %v3461 = vld [vmem:[%s3343 + $0x3a8] sm:$0xff]
    %v3462 = vld [vmem:[%s3343 + $0x3b0] sm:$0xff]
    %v3463 = vld [vmem:[%s3343 + $0x3b8] sm:$0xff]
    %v3464 = vld [vmem:[%s3343 + $0x3c0] sm:$0xff]
    %v3465 = vld [vmem:[%s3343 + $0x3c8] sm:$0xff]
    %v3466 = vld [vmem:[%s3343 + $0x3d0] sm:$0xff]
    %v3467 = vld [vmem:[%s3343 + $0x3d8] sm:$0xff]
    %v3468 = vld [vmem:[%s3343 + $0x3e0] sm:$0xff]
    %v3469 = vld [vmem:[%s3343 + $0x3e8] sm:$0xff]
    %v3470 = vld [vmem:[%s3343 + $0x3f0] sm:$0xff]
    %v3471 = vld [vmem:[%s3343 + $0x3f8] sm:$0xff]
    %v3472 = vld [vmem:[%s3343 + $0x400] sm:$0xff]
    %v3473 = vld [vmem:[%s3343 + $0x408] sm:$0xff]
    %v3474 = vld [vmem:[%s3343 + $0x410] sm:$0xff]
    %v3475 = vld [vmem:[%s3343 + $0x418] sm:$0xff]
    %v3476 = vld [vmem:[%s3343 + $0x420] sm:$0xff]
    %v3477 = vld [vmem:[%s3343 + $0x428] sm:$0xff]
    %v3478 = vld [vmem:[%s3343 + $0x430] sm:$0xff]
    %v3479 = vld [vmem:[%s3343 + $0x438] sm:$0xff]
    %v3480 = vld [vmem:[%s3343 + $0x440] sm:$0xff]
    %v3481 = vld [vmem:[%s3343 + $0x448] sm:$0xff]
    %v3482 = vld [vmem:[%s3343 + $0x450] sm:$0xff]
    %v3483 = vld [vmem:[%s3343 + $0x458] sm:$0xff]
    %v3484 = vld [vmem:[%s3343 + $0x460] sm:$0xff]
    %v3485 = vld [vmem:[%s3343 + $0x468] sm:$0xff]
    %v3486 = vld [vmem:[%s3343 + $0x470] sm:$0xff]
    %v3487 = vld [vmem:[%s3343 + $0x478] sm:$0xff]
    %v3488 = vld [vmem:[%s3343 + $0x480] sm:$0xff]
    %v3489 = vld [vmem:[%s3343 + $0x488] sm:$0xff]
    %v3490 = vld [vmem:[%s3343 + $0x490] sm:$0xff]
    %v3491 = vld [vmem:[%s3343 + $0x498] sm:$0xff]
    %v3492 = vld [vmem:[%s3343 + $0x4a0] sm:$0xff]
    %v3493 = vld [vmem:[%s3343 + $0x4a8] sm:$0xff]
    %v3494 = vld [vmem:[%s3343 + $0x4b0] sm:$0xff]
    %v3495 = vld [vmem:[%s3343 + $0x4b8] sm:$0xff]
    %v3496 = vld [vmem:[%s3343 + $0x4c0] sm:$0xff]
    %v3497 = vld [vmem:[%s3343 + $0x4c8] sm:$0xff]
    %v3498 = vld [vmem:[%s3343 + $0x4d0] sm:$0xff]
    %v3499 = vld [vmem:[%s3343 + $0x4d8] sm:$0xff]
    %v3500 = vld [vmem:[%s3343 + $0x4e0] sm:$0xff]
    %v3501 = vld [vmem:[%s3343 + $0x4e8] sm:$0xff]
    %v3502 = vld [vmem:[%s3343 + $0x4f0] sm:$0xff]
    %v3503 = vld [vmem:[%s3343 + $0x4f8] sm:$0xff]
    %v3504 = vld [vmem:[%s3343 + $0x500] sm:$0xff]
    %v3505 = vld [vmem:[%s3343 + $0x508] sm:$0xff]
    %v3506 = vld [vmem:[%s3343 + $0x510] sm:$0xff]
    %v3507 = vld [vmem:[%s3343 + $0x518] sm:$0xff]
    %v3508 = vld [vmem:[%s3343 + $0x520] sm:$0xff]
    %v3509 = vld [vmem:[%s3343 + $0x528] sm:$0xff]
    %v3510 = vld [vmem:[%s3343 + $0x530] sm:$0xff]
    %v3511 = vld [vmem:[%s3343 + $0x538] sm:$0xff]
    %v3512 = vld [vmem:[%s3343 + $0x540] sm:$0xff]
    %v3513 = vld [vmem:[%s3343 + $0x548] sm:$0xff]
    %v3514 = vld [vmem:[%s3343 + $0x550] sm:$0xff]
    %v3515 = vld [vmem:[%s3343 + $0x558] sm:$0xff]
    %v3516 = vld [vmem:[%s3343 + $0x560] sm:$0xff]
    %v3517 = vld [vmem:[%s3343 + $0x568] sm:$0xff]
    %v3518 = vld [vmem:[%s3343 + $0x570] sm:$0xff]
    %v3519 = vld [vmem:[%s3343 + $0x578] sm:$0xff]
    %v3520 = vld [vmem:[%s3343 + $0x580] sm:$0xff]
    %v3521 = vld [vmem:[%s3343 + $0x588] sm:$0xff]
    %v3522 = vld [vmem:[%s3343 + $0x590] sm:$0xff]
    %v3523 = vld [vmem:[%s3343 + $0x598] sm:$0xff]
    %v3524 = vld [vmem:[%s3343 + $0x5a0] sm:$0xff]
    %v3525 = vld [vmem:[%s3343 + $0x5a8] sm:$0xff]
    %v3526 = vld [vmem:[%s3343 + $0x5b0] sm:$0xff]
    %v3527 = vld [vmem:[%s3343 + $0x5b8] sm:$0xff]
    %v3528 = vld [vmem:[%s3343 + $0x5c0] sm:$0xff]
    %v3529 = vld [vmem:[%s3343 + $0x5c8] sm:$0xff]
    %v3530 = vld [vmem:[%s3343 + $0x5d0] sm:$0xff]
    %v3531 = vld [vmem:[%s3343 + $0x5d8] sm:$0xff]
    %v3532 = vld [vmem:[%s3343 + $0x5e0] sm:$0xff]
    %v3533 = vld [vmem:[%s3343 + $0x5e8] sm:$0xff]
    %v3534 = vld [vmem:[%s3343 + $0x5f0] sm:$0xff]
    %v3535 = vld [vmem:[%s3343 + $0x5f8] sm:$0xff]
    %v3536 = vld [vmem:[%s3343 + $0x600] sm:$0xff]
    %v3537 = vld [vmem:[%s3343 + $0x608] sm:$0xff]
    %v3538 = vld [vmem:[%s3343 + $0x610] sm:$0xff]
    %v3539 = vld [vmem:[%s3343 + $0x618] sm:$0xff]
    %v3540 = vld [vmem:[%s3343 + $0x620] sm:$0xff]
    %v3541 = vld [vmem:[%s3343 + $0x628] sm:$0xff]
    %v3542 = vld [vmem:[%s3343 + $0x630] sm:$0xff]
    %v3543 = vld [vmem:[%s3343 + $0x638] sm:$0xff]
    %v3544 = vld [vmem:[%s3343 + $0x640] sm:$0xff]
    %v3545 = vld [vmem:[%s3343 + $0x648] sm:$0xff]
    %v3546 = vld [vmem:[%s3343 + $0x650] sm:$0xff]
    %v3547 = vld [vmem:[%s3343 + $0x658] sm:$0xff]
    %v3548 = vld [vmem:[%s3343 + $0x660] sm:$0xff]
    %v3549 = vld [vmem:[%s3343 + $0x668] sm:$0xff]
    %v3550 = vld [vmem:[%s3343 + $0x670] sm:$0xff]
    %v3551 = vld [vmem:[%s3343 + $0x678] sm:$0xff]
    %v3552 = vld [vmem:[%s3343 + $0x680] sm:$0xff]
    %v3553 = vld [vmem:[%s3343 + $0x688] sm:$0xff]
    %v3554 = vld [vmem:[%s3343 + $0x690] sm:$0xff]
    %v3555 = vld [vmem:[%s3343 + $0x698] sm:$0xff]
    %v3556 = vld [vmem:[%s3343 + $0x6a0] sm:$0xff]
    %v3557 = vld [vmem:[%s3343 + $0x6a8] sm:$0xff]
    %v3558 = vld [vmem:[%s3343 + $0x6b0] sm:$0xff]
    %v3559 = vld [vmem:[%s3343 + $0x6b8] sm:$0xff]
    %v3560 = vld [vmem:[%s3343 + $0x6c0] sm:$0xff]
    %v3561 = vld [vmem:[%s3343 + $0x6c8] sm:$0xff]
    %v3562 = vld [vmem:[%s3343 + $0x6d0] sm:$0xff]
    %v3563 = vld [vmem:[%s3343 + $0x6d8] sm:$0xff]
    %v3564 = vld [vmem:[%s3343 + $0x6e0] sm:$0xff]
    %v3565 = vld [vmem:[%s3343 + $0x6e8] sm:$0xff]
    %v3566 = vld [vmem:[%s3343 + $0x6f0] sm:$0xff]
    %v3567 = vld [vmem:[%s3343 + $0x6f8] sm:$0xff]
    %v3568 = vld [vmem:[%s3343 + $0x700] sm:$0xff]
    %v3569 = vld [vmem:[%s3343 + $0x708] sm:$0xff]
    %v3570 = vld [vmem:[%s3343 + $0x710] sm:$0xff]
    %v3571 = vld [vmem:[%s3343 + $0x718] sm:$0xff]
    %v3572 = vld [vmem:[%s3343 + $0x720] sm:$0xff]
    %v3573 = vld [vmem:[%s3343 + $0x728] sm:$0xff]
    %v3574 = vld [vmem:[%s3343 + $0x730] sm:$0xff]
    %v3575 = vld [vmem:[%s3343 + $0x738] sm:$0xff]
    %v3576 = vld [vmem:[%s3343 + $0x740] sm:$0xff]
    %v3577 = vld [vmem:[%s3343 + $0x748] sm:$0xff]
    %v3578 = vld [vmem:[%s3343 + $0x750] sm:$0xff]
    %v3579 = vld [vmem:[%s3343 + $0x758] sm:$0xff]
    %v3580 = vld [vmem:[%s3343 + $0x760] sm:$0xff]
    %v3581 = vld [vmem:[%s3343 + $0x768] sm:$0xff]
    %v3582 = vld [vmem:[%s3343 + $0x770] sm:$0xff]
    %v3583 = vld [vmem:[%s3343 + $0x778] sm:$0xff]
    %v3584 = vld [vmem:[%s3343 + $0x780] sm:$0xff]
    %v3585 = vld [vmem:[%s3343 + $0x788] sm:$0xff]
    %v3586 = vld [vmem:[%s3343 + $0x790] sm:$0xff]
    %v3587 = vld [vmem:[%s3343 + $0x798] sm:$0xff]
    %v3588 = vld [vmem:[%s3343 + $0x7a0] sm:$0xff]
    %v3589 = vld [vmem:[%s3343 + $0x7a8] sm:$0xff]
    %v3590 = vld [vmem:[%s3343 + $0x7b0] sm:$0xff]
    %v3591 = vld [vmem:[%s3343 + $0x7b8] sm:$0xff]
    %v3592 = vld [vmem:[%s3343 + $0x7c0] sm:$0xff]
    %v3593 = vld [vmem:[%s3343 + $0x7c8] sm:$0xff]
    %v3594 = vld [vmem:[%s3343 + $0x7d0] sm:$0xff]
    %v3595 = vld [vmem:[%s3343 + $0x7d8] sm:$0xff]
    %v3596 = vld [vmem:[%s3343 + $0x7e0] sm:$0xff]
    %v3597 = vld [vmem:[%s3343 + $0x7e8] sm:$0xff]
    %v3598 = vld [vmem:[%s3343 + $0x7f0] sm:$0xff]
    %v3599 = vld [vmem:[%s3343 + $0x7f8] sm:$0xff]
    %3600 = vmatprep.subr.mxu0 %v3345
    %3601 = vmatpush1.msra.mxu0 %v3344
    %3602 = vmatprep.subr.mxu0 %v3349
    %3603 = vmatpush1.msra.mxu0 %v3348
    %3604 = vmatprep.subr.mxu0 %v3353
    %3605 = vmatpush1.msra.mxu0 %v3352
    %3606 = vmatprep.subr.mxu0 %v3357
    %3607 = vmatpush1.msra.mxu0 %v3356
    %3608 = vmatprep.subr.mxu0 %v3361
    %3609 = vmatpush1.msra.mxu0 %v3360
    %3610 = vmatprep.subr.mxu0 %v3365
    %3611 = vmatpush1.msra.mxu0 %v3364
    %3612 = vmatprep.subr.mxu0 %v3369
    %3613 = vmatpush1.msra.mxu0 %v3368
    %3614 = vmatprep.subr.mxu0 %v3373
    %3615 = vmatpush1.msra.mxu0 %v3372
    %3616 = vmatprep.subr.mxu0 %v3377
    %3617 = vmatpush1.msra.mxu0 %v3376
    %3618 = vmatprep.subr.mxu0 %v3381
    %3619 = vmatpush1.msra.mxu0 %v3380
    %3620 = vmatprep.subr.mxu0 %v3385
    %3621 = vmatpush1.msra.mxu0 %v3384
    %3622 = vmatprep.subr.mxu0 %v3389
    %3623 = vmatpush1.msra.mxu0 %v3388
    %3624 = vmatprep.subr.mxu0 %v3393
    %3625 = vmatpush1.msra.mxu0 %v3392
    %3626 = vmatprep.subr.mxu0 %v3397
    %3627 = vmatpush1.msra.mxu0 %v3396
    %3628 = vmatprep.subr.mxu0 %v3401
    %3629 = vmatpush1.msra.mxu0 %v3400
    %3630 = vmatprep.subr.mxu0 %v3405
    %3631 = vmatpush1.msra.mxu0 %v3404
    %3632 = vmatprep.subr.mxu0 %v3409
    %3633 = vmatpush1.msra.mxu0 %v3408
    %3634 = vmatprep.subr.mxu0 %v3413
    %3635 = vmatpush1.msra.mxu0 %v3412
    %3636 = vmatprep.subr.mxu0 %v3417
    %3637 = vmatpush1.msra.mxu0 %v3416
    %3638 = vmatprep.subr.mxu0 %v3421
    %3639 = vmatpush1.msra.mxu0 %v3420
    %3640 = vmatprep.subr.mxu0 %v3425
    %3641 = vmatpush1.msra.mxu0 %v3424
    %3642 = vmatprep.subr.mxu0 %v3429
    %3643 = vmatpush1.msra.mxu0 %v3428
    %3644 = vmatprep.subr.mxu0 %v3433
    %3645 = vmatpush1.msra.mxu0 %v3432
    %3646 = vmatprep.subr.mxu0 %v3437
    %3647 = vmatpush1.msra.mxu0 %v3436
    %3648 = vmatprep.subr.mxu0 %v3441
    %3649 = vmatpush1.msra.mxu0 %v3440
    %3650 = vmatprep.subr.mxu0 %v3445
    %3651 = vmatpush1.msra.mxu0 %v3444
    %3652 = vmatprep.subr.mxu0 %v3449
    %3653 = vmatpush1.msra.mxu0 %v3448
    %3654 = vmatprep.subr.mxu0 %v3453
    %3655 = vmatpush1.msra.mxu0 %v3452
    %3656 = vmatprep.subr.mxu0 %v3457
    %3657 = vmatpush1.msra.mxu0 %v3456
    %3658 = vmatprep.subr.mxu0 %v3461
    %3659 = vmatpush1.msra.mxu0 %v3460
    %3660 = vmatprep.subr.mxu0 %v3465
    %3661 = vmatpush1.msra.mxu0 %v3464
    %3662 = vmatprep.subr.mxu0 %v3469
    %3663 = vmatpush1.msra.mxu0 %v3468
    %3664 = vmatprep.mubr.f32.mxu0 %v3258
    %3665 = vmatmul.mubr.f32.gmra.mrb[0].mxu0 %v3256
    %v3666 = vpop.f32.mrb[0].mxu0
    %v3667 = vadd.f32 0.0, %v3666
    %v3668 = vpop.f32.mrb[0].mxu0
    %v3669 = vadd.f32 0.0, %v3668
    %3670 = vmatprep.mubr.f32.mxu0 %v3264
    %3671 = vmatmul.mubr.f32.gmra.mrb[0].mxu0 %v3262
    %v3672 = vpop.f32.mrb[0].mxu0
    %v3673 = vadd.f32 0.0, %v3672
    %v3674 = vpop.f32.mrb[0].mxu0
    %v3675 = vadd.f32 0.0, %v3674
    %3676 = vdwg.mxu0
    %3677 = vmatprep.subr.mxu0 %v3473
    %3678 = vmatpush1.msra.mxu0 %v3472
    %3679 = vmatprep.subr.mxu0 %v3477
    %3680 = vmatpush1.msra.mxu0 %v3476
    %3681 = vmatprep.subr.mxu0 %v3481
    %3682 = vmatpush1.msra.mxu0 %v3480
    %3683 = vmatprep.subr.mxu0 %v3485
    %3684 = vmatpush1.msra.mxu0 %v3484
    %3685 = vmatprep.subr.mxu0 %v3489
    %3686 = vmatpush1.msra.mxu0 %v3488
    %3687 = vmatprep.subr.mxu0 %v3493
    %3688 = vmatpush1.msra.mxu0 %v3492
    %3689 = vmatprep.subr.mxu0 %v3497
    %3690 = vmatpush1.msra.mxu0 %v3496
    %3691 = vmatprep.subr.mxu0 %v3501
    %3692 = vmatpush1.msra.mxu0 %v3500
    %3693 = vmatprep.subr.mxu0 %v3505
    %3694 = vmatpush1.msra.mxu0 %v3504
    %3695 = vmatprep.subr.mxu0 %v3509
    %3696 = vmatpush1.msra.mxu0 %v3508
    %3697 = vmatprep.subr.mxu0 %v3513
    %3698 = vmatpush1.msra.mxu0 %v3512
    %3699 = vmatprep.subr.mxu0 %v3517
    %3700 = vmatpush1.msra.mxu0 %v3516
    %3701 = vmatprep.subr.mxu0 %v3521
    %3702 = vmatpush1.msra.mxu0 %v3520
    %3703 = vmatprep.subr.mxu0 %v3525
    %3704 = vmatpush1.msra.mxu0 %v3524
    %3705 = vmatprep.subr.mxu0 %v3529
    %3706 = vmatpush1.msra.mxu0 %v3528
    %3707 = vmatprep.subr.mxu0 %v3533
    %3708 = vmatpush1.msra.mxu0 %v3532
    %3709 = vmatprep.subr.mxu0 %v3537
    %3710 = vmatpush1.msra.mxu0 %v3536
    %3711 = vmatprep.subr.mxu0 %v3541
    %3712 = vmatpush1.msra.mxu0 %v3540
    %3713 = vmatprep.subr.mxu0 %v3545
    %3714 = vmatpush1.msra.mxu0 %v3544
    %3715 = vmatprep.subr.mxu0 %v3549
    %3716 = vmatpush1.msra.mxu0 %v3548
    %3717 = vmatprep.subr.mxu0 %v3553
    %3718 = vmatpush1.msra.mxu0 %v3552
    %3719 = vmatprep.subr.mxu0 %v3557
    %3720 = vmatpush1.msra.mxu0 %v3556
    %3721 = vmatprep.subr.mxu0 %v3561
    %3722 = vmatpush1.msra.mxu0 %v3560
    %3723 = vmatprep.subr.mxu0 %v3565
    %3724 = vmatpush1.msra.mxu0 %v3564
    %3725 = vmatprep.subr.mxu0 %v3569
    %3726 = vmatpush1.msra.mxu0 %v3568
    %3727 = vmatprep.subr.mxu0 %v3573
    %3728 = vmatpush1.msra.mxu0 %v3572
    %3729 = vmatprep.subr.mxu0 %v3577
    %3730 = vmatpush1.msra.mxu0 %v3576
    %3731 = vmatprep.subr.mxu0 %v3581
    %3732 = vmatpush1.msra.mxu0 %v3580
    %3733 = vmatprep.subr.mxu0 %v3585
    %3734 = vmatpush1.msra.mxu0 %v3584
    %3735 = vmatprep.subr.mxu0 %v3589
    %3736 = vmatpush1.msra.mxu0 %v3588
    %3737 = vmatprep.subr.mxu0 %v3593
    %3738 = vmatpush1.msra.mxu0 %v3592
    %3739 = vmatprep.subr.mxu0 %v3597
    %3740 = vmatpush1.msra.mxu0 %v3596
    %3741 = vmatprep.mubr.f32.mxu0 %v3335
    %3742 = vmatmul.mubr.f32.gmra.mrb[0].mxu0 %v3333
    %v3743 = vpop.f32.mrb[0].mxu0
    %v3744 = vadd.f32 %v3667, %v3743
    %v3745 = vpop.f32.mrb[0].mxu0
    %v3746 = vadd.f32 %v3669, %v3745
    %3747 = vmatprep.mubr.f32.mxu0 %v3341
    %3748 = vmatmul.mubr.f32.gmra.mrb[0].mxu0 %v3339
    %v3749 = vpop.f32.mrb[0].mxu0
    %v3750 = vadd.f32 %v3673, %v3749
    %v3751 = vpop.f32.mrb[0].mxu0
    %v3752 = vadd.f32 %v3675, %v3751
    %3753 = vdwg.mxu0
    %3754 = vmatprep.subr.mxu0 %v3347
    %3755 = vmatpush1.msra.mxu0 %v3346
    %3756 = vmatprep.subr.mxu0 %v3351
    %3757 = vmatpush1.msra.mxu0 %v3350
    %3758 = vmatprep.subr.mxu0 %v3355
    %3759 = vmatpush1.msra.mxu0 %v3354
    %3760 = vmatprep.subr.mxu0 %v3359
    %3761 = vmatpush1.msra.mxu0 %v3358
    %3762 = vmatprep.subr.mxu0 %v3363
    %3763 = vmatpush1.msra.mxu0 %v3362
    %3764 = vmatprep.subr.mxu0 %v3367
    %3765 = vmatpush1.msra.mxu0 %v3366
    %3766 = vmatprep.subr.mxu0 %v3371
    %3767 = vmatpush1.msra.mxu0 %v3370
    %3768 = vmatprep.subr.mxu0 %v3375
    %3769 = vmatpush1.msra.mxu0 %v3374
    %3770 = vmatprep.subr.mxu0 %v3379
    %3771 = vmatpush1.msra.mxu0 %v3378
    %3772 = vmatprep.subr.mxu0 %v3383
    %3773 = vmatpush1.msra.mxu0 %v3382
    %3774 = vmatprep.subr.mxu0 %v3387
    %3775 = vmatpush1.msra.mxu0 %v3386
    %3776 = vmatprep.subr.mxu0 %v3391
    %3777 = vmatpush1.msra.mxu0 %v3390
    %3778 = vmatprep.subr.mxu0 %v3395
    %3779 = vmatpush1.msra.mxu0 %v3394
    %3780 = vmatprep.subr.mxu0 %v3399
    %3781 = vmatpush1.msra.mxu0 %v3398
    %3782 = vmatprep.subr.mxu0 %v3403
    %3783 = vmatpush1.msra.mxu0 %v3402
    %3784 = vmatprep.subr.mxu0 %v3407
    %3785 = vmatpush1.msra.mxu0 %v3406
    %3786 = vmatprep.subr.mxu0 %v3411
    %3787 = vmatpush1.msra.mxu0 %v3410
    %3788 = vmatprep.subr.mxu0 %v3415
    %3789 = vmatpush1.msra.mxu0 %v3414
    %3790 = vmatprep.subr.mxu0 %v3419
    %3791 = vmatpush1.msra.mxu0 %v3418
    %3792 = vmatprep.subr.mxu0 %v3423
    %3793 = vmatpush1.msra.mxu0 %v3422
    %3794 = vmatprep.subr.mxu0 %v3427
    %3795 = vmatpush1.msra.mxu0 %v3426
    %3796 = vmatprep.subr.mxu0 %v3431
    %3797 = vmatpush1.msra.mxu0 %v3430
    %3798 = vmatprep.subr.mxu0 %v3435
    %3799 = vmatpush1.msra.mxu0 %v3434
    %3800 = vmatprep.subr.mxu0 %v3439
    %3801 = vmatpush1.msra.mxu0 %v3438
    %3802 = vmatprep.subr.mxu0 %v3443
    %3803 = vmatpush1.msra.mxu0 %v3442
    %3804 = vmatprep.subr.mxu0 %v3447
    %3805 = vmatpush1.msra.mxu0 %v3446
    %3806 = vmatprep.subr.mxu0 %v3451
    %3807 = vmatpush1.msra.mxu0 %v3450
    %3808 = vmatprep.subr.mxu0 %v3455
    %3809 = vmatpush1.msra.mxu0 %v3454
    %3810 = vmatprep.subr.mxu0 %v3459
    %3811 = vmatpush1.msra.mxu0 %v3458
    %3812 = vmatprep.subr.mxu0 %v3463
    %3813 = vmatpush1.msra.mxu0 %v3462
    %3814 = vmatprep.subr.mxu0 %v3467
    %3815 = vmatpush1.msra.mxu0 %v3466
    %3816 = vmatprep.subr.mxu0 %v3471
    %3817 = vmatpush1.msra.mxu0 %v3470
    %3818 = vmatprep.mubr.f32.mxu0 %v3258
    %3819 = vmatmul.mubr.f32.gmra.mrb[0].mxu0 %v3256
    %v3820 = vpop.f32.mrb[0].mxu0
    %v3821 = vadd.f32 0.0, %v3820
    %v3822 = vpop.f32.mrb[0].mxu0
    %v3823 = vadd.f32 0.0, %v3822
    %3824 = vmatprep.mubr.f32.mxu0 %v3264
    %3825 = vmatmul.mubr.f32.gmra.mrb[0].mxu0 %v3262
    %v3826 = vpop.f32.mrb[0].mxu0
    %v3827 = vadd.f32 0.0, %v3826
    %v3828 = vpop.f32.mrb[0].mxu0
    %v3829 = vadd.f32 0.0, %v3828
    %3830 = vdwg.mxu0
    %3831 = vmatprep.subr.mxu0 %v3475
    %3832 = vmatpush1.msra.mxu0 %v3474
    %3833 = vmatprep.subr.mxu0 %v3479
    %3834 = vmatpush1.msra.mxu0 %v3478
    %3835 = vmatprep.subr.mxu0 %v3483
    %3836 = vmatpush1.msra.mxu0 %v3482
    %3837 = vmatprep.subr.mxu0 %v3487
    %3838 = vmatpush1.msra.mxu0 %v3486
    %3839 = vmatprep.subr.mxu0 %v3491
    %3840 = vmatpush1.msra.mxu0 %v3490
    %3841 = vmatprep.subr.mxu0 %v3495
    %3842 = vmatpush1.msra.mxu0 %v3494
    %3843 = vmatprep.subr.mxu0 %v3499
    %3844 = vmatpush1.msra.mxu0 %v3498
    %3845 = vmatprep.subr.mxu0 %v3503
    %3846 = vmatpush1.msra.mxu0 %v3502
    %3847 = vmatprep.subr.mxu0 %v3507
    %3848 = vmatpush1.msra.mxu0 %v3506
    %3849 = vmatprep.subr.mxu0 %v3511
    %3850 = vmatpush1.msra.mxu0 %v3510
    %3851 = vmatprep.subr.mxu0 %v3515
    %3852 = vmatpush1.msra.mxu0 %v3514
    %3853 = vmatprep.subr.mxu0 %v3519
    %3854 = vmatpush1.msra.mxu0 %v3518
    %3855 = vmatprep.subr.mxu0 %v3523
    %3856 = vmatpush1.msra.mxu0 %v3522
    %3857 = vmatprep.subr.mxu0 %v3527
    %3858 = vmatpush1.msra.mxu0 %v3526
    %3859 = vmatprep.subr.mxu0 %v3531
    %3860 = vmatpush1.msra.mxu0 %v3530
    %3861 = vmatprep.subr.mxu0 %v3535
    %3862 = vmatpush1.msra.mxu0 %v3534
    %3863 = vmatprep.subr.mxu0 %v3539
    %3864 = vmatpush1.msra.mxu0 %v3538
    %3865 = vmatprep.subr.mxu0 %v3543
    %3866 = vmatpush1.msra.mxu0 %v3542
    %3867 = vmatprep.subr.mxu0 %v3547
    %3868 = vmatpush1.msra.mxu0 %v3546
    %3869 = vmatprep.subr.mxu0 %v3551
    %3870 = vmatpush1.msra.mxu0 %v3550
    %3871 = vmatprep.subr.mxu0 %v3555
    %3872 = vmatpush1.msra.mxu0 %v3554
    %3873 = vmatprep.subr.mxu0 %v3559
    %3874 = vmatpush1.msra.mxu0 %v3558
    %3875 = vmatprep.subr.mxu0 %v3563
    %3876 = vmatpush1.msra.mxu0 %v3562
    %3877 = vmatprep.subr.mxu0 %v3567
    %3878 = vmatpush1.msra.mxu0 %v3566
    %3879 = vmatprep.subr.mxu0 %v3571
    %3880 = vmatpush1.msra.mxu0 %v3570
    %3881 = vmatprep.subr.mxu0 %v3575
    %3882 = vmatpush1.msra.mxu0 %v3574
    %3883 = vmatprep.subr.mxu0 %v3579
    %3884 = vmatpush1.msra.mxu0 %v3578
    %3885 = vmatprep.subr.mxu0 %v3583
    %3886 = vmatpush1.msra.mxu0 %v3582
    %3887 = vmatprep.subr.mxu0 %v3587
    %3888 = vmatpush1.msra.mxu0 %v3586
    %3889 = vmatprep.subr.mxu0 %v3591
    %3890 = vmatpush1.msra.mxu0 %v3590
    %3891 = vmatprep.subr.mxu0 %v3595
    %3892 = vmatpush1.msra.mxu0 %v3594
    %3893 = vmatprep.subr.mxu0 %v3599
    %3894 = vmatpush1.msra.mxu0 %v3598
    %3895 = vmatprep.mubr.f32.mxu0 %v3335
    %3896 = vmatmul.mubr.f32.gmra.mrb[0].mxu0 %v3333
    %v3897 = vpop.f32.mrb[0].mxu0
    %v3898 = vadd.f32 %v3821, %v3897
    %v3899 = vpop.f32.mrb[0].mxu0
    %v3900 = vadd.f32 %v3823, %v3899
    %3901 = vmatprep.mubr.f32.mxu0 %v3341
    %3902 = vmatmul.mubr.f32.gmra.mrb[0].mxu0 %v3339
    %v3903 = vpop.f32.mrb[0].mxu0
    %v3904 = vadd.f32 %v3827, %v3903
    %v3905 = vpop.f32.mrb[0].mxu0
    %v3906 = vadd.f32 %v3829, %v3905
    %3907 = vdwg.mxu0
    %v3908 = vadd.f32 %v3016, %v3744
    %v3909 = vadd.f32 %v3018, %v3746
    %v3910 = vadd.f32 %v3170, %v3898
    %v3911 = vadd.f32 %v3172, %v3900
    %v3912 = vadd.f32 %v3022, %v3750
    %v3913 = vadd.f32 %v3024, %v3752
    %v3914 = vadd.f32 %v3176, %v3904
    %v3915 = vadd.f32 %v3178, %v3906
    %v3916 = vld [vmem:[%s14] sm:$0xf]
    %v3918 = vlaneseq
    %v3919 = vshrl.u32 %v3918, 7
    %v3920 = vsub.s32 0, %v3919
    %v3921 = vrot.slane %v3916, %v3920
    %v3922 = vlaneseq
    %v3923 = vshrl.u32 %v3922, 7
    %v3924 = vsub.s32 1, %v3923
    %v3925 = vrot.slane %v3916, %v3924
    %v3926 = vlaneseq
    %v3927 = vshrl.u32 %v3926, 7
    %v3928 = vsub.s32 2, %v3927
    %v3929 = vrot.slane %v3916, %v3928
    %v3930 = vlaneseq
    %v3931 = vshrl.u32 %v3930, 7
    %v3932 = vsub.s32 3, %v3931
    %v3933 = vrot.slane %v3916, %v3932
    %v3938 = vadd.f32 %v3908, %v3921
    %v3939 = vadd.f32 %v3909, %v3925
    %v3940 = vadd.f32 %v3910, %v3929
    %v3941 = vadd.f32 %v3911, %v3933
    %v3942 = vadd.f32 %v3912, %v3921
    %v3943 = vadd.f32 %v3913, %v3925
    %v3944 = vadd.f32 %v3914, %v3929
    %v3945 = vadd.f32 %v3915, %v3933
    %v3946 = vmax.f32 %v3938, 0.0
    %v3947 = vmax.f32 %v3939, 0.0
    %v3948 = vmax.f32 %v3940, 0.0
    %v3949 = vmax.f32 %v3941, 0.0
    %v3950 = vmax.f32 %v3942, 0.0
    %v3951 = vmax.f32 %v3943, 0.0
    %v3952 = vmax.f32 %v3944, 0.0
    %v3953 = vmax.f32 %v3945, 0.0
    %v3954 = vld [vmem:[%s15] sm:$0xff]
    %v3955 = vld [vmem:[%s15 + $0x8] sm:$0xff]
    %v3956 = vld [vmem:[%s15 + $0x10] sm:$0xff]
    %v3957 = vld [vmem:[%s15 + $0x18] sm:$0xf]
    %vm3958 = vcmask 113664
    %v3960 = vsel %vm3958, %v3954, 0
    %v3963 = vsel %vm3958, %v3955, 0
    %v3966 = vsel %vm3958, %v3956, 0
    %v3969 = vsel %vm3958, %v3957, 0
    %vm3971 = vcmask 1045504
    %v3973 = vsel %vm3971, %v3950, 0
    %v3976 = vsel %vm3971, %v3951, 0
    %v3979 = vsel %vm3971, %v3952, 0
    %v3982 = vsel %vm3971, %v3953, 0
    %3984 = vmatprep.subr.mxu0 %v3947
    %3985 = vmatpush1.msra.mxu0 %v3946
    %3986 = vmatprep.subr.mxu0 %v3976
    %3987 = vmatpush1.msra.mxu0 %v3973
    %3988 = vmatprep.subr.mxu0 0.0
    %3989 = vmatpush1.msra.mxu0 0.0
    %3990 = vmatprep.subr.mxu0 0.0
    %3991 = vmatpush1.msra.mxu0 0.0
    %3992 = vmatprep.subr.mxu0 0.0
    %3993 = vmatpush1.msra.mxu0 0.0
    %3994 = vmatprep.subr.mxu0 0.0
    %3995 = vmatpush1.msra.mxu0 0.0
    %3996 = vmatprep.subr.mxu0 0.0
    %3997 = vmatpush1.msra.mxu0 0.0
    %3998 = vmatprep.subr.mxu0 0.0
    %3999 = vmatpush1.msra.mxu0 0.0
    %4000 = vmatprep.subr.mxu0 0.0
    %4001 = vmatpush1.msra.mxu0 0.0
    %4002 = vmatprep.subr.mxu0 0.0
    %4003 = vmatpush1.msra.mxu0 0.0
    %4004 = vmatprep.subr.mxu0 0.0
    %4005 = vmatpush1.msra.mxu0 0.0
    %4006 = vmatprep.subr.mxu0 0.0
    %4007 = vmatpush1.msra.mxu0 0.0
    %4008 = vmatprep.subr.mxu0 0.0
    %4009 = vmatpush1.msra.mxu0 0.0
    %4010 = vmatprep.subr.mxu0 0.0
    %4011 = vmatpush1.msra.mxu0 0.0
    %4012 = vmatprep.subr.mxu0 0.0
    %4013 = vmatpush1.msra.mxu0 0.0
    %4014 = vmatprep.subr.mxu0 0.0
    %4015 = vmatpush1.msra.mxu0 0.0
    %4016 = vmatprep.subr.mxu0 0.0
    %4017 = vmatpush1.msra.mxu0 0.0
    %4018 = vmatprep.subr.mxu0 0.0
    %4019 = vmatpush1.msra.mxu0 0.0
    %4020 = vmatprep.subr.mxu0 0.0
    %4021 = vmatpush1.msra.mxu0 0.0
    %4022 = vmatprep.subr.mxu0 0.0
    %4023 = vmatpush1.msra.mxu0 0.0
    %4024 = vmatprep.subr.mxu0 0.0
    %4025 = vmatpush1.msra.mxu0 0.0
    %4026 = vmatprep.subr.mxu0 0.0
    %4027 = vmatpush1.msra.mxu0 0.0
    %4028 = vmatprep.subr.mxu0 0.0
    %4029 = vmatpush1.msra.mxu0 0.0
    %4030 = vmatprep.subr.mxu0 0.0
    %4031 = vmatpush1.msra.mxu0 0.0
    %4032 = vmatprep.subr.mxu0 0.0
    %4033 = vmatpush1.msra.mxu0 0.0
    %4034 = vmatprep.subr.mxu0 0.0
    %4035 = vmatpush1.msra.mxu0 0.0
    %4036 = vmatprep.subr.mxu0 0.0
    %4037 = vmatpush1.msra.mxu0 0.0
    %4038 = vmatprep.subr.mxu0 0.0
    %4039 = vmatpush1.msra.mxu0 0.0
    %4040 = vmatprep.subr.mxu0 0.0
    %4041 = vmatpush1.msra.mxu0 0.0
    %4042 = vmatprep.subr.mxu0 0.0
    %4043 = vmatpush1.msra.mxu0 0.0
    %4044 = vmatprep.subr.mxu0 0.0
    %4045 = vmatpush1.msra.mxu0 0.0
    %4046 = vmatprep.subr.mxu0 0.0
    %4047 = vmatpush1.msra.mxu0 0.0
    %4048 = vmatprep.mubr.f32.mxu0 0.0
    %4049 = vmatmul.mubr.f32.gmra.mrb[0].mxu0 %v3960
    %v4050 = vpop.f32.mrb[0].mxu0
    %v4051 = vadd.f32 0.0, %v4050
    %v4052 = vpop.f32.mrb[0].mxu0
    %v4053 = vadd.f32 0.0, %v4052
    %4054 = vmatprep.mubr.f32.mxu0 0.0
    %4055 = vmatmul.mubr.f32.gmra.mrb[0].mxu0 %v3963
    %v4056 = vpop.f32.mrb[0].mxu0
    %v4057 = vadd.f32 0.0, %v4056
    %v4058 = vpop.f32.mrb[0].mxu0
    %v4059 = vadd.f32 0.0, %v4058
    %4060 = vmatprep.mubr.f32.mxu0 0.0
    %4061 = vmatmul.mubr.f32.gmra.mrb[0].mxu0 %v3966
    %v4062 = vpop.f32.mrb[0].mxu0
    %v4063 = vadd.f32 0.0, %v4062
    %v4064 = vpop.f32.mrb[0].mxu0
    %v4065 = vadd.f32 0.0, %v4064
    %4066 = vmatprep.mubr.f32.mxu0 0.0
    %4067 = vmatmul.mubr.f32.gmra.mrb[0].mxu0 %v3969
    %v4068 = vpop.f32.mrb[0].mxu0
    %v4069 = vadd.f32 0.0, %v4068
    %v4070 = vpop.f32.mrb[0].mxu0
    %v4071 = vadd.f32 0.0, %v4070
    %4072 = vdwg.mxu0
    %4073 = vmatprep.subr.mxu0 %v3949
    %4074 = vmatpush1.msra.mxu0 %v3948
    %4075 = vmatprep.subr.mxu0 %v3982
    %4076 = vmatpush1.msra.mxu0 %v3979
    %4077 = vmatprep.subr.mxu0 0.0
    %4078 = vmatpush1.msra.mxu0 0.0
    %4079 = vmatprep.subr.mxu0 0.0
    %4080 = vmatpush1.msra.mxu0 0.0
    %4081 = vmatprep.subr.mxu0 0.0
    %4082 = vmatpush1.msra.mxu0 0.0
    %4083 = vmatprep.subr.mxu0 0.0
    %4084 = vmatpush1.msra.mxu0 0.0
    %4085 = vmatprep.subr.mxu0 0.0
    %4086 = vmatpush1.msra.mxu0 0.0
    %4087 = vmatprep.subr.mxu0 0.0
    %4088 = vmatpush1.msra.mxu0 0.0
    %4089 = vmatprep.subr.mxu0 0.0
    %4090 = vmatpush1.msra.mxu0 0.0
    %4091 = vmatprep.subr.mxu0 0.0
    %4092 = vmatpush1.msra.mxu0 0.0
    %4093 = vmatprep.subr.mxu0 0.0
    %4094 = vmatpush1.msra.mxu0 0.0
    %4095 = vmatprep.subr.mxu0 0.0
    %4096 = vmatpush1.msra.mxu0 0.0
    %4097 = vmatprep.subr.mxu0 0.0
    %4098 = vmatpush1.msra.mxu0 0.0
    %4099 = vmatprep.subr.mxu0 0.0
    %4100 = vmatpush1.msra.mxu0 0.0
    %4101 = vmatprep.subr.mxu0 0.0
    %4102 = vmatpush1.msra.mxu0 0.0
    %4103 = vmatprep.subr.mxu0 0.0
    %4104 = vmatpush1.msra.mxu0 0.0
    %4105 = vmatprep.subr.mxu0 0.0
    %4106 = vmatpush1.msra.mxu0 0.0
    %4107 = vmatprep.subr.mxu0 0.0
    %4108 = vmatpush1.msra.mxu0 0.0
    %4109 = vmatprep.subr.mxu0 0.0
    %4110 = vmatpush1.msra.mxu0 0.0
    %4111 = vmatprep.subr.mxu0 0.0
    %4112 = vmatpush1.msra.mxu0 0.0
    %4113 = vmatprep.subr.mxu0 0.0
    %4114 = vmatpush1.msra.mxu0 0.0
    %4115 = vmatprep.subr.mxu0 0.0
    %4116 = vmatpush1.msra.mxu0 0.0
    %4117 = vmatprep.subr.mxu0 0.0
    %4118 = vmatpush1.msra.mxu0 0.0
    %4119 = vmatprep.subr.mxu0 0.0
    %4120 = vmatpush1.msra.mxu0 0.0
    %4121 = vmatprep.subr.mxu0 0.0
    %4122 = vmatpush1.msra.mxu0 0.0
    %4123 = vmatprep.subr.mxu0 0.0
    %4124 = vmatpush1.msra.mxu0 0.0
    %4125 = vmatprep.subr.mxu0 0.0
    %4126 = vmatpush1.msra.mxu0 0.0
    %4127 = vmatprep.subr.mxu0 0.0
    %4128 = vmatpush1.msra.mxu0 0.0
    %4129 = vmatprep.subr.mxu0 0.0
    %4130 = vmatpush1.msra.mxu0 0.0
    %4131 = vmatprep.subr.mxu0 0.0
    %4132 = vmatpush1.msra.mxu0 0.0
    %4133 = vmatprep.subr.mxu0 0.0
    %4134 = vmatpush1.msra.mxu0 0.0
    %4135 = vmatprep.subr.mxu0 0.0
    %4136 = vmatpush1.msra.mxu0 0.0
    %4137 = vmatprep.mubr.f32.mxu0 0.0
    %4138 = vmatmul.mubr.f32.gmra.mrb[0].mxu0 %v3960
    %v4139 = vpop.f32.mrb[0].mxu0
    %v4140 = vadd.f32 0.0, %v4139
    %v4141 = vpop.f32.mrb[0].mxu0
    %v4142 = vadd.f32 0.0, %v4141
    %4143 = vmatprep.mubr.f32.mxu0 0.0
    %4144 = vmatmul.mubr.f32.gmra.mrb[0].mxu0 %v3963
    %v4145 = vpop.f32.mrb[0].mxu0
    %v4146 = vadd.f32 0.0, %v4145
    %v4147 = vpop.f32.mrb[0].mxu0
    %v4148 = vadd.f32 0.0, %v4147
    %4149 = vmatprep.mubr.f32.mxu0 0.0
    %4150 = vmatmul.mubr.f32.gmra.mrb[0].mxu0 %v3966
    %v4151 = vpop.f32.mrb[0].mxu0
    %v4152 = vadd.f32 0.0, %v4151
    %v4153 = vpop.f32.mrb[0].mxu0
    %v4154 = vadd.f32 0.0, %v4153
    %4155 = vmatprep.mubr.f32.mxu0 0.0
    %4156 = vmatmul.mubr.f32.gmra.mrb[0].mxu0 %v3969
    %v4157 = vpop.f32.mrb[0].mxu0
    %v4158 = vadd.f32 0.0, %v4157
    %v4159 = vpop.f32.mrb[0].mxu0
    %v4160 = vadd.f32 0.0, %v4159
    %4161 = vdwg.mxu0
    %v4162 = vld [vmem:[%s16] sm:$0xff]
    %v4163 = vld [vmem:[%s16 + $0x8] sm:$0xff]
    %v4164 = vld [vmem:[%s16 + $0x10] sm:$0xff]
    %v4165 = vld [vmem:[%s16 + $0x18] sm:$0xff]
    %v4166 = vld [vmem:[%s16 + $0x20] sm:$0xff]
    %v4167 = vld [vmem:[%s16 + $0x28] sm:$0xff]
    %v4168 = vld [vmem:[%s16 + $0x30] sm:$0xff]
    %v4169 = vld [vmem:[%s16 + $0x38] sm:$0xff]
    %v4170 = vld [vmem:[%s16 + $0x40] sm:$0xff]
    %v4171 = vld [vmem:[%s16 + $0x48] sm:$0xff]
    %v4172 = vld [vmem:[%s16 + $0x50] sm:$0xff]
    %v4173 = vld [vmem:[%s16 + $0x58] sm:$0xff]
    %v4174 = vld [vmem:[%s16 + $0x60] sm:$0xff]
    %v4175 = vld [vmem:[%s16 + $0x68] sm:$0xff]
    %v4176 = vld [vmem:[%s16 + $0x70] sm:$0xff]
    %v4177 = vld [vmem:[%s16 + $0x78] sm:$0xff]
    %v4178 = vld [vmem:[%s16 + $0x80] sm:$0xff]
    %v4179 = vld [vmem:[%s16 + $0x88] sm:$0xff]
    %v4180 = vld [vmem:[%s16 + $0x90] sm:$0xff]
    %v4181 = vld [vmem:[%s16 + $0x98] sm:$0xff]
    %v4182 = vld [vmem:[%s16 + $0xa0] sm:$0xff]
    %v4183 = vld [vmem:[%s16 + $0xa8] sm:$0xff]
    %v4184 = vld [vmem:[%s16 + $0xb0] sm:$0xff]
    %v4185 = vld [vmem:[%s16 + $0xb8] sm:$0xff]
    %v4186 = vld [vmem:[%s16 + $0xc0] sm:$0xff]
    %v4187 = vld [vmem:[%s16 + $0xc8] sm:$0xff]
    %v4188 = vld [vmem:[%s16 + $0xd0] sm:$0xff]
    %v4189 = vld [vmem:[%s16 + $0xd8] sm:$0xff]
    %v4190 = vld [vmem:[%s16 + $0xe0] sm:$0xff]
    %v4191 = vld [vmem:[%s16 + $0xe8] sm:$0xff]
    %v4192 = vld [vmem:[%s16 + $0xf0] sm:$0xff]
    %v4193 = vld [vmem:[%s16 + $0xf8] sm:$0xff]
    %v4194 = vld [vmem:[%s16 + $0x100] sm:$0xff]
    %v4195 = vld [vmem:[%s16 + $0x108] sm:$0xff]
    %v4196 = vld [vmem:[%s16 + $0x110] sm:$0xff]
    %v4197 = vld [vmem:[%s16 + $0x118] sm:$0xff]
    %v4198 = vld [vmem:[%s16 + $0x120] sm:$0xff]
    %v4199 = vld [vmem:[%s16 + $0x128] sm:$0xff]
    %v4200 = vld [vmem:[%s16 + $0x130] sm:$0xff]
    %v4201 = vld [vmem:[%s16 + $0x138] sm:$0xff]
    %v4202 = vld [vmem:[%s16 + $0x140] sm:$0xff]
    %v4203 = vld [vmem:[%s16 + $0x148] sm:$0xff]
    %v4204 = vld [vmem:[%s16 + $0x150] sm:$0xff]
    %v4205 = vld [vmem:[%s16 + $0x158] sm:$0xff]
    %v4206 = vld [vmem:[%s16 + $0x160] sm:$0xff]
    %v4207 = vld [vmem:[%s16 + $0x168] sm:$0xff]
    %v4208 = vld [vmem:[%s16 + $0x170] sm:$0xff]
    %v4209 = vld [vmem:[%s16 + $0x178] sm:$0xff]
    %v4210 = vld [vmem:[%s16 + $0x180] sm:$0xff]
    %v4211 = vld [vmem:[%s16 + $0x188] sm:$0xff]
    %v4212 = vld [vmem:[%s16 + $0x190] sm:$0xff]
    %v4213 = vld [vmem:[%s16 + $0x198] sm:$0xff]
    %v4214 = vld [vmem:[%s16 + $0x1a0] sm:$0xff]
    %v4215 = vld [vmem:[%s16 + $0x1a8] sm:$0xff]
    %v4216 = vld [vmem:[%s16 + $0x1b0] sm:$0xff]
    %v4217 = vld [vmem:[%s16 + $0x1b8] sm:$0xff]
    %v4218 = vld [vmem:[%s16 + $0x1c0] sm:$0xff]
    %v4219 = vld [vmem:[%s16 + $0x1c8] sm:$0xff]
    %v4220 = vld [vmem:[%s16 + $0x1d0] sm:$0xff]
    %v4221 = vld [vmem:[%s16 + $0x1d8] sm:$0xff]
    %v4222 = vld [vmem:[%s16 + $0x1e0] sm:$0xff]
    %v4223 = vld [vmem:[%s16 + $0x1e8] sm:$0xff]
    %v4224 = vld [vmem:[%s16 + $0x1f0] sm:$0xff]
    %v4225 = vld [vmem:[%s16 + $0x1f8] sm:$0xff]
    %v4226 = vld [vmem:[%s16 + $0x200] sm:$0xff]
    %v4227 = vld [vmem:[%s16 + $0x208] sm:$0xff]
    %v4228 = vld [vmem:[%s16 + $0x210] sm:$0xff]
    %v4229 = vld [vmem:[%s16 + $0x218] sm:$0xff]
    %v4230 = vld [vmem:[%s16 + $0x220] sm:$0xff]
    %v4231 = vld [vmem:[%s16 + $0x228] sm:$0xff]
    %v4232 = vld [vmem:[%s16 + $0x230] sm:$0xff]
    %v4233 = vld [vmem:[%s16 + $0x238] sm:$0xff]
    %v4234 = vld [vmem:[%s16 + $0x240] sm:$0xff]
    %v4235 = vld [vmem:[%s16 + $0x248] sm:$0xff]
    %v4236 = vld [vmem:[%s16 + $0x250] sm:$0xff]
    %v4237 = vld [vmem:[%s16 + $0x258] sm:$0xff]
    %v4238 = vld [vmem:[%s16 + $0x260] sm:$0xff]
    %v4239 = vld [vmem:[%s16 + $0x268] sm:$0xff]
    %v4240 = vld [vmem:[%s16 + $0x270] sm:$0xff]
    %v4241 = vld [vmem:[%s16 + $0x278] sm:$0xff]
    %v4242 = vld [vmem:[%s16 + $0x280] sm:$0xff]
    %v4243 = vld [vmem:[%s16 + $0x288] sm:$0xff]
    %v4244 = vld [vmem:[%s16 + $0x290] sm:$0xff]
    %v4245 = vld [vmem:[%s16 + $0x298] sm:$0xff]
    %v4246 = vld [vmem:[%s16 + $0x2a0] sm:$0xff]
    %v4247 = vld [vmem:[%s16 + $0x2a8] sm:$0xff]
    %v4248 = vld [vmem:[%s16 + $0x2b0] sm:$0xff]
    %v4249 = vld [vmem:[%s16 + $0x2b8] sm:$0xff]
    %v4250 = vld [vmem:[%s16 + $0x2c0] sm:$0xff]
    %v4251 = vld [vmem:[%s16 + $0x2c8] sm:$0xff]
    %v4252 = vld [vmem:[%s16 + $0x2d0] sm:$0xff]
    %v4253 = vld [vmem:[%s16 + $0x2d8] sm:$0xff]
    %v4254 = vld [vmem:[%s16 + $0x2e0] sm:$0xff]
    %v4255 = vld [vmem:[%s16 + $0x2e8] sm:$0xff]
    %v4256 = vld [vmem:[%s16 + $0x2f0] sm:$0xff]
    %v4257 = vld [vmem:[%s16 + $0x2f8] sm:$0xff]
    %v4258 = vld [vmem:[%s16 + $0x300] sm:$0xff]
    %v4259 = vld [vmem:[%s16 + $0x308] sm:$0xff]
    %v4260 = vld [vmem:[%s16 + $0x310] sm:$0xff]
    %v4261 = vld [vmem:[%s16 + $0x318] sm:$0xff]
    %v4262 = vld [vmem:[%s16 + $0x320] sm:$0xff]
    %v4263 = vld [vmem:[%s16 + $0x328] sm:$0xff]
    %v4264 = vld [vmem:[%s16 + $0x330] sm:$0xff]
    %v4265 = vld [vmem:[%s16 + $0x338] sm:$0xff]
    %v4266 = vld [vmem:[%s16 + $0x340] sm:$0xff]
    %v4267 = vld [vmem:[%s16 + $0x348] sm:$0xff]
    %v4268 = vld [vmem:[%s16 + $0x350] sm:$0xff]
    %v4269 = vld [vmem:[%s16 + $0x358] sm:$0xff]
    %v4270 = vld [vmem:[%s16 + $0x360] sm:$0xff]
    %v4271 = vld [vmem:[%s16 + $0x368] sm:$0xff]
    %v4272 = vld [vmem:[%s16 + $0x370] sm:$0xff]
    %v4273 = vld [vmem:[%s16 + $0x378] sm:$0xff]
    %v4274 = vld [vmem:[%s16 + $0x380] sm:$0xff]
    %v4275 = vld [vmem:[%s16 + $0x388] sm:$0xff]
    %v4276 = vld [vmem:[%s16 + $0x390] sm:$0xff]
    %v4277 = vld [vmem:[%s16 + $0x398] sm:$0xff]
    %v4278 = vld [vmem:[%s16 + $0x3a0] sm:$0xff]
    %v4279 = vld [vmem:[%s16 + $0x3a8] sm:$0xff]
    %v4280 = vld [vmem:[%s16 + $0x3b0] sm:$0xff]
    %v4281 = vld [vmem:[%s16 + $0x3b8] sm:$0xff]
    %v4282 = vld [vmem:[%s16 + $0x3c0] sm:$0xff]
    %v4283 = vld [vmem:[%s16 + $0x3c8] sm:$0xff]
    %v4284 = vld [vmem:[%s16 + $0x3d0] sm:$0xff]
    %v4285 = vld [vmem:[%s16 + $0x3d8] sm:$0xff]
    %v4286 = vld [vmem:[%s16 + $0x3e0] sm:$0xff]
    %v4287 = vld [vmem:[%s16 + $0x3e8] sm:$0xff]
    %v4288 = vld [vmem:[%s16 + $0x3f0] sm:$0xff]
    %v4289 = vld [vmem:[%s16 + $0x3f8] sm:$0xff]
    %v4290 = vld [vmem:[%s16 + $0x400] sm:$0xff]
    %v4291 = vld [vmem:[%s16 + $0x408] sm:$0xff]
    %v4292 = vld [vmem:[%s16 + $0x410] sm:$0xff]
    %v4293 = vld [vmem:[%s16 + $0x418] sm:$0xff]
    %v4294 = vld [vmem:[%s16 + $0x420] sm:$0xff]
    %v4295 = vld [vmem:[%s16 + $0x428] sm:$0xff]
    %v4296 = vld [vmem:[%s16 + $0x430] sm:$0xff]
    %v4297 = vld [vmem:[%s16 + $0x438] sm:$0xff]
    %v4298 = vld [vmem:[%s16 + $0x440] sm:$0xff]
    %v4299 = vld [vmem:[%s16 + $0x448] sm:$0xff]
    %v4300 = vld [vmem:[%s16 + $0x450] sm:$0xff]
    %v4301 = vld [vmem:[%s16 + $0x458] sm:$0xff]
    %v4302 = vld [vmem:[%s16 + $0x460] sm:$0xff]
    %v4303 = vld [vmem:[%s16 + $0x468] sm:$0xff]
    %v4304 = vld [vmem:[%s16 + $0x470] sm:$0xff]
    %v4305 = vld [vmem:[%s16 + $0x478] sm:$0xff]
    %v4306 = vld [vmem:[%s16 + $0x480] sm:$0xff]
    %v4307 = vld [vmem:[%s16 + $0x488] sm:$0xff]
    %v4308 = vld [vmem:[%s16 + $0x490] sm:$0xff]
    %v4309 = vld [vmem:[%s16 + $0x498] sm:$0xff]
    %v4310 = vld [vmem:[%s16 + $0x4a0] sm:$0xff]
    %v4311 = vld [vmem:[%s16 + $0x4a8] sm:$0xff]
    %v4312 = vld [vmem:[%s16 + $0x4b0] sm:$0xff]
    %v4313 = vld [vmem:[%s16 + $0x4b8] sm:$0xff]
    %v4314 = vld [vmem:[%s16 + $0x4c0] sm:$0xff]
    %v4315 = vld [vmem:[%s16 + $0x4c8] sm:$0xff]
    %v4316 = vld [vmem:[%s16 + $0x4d0] sm:$0xff]
    %v4317 = vld [vmem:[%s16 + $0x4d8] sm:$0xff]
    %v4318 = vld [vmem:[%s16 + $0x4e0] sm:$0xff]
    %v4319 = vld [vmem:[%s16 + $0x4e8] sm:$0xff]
    %v4320 = vld [vmem:[%s16 + $0x4f0] sm:$0xff]
    %v4321 = vld [vmem:[%s16 + $0x4f8] sm:$0xff]
    %v4322 = vld [vmem:[%s16 + $0x500] sm:$0xff]
    %v4323 = vld [vmem:[%s16 + $0x508] sm:$0xff]
    %v4324 = vld [vmem:[%s16 + $0x510] sm:$0xff]
    %v4325 = vld [vmem:[%s16 + $0x518] sm:$0xff]
    %v4326 = vld [vmem:[%s16 + $0x520] sm:$0xff]
    %v4327 = vld [vmem:[%s16 + $0x528] sm:$0xff]
    %v4328 = vld [vmem:[%s16 + $0x530] sm:$0xff]
    %v4329 = vld [vmem:[%s16 + $0x538] sm:$0xff]
    %v4330 = vld [vmem:[%s16 + $0x540] sm:$0xff]
    %v4331 = vld [vmem:[%s16 + $0x548] sm:$0xff]
    %v4332 = vld [vmem:[%s16 + $0x550] sm:$0xff]
    %v4333 = vld [vmem:[%s16 + $0x558] sm:$0xff]
    %v4334 = vld [vmem:[%s16 + $0x560] sm:$0xff]
    %v4335 = vld [vmem:[%s16 + $0x568] sm:$0xff]
    %v4336 = vld [vmem:[%s16 + $0x570] sm:$0xff]
    %v4337 = vld [vmem:[%s16 + $0x578] sm:$0xff]
    %v4338 = vld [vmem:[%s16 + $0x580] sm:$0xff]
    %v4339 = vld [vmem:[%s16 + $0x588] sm:$0xff]
    %v4340 = vld [vmem:[%s16 + $0x590] sm:$0xff]
    %v4341 = vld [vmem:[%s16 + $0x598] sm:$0xff]
    %v4342 = vld [vmem:[%s16 + $0x5a0] sm:$0xff]
    %v4343 = vld [vmem:[%s16 + $0x5a8] sm:$0xff]
    %v4344 = vld [vmem:[%s16 + $0x5b0] sm:$0xff]
    %v4345 = vld [vmem:[%s16 + $0x5b8] sm:$0xff]
    %v4346 = vld [vmem:[%s16 + $0x5c0] sm:$0xff]
    %v4347 = vld [vmem:[%s16 + $0x5c8] sm:$0xff]
    %v4348 = vld [vmem:[%s16 + $0x5d0] sm:$0xff]
    %v4349 = vld [vmem:[%s16 + $0x5d8] sm:$0xff]
    %v4350 = vld [vmem:[%s16 + $0x5e0] sm:$0xff]
    %v4351 = vld [vmem:[%s16 + $0x5e8] sm:$0xff]
    %v4352 = vld [vmem:[%s16 + $0x5f0] sm:$0xff]
    %v4353 = vld [vmem:[%s16 + $0x5f8] sm:$0xff]
    %v4354 = vld [vmem:[%s16 + $0x600] sm:$0xff]
    %v4355 = vld [vmem:[%s16 + $0x608] sm:$0xff]
    %v4356 = vld [vmem:[%s16 + $0x610] sm:$0xff]
    %v4357 = vld [vmem:[%s16 + $0x618] sm:$0xff]
    %v4358 = vld [vmem:[%s16 + $0x620] sm:$0xff]
    %v4359 = vld [vmem:[%s16 + $0x628] sm:$0xff]
    %v4360 = vld [vmem:[%s16 + $0x630] sm:$0xff]
    %v4361 = vld [vmem:[%s16 + $0x638] sm:$0xff]
    %v4362 = vld [vmem:[%s16 + $0x640] sm:$0xff]
    %v4363 = vld [vmem:[%s16 + $0x648] sm:$0xff]
    %v4364 = vld [vmem:[%s16 + $0x650] sm:$0xff]
    %v4365 = vld [vmem:[%s16 + $0x658] sm:$0xff]
    %v4366 = vld [vmem:[%s16 + $0x660] sm:$0xff]
    %v4367 = vld [vmem:[%s16 + $0x668] sm:$0xff]
    %v4368 = vld [vmem:[%s16 + $0x670] sm:$0xff]
    %v4369 = vld [vmem:[%s16 + $0x678] sm:$0xff]
    %v4370 = vld [vmem:[%s16 + $0x680] sm:$0xff]
    %v4371 = vld [vmem:[%s16 + $0x688] sm:$0xff]
    %v4372 = vld [vmem:[%s16 + $0x690] sm:$0xff]
    %v4373 = vld [vmem:[%s16 + $0x698] sm:$0xff]
    %v4374 = vld [vmem:[%s16 + $0x6a0] sm:$0xff]
    %v4375 = vld [vmem:[%s16 + $0x6a8] sm:$0xff]
    %v4376 = vld [vmem:[%s16 + $0x6b0] sm:$0xff]
    %v4377 = vld [vmem:[%s16 + $0x6b8] sm:$0xff]
    %v4378 = vld [vmem:[%s16 + $0x6c0] sm:$0xff]
    %v4379 = vld [vmem:[%s16 + $0x6c8] sm:$0xff]
    %v4380 = vld [vmem:[%s16 + $0x6d0] sm:$0xff]
    %v4381 = vld [vmem:[%s16 + $0x6d8] sm:$0xff]
    %v4382 = vld [vmem:[%s16 + $0x6e0] sm:$0xff]
    %v4383 = vld [vmem:[%s16 + $0x6e8] sm:$0xff]
    %v4384 = vld [vmem:[%s16 + $0x6f0] sm:$0xff]
    %v4385 = vld [vmem:[%s16 + $0x6f8] sm:$0xff]
    %s4386 = scalar_lea.vmem %s15, 32
    %v4387 = vld [vmem:[%s4386] sm:$0xff]
    %v4388 = vld [vmem:[%s4386 + $0x8] sm:$0xff]
    %v4389 = vld [vmem:[%s4386 + $0x10] sm:$0xff]
    %v4390 = vld [vmem:[%s4386 + $0x18] sm:$0xf]
    %v4392 = vsel %vm3958, %v4387, 0
    %v4395 = vsel %vm3958, %v4388, 0
    %v4398 = vsel %vm3958, %v4389, 0
    %v4401 = vsel %vm3958, %v4390, 0
    %4403 = vmatprep.subr.mxu0 %v3947
    %4404 = vmatpush1.msra.mxu0 %v3946
    %4405 = vmatprep.subr.mxu0 %v3976
    %4406 = vmatpush1.msra.mxu0 %v3973
    %4407 = vmatprep.subr.mxu0 0.0
    %4408 = vmatpush1.msra.mxu0 0.0
    %4409 = vmatprep.subr.mxu0 0.0
    %4410 = vmatpush1.msra.mxu0 0.0
    %4411 = vmatprep.subr.mxu0 0.0
    %4412 = vmatpush1.msra.mxu0 0.0
    %4413 = vmatprep.subr.mxu0 0.0
    %4414 = vmatpush1.msra.mxu0 0.0
    %4415 = vmatprep.subr.mxu0 0.0
    %4416 = vmatpush1.msra.mxu0 0.0
    %4417 = vmatprep.subr.mxu0 0.0
    %4418 = vmatpush1.msra.mxu0 0.0
    %4419 = vmatprep.subr.mxu0 0.0
    %4420 = vmatpush1.msra.mxu0 0.0
    %4421 = vmatprep.subr.mxu0 0.0
    %4422 = vmatpush1.msra.mxu0 0.0
    %4423 = vmatprep.subr.mxu0 0.0
    %4424 = vmatpush1.msra.mxu0 0.0
    %4425 = vmatprep.subr.mxu0 0.0
    %4426 = vmatpush1.msra.mxu0 0.0
    %4427 = vmatprep.subr.mxu0 0.0
    %4428 = vmatpush1.msra.mxu0 0.0
    %4429 = vmatprep.subr.mxu0 0.0
    %4430 = vmatpush1.msra.mxu0 0.0
    %4431 = vmatprep.subr.mxu0 0.0
    %4432 = vmatpush1.msra.mxu0 0.0
    %4433 = vmatprep.subr.mxu0 0.0
    %4434 = vmatpush1.msra.mxu0 0.0
    %4435 = vmatprep.subr.mxu0 0.0
    %4436 = vmatpush1.msra.mxu0 0.0
    %4437 = vmatprep.subr.mxu0 0.0
    %4438 = vmatpush1.msra.mxu0 0.0
    %4439 = vmatprep.subr.mxu0 0.0
    %4440 = vmatpush1.msra.mxu0 0.0
    %4441 = vmatprep.subr.mxu0 0.0
    %4442 = vmatpush1.msra.mxu0 0.0
    %4443 = vmatprep.subr.mxu0 0.0
    %4444 = vmatpush1.msra.mxu0 0.0
    %4445 = vmatprep.subr.mxu0 0.0
    %4446 = vmatpush1.msra.mxu0 0.0
    %4447 = vmatprep.subr.mxu0 0.0
    %4448 = vmatpush1.msra.mxu0 0.0
    %4449 = vmatprep.subr.mxu0 0.0
    %4450 = vmatpush1.msra.mxu0 0.0
    %4451 = vmatprep.subr.mxu0 0.0
    %4452 = vmatpush1.msra.mxu0 0.0
    %4453 = vmatprep.subr.mxu0 0.0
    %4454 = vmatpush1.msra.mxu0 0.0
    %4455 = vmatprep.subr.mxu0 0.0
    %4456 = vmatpush1.msra.mxu0 0.0
    %4457 = vmatprep.subr.mxu0 0.0
    %4458 = vmatpush1.msra.mxu0 0.0
    %4459 = vmatprep.subr.mxu0 0.0
    %4460 = vmatpush1.msra.mxu0 0.0
    %4461 = vmatprep.subr.mxu0 0.0
    %4462 = vmatpush1.msra.mxu0 0.0
    %4463 = vmatprep.subr.mxu0 0.0
    %4464 = vmatpush1.msra.mxu0 0.0
    %4465 = vmatprep.subr.mxu0 0.0
    %4466 = vmatpush1.msra.mxu0 0.0
    %4467 = vmatprep.mubr.f32.mxu0 0.0
    %4468 = vmatmul.mubr.f32.gmra.mrb[0].mxu0 %v4392
    %v4469 = vpop.f32.mrb[0].mxu0
    %v4470 = vadd.f32 0.0, %v4469
    %v4471 = vpop.f32.mrb[0].mxu0
    %v4472 = vadd.f32 0.0, %v4471
    %4473 = vmatprep.mubr.f32.mxu0 0.0
    %4474 = vmatmul.mubr.f32.gmra.mrb[0].mxu0 %v4395
    %v4475 = vpop.f32.mrb[0].mxu0
    %v4476 = vadd.f32 0.0, %v4475
    %v4477 = vpop.f32.mrb[0].mxu0
    %v4478 = vadd.f32 0.0, %v4477
    %4479 = vmatprep.mubr.f32.mxu0 0.0
    %4480 = vmatmul.mubr.f32.gmra.mrb[0].mxu0 %v4398
    %v4481 = vpop.f32.mrb[0].mxu0
    %v4482 = vadd.f32 0.0, %v4481
    %v4483 = vpop.f32.mrb[0].mxu0
    %v4484 = vadd.f32 0.0, %v4483
    %4485 = vmatprep.mubr.f32.mxu0 0.0
    %4486 = vmatmul.mubr.f32.gmra.mrb[0].mxu0 %v4401
    %v4487 = vpop.f32.mrb[0].mxu0
    %v4488 = vadd.f32 0.0, %v4487
    %v4489 = vpop.f32.mrb[0].mxu0
    %v4490 = vadd.f32 0.0, %v4489
    %4491 = vdwg.mxu0
    %4492 = vmatprep.subr.mxu0 %v3949
    %4493 = vmatpush1.msra.mxu0 %v3948
    %4494 = vmatprep.subr.mxu0 %v3982
    %4495 = vmatpush1.msra.mxu0 %v3979
    %4496 = vmatprep.subr.mxu0 0.0
    %4497 = vmatpush1.msra.mxu0 0.0
    %4498 = vmatprep.subr.mxu0 0.0
    %4499 = vmatpush1.msra.mxu0 0.0
    %4500 = vmatprep.subr.mxu0 0.0
    %4501 = vmatpush1.msra.mxu0 0.0
    %4502 = vmatprep.subr.mxu0 0.0
    %4503 = vmatpush1.msra.mxu0 0.0
    %4504 = vmatprep.subr.mxu0 0.0
    %4505 = vmatpush1.msra.mxu0 0.0
    %4506 = vmatprep.subr.mxu0 0.0
    %4507 = vmatpush1.msra.mxu0 0.0
    %4508 = vmatprep.subr.mxu0 0.0
    %4509 = vmatpush1.msra.mxu0 0.0
    %4510 = vmatprep.subr.mxu0 0.0
    %4511 = vmatpush1.msra.mxu0 0.0
    %4512 = vmatprep.subr.mxu0 0.0
    %4513 = vmatpush1.msra.mxu0 0.0
    %4514 = vmatprep.subr.mxu0 0.0
    %4515 = vmatpush1.msra.mxu0 0.0
    %4516 = vmatprep.subr.mxu0 0.0
    %4517 = vmatpush1.msra.mxu0 0.0
    %4518 = vmatprep.subr.mxu0 0.0
    %4519 = vmatpush1.msra.mxu0 0.0
    %4520 = vmatprep.subr.mxu0 0.0
    %4521 = vmatpush1.msra.mxu0 0.0
    %4522 = vmatprep.subr.mxu0 0.0
    %4523 = vmatpush1.msra.mxu0 0.0
    %4524 = vmatprep.subr.mxu0 0.0
    %4525 = vmatpush1.msra.mxu0 0.0
    %4526 = vmatprep.subr.mxu0 0.0
    %4527 = vmatpush1.msra.mxu0 0.0
    %4528 = vmatprep.subr.mxu0 0.0
    %4529 = vmatpush1.msra.mxu0 0.0
    %4530 = vmatprep.subr.mxu0 0.0
    %4531 = vmatpush1.msra.mxu0 0.0
    %4532 = vmatprep.subr.mxu0 0.0
    %4533 = vmatpush1.msra.mxu0 0.0
    %4534 = vmatprep.subr.mxu0 0.0
    %4535 = vmatpush1.msra.mxu0 0.0
    %4536 = vmatprep.subr.mxu0 0.0
    %4537 = vmatpush1.msra.mxu0 0.0
    %4538 = vmatprep.subr.mxu0 0.0
    %4539 = vmatpush1.msra.mxu0 0.0
    %4540 = vmatprep.subr.mxu0 0.0
    %4541 = vmatpush1.msra.mxu0 0.0
    %4542 = vmatprep.subr.mxu0 0.0
    %4543 = vmatpush1.msra.mxu0 0.0
    %4544 = vmatprep.subr.mxu0 0.0
    %4545 = vmatpush1.msra.mxu0 0.0
    %4546 = vmatprep.subr.mxu0 0.0
    %4547 = vmatpush1.msra.mxu0 0.0
    %4548 = vmatprep.subr.mxu0 0.0
    %4549 = vmatpush1.msra.mxu0 0.0
    %4550 = vmatprep.subr.mxu0 0.0
    %4551 = vmatpush1.msra.mxu0 0.0
    %4552 = vmatprep.subr.mxu0 0.0
    %4553 = vmatpush1.msra.mxu0 0.0
    %4554 = vmatprep.subr.mxu0 0.0
    %4555 = vmatpush1.msra.mxu0 0.0
    %4556 = vmatprep.mubr.f32.mxu0 0.0
    %4557 = vmatmul.mubr.f32.gmra.mrb[0].mxu0 %v4392
    %v4558 = vpop.f32.mrb[0].mxu0
    %v4559 = vadd.f32 0.0, %v4558
    %v4560 = vpop.f32.mrb[0].mxu0
    %v4561 = vadd.f32 0.0, %v4560
    %4562 = vmatprep.mubr.f32.mxu0 0.0
    %4563 = vmatmul.mubr.f32.gmra.mrb[0].mxu0 %v4395
    %v4564 = vpop.f32.mrb[0].mxu0
    %v4565 = vadd.f32 0.0, %v4564
    %v4566 = vpop.f32.mrb[0].mxu0
    %v4567 = vadd.f32 0.0, %v4566
    %4568 = vmatprep.mubr.f32.mxu0 0.0
    %4569 = vmatmul.mubr.f32.gmra.mrb[0].mxu0 %v4398
    %v4570 = vpop.f32.mrb[0].mxu0
    %v4571 = vadd.f32 0.0, %v4570
    %v4572 = vpop.f32.mrb[0].mxu0
    %v4573 = vadd.f32 0.0, %v4572
    %4574 = vmatprep.mubr.f32.mxu0 0.0
    %4575 = vmatmul.mubr.f32.gmra.mrb[0].mxu0 %v4401
    %v4576 = vpop.f32.mrb[0].mxu0
    %v4577 = vadd.f32 0.0, %v4576
    %v4578 = vpop.f32.mrb[0].mxu0
    %v4579 = vadd.f32 0.0, %v4578
    %4580 = vdwg.mxu0
    %s4581 = scalar_lea.vmem %s16, 1792
    %v4582 = vld [vmem:[%s4581] sm:$0xff]
    %v4583 = vld [vmem:[%s4581 + $0x8] sm:$0xff]
    %v4584 = vld [vmem:[%s4581 + $0x10] sm:$0xff]
    %v4585 = vld [vmem:[%s4581 + $0x18] sm:$0xff]
    %v4586 = vld [vmem:[%s4581 + $0x20] sm:$0xff]
    %v4587 = vld [vmem:[%s4581 + $0x28] sm:$0xff]
    %v4588 = vld [vmem:[%s4581 + $0x30] sm:$0xff]
    %v4589 = vld [vmem:[%s4581 + $0x38] sm:$0xff]
    %v4590 = vld [vmem:[%s4581 + $0x40] sm:$0xff]
    %v4591 = vld [vmem:[%s4581 + $0x48] sm:$0xff]
    %v4592 = vld [vmem:[%s4581 + $0x50] sm:$0xff]
    %v4593 = vld [vmem:[%s4581 + $0x58] sm:$0xff]
    %v4594 = vld [vmem:[%s4581 + $0x60] sm:$0xff]
    %v4595 = vld [vmem:[%s4581 + $0x68] sm:$0xff]
    %v4596 = vld [vmem:[%s4581 + $0x70] sm:$0xff]
    %v4597 = vld [vmem:[%s4581 + $0x78] sm:$0xff]
    %v4598 = vld [vmem:[%s4581 + $0x80] sm:$0xff]
    %v4599 = vld [vmem:[%s4581 + $0x88] sm:$0xff]
    %v4600 = vld [vmem:[%s4581 + $0x90] sm:$0xff]
    %v4601 = vld [vmem:[%s4581 + $0x98] sm:$0xff]
    %v4602 = vld [vmem:[%s4581 + $0xa0] sm:$0xff]
    %v4603 = vld [vmem:[%s4581 + $0xa8] sm:$0xff]
    %v4604 = vld [vmem:[%s4581 + $0xb0] sm:$0xff]
    %v4605 = vld [vmem:[%s4581 + $0xb8] sm:$0xff]
    %v4606 = vld [vmem:[%s4581 + $0xc0] sm:$0xff]
    %v4607 = vld [vmem:[%s4581 + $0xc8] sm:$0xff]
    %v4608 = vld [vmem:[%s4581 + $0xd0] sm:$0xff]
    %v4609 = vld [vmem:[%s4581 + $0xd8] sm:$0xff]
    %v4610 = vld [vmem:[%s4581 + $0xe0] sm:$0xff]
    %v4611 = vld [vmem:[%s4581 + $0xe8] sm:$0xff]
    %v4612 = vld [vmem:[%s4581 + $0xf0] sm:$0xff]
    %v4613 = vld [vmem:[%s4581 + $0xf8] sm:$0xff]
    %v4614 = vld [vmem:[%s4581 + $0x100] sm:$0xff]
    %v4615 = vld [vmem:[%s4581 + $0x108] sm:$0xff]
    %v4616 = vld [vmem:[%s4581 + $0x110] sm:$0xff]
    %v4617 = vld [vmem:[%s4581 + $0x118] sm:$0xff]
    %v4618 = vld [vmem:[%s4581 + $0x120] sm:$0xff]
    %v4619 = vld [vmem:[%s4581 + $0x128] sm:$0xff]
    %v4620 = vld [vmem:[%s4581 + $0x130] sm:$0xff]
    %v4621 = vld [vmem:[%s4581 + $0x138] sm:$0xff]
    %v4622 = vld [vmem:[%s4581 + $0x140] sm:$0xff]
    %v4623 = vld [vmem:[%s4581 + $0x148] sm:$0xff]
    %v4624 = vld [vmem:[%s4581 + $0x150] sm:$0xff]
    %v4625 = vld [vmem:[%s4581 + $0x158] sm:$0xff]
    %v4626 = vld [vmem:[%s4581 + $0x160] sm:$0xff]
    %v4627 = vld [vmem:[%s4581 + $0x168] sm:$0xff]
    %v4628 = vld [vmem:[%s4581 + $0x170] sm:$0xff]
    %v4629 = vld [vmem:[%s4581 + $0x178] sm:$0xff]
    %v4630 = vld [vmem:[%s4581 + $0x180] sm:$0xff]
    %v4631 = vld [vmem:[%s4581 + $0x188] sm:$0xff]
    %v4632 = vld [vmem:[%s4581 + $0x190] sm:$0xff]
    %v4633 = vld [vmem:[%s4581 + $0x198] sm:$0xff]
    %v4634 = vld [vmem:[%s4581 + $0x1a0] sm:$0xff]
    %v4635 = vld [vmem:[%s4581 + $0x1a8] sm:$0xff]
    %v4636 = vld [vmem:[%s4581 + $0x1b0] sm:$0xff]
    %v4637 = vld [vmem:[%s4581 + $0x1b8] sm:$0xff]
    %v4638 = vld [vmem:[%s4581 + $0x1c0] sm:$0xff]
    %v4639 = vld [vmem:[%s4581 + $0x1c8] sm:$0xff]
    %v4640 = vld [vmem:[%s4581 + $0x1d0] sm:$0xff]
    %v4641 = vld [vmem:[%s4581 + $0x1d8] sm:$0xff]
    %v4642 = vld [vmem:[%s4581 + $0x1e0] sm:$0xff]
    %v4643 = vld [vmem:[%s4581 + $0x1e8] sm:$0xff]
    %v4644 = vld [vmem:[%s4581 + $0x1f0] sm:$0xff]
    %v4645 = vld [vmem:[%s4581 + $0x1f8] sm:$0xff]
    %v4646 = vld [vmem:[%s4581 + $0x200] sm:$0xff]
    %v4647 = vld [vmem:[%s4581 + $0x208] sm:$0xff]
    %v4648 = vld [vmem:[%s4581 + $0x210] sm:$0xff]
    %v4649 = vld [vmem:[%s4581 + $0x218] sm:$0xff]
    %v4650 = vld [vmem:[%s4581 + $0x220] sm:$0xff]
    %v4651 = vld [vmem:[%s4581 + $0x228] sm:$0xff]
    %v4652 = vld [vmem:[%s4581 + $0x230] sm:$0xff]
    %v4653 = vld [vmem:[%s4581 + $0x238] sm:$0xff]
    %v4654 = vld [vmem:[%s4581 + $0x240] sm:$0xff]
    %v4655 = vld [vmem:[%s4581 + $0x248] sm:$0xff]
    %v4656 = vld [vmem:[%s4581 + $0x250] sm:$0xff]
    %v4657 = vld [vmem:[%s4581 + $0x258] sm:$0xff]
    %v4658 = vld [vmem:[%s4581 + $0x260] sm:$0xff]
    %v4659 = vld [vmem:[%s4581 + $0x268] sm:$0xff]
    %v4660 = vld [vmem:[%s4581 + $0x270] sm:$0xff]
    %v4661 = vld [vmem:[%s4581 + $0x278] sm:$0xff]
    %v4662 = vld [vmem:[%s4581 + $0x280] sm:$0xff]
    %v4663 = vld [vmem:[%s4581 + $0x288] sm:$0xff]
    %v4664 = vld [vmem:[%s4581 + $0x290] sm:$0xff]
    %v4665 = vld [vmem:[%s4581 + $0x298] sm:$0xff]
    %v4666 = vld [vmem:[%s4581 + $0x2a0] sm:$0xff]
    %v4667 = vld [vmem:[%s4581 + $0x2a8] sm:$0xff]
    %v4668 = vld [vmem:[%s4581 + $0x2b0] sm:$0xff]
    %v4669 = vld [vmem:[%s4581 + $0x2b8] sm:$0xff]
    %v4670 = vld [vmem:[%s4581 + $0x2c0] sm:$0xff]
    %v4671 = vld [vmem:[%s4581 + $0x2c8] sm:$0xff]
    %v4672 = vld [vmem:[%s4581 + $0x2d0] sm:$0xff]
    %v4673 = vld [vmem:[%s4581 + $0x2d8] sm:$0xff]
    %v4674 = vld [vmem:[%s4581 + $0x2e0] sm:$0xff]
    %v4675 = vld [vmem:[%s4581 + $0x2e8] sm:$0xff]
    %v4676 = vld [vmem:[%s4581 + $0x2f0] sm:$0xff]
    %v4677 = vld [vmem:[%s4581 + $0x2f8] sm:$0xff]
    %v4678 = vld [vmem:[%s4581 + $0x300] sm:$0xff]
    %v4679 = vld [vmem:[%s4581 + $0x308] sm:$0xff]
    %v4680 = vld [vmem:[%s4581 + $0x310] sm:$0xff]
    %v4681 = vld [vmem:[%s4581 + $0x318] sm:$0xff]
    %v4682 = vld [vmem:[%s4581 + $0x320] sm:$0xff]
    %v4683 = vld [vmem:[%s4581 + $0x328] sm:$0xff]
    %v4684 = vld [vmem:[%s4581 + $0x330] sm:$0xff]
    %v4685 = vld [vmem:[%s4581 + $0x338] sm:$0xff]
    %v4686 = vld [vmem:[%s4581 + $0x340] sm:$0xff]
    %v4687 = vld [vmem:[%s4581 + $0x348] sm:$0xff]
    %v4688 = vld [vmem:[%s4581 + $0x350] sm:$0xff]
    %v4689 = vld [vmem:[%s4581 + $0x358] sm:$0xff]
    %v4690 = vld [vmem:[%s4581 + $0x360] sm:$0xff]
    %v4691 = vld [vmem:[%s4581 + $0x368] sm:$0xff]
    %v4692 = vld [vmem:[%s4581 + $0x370] sm:$0xff]
    %v4693 = vld [vmem:[%s4581 + $0x378] sm:$0xff]
    %v4694 = vld [vmem:[%s4581 + $0x380] sm:$0xff]
    %v4695 = vld [vmem:[%s4581 + $0x388] sm:$0xff]
    %v4696 = vld [vmem:[%s4581 + $0x390] sm:$0xff]
    %v4697 = vld [vmem:[%s4581 + $0x398] sm:$0xff]
    %v4698 = vld [vmem:[%s4581 + $0x3a0] sm:$0xff]
    %v4699 = vld [vmem:[%s4581 + $0x3a8] sm:$0xff]
    %v4700 = vld [vmem:[%s4581 + $0x3b0] sm:$0xff]
    %v4701 = vld [vmem:[%s4581 + $0x3b8] sm:$0xff]
    %v4702 = vld [vmem:[%s4581 + $0x3c0] sm:$0xff]
    %v4703 = vld [vmem:[%s4581 + $0x3c8] sm:$0xff]
    %v4704 = vld [vmem:[%s4581 + $0x3d0] sm:$0xff]
    %v4705 = vld [vmem:[%s4581 + $0x3d8] sm:$0xff]
    %v4706 = vld [vmem:[%s4581 + $0x3e0] sm:$0xff]
    %v4707 = vld [vmem:[%s4581 + $0x3e8] sm:$0xff]
    %v4708 = vld [vmem:[%s4581 + $0x3f0] sm:$0xff]
    %v4709 = vld [vmem:[%s4581 + $0x3f8] sm:$0xff]
    %v4710 = vld [vmem:[%s4581 + $0x400] sm:$0xff]
    %v4711 = vld [vmem:[%s4581 + $0x408] sm:$0xff]
    %v4712 = vld [vmem:[%s4581 + $0x410] sm:$0xff]
    %v4713 = vld [vmem:[%s4581 + $0x418] sm:$0xff]
    %v4714 = vld [vmem:[%s4581 + $0x420] sm:$0xff]
    %v4715 = vld [vmem:[%s4581 + $0x428] sm:$0xff]
    %v4716 = vld [vmem:[%s4581 + $0x430] sm:$0xff]
    %v4717 = vld [vmem:[%s4581 + $0x438] sm:$0xff]
    %v4718 = vld [vmem:[%s4581 + $0x440] sm:$0xff]
    %v4719 = vld [vmem:[%s4581 + $0x448] sm:$0xff]
    %v4720 = vld [vmem:[%s4581 + $0x450] sm:$0xff]
    %v4721 = vld [vmem:[%s4581 + $0x458] sm:$0xff]
    %v4722 = vld [vmem:[%s4581 + $0x460] sm:$0xff]
    %v4723 = vld [vmem:[%s4581 + $0x468] sm:$0xff]
    %v4724 = vld [vmem:[%s4581 + $0x470] sm:$0xff]
    %v4725 = vld [vmem:[%s4581 + $0x478] sm:$0xff]
    %v4726 = vld [vmem:[%s4581 + $0x480] sm:$0xff]
    %v4727 = vld [vmem:[%s4581 + $0x488] sm:$0xff]
    %v4728 = vld [vmem:[%s4581 + $0x490] sm:$0xff]
    %v4729 = vld [vmem:[%s4581 + $0x498] sm:$0xff]
    %v4730 = vld [vmem:[%s4581 + $0x4a0] sm:$0xff]
    %v4731 = vld [vmem:[%s4581 + $0x4a8] sm:$0xff]
    %v4732 = vld [vmem:[%s4581 + $0x4b0] sm:$0xff]
    %v4733 = vld [vmem:[%s4581 + $0x4b8] sm:$0xff]
    %v4734 = vld [vmem:[%s4581 + $0x4c0] sm:$0xff]
    %v4735 = vld [vmem:[%s4581 + $0x4c8] sm:$0xff]
    %v4736 = vld [vmem:[%s4581 + $0x4d0] sm:$0xff]
    %v4737 = vld [vmem:[%s4581 + $0x4d8] sm:$0xff]
    %v4738 = vld [vmem:[%s4581 + $0x4e0] sm:$0xff]
    %v4739 = vld [vmem:[%s4581 + $0x4e8] sm:$0xff]
    %v4740 = vld [vmem:[%s4581 + $0x4f0] sm:$0xff]
    %v4741 = vld [vmem:[%s4581 + $0x4f8] sm:$0xff]
    %v4742 = vld [vmem:[%s4581 + $0x500] sm:$0xff]
    %v4743 = vld [vmem:[%s4581 + $0x508] sm:$0xff]
    %v4744 = vld [vmem:[%s4581 + $0x510] sm:$0xff]
    %v4745 = vld [vmem:[%s4581 + $0x518] sm:$0xff]
    %v4746 = vld [vmem:[%s4581 + $0x520] sm:$0xff]
    %v4747 = vld [vmem:[%s4581 + $0x528] sm:$0xff]
    %v4748 = vld [vmem:[%s4581 + $0x530] sm:$0xff]
    %v4749 = vld [vmem:[%s4581 + $0x538] sm:$0xff]
    %v4750 = vld [vmem:[%s4581 + $0x540] sm:$0xff]
    %v4751 = vld [vmem:[%s4581 + $0x548] sm:$0xff]
    %v4752 = vld [vmem:[%s4581 + $0x550] sm:$0xff]
    %v4753 = vld [vmem:[%s4581 + $0x558] sm:$0xff]
    %v4754 = vld [vmem:[%s4581 + $0x560] sm:$0xff]
    %v4755 = vld [vmem:[%s4581 + $0x568] sm:$0xff]
    %v4756 = vld [vmem:[%s4581 + $0x570] sm:$0xff]
    %v4757 = vld [vmem:[%s4581 + $0x578] sm:$0xff]
    %v4758 = vld [vmem:[%s4581 + $0x580] sm:$0xff]
    %v4759 = vld [vmem:[%s4581 + $0x588] sm:$0xff]
    %v4760 = vld [vmem:[%s4581 + $0x590] sm:$0xff]
    %v4761 = vld [vmem:[%s4581 + $0x598] sm:$0xff]
    %v4762 = vld [vmem:[%s4581 + $0x5a0] sm:$0xff]
    %v4763 = vld [vmem:[%s4581 + $0x5a8] sm:$0xff]
    %v4764 = vld [vmem:[%s4581 + $0x5b0] sm:$0xff]
    %v4765 = vld [vmem:[%s4581 + $0x5b8] sm:$0xff]
    %v4766 = vld [vmem:[%s4581 + $0x5c0] sm:$0xff]
    %v4767 = vld [vmem:[%s4581 + $0x5c8] sm:$0xff]
    %v4768 = vld [vmem:[%s4581 + $0x5d0] sm:$0xff]
    %v4769 = vld [vmem:[%s4581 + $0x5d8] sm:$0xff]
    %v4770 = vld [vmem:[%s4581 + $0x5e0] sm:$0xff]
    %v4771 = vld [vmem:[%s4581 + $0x5e8] sm:$0xff]
    %v4772 = vld [vmem:[%s4581 + $0x5f0] sm:$0xff]
    %v4773 = vld [vmem:[%s4581 + $0x5f8] sm:$0xff]
    %v4774 = vld [vmem:[%s4581 + $0x600] sm:$0xff]
    %v4775 = vld [vmem:[%s4581 + $0x608] sm:$0xff]
    %v4776 = vld [vmem:[%s4581 + $0x610] sm:$0xff]
    %v4777 = vld [vmem:[%s4581 + $0x618] sm:$0xff]
    %v4778 = vld [vmem:[%s4581 + $0x620] sm:$0xff]
    %v4779 = vld [vmem:[%s4581 + $0x628] sm:$0xff]
    %v4780 = vld [vmem:[%s4581 + $0x630] sm:$0xff]
    %v4781 = vld [vmem:[%s4581 + $0x638] sm:$0xff]
    %v4782 = vld [vmem:[%s4581 + $0x640] sm:$0xff]
    %v4783 = vld [vmem:[%s4581 + $0x648] sm:$0xff]
    %v4784 = vld [vmem:[%s4581 + $0x650] sm:$0xff]
    %v4785 = vld [vmem:[%s4581 + $0x658] sm:$0xff]
    %v4786 = vld [vmem:[%s4581 + $0x660] sm:$0xff]
    %v4787 = vld [vmem:[%s4581 + $0x668] sm:$0xff]
    %v4788 = vld [vmem:[%s4581 + $0x670] sm:$0xff]
    %v4789 = vld [vmem:[%s4581 + $0x678] sm:$0xff]
    %v4790 = vld [vmem:[%s4581 + $0x680] sm:$0xff]
    %v4791 = vld [vmem:[%s4581 + $0x688] sm:$0xff]
    %v4792 = vld [vmem:[%s4581 + $0x690] sm:$0xff]
    %v4793 = vld [vmem:[%s4581 + $0x698] sm:$0xff]
    %v4794 = vld [vmem:[%s4581 + $0x6a0] sm:$0xff]
    %v4795 = vld [vmem:[%s4581 + $0x6a8] sm:$0xff]
    %v4796 = vld [vmem:[%s4581 + $0x6b0] sm:$0xff]
    %v4797 = vld [vmem:[%s4581 + $0x6b8] sm:$0xff]
    %v4798 = vld [vmem:[%s4581 + $0x6c0] sm:$0xff]
    %v4799 = vld [vmem:[%s4581 + $0x6c8] sm:$0xff]
    %v4800 = vld [vmem:[%s4581 + $0x6d0] sm:$0xff]
    %v4801 = vld [vmem:[%s4581 + $0x6d8] sm:$0xff]
    %v4802 = vld [vmem:[%s4581 + $0x6e0] sm:$0xff]
    %v4803 = vld [vmem:[%s4581 + $0x6e8] sm:$0xff]
    %v4804 = vld [vmem:[%s4581 + $0x6f0] sm:$0xff]
    %v4805 = vld [vmem:[%s4581 + $0x6f8] sm:$0xff]
    %vm4806 = vcmask 523264
    %v4808 = vsel %vm4806, %v4561, 0
    %v4811 = vsel %vm4806, %v4567, 0
    %v4814 = vsel %vm4806, %v4573, 0
    %v4817 = vsel %vm4806, %v4579, 0
    %4819 = vmatprep.subr.mxu0 %v4583
    %4820 = vmatpush1.msra.mxu0 %v4582
    %4821 = vmatprep.subr.mxu0 %v4587
    %4822 = vmatpush1.msra.mxu0 %v4586
    %4823 = vmatprep.subr.mxu0 %v4591
    %4824 = vmatpush1.msra.mxu0 %v4590
    %4825 = vmatprep.subr.mxu0 %v4595
    %4826 = vmatpush1.msra.mxu0 %v4594
    %4827 = vmatprep.subr.mxu0 %v4599
    %4828 = vmatpush1.msra.mxu0 %v4598
    %4829 = vmatprep.subr.mxu0 %v4603
    %4830 = vmatpush1.msra.mxu0 %v4602
    %4831 = vmatprep.subr.mxu0 %v4607
    %4832 = vmatpush1.msra.mxu0 %v4606
    %4833 = vmatprep.subr.mxu0 %v4611
    %4834 = vmatpush1.msra.mxu0 %v4610
    %4835 = vmatprep.subr.mxu0 %v4615
    %4836 = vmatpush1.msra.mxu0 %v4614
    %4837 = vmatprep.subr.mxu0 %v4619
    %4838 = vmatpush1.msra.mxu0 %v4618
    %4839 = vmatprep.subr.mxu0 %v4623
    %4840 = vmatpush1.msra.mxu0 %v4622
    %4841 = vmatprep.subr.mxu0 %v4627
    %4842 = vmatpush1.msra.mxu0 %v4626
    %4843 = vmatprep.subr.mxu0 %v4631
    %4844 = vmatpush1.msra.mxu0 %v4630
    %4845 = vmatprep.subr.mxu0 %v4635
    %4846 = vmatpush1.msra.mxu0 %v4634
    %4847 = vmatprep.subr.mxu0 %v4639
    %4848 = vmatpush1.msra.mxu0 %v4638
    %4849 = vmatprep.subr.mxu0 %v4643
    %4850 = vmatpush1.msra.mxu0 %v4642
    %4851 = vmatprep.subr.mxu0 %v4647
    %4852 = vmatpush1.msra.mxu0 %v4646
    %4853 = vmatprep.subr.mxu0 %v4651
    %4854 = vmatpush1.msra.mxu0 %v4650
    %4855 = vmatprep.subr.mxu0 %v4655
    %4856 = vmatpush1.msra.mxu0 %v4654
    %4857 = vmatprep.subr.mxu0 %v4659
    %4858 = vmatpush1.msra.mxu0 %v4658
    %4859 = vmatprep.subr.mxu0 %v4663
    %4860 = vmatpush1.msra.mxu0 %v4662
    %4861 = vmatprep.subr.mxu0 %v4667
    %4862 = vmatpush1.msra.mxu0 %v4666
    %4863 = vmatprep.subr.mxu0 %v4671
    %4864 = vmatpush1.msra.mxu0 %v4670
    %4865 = vmatprep.subr.mxu0 %v4675
    %4866 = vmatpush1.msra.mxu0 %v4674
    %4867 = vmatprep.subr.mxu0 %v4679
    %4868 = vmatpush1.msra.mxu0 %v4678
    %4869 = vmatprep.subr.mxu0 %v4683
    %4870 = vmatpush1.msra.mxu0 %v4682
    %4871 = vmatprep.subr.mxu0 %v4687
    %4872 = vmatpush1.msra.mxu0 %v4686
    %4873 = vmatprep.subr.mxu0 %v4691
    %4874 = vmatpush1.msra.mxu0 %v4690
    %4875 = vmatprep.subr.mxu0 %v4695
    %4876 = vmatpush1.msra.mxu0 %v4694
    %4877 = vmatprep.subr.mxu0 %v4699
    %4878 = vmatpush1.msra.mxu0 %v4698
    %4879 = vmatprep.subr.mxu0 %v4703
    %4880 = vmatpush1.msra.mxu0 %v4702
    %4881 = vmatprep.subr.mxu0 %v4707
    %4882 = vmatpush1.msra.mxu0 %v4706
    %4883 = vmatprep.mubr.f32.mxu0 %v4472
    %4884 = vmatmul.mubr.f32.gmra.mrb[0].mxu0 %v4470
    %v4885 = vpop.f32.mrb[0].mxu0
    %v4886 = vadd.f32 0.0, %v4885
    %v4887 = vpop.f32.mrb[0].mxu0
    %v4888 = vadd.f32 0.0, %v4887
    %4889 = vmatprep.mubr.f32.mxu0 %v4478
    %4890 = vmatmul.mubr.f32.gmra.mrb[0].mxu0 %v4476
    %v4891 = vpop.f32.mrb[0].mxu0
    %v4892 = vadd.f32 0.0, %v4891
    %v4893 = vpop.f32.mrb[0].mxu0
    %v4894 = vadd.f32 0.0, %v4893
    %4895 = vmatprep.mubr.f32.mxu0 %v4484
    %4896 = vmatmul.mubr.f32.gmra.mrb[0].mxu0 %v4482
    %v4897 = vpop.f32.mrb[0].mxu0
    %v4898 = vadd.f32 0.0, %v4897
    %v4899 = vpop.f32.mrb[0].mxu0
    %v4900 = vadd.f32 0.0, %v4899
    %4901 = vmatprep.mubr.f32.mxu0 %v4490
    %4902 = vmatmul.mubr.f32.gmra.mrb[0].mxu0 %v4488
    %v4903 = vpop.f32.mrb[0].mxu0
    %v4904 = vadd.f32 0.0, %v4903
    %v4905 = vpop.f32.mrb[0].mxu0
    %v4906 = vadd.f32 0.0, %v4905
    %4907 = vdwg.mxu0
    %4908 = vmatprep.subr.mxu0 %v4711
    %4909 = vmatpush1.msra.mxu0 %v4710
    %4910 = vmatprep.subr.mxu0 %v4715
    %4911 = vmatpush1.msra.mxu0 %v4714
    %4912 = vmatprep.subr.mxu0 %v4719
    %4913 = vmatpush1.msra.mxu0 %v4718
    %4914 = vmatprep.subr.mxu0 %v4723
    %4915 = vmatpush1.msra.mxu0 %v4722
    %4916 = vmatprep.subr.mxu0 %v4727
    %4917 = vmatpush1.msra.mxu0 %v4726
    %4918 = vmatprep.subr.mxu0 %v4731
    %4919 = vmatpush1.msra.mxu0 %v4730
    %4920 = vmatprep.subr.mxu0 %v4735
    %4921 = vmatpush1.msra.mxu0 %v4734
    %4922 = vmatprep.subr.mxu0 %v4739
    %4923 = vmatpush1.msra.mxu0 %v4738
    %4924 = vmatprep.subr.mxu0 %v4743
    %4925 = vmatpush1.msra.mxu0 %v4742
    %4926 = vmatprep.subr.mxu0 %v4747
    %4927 = vmatpush1.msra.mxu0 %v4746
    %4928 = vmatprep.subr.mxu0 %v4751
    %4929 = vmatpush1.msra.mxu0 %v4750
    %4930 = vmatprep.subr.mxu0 %v4755
    %4931 = vmatpush1.msra.mxu0 %v4754
    %4932 = vmatprep.subr.mxu0 %v4759
    %4933 = vmatpush1.msra.mxu0 %v4758
    %4934 = vmatprep.subr.mxu0 %v4763
    %4935 = vmatpush1.msra.mxu0 %v4762
    %4936 = vmatprep.subr.mxu0 %v4767
    %4937 = vmatpush1.msra.mxu0 %v4766
    %4938 = vmatprep.subr.mxu0 %v4771
    %4939 = vmatpush1.msra.mxu0 %v4770
    %4940 = vmatprep.subr.mxu0 %v4775
    %4941 = vmatpush1.msra.mxu0 %v4774
    %4942 = vmatprep.subr.mxu0 %v4779
    %4943 = vmatpush1.msra.mxu0 %v4778
    %4944 = vmatprep.subr.mxu0 %v4783
    %4945 = vmatpush1.msra.mxu0 %v4782
    %4946 = vmatprep.subr.mxu0 %v4787
    %4947 = vmatpush1.msra.mxu0 %v4786
    %4948 = vmatprep.subr.mxu0 %v4791
    %4949 = vmatpush1.msra.mxu0 %v4790
    %4950 = vmatprep.subr.mxu0 %v4795
    %4951 = vmatpush1.msra.mxu0 %v4794
    %4952 = vmatprep.subr.mxu0 %v4799
    %4953 = vmatpush1.msra.mxu0 %v4798
    %4954 = vmatprep.subr.mxu0 %v4803
    %4955 = vmatpush1.msra.mxu0 %v4802
    %4956 = vmatprep.subr.mxu0 0.0
    %4957 = vmatpush1.msra.mxu0 0.0
    %4958 = vmatprep.subr.mxu0 0.0
    %4959 = vmatpush1.msra.mxu0 0.0
    %4960 = vmatprep.subr.mxu0 0.0
    %4961 = vmatpush1.msra.mxu0 0.0
    %4962 = vmatprep.subr.mxu0 0.0
    %4963 = vmatpush1.msra.mxu0 0.0
    %4964 = vmatprep.subr.mxu0 0.0
    %4965 = vmatpush1.msra.mxu0 0.0
    %4966 = vmatprep.subr.mxu0 0.0
    %4967 = vmatpush1.msra.mxu0 0.0
    %4968 = vmatprep.subr.mxu0 0.0
    %4969 = vmatpush1.msra.mxu0 0.0
    %4970 = vmatprep.subr.mxu0 0.0
    %4971 = vmatpush1.msra.mxu0 0.0
    %4972 = vmatprep.mubr.f32.mxu0 %v4808
    %4973 = vmatmul.mubr.f32.gmra.mrb[0].mxu0 %v4559
    %v4974 = vpop.f32.mrb[0].mxu0
    %v4975 = vadd.f32 %v4886, %v4974
    %v4976 = vpop.f32.mrb[0].mxu0
    %v4977 = vadd.f32 %v4888, %v4976
    %4978 = vmatprep.mubr.f32.mxu0 %v4811
    %4979 = vmatmul.mubr.f32.gmra.mrb[0].mxu0 %v4565
    %v4980 = vpop.f32.mrb[0].mxu0
    %v4981 = vadd.f32 %v4892, %v4980
    %v4982 = vpop.f32.mrb[0].mxu0
    %v4983 = vadd.f32 %v4894, %v4982
    %4984 = vmatprep.mubr.f32.mxu0 %v4814
    %4985 = vmatmul.mubr.f32.gmra.mrb[0].mxu0 %v4571
    %v4986 = vpop.f32.mrb[0].mxu0
    %v4987 = vadd.f32 %v4898, %v4986
    %v4988 = vpop.f32.mrb[0].mxu0
    %v4989 = vadd.f32 %v4900, %v4988
    %4990 = vmatprep.mubr.f32.mxu0 %v4817
    %4991 = vmatmul.mubr.f32.gmra.mrb[0].mxu0 %v4577
    %v4992 = vpop.f32.mrb[0].mxu0
    %v4993 = vadd.f32 %v4904, %v4992
    %v4994 = vpop.f32.mrb[0].mxu0
    %v4995 = vadd.f32 %v4906, %v4994
    %4996 = vdwg.mxu0
    %4997 = vmatprep.subr.mxu0 %v4585
    %4998 = vmatpush1.msra.mxu0 %v4584
    %4999 = vmatprep.subr.mxu0 %v4589
    %5000 = vmatpush1.msra.mxu0 %v4588
    %5001 = vmatprep.subr.mxu0 %v4593
    %5002 = vmatpush1.msra.mxu0 %v4592
    %5003 = vmatprep.subr.mxu0 %v4597
    %5004 = vmatpush1.msra.mxu0 %v4596
    %5005 = vmatprep.subr.mxu0 %v4601
    %5006 = vmatpush1.msra.mxu0 %v4600
    %5007 = vmatprep.subr.mxu0 %v4605
    %5008 = vmatpush1.msra.mxu0 %v4604
    %5009 = vmatprep.subr.mxu0 %v4609
    %5010 = vmatpush1.msra.mxu0 %v4608
    %5011 = vmatprep.subr.mxu0 %v4613
    %5012 = vmatpush1.msra.mxu0 %v4612
    %5013 = vmatprep.subr.mxu0 %v4617
    %5014 = vmatpush1.msra.mxu0 %v4616
    %5015 = vmatprep.subr.mxu0 %v4621
    %5016 = vmatpush1.msra.mxu0 %v4620
    %5017 = vmatprep.subr.mxu0 %v4625
    %5018 = vmatpush1.msra.mxu0 %v4624
    %5019 = vmatprep.subr.mxu0 %v4629
    %5020 = vmatpush1.msra.mxu0 %v4628
    %5021 = vmatprep.subr.mxu0 %v4633
    %5022 = vmatpush1.msra.mxu0 %v4632
    %5023 = vmatprep.subr.mxu0 %v4637
    %5024 = vmatpush1.msra.mxu0 %v4636
    %5025 = vmatprep.subr.mxu0 %v4641
    %5026 = vmatpush1.msra.mxu0 %v4640
    %5027 = vmatprep.subr.mxu0 %v4645
    %5028 = vmatpush1.msra.mxu0 %v4644
    %5029 = vmatprep.subr.mxu0 %v4649
    %5030 = vmatpush1.msra.mxu0 %v4648
    %5031 = vmatprep.subr.mxu0 %v4653
    %5032 = vmatpush1.msra.mxu0 %v4652
    %5033 = vmatprep.subr.mxu0 %v4657
    %5034 = vmatpush1.msra.mxu0 %v4656
    %5035 = vmatprep.subr.mxu0 %v4661
    %5036 = vmatpush1.msra.mxu0 %v4660
    %5037 = vmatprep.subr.mxu0 %v4665
    %5038 = vmatpush1.msra.mxu0 %v4664
    %5039 = vmatprep.subr.mxu0 %v4669
    %5040 = vmatpush1.msra.mxu0 %v4668
    %5041 = vmatprep.subr.mxu0 %v4673
    %5042 = vmatpush1.msra.mxu0 %v4672
    %5043 = vmatprep.subr.mxu0 %v4677
    %5044 = vmatpush1.msra.mxu0 %v4676
    %5045 = vmatprep.subr.mxu0 %v4681
    %5046 = vmatpush1.msra.mxu0 %v4680
    %5047 = vmatprep.subr.mxu0 %v4685
    %5048 = vmatpush1.msra.mxu0 %v4684
    %5049 = vmatprep.subr.mxu0 %v4689
    %5050 = vmatpush1.msra.mxu0 %v4688
    %5051 = vmatprep.subr.mxu0 %v4693
    %5052 = vmatpush1.msra.mxu0 %v4692
    %5053 = vmatprep.subr.mxu0 %v4697
    %5054 = vmatpush1.msra.mxu0 %v4696
    %5055 = vmatprep.subr.mxu0 %v4701
    %5056 = vmatpush1.msra.mxu0 %v4700
    %5057 = vmatprep.subr.mxu0 %v4705
    %5058 = vmatpush1.msra.mxu0 %v4704
    %5059 = vmatprep.subr.mxu0 %v4709
    %5060 = vmatpush1.msra.mxu0 %v4708
    %5061 = vmatprep.mubr.f32.mxu0 %v4472
    %5062 = vmatmul.mubr.f32.gmra.mrb[0].mxu0 %v4470
    %v5063 = vpop.f32.mrb[0].mxu0
    %v5064 = vadd.f32 0.0, %v5063
    %v5065 = vpop.f32.mrb[0].mxu0
    %v5066 = vadd.f32 0.0, %v5065
    %5067 = vmatprep.mubr.f32.mxu0 %v4478
    %5068 = vmatmul.mubr.f32.gmra.mrb[0].mxu0 %v4476
    %v5069 = vpop.f32.mrb[0].mxu0
    %v5070 = vadd.f32 0.0, %v5069
    %v5071 = vpop.f32.mrb[0].mxu0
    %v5072 = vadd.f32 0.0, %v5071
    %5073 = vmatprep.mubr.f32.mxu0 %v4484
    %5074 = vmatmul.mubr.f32.gmra.mrb[0].mxu0 %v4482
    %v5075 = vpop.f32.mrb[0].mxu0
    %v5076 = vadd.f32 0.0, %v5075
    %v5077 = vpop.f32.mrb[0].mxu0
    %v5078 = vadd.f32 0.0, %v5077
    %5079 = vmatprep.mubr.f32.mxu0 %v4490
    %5080 = vmatmul.mubr.f32.gmra.mrb[0].mxu0 %v4488
    %v5081 = vpop.f32.mrb[0].mxu0
    %v5082 = vadd.f32 0.0, %v5081
    %v5083 = vpop.f32.mrb[0].mxu0
    %v5084 = vadd.f32 0.0, %v5083
    %5085 = vdwg.mxu0
    %5086 = vmatprep.subr.mxu0 %v4713
    %5087 = vmatpush1.msra.mxu0 %v4712
    %5088 = vmatprep.subr.mxu0 %v4717
    %5089 = vmatpush1.msra.mxu0 %v4716
    %5090 = vmatprep.subr.mxu0 %v4721
    %5091 = vmatpush1.msra.mxu0 %v4720
    %5092 = vmatprep.subr.mxu0 %v4725
    %5093 = vmatpush1.msra.mxu0 %v4724
    %5094 = vmatprep.subr.mxu0 %v4729
    %5095 = vmatpush1.msra.mxu0 %v4728
    %5096 = vmatprep.subr.mxu0 %v4733
    %5097 = vmatpush1.msra.mxu0 %v4732
    %5098 = vmatprep.subr.mxu0 %v4737
    %5099 = vmatpush1.msra.mxu0 %v4736
    %5100 = vmatprep.subr.mxu0 %v4741
    %5101 = vmatpush1.msra.mxu0 %v4740
    %5102 = vmatprep.subr.mxu0 %v4745
    %5103 = vmatpush1.msra.mxu0 %v4744
    %5104 = vmatprep.subr.mxu0 %v4749
    %5105 = vmatpush1.msra.mxu0 %v4748
    %5106 = vmatprep.subr.mxu0 %v4753
    %5107 = vmatpush1.msra.mxu0 %v4752
    %5108 = vmatprep.subr.mxu0 %v4757
    %5109 = vmatpush1.msra.mxu0 %v4756
    %5110 = vmatprep.subr.mxu0 %v4761
    %5111 = vmatpush1.msra.mxu0 %v4760
    %5112 = vmatprep.subr.mxu0 %v4765
    %5113 = vmatpush1.msra.mxu0 %v4764
    %5114 = vmatprep.subr.mxu0 %v4769
    %5115 = vmatpush1.msra.mxu0 %v4768
    %5116 = vmatprep.subr.mxu0 %v4773
    %5117 = vmatpush1.msra.mxu0 %v4772
    %5118 = vmatprep.subr.mxu0 %v4777
    %5119 = vmatpush1.msra.mxu0 %v4776
    %5120 = vmatprep.subr.mxu0 %v4781
    %5121 = vmatpush1.msra.mxu0 %v4780
    %5122 = vmatprep.subr.mxu0 %v4785
    %5123 = vmatpush1.msra.mxu0 %v4784
    %5124 = vmatprep.subr.mxu0 %v4789
    %5125 = vmatpush1.msra.mxu0 %v4788
    %5126 = vmatprep.subr.mxu0 %v4793
    %5127 = vmatpush1.msra.mxu0 %v4792
    %5128 = vmatprep.subr.mxu0 %v4797
    %5129 = vmatpush1.msra.mxu0 %v4796
    %5130 = vmatprep.subr.mxu0 %v4801
    %5131 = vmatpush1.msra.mxu0 %v4800
    %5132 = vmatprep.subr.mxu0 %v4805
    %5133 = vmatpush1.msra.mxu0 %v4804
    %5134 = vmatprep.subr.mxu0 0.0
    %5135 = vmatpush1.msra.mxu0 0.0
    %5136 = vmatprep.subr.mxu0 0.0
    %5137 = vmatpush1.msra.mxu0 0.0
    %5138 = vmatprep.subr.mxu0 0.0
    %5139 = vmatpush1.msra.mxu0 0.0
    %5140 = vmatprep.subr.mxu0 0.0
    %5141 = vmatpush1.msra.mxu0 0.0
    %5142 = vmatprep.subr.mxu0 0.0
    %5143 = vmatpush1.msra.mxu0 0.0
    %5144 = vmatprep.subr.mxu0 0.0
    %5145 = vmatpush1.msra.mxu0 0.0
    %5146 = vmatprep.subr.mxu0 0.0
    %5147 = vmatpush1.msra.mxu0 0.0
    %5148 = vmatprep.subr.mxu0 0.0
    %5149 = vmatpush1.msra.mxu0 0.0
    %5150 = vmatprep.mubr.f32.mxu0 %v4808
    %5151 = vmatmul.mubr.f32.gmra.mrb[0].mxu0 %v4559
    %v5152 = vpop.f32.mrb[0].mxu0
    %v5153 = vadd.f32 %v5064, %v5152
    %v5154 = vpop.f32.mrb[0].mxu0
    %v5155 = vadd.f32 %v5066, %v5154
    %5156 = vmatprep.mubr.f32.mxu0 %v4811
    %5157 = vmatmul.mubr.f32.gmra.mrb[0].mxu0 %v4565
    %v5158 = vpop.f32.mrb[0].mxu0
    %v5159 = vadd.f32 %v5070, %v5158
    %v5160 = vpop.f32.mrb[0].mxu0
    %v5161 = vadd.f32 %v5072, %v5160
    %5162 = vmatprep.mubr.f32.mxu0 %v4814
    %5163 = vmatmul.mubr.f32.gmra.mrb[0].mxu0 %v4571
    %v5164 = vpop.f32.mrb[0].mxu0
    %v5165 = vadd.f32 %v5076, %v5164
    %v5166 = vpop.f32.mrb[0].mxu0
    %v5167 = vadd.f32 %v5078, %v5166
    %5168 = vmatprep.mubr.f32.mxu0 %v4817
    %5169 = vmatmul.mubr.f32.gmra.mrb[0].mxu0 %v4577
    %v5170 = vpop.f32.mrb[0].mxu0
    %v5171 = vadd.f32 %v5082, %v5170
    %v5172 = vpop.f32.mrb[0].mxu0
    %v5173 = vadd.f32 %v5084, %v5172
    %5174 = vdwg.mxu0
    %v5176 = vsel %vm4806, %v4142, 0
    %v5179 = vsel %vm4806, %v4148, 0
    %v5182 = vsel %vm4806, %v4154, 0
    %v5185 = vsel %vm4806, %v4160, 0
    %5187 = vmatprep.subr.mxu0 %v4163
    %5188 = vmatpush1.msra.mxu0 %v4162
    %5189 = vmatprep.subr.mxu0 %v4167
    %5190 = vmatpush1.msra.mxu0 %v4166
    %5191 = vmatprep.subr.mxu0 %v4171
    %5192 = vmatpush1.msra.mxu0 %v4170
    %5193 = vmatprep.subr.mxu0 %v4175
    %5194 = vmatpush1.msra.mxu0 %v4174
    %5195 = vmatprep.subr.mxu0 %v4179
    %5196 = vmatpush1.msra.mxu0 %v4178
    %5197 = vmatprep.subr.mxu0 %v4183
    %5198 = vmatpush1.msra.mxu0 %v4182
    %5199 = vmatprep.subr.mxu0 %v4187
    %5200 = vmatpush1.msra.mxu0 %v4186
    %5201 = vmatprep.subr.mxu0 %v4191
    %5202 = vmatpush1.msra.mxu0 %v4190
    %5203 = vmatprep.subr.mxu0 %v4195
    %5204 = vmatpush1.msra.mxu0 %v4194
    %5205 = vmatprep.subr.mxu0 %v4199
    %5206 = vmatpush1.msra.mxu0 %v4198
    %5207 = vmatprep.subr.mxu0 %v4203
    %5208 = vmatpush1.msra.mxu0 %v4202
    %5209 = vmatprep.subr.mxu0 %v4207
    %5210 = vmatpush1.msra.mxu0 %v4206
    %5211 = vmatprep.subr.mxu0 %v4211
    %5212 = vmatpush1.msra.mxu0 %v4210
    %5213 = vmatprep.subr.mxu0 %v4215
    %5214 = vmatpush1.msra.mxu0 %v4214
    %5215 = vmatprep.subr.mxu0 %v4219
    %5216 = vmatpush1.msra.mxu0 %v4218
    %5217 = vmatprep.subr.mxu0 %v4223
    %5218 = vmatpush1.msra.mxu0 %v4222
    %5219 = vmatprep.subr.mxu0 %v4227
    %5220 = vmatpush1.msra.mxu0 %v4226
    %5221 = vmatprep.subr.mxu0 %v4231
    %5222 = vmatpush1.msra.mxu0 %v4230
    %5223 = vmatprep.subr.mxu0 %v4235
    %5224 = vmatpush1.msra.mxu0 %v4234
    %5225 = vmatprep.subr.mxu0 %v4239
    %5226 = vmatpush1.msra.mxu0 %v4238
    %5227 = vmatprep.subr.mxu0 %v4243
    %5228 = vmatpush1.msra.mxu0 %v4242
    %5229 = vmatprep.subr.mxu0 %v4247
    %5230 = vmatpush1.msra.mxu0 %v4246
    %5231 = vmatprep.subr.mxu0 %v4251
    %5232 = vmatpush1.msra.mxu0 %v4250
    %5233 = vmatprep.subr.mxu0 %v4255
    %5234 = vmatpush1.msra.mxu0 %v4254
    %5235 = vmatprep.subr.mxu0 %v4259
    %5236 = vmatpush1.msra.mxu0 %v4258
    %5237 = vmatprep.subr.mxu0 %v4263
    %5238 = vmatpush1.msra.mxu0 %v4262
    %5239 = vmatprep.subr.mxu0 %v4267
    %5240 = vmatpush1.msra.mxu0 %v4266
    %5241 = vmatprep.subr.mxu0 %v4271
    %5242 = vmatpush1.msra.mxu0 %v4270
    %5243 = vmatprep.subr.mxu0 %v4275
    %5244 = vmatpush1.msra.mxu0 %v4274
    %5245 = vmatprep.subr.mxu0 %v4279
    %5246 = vmatpush1.msra.mxu0 %v4278
    %5247 = vmatprep.subr.mxu0 %v4283
    %5248 = vmatpush1.msra.mxu0 %v4282
    %5249 = vmatprep.subr.mxu0 %v4287
    %5250 = vmatpush1.msra.mxu0 %v4286
    %5251 = vmatprep.mubr.f32.mxu0 %v4053
    %5252 = vmatmul.mubr.f32.gmra.mrb[0].mxu0 %v4051
    %v5253 = vpop.f32.mrb[0].mxu0
    %v5254 = vadd.f32 %v4975, %v5253
    %v5255 = vpop.f32.mrb[0].mxu0
    %v5256 = vadd.f32 %v4977, %v5255
    %5257 = vmatprep.mubr.f32.mxu0 %v4059
    %5258 = vmatmul.mubr.f32.gmra.mrb[0].mxu0 %v4057
    %v5259 = vpop.f32.mrb[0].mxu0
    %v5260 = vadd.f32 %v4981, %v5259
    %v5261 = vpop.f32.mrb[0].mxu0
    %v5262 = vadd.f32 %v4983, %v5261
    %5263 = vmatprep.mubr.f32.mxu0 %v4065
    %5264 = vmatmul.mubr.f32.gmra.mrb[0].mxu0 %v4063
    %v5265 = vpop.f32.mrb[0].mxu0
    %v5266 = vadd.f32 %v4987, %v5265
    %v5267 = vpop.f32.mrb[0].mxu0
    %v5268 = vadd.f32 %v4989, %v5267
    %5269 = vmatprep.mubr.f32.mxu0 %v4071
    %5270 = vmatmul.mubr.f32.gmra.mrb[0].mxu0 %v4069
    %v5271 = vpop.f32.mrb[0].mxu0
    %v5272 = vadd.f32 %v4993, %v5271
    %v5273 = vpop.f32.mrb[0].mxu0
    %v5274 = vadd.f32 %v4995, %v5273
    %5275 = vdwg.mxu0
    %5276 = vmatprep.subr.mxu0 %v4291
    %5277 = vmatpush1.msra.mxu0 %v4290
    %5278 = vmatprep.subr.mxu0 %v4295
    %5279 = vmatpush1.msra.mxu0 %v4294
    %5280 = vmatprep.subr.mxu0 %v4299
    %5281 = vmatpush1.msra.mxu0 %v4298
    %5282 = vmatprep.subr.mxu0 %v4303
    %5283 = vmatpush1.msra.mxu0 %v4302
    %5284 = vmatprep.subr.mxu0 %v4307
    %5285 = vmatpush1.msra.mxu0 %v4306
    %5286 = vmatprep.subr.mxu0 %v4311
    %5287 = vmatpush1.msra.mxu0 %v4310
    %5288 = vmatprep.subr.mxu0 %v4315
    %5289 = vmatpush1.msra.mxu0 %v4314
    %5290 = vmatprep.subr.mxu0 %v4319
    %5291 = vmatpush1.msra.mxu0 %v4318
    %5292 = vmatprep.subr.mxu0 %v4323
    %5293 = vmatpush1.msra.mxu0 %v4322
    %5294 = vmatprep.subr.mxu0 %v4327
    %5295 = vmatpush1.msra.mxu0 %v4326
    %5296 = vmatprep.subr.mxu0 %v4331
    %5297 = vmatpush1.msra.mxu0 %v4330
    %5298 = vmatprep.subr.mxu0 %v4335
    %5299 = vmatpush1.msra.mxu0 %v4334
    %5300 = vmatprep.subr.mxu0 %v4339
    %5301 = vmatpush1.msra.mxu0 %v4338
    %5302 = vmatprep.subr.mxu0 %v4343
    %5303 = vmatpush1.msra.mxu0 %v4342
    %5304 = vmatprep.subr.mxu0 %v4347
    %5305 = vmatpush1.msra.mxu0 %v4346
    %5306 = vmatprep.subr.mxu0 %v4351
    %5307 = vmatpush1.msra.mxu0 %v4350
    %5308 = vmatprep.subr.mxu0 %v4355
    %5309 = vmatpush1.msra.mxu0 %v4354
    %5310 = vmatprep.subr.mxu0 %v4359
    %5311 = vmatpush1.msra.mxu0 %v4358
    %5312 = vmatprep.subr.mxu0 %v4363
    %5313 = vmatpush1.msra.mxu0 %v4362
    %5314 = vmatprep.subr.mxu0 %v4367
    %5315 = vmatpush1.msra.mxu0 %v4366
    %5316 = vmatprep.subr.mxu0 %v4371
    %5317 = vmatpush1.msra.mxu0 %v4370
    %5318 = vmatprep.subr.mxu0 %v4375
    %5319 = vmatpush1.msra.mxu0 %v4374
    %5320 = vmatprep.subr.mxu0 %v4379
    %5321 = vmatpush1.msra.mxu0 %v4378
    %5322 = vmatprep.subr.mxu0 %v4383
    %5323 = vmatpush1.msra.mxu0 %v4382
    %5324 = vmatprep.subr.mxu0 0.0
    %5325 = vmatpush1.msra.mxu0 0.0
    %5326 = vmatprep.subr.mxu0 0.0
    %5327 = vmatpush1.msra.mxu0 0.0
    %5328 = vmatprep.subr.mxu0 0.0
    %5329 = vmatpush1.msra.mxu0 0.0
    %5330 = vmatprep.subr.mxu0 0.0
    %5331 = vmatpush1.msra.mxu0 0.0
    %5332 = vmatprep.subr.mxu0 0.0
    %5333 = vmatpush1.msra.mxu0 0.0
    %5334 = vmatprep.subr.mxu0 0.0
    %5335 = vmatpush1.msra.mxu0 0.0
    %5336 = vmatprep.subr.mxu0 0.0
    %5337 = vmatpush1.msra.mxu0 0.0
    %5338 = vmatprep.subr.mxu0 0.0
    %5339 = vmatpush1.msra.mxu0 0.0
    %5340 = vmatprep.mubr.f32.mxu0 %v5176
    %5341 = vmatmul.mubr.f32.gmra.mrb[0].mxu0 %v4140
    %v5342 = vpop.f32.mrb[0].mxu0
    %v5343 = vadd.f32 %v5254, %v5342
    %v5344 = vpop.f32.mrb[0].mxu0
    %v5345 = vadd.f32 %v5256, %v5344
    %5346 = vmatprep.mubr.f32.mxu0 %v5179
    %5347 = vmatmul.mubr.f32.gmra.mrb[0].mxu0 %v4146
    %v5348 = vpop.f32.mrb[0].mxu0
    %v5349 = vadd.f32 %v5260, %v5348
    %v5350 = vpop.f32.mrb[0].mxu0
    %v5351 = vadd.f32 %v5262, %v5350
    %5352 = vmatprep.mubr.f32.mxu0 %v5182
    %5353 = vmatmul.mubr.f32.gmra.mrb[0].mxu0 %v4152
    %v5354 = vpop.f32.mrb[0].mxu0
    %v5355 = vadd.f32 %v5266, %v5354
    %v5356 = vpop.f32.mrb[0].mxu0
    %v5357 = vadd.f32 %v5268, %v5356
    %5358 = vmatprep.mubr.f32.mxu0 %v5185
    %5359 = vmatmul.mubr.f32.gmra.mrb[0].mxu0 %v4158
    %v5360 = vpop.f32.mrb[0].mxu0
    %v5361 = vadd.f32 %v5272, %v5360
    %v5362 = vpop.f32.mrb[0].mxu0
    %v5363 = vadd.f32 %v5274, %v5362
    %5364 = vdwg.mxu0
    %5365 = vmatprep.subr.mxu0 %v4165
    %5366 = vmatpush1.msra.mxu0 %v4164
    %5367 = vmatprep.subr.mxu0 %v4169
    %5368 = vmatpush1.msra.mxu0 %v4168
    %5369 = vmatprep.subr.mxu0 %v4173
    %5370 = vmatpush1.msra.mxu0 %v4172
    %5371 = vmatprep.subr.mxu0 %v4177
    %5372 = vmatpush1.msra.mxu0 %v4176
    %5373 = vmatprep.subr.mxu0 %v4181
    %5374 = vmatpush1.msra.mxu0 %v4180
    %5375 = vmatprep.subr.mxu0 %v4185
    %5376 = vmatpush1.msra.mxu0 %v4184
    %5377 = vmatprep.subr.mxu0 %v4189
    %5378 = vmatpush1.msra.mxu0 %v4188
    %5379 = vmatprep.subr.mxu0 %v4193
    %5380 = vmatpush1.msra.mxu0 %v4192
    %5381 = vmatprep.subr.mxu0 %v4197
    %5382 = vmatpush1.msra.mxu0 %v4196
    %5383 = vmatprep.subr.mxu0 %v4201
    %5384 = vmatpush1.msra.mxu0 %v4200
    %5385 = vmatprep.subr.mxu0 %v4205
    %5386 = vmatpush1.msra.mxu0 %v4204
    %5387 = vmatprep.subr.mxu0 %v4209
    %5388 = vmatpush1.msra.mxu0 %v4208
    %5389 = vmatprep.subr.mxu0 %v4213
    %5390 = vmatpush1.msra.mxu0 %v4212
    %5391 = vmatprep.subr.mxu0 %v4217
    %5392 = vmatpush1.msra.mxu0 %v4216
    %5393 = vmatprep.subr.mxu0 %v4221
    %5394 = vmatpush1.msra.mxu0 %v4220
    %5395 = vmatprep.subr.mxu0 %v4225
    %5396 = vmatpush1.msra.mxu0 %v4224
    %5397 = vmatprep.subr.mxu0 %v4229
    %5398 = vmatpush1.msra.mxu0 %v4228
    %5399 = vmatprep.subr.mxu0 %v4233
    %5400 = vmatpush1.msra.mxu0 %v4232
    %5401 = vmatprep.subr.mxu0 %v4237
    %5402 = vmatpush1.msra.mxu0 %v4236
    %5403 = vmatprep.subr.mxu0 %v4241
    %5404 = vmatpush1.msra.mxu0 %v4240
    %5405 = vmatprep.subr.mxu0 %v4245
    %5406 = vmatpush1.msra.mxu0 %v4244
    %5407 = vmatprep.subr.mxu0 %v4249
    %5408 = vmatpush1.msra.mxu0 %v4248
    %5409 = vmatprep.subr.mxu0 %v4253
    %5410 = vmatpush1.msra.mxu0 %v4252
    %5411 = vmatprep.subr.mxu0 %v4257
    %5412 = vmatpush1.msra.mxu0 %v4256
    %5413 = vmatprep.subr.mxu0 %v4261
    %5414 = vmatpush1.msra.mxu0 %v4260
    %5415 = vmatprep.subr.mxu0 %v4265
    %5416 = vmatpush1.msra.mxu0 %v4264
    %5417 = vmatprep.subr.mxu0 %v4269
    %5418 = vmatpush1.msra.mxu0 %v4268
    %5419 = vmatprep.subr.mxu0 %v4273
    %5420 = vmatpush1.msra.mxu0 %v4272
    %5421 = vmatprep.subr.mxu0 %v4277
    %5422 = vmatpush1.msra.mxu0 %v4276
    %5423 = vmatprep.subr.mxu0 %v4281
    %5424 = vmatpush1.msra.mxu0 %v4280
    %5425 = vmatprep.subr.mxu0 %v4285
    %5426 = vmatpush1.msra.mxu0 %v4284
    %5427 = vmatprep.subr.mxu0 %v4289
    %5428 = vmatpush1.msra.mxu0 %v4288
    %5429 = vmatprep.mubr.f32.mxu0 %v4053
    %5430 = vmatmul.mubr.f32.gmra.mrb[0].mxu0 %v4051
    %v5431 = vpop.f32.mrb[0].mxu0
    %v5432 = vadd.f32 %v5153, %v5431
    %v5433 = vpop.f32.mrb[0].mxu0
    %v5434 = vadd.f32 %v5155, %v5433
    %5435 = vmatprep.mubr.f32.mxu0 %v4059
    %5436 = vmatmul.mubr.f32.gmra.mrb[0].mxu0 %v4057
    %v5437 = vpop.f32.mrb[0].mxu0
    %v5438 = vadd.f32 %v5159, %v5437
    %v5439 = vpop.f32.mrb[0].mxu0
    %v5440 = vadd.f32 %v5161, %v5439
    %5441 = vmatprep.mubr.f32.mxu0 %v4065
    %5442 = vmatmul.mubr.f32.gmra.mrb[0].mxu0 %v4063
    %v5443 = vpop.f32.mrb[0].mxu0
    %v5444 = vadd.f32 %v5165, %v5443
    %v5445 = vpop.f32.mrb[0].mxu0
    %v5446 = vadd.f32 %v5167, %v5445
    %5447 = vmatprep.mubr.f32.mxu0 %v4071
    %5448 = vmatmul.mubr.f32.gmra.mrb[0].mxu0 %v4069
    %v5449 = vpop.f32.mrb[0].mxu0
    %v5450 = vadd.f32 %v5171, %v5449
    %v5451 = vpop.f32.mrb[0].mxu0
    %v5452 = vadd.f32 %v5173, %v5451
    %5453 = vdwg.mxu0
    %5454 = vmatprep.subr.mxu0 %v4293
    %5455 = vmatpush1.msra.mxu0 %v4292
    %5456 = vmatprep.subr.mxu0 %v4297
    %5457 = vmatpush1.msra.mxu0 %v4296
    %5458 = vmatprep.subr.mxu0 %v4301
    %5459 = vmatpush1.msra.mxu0 %v4300
    %5460 = vmatprep.subr.mxu0 %v4305
    %5461 = vmatpush1.msra.mxu0 %v4304
    %5462 = vmatprep.subr.mxu0 %v4309
    %5463 = vmatpush1.msra.mxu0 %v4308
    %5464 = vmatprep.subr.mxu0 %v4313
    %5465 = vmatpush1.msra.mxu0 %v4312
    %5466 = vmatprep.subr.mxu0 %v4317
    %5467 = vmatpush1.msra.mxu0 %v4316
    %5468 = vmatprep.subr.mxu0 %v4321
    %5469 = vmatpush1.msra.mxu0 %v4320
    %5470 = vmatprep.subr.mxu0 %v4325
    %5471 = vmatpush1.msra.mxu0 %v4324
    %5472 = vmatprep.subr.mxu0 %v4329
    %5473 = vmatpush1.msra.mxu0 %v4328
    %5474 = vmatprep.subr.mxu0 %v4333
    %5475 = vmatpush1.msra.mxu0 %v4332
    %5476 = vmatprep.subr.mxu0 %v4337
    %5477 = vmatpush1.msra.mxu0 %v4336
    %5478 = vmatprep.subr.mxu0 %v4341
    %5479 = vmatpush1.msra.mxu0 %v4340
    %5480 = vmatprep.subr.mxu0 %v4345
    %5481 = vmatpush1.msra.mxu0 %v4344
    %5482 = vmatprep.subr.mxu0 %v4349
    %5483 = vmatpush1.msra.mxu0 %v4348
    %5484 = vmatprep.subr.mxu0 %v4353
    %5485 = vmatpush1.msra.mxu0 %v4352
    %5486 = vmatprep.subr.mxu0 %v4357
    %5487 = vmatpush1.msra.mxu0 %v4356
    %5488 = vmatprep.subr.mxu0 %v4361
    %5489 = vmatpush1.msra.mxu0 %v4360
    %5490 = vmatprep.subr.mxu0 %v4365
    %5491 = vmatpush1.msra.mxu0 %v4364
    %5492 = vmatprep.subr.mxu0 %v4369
    %5493 = vmatpush1.msra.mxu0 %v4368
    %5494 = vmatprep.subr.mxu0 %v4373
    %5495 = vmatpush1.msra.mxu0 %v4372
    %5496 = vmatprep.subr.mxu0 %v4377
    %5497 = vmatpush1.msra.mxu0 %v4376
    %5498 = vmatprep.subr.mxu0 %v4381
    %5499 = vmatpush1.msra.mxu0 %v4380
    %5500 = vmatprep.subr.mxu0 %v4385
    %5501 = vmatpush1.msra.mxu0 %v4384
    %5502 = vmatprep.subr.mxu0 0.0
    %5503 = vmatpush1.msra.mxu0 0.0
    %5504 = vmatprep.subr.mxu0 0.0
    %5505 = vmatpush1.msra.mxu0 0.0
    %5506 = vmatprep.subr.mxu0 0.0
    %5507 = vmatpush1.msra.mxu0 0.0
    %5508 = vmatprep.subr.mxu0 0.0
    %5509 = vmatpush1.msra.mxu0 0.0
    %5510 = vmatprep.subr.mxu0 0.0
    %5511 = vmatpush1.msra.mxu0 0.0
    %5512 = vmatprep.subr.mxu0 0.0
    %5513 = vmatpush1.msra.mxu0 0.0
    %5514 = vmatprep.subr.mxu0 0.0
    %5515 = vmatpush1.msra.mxu0 0.0
    %5516 = vmatprep.subr.mxu0 0.0
    %5517 = vmatpush1.msra.mxu0 0.0
    %5518 = vmatprep.mubr.f32.mxu0 %v5176
    %5519 = vmatmul.mubr.f32.gmra.mrb[0].mxu0 %v4140
    %v5520 = vpop.f32.mrb[0].mxu0
    %v5521 = vadd.f32 %v5432, %v5520
    %v5522 = vpop.f32.mrb[0].mxu0
    %v5523 = vadd.f32 %v5434, %v5522
    %5524 = vmatprep.mubr.f32.mxu0 %v5179
    %5525 = vmatmul.mubr.f32.gmra.mrb[0].mxu0 %v4146
    %v5526 = vpop.f32.mrb[0].mxu0
    %v5527 = vadd.f32 %v5438, %v5526
    %v5528 = vpop.f32.mrb[0].mxu0
    %v5529 = vadd.f32 %v5440, %v5528
    %5530 = vmatprep.mubr.f32.mxu0 %v5182
    %5531 = vmatmul.mubr.f32.gmra.mrb[0].mxu0 %v4152
    %v5532 = vpop.f32.mrb[0].mxu0
    %v5533 = vadd.f32 %v5444, %v5532
    %v5534 = vpop.f32.mrb[0].mxu0
    %v5535 = vadd.f32 %v5446, %v5534
    %5536 = vmatprep.mubr.f32.mxu0 %v5185
    %5537 = vmatmul.mubr.f32.gmra.mrb[0].mxu0 %v4158
    %v5538 = vpop.f32.mrb[0].mxu0
    %v5539 = vadd.f32 %v5450, %v5538
    %v5540 = vpop.f32.mrb[0].mxu0
    %v5541 = vadd.f32 %v5452, %v5540
    %5542 = vdwg.mxu0
    %s5543 = scalar_lea.vmem %s15, 64
    %v5544 = vld [vmem:[%s5543] sm:$0xff]
    %v5545 = vld [vmem:[%s5543 + $0x8] sm:$0xff]
    %v5546 = vld [vmem:[%s5543 + $0x10] sm:$0xff]
    %v5547 = vld [vmem:[%s5543 + $0x18] sm:$0xf]
    %v5549 = vsel %vm3958, %v5544, 0
    %v5552 = vsel %vm3958, %v5545, 0
    %v5555 = vsel %vm3958, %v5546, 0
    %v5558 = vsel %vm3958, %v5547, 0
    %5560 = vmatprep.subr.mxu0 %v3947
    %5561 = vmatpush1.msra.mxu0 %v3946
    %5562 = vmatprep.subr.mxu0 %v3976
    %5563 = vmatpush1.msra.mxu0 %v3973
    %5564 = vmatprep.subr.mxu0 0.0
    %5565 = vmatpush1.msra.mxu0 0.0
    %5566 = vmatprep.subr.mxu0 0.0
    %5567 = vmatpush1.msra.mxu0 0.0
    %5568 = vmatprep.subr.mxu0 0.0
    %5569 = vmatpush1.msra.mxu0 0.0
    %5570 = vmatprep.subr.mxu0 0.0
    %5571 = vmatpush1.msra.mxu0 0.0
    %5572 = vmatprep.subr.mxu0 0.0
    %5573 = vmatpush1.msra.mxu0 0.0
    %5574 = vmatprep.subr.mxu0 0.0
    %5575 = vmatpush1.msra.mxu0 0.0
    %5576 = vmatprep.subr.mxu0 0.0
    %5577 = vmatpush1.msra.mxu0 0.0
    %5578 = vmatprep.subr.mxu0 0.0
    %5579 = vmatpush1.msra.mxu0 0.0
    %5580 = vmatprep.subr.mxu0 0.0
    %5581 = vmatpush1.msra.mxu0 0.0
    %5582 = vmatprep.subr.mxu0 0.0
    %5583 = vmatpush1.msra.mxu0 0.0
    %5584 = vmatprep.subr.mxu0 0.0
    %5585 = vmatpush1.msra.mxu0 0.0
    %5586 = vmatprep.subr.mxu0 0.0
    %5587 = vmatpush1.msra.mxu0 0.0
    %5588 = vmatprep.subr.mxu0 0.0
    %5589 = vmatpush1.msra.mxu0 0.0
    %5590 = vmatprep.subr.mxu0 0.0
    %5591 = vmatpush1.msra.mxu0 0.0
    %5592 = vmatprep.subr.mxu0 0.0
    %5593 = vmatpush1.msra.mxu0 0.0
    %5594 = vmatprep.subr.mxu0 0.0
    %5595 = vmatpush1.msra.mxu0 0.0
    %5596 = vmatprep.subr.mxu0 0.0
    %5597 = vmatpush1.msra.mxu0 0.0
    %5598 = vmatprep.subr.mxu0 0.0
    %5599 = vmatpush1.msra.mxu0 0.0
    %5600 = vmatprep.subr.mxu0 0.0
    %5601 = vmatpush1.msra.mxu0 0.0
    %5602 = vmatprep.subr.mxu0 0.0
    %5603 = vmatpush1.msra.mxu0 0.0
    %5604 = vmatprep.subr.mxu0 0.0
    %5605 = vmatpush1.msra.mxu0 0.0
    %5606 = vmatprep.subr.mxu0 0.0
    %5607 = vmatpush1.msra.mxu0 0.0
    %5608 = vmatprep.subr.mxu0 0.0
    %5609 = vmatpush1.msra.mxu0 0.0
    %5610 = vmatprep.subr.mxu0 0.0
    %5611 = vmatpush1.msra.mxu0 0.0
    %5612 = vmatprep.subr.mxu0 0.0
    %5613 = vmatpush1.msra.mxu0 0.0
    %5614 = vmatprep.subr.mxu0 0.0
    %5615 = vmatpush1.msra.mxu0 0.0
    %5616 = vmatprep.subr.mxu0 0.0
    %5617 = vmatpush1.msra.mxu0 0.0
    %5618 = vmatprep.subr.mxu0 0.0
    %5619 = vmatpush1.msra.mxu0 0.0
    %5620 = vmatprep.subr.mxu0 0.0
    %5621 = vmatpush1.msra.mxu0 0.0
    %5622 = vmatprep.subr.mxu0 0.0
    %5623 = vmatpush1.msra.mxu0 0.0
    %5624 = vmatprep.mubr.f32.mxu0 0.0
    %5625 = vmatmul.mubr.f32.gmra.mrb[0].mxu0 %v5549
    %v5626 = vpop.f32.mrb[0].mxu0
    %v5627 = vadd.f32 0.0, %v5626
    %v5628 = vpop.f32.mrb[0].mxu0
    %v5629 = vadd.f32 0.0, %v5628
    %5630 = vmatprep.mubr.f32.mxu0 0.0
    %5631 = vmatmul.mubr.f32.gmra.mrb[0].mxu0 %v5552
    %v5632 = vpop.f32.mrb[0].mxu0
    %v5633 = vadd.f32 0.0, %v5632
    %v5634 = vpop.f32.mrb[0].mxu0
    %v5635 = vadd.f32 0.0, %v5634
    %5636 = vmatprep.mubr.f32.mxu0 0.0
    %5637 = vmatmul.mubr.f32.gmra.mrb[0].mxu0 %v5555
    %v5638 = vpop.f32.mrb[0].mxu0
    %v5639 = vadd.f32 0.0, %v5638
    %v5640 = vpop.f32.mrb[0].mxu0
    %v5641 = vadd.f32 0.0, %v5640
    %5642 = vmatprep.mubr.f32.mxu0 0.0
    %5643 = vmatmul.mubr.f32.gmra.mrb[0].mxu0 %v5558
    %v5644 = vpop.f32.mrb[0].mxu0
    %v5645 = vadd.f32 0.0, %v5644
    %v5646 = vpop.f32.mrb[0].mxu0
    %v5647 = vadd.f32 0.0, %v5646
    %5648 = vdwg.mxu0
    %5649 = vmatprep.subr.mxu0 %v3949
    %5650 = vmatpush1.msra.mxu0 %v3948
    %5651 = vmatprep.subr.mxu0 %v3982
    %5652 = vmatpush1.msra.mxu0 %v3979
    %5653 = vmatprep.subr.mxu0 0.0
    %5654 = vmatpush1.msra.mxu0 0.0
    %5655 = vmatprep.subr.mxu0 0.0
    %5656 = vmatpush1.msra.mxu0 0.0
    %5657 = vmatprep.subr.mxu0 0.0
    %5658 = vmatpush1.msra.mxu0 0.0
    %5659 = vmatprep.subr.mxu0 0.0
    %5660 = vmatpush1.msra.mxu0 0.0
    %5661 = vmatprep.subr.mxu0 0.0
    %5662 = vmatpush1.msra.mxu0 0.0
    %5663 = vmatprep.subr.mxu0 0.0
    %5664 = vmatpush1.msra.mxu0 0.0
    %5665 = vmatprep.subr.mxu0 0.0
    %5666 = vmatpush1.msra.mxu0 0.0
    %5667 = vmatprep.subr.mxu0 0.0
    %5668 = vmatpush1.msra.mxu0 0.0
    %5669 = vmatprep.subr.mxu0 0.0
    %5670 = vmatpush1.msra.mxu0 0.0
    %5671 = vmatprep.subr.mxu0 0.0
    %5672 = vmatpush1.msra.mxu0 0.0
    %5673 = vmatprep.subr.mxu0 0.0
    %5674 = vmatpush1.msra.mxu0 0.0
    %5675 = vmatprep.subr.mxu0 0.0
    %5676 = vmatpush1.msra.mxu0 0.0
    %5677 = vmatprep.subr.mxu0 0.0
    %5678 = vmatpush1.msra.mxu0 0.0
    %5679 = vmatprep.subr.mxu0 0.0
    %5680 = vmatpush1.msra.mxu0 0.0
    %5681 = vmatprep.subr.mxu0 0.0
    %5682 = vmatpush1.msra.mxu0 0.0
    %5683 = vmatprep.subr.mxu0 0.0
    %5684 = vmatpush1.msra.mxu0 0.0
    %5685 = vmatprep.subr.mxu0 0.0
    %5686 = vmatpush1.msra.mxu0 0.0
    %5687 = vmatprep.subr.mxu0 0.0
    %5688 = vmatpush1.msra.mxu0 0.0
    %5689 = vmatprep.subr.mxu0 0.0
    %5690 = vmatpush1.msra.mxu0 0.0
    %5691 = vmatprep.subr.mxu0 0.0
    %5692 = vmatpush1.msra.mxu0 0.0
    %5693 = vmatprep.subr.mxu0 0.0
    %5694 = vmatpush1.msra.mxu0 0.0
    %5695 = vmatprep.subr.mxu0 0.0
    %5696 = vmatpush1.msra.mxu0 0.0
    %5697 = vmatprep.subr.mxu0 0.0
    %5698 = vmatpush1.msra.mxu0 0.0
    %5699 = vmatprep.subr.mxu0 0.0
    %5700 = vmatpush1.msra.mxu0 0.0
    %5701 = vmatprep.subr.mxu0 0.0
    %5702 = vmatpush1.msra.mxu0 0.0
    %5703 = vmatprep.subr.mxu0 0.0
    %5704 = vmatpush1.msra.mxu0 0.0
    %5705 = vmatprep.subr.mxu0 0.0
    %5706 = vmatpush1.msra.mxu0 0.0
    %5707 = vmatprep.subr.mxu0 0.0
    %5708 = vmatpush1.msra.mxu0 0.0
    %5709 = vmatprep.subr.mxu0 0.0
    %5710 = vmatpush1.msra.mxu0 0.0
    %5711 = vmatprep.subr.mxu0 0.0
    %5712 = vmatpush1.msra.mxu0 0.0
    %5713 = vmatprep.mubr.f32.mxu0 0.0
    %5714 = vmatmul.mubr.f32.gmra.mrb[0].mxu0 %v5549
    %v5715 = vpop.f32.mrb[0].mxu0
    %v5716 = vadd.f32 0.0, %v5715
    %v5717 = vpop.f32.mrb[0].mxu0
    %v5718 = vadd.f32 0.0, %v5717
    %5719 = vmatprep.mubr.f32.mxu0 0.0
    %5720 = vmatmul.mubr.f32.gmra.mrb[0].mxu0 %v5552
    %v5721 = vpop.f32.mrb[0].mxu0
    %v5722 = vadd.f32 0.0, %v5721
    %v5723 = vpop.f32.mrb[0].mxu0
    %v5724 = vadd.f32 0.0, %v5723
    %5725 = vmatprep.mubr.f32.mxu0 0.0
    %5726 = vmatmul.mubr.f32.gmra.mrb[0].mxu0 %v5555
    %v5727 = vpop.f32.mrb[0].mxu0
    %v5728 = vadd.f32 0.0, %v5727
    %v5729 = vpop.f32.mrb[0].mxu0
    %v5730 = vadd.f32 0.0, %v5729
    %5731 = vmatprep.mubr.f32.mxu0 0.0
    %5732 = vmatmul.mubr.f32.gmra.mrb[0].mxu0 %v5558
    %v5733 = vpop.f32.mrb[0].mxu0
    %v5734 = vadd.f32 0.0, %v5733
    %v5735 = vpop.f32.mrb[0].mxu0
    %v5736 = vadd.f32 0.0, %v5735
    %5737 = vdwg.mxu0
    %s5738 = scalar_lea.vmem %s16, 3584
    %v5739 = vld [vmem:[%s5738] sm:$0xff]
    %v5740 = vld [vmem:[%s5738 + $0x8] sm:$0xff]
    %v5741 = vld [vmem:[%s5738 + $0x10] sm:$0xff]
    %v5742 = vld [vmem:[%s5738 + $0x18] sm:$0xff]
    %v5743 = vld [vmem:[%s5738 + $0x20] sm:$0xff]
    %v5744 = vld [vmem:[%s5738 + $0x28] sm:$0xff]
    %v5745 = vld [vmem:[%s5738 + $0x30] sm:$0xff]
    %v5746 = vld [vmem:[%s5738 + $0x38] sm:$0xff]
    %v5747 = vld [vmem:[%s5738 + $0x40] sm:$0xff]
    %v5748 = vld [vmem:[%s5738 + $0x48] sm:$0xff]
    %v5749 = vld [vmem:[%s5738 + $0x50] sm:$0xff]
    %v5750 = vld [vmem:[%s5738 + $0x58] sm:$0xff]
    %v5751 = vld [vmem:[%s5738 + $0x60] sm:$0xff]
    %v5752 = vld [vmem:[%s5738 + $0x68] sm:$0xff]
    %v5753 = vld [vmem:[%s5738 + $0x70] sm:$0xff]
    %v5754 = vld [vmem:[%s5738 + $0x78] sm:$0xff]
    %v5755 = vld [vmem:[%s5738 + $0x80] sm:$0xff]
    %v5756 = vld [vmem:[%s5738 + $0x88] sm:$0xff]
    %v5757 = vld [vmem:[%s5738 + $0x90] sm:$0xff]
    %v5758 = vld [vmem:[%s5738 + $0x98] sm:$0xff]
    %v5759 = vld [vmem:[%s5738 + $0xa0] sm:$0xff]
    %v5760 = vld [vmem:[%s5738 + $0xa8] sm:$0xff]
    %v5761 = vld [vmem:[%s5738 + $0xb0] sm:$0xff]
    %v5762 = vld [vmem:[%s5738 + $0xb8] sm:$0xff]
    %v5763 = vld [vmem:[%s5738 + $0xc0] sm:$0xff]
    %v5764 = vld [vmem:[%s5738 + $0xc8] sm:$0xff]
    %v5765 = vld [vmem:[%s5738 + $0xd0] sm:$0xff]
    %v5766 = vld [vmem:[%s5738 + $0xd8] sm:$0xff]
    %v5767 = vld [vmem:[%s5738 + $0xe0] sm:$0xff]
    %v5768 = vld [vmem:[%s5738 + $0xe8] sm:$0xff]
    %v5769 = vld [vmem:[%s5738 + $0xf0] sm:$0xff]
    %v5770 = vld [vmem:[%s5738 + $0xf8] sm:$0xff]
    %v5771 = vld [vmem:[%s5738 + $0x100] sm:$0xff]
    %v5772 = vld [vmem:[%s5738 + $0x108] sm:$0xff]
    %v5773 = vld [vmem:[%s5738 + $0x110] sm:$0xff]
    %v5774 = vld [vmem:[%s5738 + $0x118] sm:$0xff]
    %v5775 = vld [vmem:[%s5738 + $0x120] sm:$0xff]
    %v5776 = vld [vmem:[%s5738 + $0x128] sm:$0xff]
    %v5777 = vld [vmem:[%s5738 + $0x130] sm:$0xff]
    %v5778 = vld [vmem:[%s5738 + $0x138] sm:$0xff]
    %v5779 = vld [vmem:[%s5738 + $0x140] sm:$0xff]
    %v5780 = vld [vmem:[%s5738 + $0x148] sm:$0xff]
    %v5781 = vld [vmem:[%s5738 + $0x150] sm:$0xff]
    %v5782 = vld [vmem:[%s5738 + $0x158] sm:$0xff]
    %v5783 = vld [vmem:[%s5738 + $0x160] sm:$0xff]
    %v5784 = vld [vmem:[%s5738 + $0x168] sm:$0xff]
    %v5785 = vld [vmem:[%s5738 + $0x170] sm:$0xff]
    %v5786 = vld [vmem:[%s5738 + $0x178] sm:$0xff]
    %v5787 = vld [vmem:[%s5738 + $0x180] sm:$0xff]
    %v5788 = vld [vmem:[%s5738 + $0x188] sm:$0xff]
    %v5789 = vld [vmem:[%s5738 + $0x190] sm:$0xff]
    %v5790 = vld [vmem:[%s5738 + $0x198] sm:$0xff]
    %v5791 = vld [vmem:[%s5738 + $0x1a0] sm:$0xff]
    %v5792 = vld [vmem:[%s5738 + $0x1a8] sm:$0xff]
    %v5793 = vld [vmem:[%s5738 + $0x1b0] sm:$0xff]
    %v5794 = vld [vmem:[%s5738 + $0x1b8] sm:$0xff]
    %v5795 = vld [vmem:[%s5738 + $0x1c0] sm:$0xff]
    %v5796 = vld [vmem:[%s5738 + $0x1c8] sm:$0xff]
    %v5797 = vld [vmem:[%s5738 + $0x1d0] sm:$0xff]
    %v5798 = vld [vmem:[%s5738 + $0x1d8] sm:$0xff]
    %v5799 = vld [vmem:[%s5738 + $0x1e0] sm:$0xff]
    %v5800 = vld [vmem:[%s5738 + $0x1e8] sm:$0xff]
    %v5801 = vld [vmem:[%s5738 + $0x1f0] sm:$0xff]
    %v5802 = vld [vmem:[%s5738 + $0x1f8] sm:$0xff]
    %v5803 = vld [vmem:[%s5738 + $0x200] sm:$0xff]
    %v5804 = vld [vmem:[%s5738 + $0x208] sm:$0xff]
    %v5805 = vld [vmem:[%s5738 + $0x210] sm:$0xff]
    %v5806 = vld [vmem:[%s5738 + $0x218] sm:$0xff]
    %v5807 = vld [vmem:[%s5738 + $0x220] sm:$0xff]
    %v5808 = vld [vmem:[%s5738 + $0x228] sm:$0xff]
    %v5809 = vld [vmem:[%s5738 + $0x230] sm:$0xff]
    %v5810 = vld [vmem:[%s5738 + $0x238] sm:$0xff]
    %v5811 = vld [vmem:[%s5738 + $0x240] sm:$0xff]
    %v5812 = vld [vmem:[%s5738 + $0x248] sm:$0xff]
    %v5813 = vld [vmem:[%s5738 + $0x250] sm:$0xff]
    %v5814 = vld [vmem:[%s5738 + $0x258] sm:$0xff]
    %v5815 = vld [vmem:[%s5738 + $0x260] sm:$0xff]
    %v5816 = vld [vmem:[%s5738 + $0x268] sm:$0xff]
    %v5817 = vld [vmem:[%s5738 + $0x270] sm:$0xff]
    %v5818 = vld [vmem:[%s5738 + $0x278] sm:$0xff]
    %v5819 = vld [vmem:[%s5738 + $0x280] sm:$0xff]
    %v5820 = vld [vmem:[%s5738 + $0x288] sm:$0xff]
    %v5821 = vld [vmem:[%s5738 + $0x290] sm:$0xff]
    %v5822 = vld [vmem:[%s5738 + $0x298] sm:$0xff]
    %v5823 = vld [vmem:[%s5738 + $0x2a0] sm:$0xff]
    %v5824 = vld [vmem:[%s5738 + $0x2a8] sm:$0xff]
    %v5825 = vld [vmem:[%s5738 + $0x2b0] sm:$0xff]
    %v5826 = vld [vmem:[%s5738 + $0x2b8] sm:$0xff]
    %v5827 = vld [vmem:[%s5738 + $0x2c0] sm:$0xff]
    %v5828 = vld [vmem:[%s5738 + $0x2c8] sm:$0xff]
    %v5829 = vld [vmem:[%s5738 + $0x2d0] sm:$0xff]
    %v5830 = vld [vmem:[%s5738 + $0x2d8] sm:$0xff]
    %v5831 = vld [vmem:[%s5738 + $0x2e0] sm:$0xff]
    %v5832 = vld [vmem:[%s5738 + $0x2e8] sm:$0xff]
    %v5833 = vld [vmem:[%s5738 + $0x2f0] sm:$0xff]
    %v5834 = vld [vmem:[%s5738 + $0x2f8] sm:$0xff]
    %v5835 = vld [vmem:[%s5738 + $0x300] sm:$0xff]
    %v5836 = vld [vmem:[%s5738 + $0x308] sm:$0xff]
    %v5837 = vld [vmem:[%s5738 + $0x310] sm:$0xff]
    %v5838 = vld [vmem:[%s5738 + $0x318] sm:$0xff]
    %v5839 = vld [vmem:[%s5738 + $0x320] sm:$0xff]
    %v5840 = vld [vmem:[%s5738 + $0x328] sm:$0xff]
    %v5841 = vld [vmem:[%s5738 + $0x330] sm:$0xff]
    %v5842 = vld [vmem:[%s5738 + $0x338] sm:$0xff]
    %v5843 = vld [vmem:[%s5738 + $0x340] sm:$0xff]
    %v5844 = vld [vmem:[%s5738 + $0x348] sm:$0xff]
    %v5845 = vld [vmem:[%s5738 + $0x350] sm:$0xff]
    %v5846 = vld [vmem:[%s5738 + $0x358] sm:$0xff]
    %v5847 = vld [vmem:[%s5738 + $0x360] sm:$0xff]
    %v5848 = vld [vmem:[%s5738 + $0x368] sm:$0xff]
    %v5849 = vld [vmem:[%s5738 + $0x370] sm:$0xff]
    %v5850 = vld [vmem:[%s5738 + $0x378] sm:$0xff]
    %v5851 = vld [vmem:[%s5738 + $0x380] sm:$0xff]
    %v5852 = vld [vmem:[%s5738 + $0x388] sm:$0xff]
    %v5853 = vld [vmem:[%s5738 + $0x390] sm:$0xff]
    %v5854 = vld [vmem:[%s5738 + $0x398] sm:$0xff]
    %v5855 = vld [vmem:[%s5738 + $0x3a0] sm:$0xff]
    %v5856 = vld [vmem:[%s5738 + $0x3a8] sm:$0xff]
    %v5857 = vld [vmem:[%s5738 + $0x3b0] sm:$0xff]
    %v5858 = vld [vmem:[%s5738 + $0x3b8] sm:$0xff]
    %v5859 = vld [vmem:[%s5738 + $0x3c0] sm:$0xff]
    %v5860 = vld [vmem:[%s5738 + $0x3c8] sm:$0xff]
    %v5861 = vld [vmem:[%s5738 + $0x3d0] sm:$0xff]
    %v5862 = vld [vmem:[%s5738 + $0x3d8] sm:$0xff]
    %v5863 = vld [vmem:[%s5738 + $0x3e0] sm:$0xff]
    %v5864 = vld [vmem:[%s5738 + $0x3e8] sm:$0xff]
    %v5865 = vld [vmem:[%s5738 + $0x3f0] sm:$0xff]
    %v5866 = vld [vmem:[%s5738 + $0x3f8] sm:$0xff]
    %v5867 = vld [vmem:[%s5738 + $0x400] sm:$0xff]
    %v5868 = vld [vmem:[%s5738 + $0x408] sm:$0xff]
    %v5869 = vld [vmem:[%s5738 + $0x410] sm:$0xff]
    %v5870 = vld [vmem:[%s5738 + $0x418] sm:$0xff]
    %v5871 = vld [vmem:[%s5738 + $0x420] sm:$0xff]
    %v5872 = vld [vmem:[%s5738 + $0x428] sm:$0xff]
    %v5873 = vld [vmem:[%s5738 + $0x430] sm:$0xff]
    %v5874 = vld [vmem:[%s5738 + $0x438] sm:$0xff]
    %v5875 = vld [vmem:[%s5738 + $0x440] sm:$0xff]
    %v5876 = vld [vmem:[%s5738 + $0x448] sm:$0xff]
    %v5877 = vld [vmem:[%s5738 + $0x450] sm:$0xff]
    %v5878 = vld [vmem:[%s5738 + $0x458] sm:$0xff]
    %v5879 = vld [vmem:[%s5738 + $0x460] sm:$0xff]
    %v5880 = vld [vmem:[%s5738 + $0x468] sm:$0xff]
    %v5881 = vld [vmem:[%s5738 + $0x470] sm:$0xff]
    %v5882 = vld [vmem:[%s5738 + $0x478] sm:$0xff]
    %v5883 = vld [vmem:[%s5738 + $0x480] sm:$0xff]
    %v5884 = vld [vmem:[%s5738 + $0x488] sm:$0xff]
    %v5885 = vld [vmem:[%s5738 + $0x490] sm:$0xff]
    %v5886 = vld [vmem:[%s5738 + $0x498] sm:$0xff]
    %v5887 = vld [vmem:[%s5738 + $0x4a0] sm:$0xff]
    %v5888 = vld [vmem:[%s5738 + $0x4a8] sm:$0xff]
    %v5889 = vld [vmem:[%s5738 + $0x4b0] sm:$0xff]
    %v5890 = vld [vmem:[%s5738 + $0x4b8] sm:$0xff]
    %v5891 = vld [vmem:[%s5738 + $0x4c0] sm:$0xff]
    %v5892 = vld [vmem:[%s5738 + $0x4c8] sm:$0xff]
    %v5893 = vld [vmem:[%s5738 + $0x4d0] sm:$0xff]
    %v5894 = vld [vmem:[%s5738 + $0x4d8] sm:$0xff]
    %v5895 = vld [vmem:[%s5738 + $0x4e0] sm:$0xff]
    %v5896 = vld [vmem:[%s5738 + $0x4e8] sm:$0xff]
    %v5897 = vld [vmem:[%s5738 + $0x4f0] sm:$0xff]
    %v5898 = vld [vmem:[%s5738 + $0x4f8] sm:$0xff]
    %v5899 = vld [vmem:[%s5738 + $0x500] sm:$0xff]
    %v5900 = vld [vmem:[%s5738 + $0x508] sm:$0xff]
    %v5901 = vld [vmem:[%s5738 + $0x510] sm:$0xff]
    %v5902 = vld [vmem:[%s5738 + $0x518] sm:$0xff]
    %v5903 = vld [vmem:[%s5738 + $0x520] sm:$0xff]
    %v5904 = vld [vmem:[%s5738 + $0x528] sm:$0xff]
    %v5905 = vld [vmem:[%s5738 + $0x530] sm:$0xff]
    %v5906 = vld [vmem:[%s5738 + $0x538] sm:$0xff]
    %v5907 = vld [vmem:[%s5738 + $0x540] sm:$0xff]
    %v5908 = vld [vmem:[%s5738 + $0x548] sm:$0xff]
    %v5909 = vld [vmem:[%s5738 + $0x550] sm:$0xff]
    %v5910 = vld [vmem:[%s5738 + $0x558] sm:$0xff]
    %v5911 = vld [vmem:[%s5738 + $0x560] sm:$0xff]
    %v5912 = vld [vmem:[%s5738 + $0x568] sm:$0xff]
    %v5913 = vld [vmem:[%s5738 + $0x570] sm:$0xff]
    %v5914 = vld [vmem:[%s5738 + $0x578] sm:$0xff]
    %v5915 = vld [vmem:[%s5738 + $0x580] sm:$0xff]
    %v5916 = vld [vmem:[%s5738 + $0x588] sm:$0xff]
    %v5917 = vld [vmem:[%s5738 + $0x590] sm:$0xff]
    %v5918 = vld [vmem:[%s5738 + $0x598] sm:$0xff]
    %v5919 = vld [vmem:[%s5738 + $0x5a0] sm:$0xff]
    %v5920 = vld [vmem:[%s5738 + $0x5a8] sm:$0xff]
    %v5921 = vld [vmem:[%s5738 + $0x5b0] sm:$0xff]
    %v5922 = vld [vmem:[%s5738 + $0x5b8] sm:$0xff]
    %v5923 = vld [vmem:[%s5738 + $0x5c0] sm:$0xff]
    %v5924 = vld [vmem:[%s5738 + $0x5c8] sm:$0xff]
    %v5925 = vld [vmem:[%s5738 + $0x5d0] sm:$0xff]
    %v5926 = vld [vmem:[%s5738 + $0x5d8] sm:$0xff]
    %v5927 = vld [vmem:[%s5738 + $0x5e0] sm:$0xff]
    %v5928 = vld [vmem:[%s5738 + $0x5e8] sm:$0xff]
    %v5929 = vld [vmem:[%s5738 + $0x5f0] sm:$0xff]
    %v5930 = vld [vmem:[%s5738 + $0x5f8] sm:$0xff]
    %v5931 = vld [vmem:[%s5738 + $0x600] sm:$0xff]
    %v5932 = vld [vmem:[%s5738 + $0x608] sm:$0xff]
    %v5933 = vld [vmem:[%s5738 + $0x610] sm:$0xff]
    %v5934 = vld [vmem:[%s5738 + $0x618] sm:$0xff]
    %v5935 = vld [vmem:[%s5738 + $0x620] sm:$0xff]
    %v5936 = vld [vmem:[%s5738 + $0x628] sm:$0xff]
    %v5937 = vld [vmem:[%s5738 + $0x630] sm:$0xff]
    %v5938 = vld [vmem:[%s5738 + $0x638] sm:$0xff]
    %v5939 = vld [vmem:[%s5738 + $0x640] sm:$0xff]
    %v5940 = vld [vmem:[%s5738 + $0x648] sm:$0xff]
    %v5941 = vld [vmem:[%s5738 + $0x650] sm:$0xff]
    %v5942 = vld [vmem:[%s5738 + $0x658] sm:$0xff]
    %v5943 = vld [vmem:[%s5738 + $0x660] sm:$0xff]
    %v5944 = vld [vmem:[%s5738 + $0x668] sm:$0xff]
    %v5945 = vld [vmem:[%s5738 + $0x670] sm:$0xff]
    %v5946 = vld [vmem:[%s5738 + $0x678] sm:$0xff]
    %v5947 = vld [vmem:[%s5738 + $0x680] sm:$0xff]
    %v5948 = vld [vmem:[%s5738 + $0x688] sm:$0xff]
    %v5949 = vld [vmem:[%s5738 + $0x690] sm:$0xff]
    %v5950 = vld [vmem:[%s5738 + $0x698] sm:$0xff]
    %v5951 = vld [vmem:[%s5738 + $0x6a0] sm:$0xff]
    %v5952 = vld [vmem:[%s5738 + $0x6a8] sm:$0xff]
    %v5953 = vld [vmem:[%s5738 + $0x6b0] sm:$0xff]
    %v5954 = vld [vmem:[%s5738 + $0x6b8] sm:$0xff]
    %v5955 = vld [vmem:[%s5738 + $0x6c0] sm:$0xff]
    %v5956 = vld [vmem:[%s5738 + $0x6c8] sm:$0xff]
    %v5957 = vld [vmem:[%s5738 + $0x6d0] sm:$0xff]
    %v5958 = vld [vmem:[%s5738 + $0x6d8] sm:$0xff]
    %v5959 = vld [vmem:[%s5738 + $0x6e0] sm:$0xff]
    %v5960 = vld [vmem:[%s5738 + $0x6e8] sm:$0xff]
    %v5961 = vld [vmem:[%s5738 + $0x6f0] sm:$0xff]
    %v5962 = vld [vmem:[%s5738 + $0x6f8] sm:$0xff]
    %v5964 = vsel %vm4806, %v5718, 0
    %v5967 = vsel %vm4806, %v5724, 0
    %v5970 = vsel %vm4806, %v5730, 0
    %v5973 = vsel %vm4806, %v5736, 0
    %5975 = vmatprep.subr.mxu0 %v5740
    %5976 = vmatpush1.msra.mxu0 %v5739
    %5977 = vmatprep.subr.mxu0 %v5744
    %5978 = vmatpush1.msra.mxu0 %v5743
    %5979 = vmatprep.subr.mxu0 %v5748
    %5980 = vmatpush1.msra.mxu0 %v5747
    %5981 = vmatprep.subr.mxu0 %v5752
    %5982 = vmatpush1.msra.mxu0 %v5751
    %5983 = vmatprep.subr.mxu0 %v5756
    %5984 = vmatpush1.msra.mxu0 %v5755
    %5985 = vmatprep.subr.mxu0 %v5760
    %5986 = vmatpush1.msra.mxu0 %v5759
    %5987 = vmatprep.subr.mxu0 %v5764
    %5988 = vmatpush1.msra.mxu0 %v5763
    %5989 = vmatprep.subr.mxu0 %v5768
    %5990 = vmatpush1.msra.mxu0 %v5767
    %5991 = vmatprep.subr.mxu0 %v5772
    %5992 = vmatpush1.msra.mxu0 %v5771
    %5993 = vmatprep.subr.mxu0 %v5776
    %5994 = vmatpush1.msra.mxu0 %v5775
    %5995 = vmatprep.subr.mxu0 %v5780
    %5996 = vmatpush1.msra.mxu0 %v5779
    %5997 = vmatprep.subr.mxu0 %v5784
    %5998 = vmatpush1.msra.mxu0 %v5783
    %5999 = vmatprep.subr.mxu0 %v5788
    %6000 = vmatpush1.msra.mxu0 %v5787
    %6001 = vmatprep.subr.mxu0 %v5792
    %6002 = vmatpush1.msra.mxu0 %v5791
    %6003 = vmatprep.subr.mxu0 %v5796
    %6004 = vmatpush1.msra.mxu0 %v5795
    %6005 = vmatprep.subr.mxu0 %v5800
    %6006 = vmatpush1.msra.mxu0 %v5799
    %6007 = vmatprep.subr.mxu0 %v5804
    %6008 = vmatpush1.msra.mxu0 %v5803
    %6009 = vmatprep.subr.mxu0 %v5808
    %6010 = vmatpush1.msra.mxu0 %v5807
    %6011 = vmatprep.subr.mxu0 %v5812
    %6012 = vmatpush1.msra.mxu0 %v5811
    %6013 = vmatprep.subr.mxu0 %v5816
    %6014 = vmatpush1.msra.mxu0 %v5815
    %6015 = vmatprep.subr.mxu0 %v5820
    %6016 = vmatpush1.msra.mxu0 %v5819
    %6017 = vmatprep.subr.mxu0 %v5824
    %6018 = vmatpush1.msra.mxu0 %v5823
    %6019 = vmatprep.subr.mxu0 %v5828
    %6020 = vmatpush1.msra.mxu0 %v5827
    %6021 = vmatprep.subr.mxu0 %v5832
    %6022 = vmatpush1.msra.mxu0 %v5831
    %6023 = vmatprep.subr.mxu0 %v5836
    %6024 = vmatpush1.msra.mxu0 %v5835
    %6025 = vmatprep.subr.mxu0 %v5840
    %6026 = vmatpush1.msra.mxu0 %v5839
    %6027 = vmatprep.subr.mxu0 %v5844
    %6028 = vmatpush1.msra.mxu0 %v5843
    %6029 = vmatprep.subr.mxu0 %v5848
    %6030 = vmatpush1.msra.mxu0 %v5847
    %6031 = vmatprep.subr.mxu0 %v5852
    %6032 = vmatpush1.msra.mxu0 %v5851
    %6033 = vmatprep.subr.mxu0 %v5856
    %6034 = vmatpush1.msra.mxu0 %v5855
    %6035 = vmatprep.subr.mxu0 %v5860
    %6036 = vmatpush1.msra.mxu0 %v5859
    %6037 = vmatprep.subr.mxu0 %v5864
    %6038 = vmatpush1.msra.mxu0 %v5863
    %6039 = vmatprep.mubr.f32.mxu0 %v5629
    %6040 = vmatmul.mubr.f32.gmra.mrb[0].mxu0 %v5627
    %v6041 = vpop.f32.mrb[0].mxu0
    %v6042 = vadd.f32 0.0, %v6041
    %v6043 = vpop.f32.mrb[0].mxu0
    %v6044 = vadd.f32 0.0, %v6043
    %6045 = vmatprep.mubr.f32.mxu0 %v5635
    %6046 = vmatmul.mubr.f32.gmra.mrb[0].mxu0 %v5633
    %v6047 = vpop.f32.mrb[0].mxu0
    %v6048 = vadd.f32 0.0, %v6047
    %v6049 = vpop.f32.mrb[0].mxu0
    %v6050 = vadd.f32 0.0, %v6049
    %6051 = vmatprep.mubr.f32.mxu0 %v5641
    %6052 = vmatmul.mubr.f32.gmra.mrb[0].mxu0 %v5639
    %v6053 = vpop.f32.mrb[0].mxu0
    %v6054 = vadd.f32 0.0, %v6053
    %v6055 = vpop.f32.mrb[0].mxu0
    %v6056 = vadd.f32 0.0, %v6055
    %6057 = vmatprep.mubr.f32.mxu0 %v5647
    %6058 = vmatmul.mubr.f32.gmra.mrb[0].mxu0 %v5645
    %v6059 = vpop.f32.mrb[0].mxu0
    %v6060 = vadd.f32 0.0, %v6059
    %v6061 = vpop.f32.mrb[0].mxu0
    %v6062 = vadd.f32 0.0, %v6061
    %6063 = vdwg.mxu0
    %6064 = vmatprep.subr.mxu0 %v5868
    %6065 = vmatpush1.msra.mxu0 %v5867
    %6066 = vmatprep.subr.mxu0 %v5872
    %6067 = vmatpush1.msra.mxu0 %v5871
    %6068 = vmatprep.subr.mxu0 %v5876
    %6069 = vmatpush1.msra.mxu0 %v5875
    %6070 = vmatprep.subr.mxu0 %v5880
    %6071 = vmatpush1.msra.mxu0 %v5879
    %6072 = vmatprep.subr.mxu0 %v5884
    %6073 = vmatpush1.msra.mxu0 %v5883
    %6074 = vmatprep.subr.mxu0 %v5888
    %6075 = vmatpush1.msra.mxu0 %v5887
    %6076 = vmatprep.subr.mxu0 %v5892
    %6077 = vmatpush1.msra.mxu0 %v5891
    %6078 = vmatprep.subr.mxu0 %v5896
    %6079 = vmatpush1.msra.mxu0 %v5895
    %6080 = vmatprep.subr.mxu0 %v5900
    %6081 = vmatpush1.msra.mxu0 %v5899
    %6082 = vmatprep.subr.mxu0 %v5904
    %6083 = vmatpush1.msra.mxu0 %v5903
    %6084 = vmatprep.subr.mxu0 %v5908
    %6085 = vmatpush1.msra.mxu0 %v5907
    %6086 = vmatprep.subr.mxu0 %v5912
    %6087 = vmatpush1.msra.mxu0 %v5911
    %6088 = vmatprep.subr.mxu0 %v5916
    %6089 = vmatpush1.msra.mxu0 %v5915
    %6090 = vmatprep.subr.mxu0 %v5920
    %6091 = vmatpush1.msra.mxu0 %v5919
    %6092 = vmatprep.subr.mxu0 %v5924
    %6093 = vmatpush1.msra.mxu0 %v5923
    %6094 = vmatprep.subr.mxu0 %v5928
    %6095 = vmatpush1.msra.mxu0 %v5927
    %6096 = vmatprep.subr.mxu0 %v5932
    %6097 = vmatpush1.msra.mxu0 %v5931
    %6098 = vmatprep.subr.mxu0 %v5936
    %6099 = vmatpush1.msra.mxu0 %v5935
    %6100 = vmatprep.subr.mxu0 %v5940
    %6101 = vmatpush1.msra.mxu0 %v5939
    %6102 = vmatprep.subr.mxu0 %v5944
    %6103 = vmatpush1.msra.mxu0 %v5943
    %6104 = vmatprep.subr.mxu0 %v5948
    %6105 = vmatpush1.msra.mxu0 %v5947
    %6106 = vmatprep.subr.mxu0 %v5952
    %6107 = vmatpush1.msra.mxu0 %v5951
    %6108 = vmatprep.subr.mxu0 %v5956
    %6109 = vmatpush1.msra.mxu0 %v5955
    %6110 = vmatprep.subr.mxu0 %v5960
    %6111 = vmatpush1.msra.mxu0 %v5959
    %6112 = vmatprep.subr.mxu0 0.0
    %6113 = vmatpush1.msra.mxu0 0.0
    %6114 = vmatprep.subr.mxu0 0.0
    %6115 = vmatpush1.msra.mxu0 0.0
    %6116 = vmatprep.subr.mxu0 0.0
    %6117 = vmatpush1.msra.mxu0 0.0
    %6118 = vmatprep.subr.mxu0 0.0
    %6119 = vmatpush1.msra.mxu0 0.0
    %6120 = vmatprep.subr.mxu0 0.0
    %6121 = vmatpush1.msra.mxu0 0.0
    %6122 = vmatprep.subr.mxu0 0.0
    %6123 = vmatpush1.msra.mxu0 0.0
    %6124 = vmatprep.subr.mxu0 0.0
    %6125 = vmatpush1.msra.mxu0 0.0
    %6126 = vmatprep.subr.mxu0 0.0
    %6127 = vmatpush1.msra.mxu0 0.0
    %6128 = vmatprep.mubr.f32.mxu0 %v5964
    %6129 = vmatmul.mubr.f32.gmra.mrb[0].mxu0 %v5716
    %v6130 = vpop.f32.mrb[0].mxu0
    %v6131 = vadd.f32 %v6042, %v6130
    %v6132 = vpop.f32.mrb[0].mxu0
    %v6133 = vadd.f32 %v6044, %v6132
    %6134 = vmatprep.mubr.f32.mxu0 %v5967
    %6135 = vmatmul.mubr.f32.gmra.mrb[0].mxu0 %v5722
    %v6136 = vpop.f32.mrb[0].mxu0
    %v6137 = vadd.f32 %v6048, %v6136
    %v6138 = vpop.f32.mrb[0].mxu0
    %v6139 = vadd.f32 %v6050, %v6138
    %6140 = vmatprep.mubr.f32.mxu0 %v5970
    %6141 = vmatmul.mubr.f32.gmra.mrb[0].mxu0 %v5728
    %v6142 = vpop.f32.mrb[0].mxu0
    %v6143 = vadd.f32 %v6054, %v6142
    %v6144 = vpop.f32.mrb[0].mxu0
    %v6145 = vadd.f32 %v6056, %v6144
    %6146 = vmatprep.mubr.f32.mxu0 %v5973
    %6147 = vmatmul.mubr.f32.gmra.mrb[0].mxu0 %v5734
    %v6148 = vpop.f32.mrb[0].mxu0
    %v6149 = vadd.f32 %v6060, %v6148
    %v6150 = vpop.f32.mrb[0].mxu0
    %v6151 = vadd.f32 %v6062, %v6150
    %6152 = vdwg.mxu0
    %6153 = vmatprep.subr.mxu0 %v5742
    %6154 = vmatpush1.msra.mxu0 %v5741
    %6155 = vmatprep.subr.mxu0 %v5746
    %6156 = vmatpush1.msra.mxu0 %v5745
    %6157 = vmatprep.subr.mxu0 %v5750
    %6158 = vmatpush1.msra.mxu0 %v5749
    %6159 = vmatprep.subr.mxu0 %v5754
    %6160 = vmatpush1.msra.mxu0 %v5753
    %6161 = vmatprep.subr.mxu0 %v5758
    %6162 = vmatpush1.msra.mxu0 %v5757
    %6163 = vmatprep.subr.mxu0 %v5762
    %6164 = vmatpush1.msra.mxu0 %v5761
    %6165 = vmatprep.subr.mxu0 %v5766
    %6166 = vmatpush1.msra.mxu0 %v5765
    %6167 = vmatprep.subr.mxu0 %v5770
    %6168 = vmatpush1.msra.mxu0 %v5769
    %6169 = vmatprep.subr.mxu0 %v5774
    %6170 = vmatpush1.msra.mxu0 %v5773
    %6171 = vmatprep.subr.mxu0 %v5778
    %6172 = vmatpush1.msra.mxu0 %v5777
    %6173 = vmatprep.subr.mxu0 %v5782
    %6174 = vmatpush1.msra.mxu0 %v5781
    %6175 = vmatprep.subr.mxu0 %v5786
    %6176 = vmatpush1.msra.mxu0 %v5785
    %6177 = vmatprep.subr.mxu0 %v5790
    %6178 = vmatpush1.msra.mxu0 %v5789
    %6179 = vmatprep.subr.mxu0 %v5794
    %6180 = vmatpush1.msra.mxu0 %v5793
    %6181 = vmatprep.subr.mxu0 %v5798
    %6182 = vmatpush1.msra.mxu0 %v5797
    %6183 = vmatprep.subr.mxu0 %v5802
    %6184 = vmatpush1.msra.mxu0 %v5801
    %6185 = vmatprep.subr.mxu0 %v5806
    %6186 = vmatpush1.msra.mxu0 %v5805
    %6187 = vmatprep.subr.mxu0 %v5810
    %6188 = vmatpush1.msra.mxu0 %v5809
    %6189 = vmatprep.subr.mxu0 %v5814
    %6190 = vmatpush1.msra.mxu0 %v5813
    %6191 = vmatprep.subr.mxu0 %v5818
    %6192 = vmatpush1.msra.mxu0 %v5817
    %6193 = vmatprep.subr.mxu0 %v5822
    %6194 = vmatpush1.msra.mxu0 %v5821
    %6195 = vmatprep.subr.mxu0 %v5826
    %6196 = vmatpush1.msra.mxu0 %v5825
    %6197 = vmatprep.subr.mxu0 %v5830
    %6198 = vmatpush1.msra.mxu0 %v5829
    %6199 = vmatprep.subr.mxu0 %v5834
    %6200 = vmatpush1.msra.mxu0 %v5833
    %6201 = vmatprep.subr.mxu0 %v5838
    %6202 = vmatpush1.msra.mxu0 %v5837
    %6203 = vmatprep.subr.mxu0 %v5842
    %6204 = vmatpush1.msra.mxu0 %v5841
    %6205 = vmatprep.subr.mxu0 %v5846
    %6206 = vmatpush1.msra.mxu0 %v5845
    %6207 = vmatprep.subr.mxu0 %v5850
    %6208 = vmatpush1.msra.mxu0 %v5849
    %6209 = vmatprep.subr.mxu0 %v5854
    %6210 = vmatpush1.msra.mxu0 %v5853
    %6211 = vmatprep.subr.mxu0 %v5858
    %6212 = vmatpush1.msra.mxu0 %v5857
    %6213 = vmatprep.subr.mxu0 %v5862
    %6214 = vmatpush1.msra.mxu0 %v5861
    %6215 = vmatprep.subr.mxu0 %v5866
    %6216 = vmatpush1.msra.mxu0 %v5865
    %6217 = vmatprep.mubr.f32.mxu0 %v5629
    %6218 = vmatmul.mubr.f32.gmra.mrb[0].mxu0 %v5627
    %v6219 = vpop.f32.mrb[0].mxu0
    %v6220 = vadd.f32 0.0, %v6219
    %v6221 = vpop.f32.mrb[0].mxu0
    %v6222 = vadd.f32 0.0, %v6221
    %6223 = vmatprep.mubr.f32.mxu0 %v5635
    %6224 = vmatmul.mubr.f32.gmra.mrb[0].mxu0 %v5633
    %v6225 = vpop.f32.mrb[0].mxu0
    %v6226 = vadd.f32 0.0, %v6225
    %v6227 = vpop.f32.mrb[0].mxu0
    %v6228 = vadd.f32 0.0, %v6227
    %6229 = vmatprep.mubr.f32.mxu0 %v5641
    %6230 = vmatmul.mubr.f32.gmra.mrb[0].mxu0 %v5639
    %v6231 = vpop.f32.mrb[0].mxu0
    %v6232 = vadd.f32 0.0, %v6231
    %v6233 = vpop.f32.mrb[0].mxu0
    %v6234 = vadd.f32 0.0, %v6233
    %6235 = vmatprep.mubr.f32.mxu0 %v5647
    %6236 = vmatmul.mubr.f32.gmra.mrb[0].mxu0 %v5645
    %v6237 = vpop.f32.mrb[0].mxu0
    %v6238 = vadd.f32 0.0, %v6237
    %v6239 = vpop.f32.mrb[0].mxu0
    %v6240 = vadd.f32 0.0, %v6239
    %6241 = vdwg.mxu0
    %6242 = vmatprep.subr.mxu0 %v5870
    %6243 = vmatpush1.msra.mxu0 %v5869
    %6244 = vmatprep.subr.mxu0 %v5874
    %6245 = vmatpush1.msra.mxu0 %v5873
    %6246 = vmatprep.subr.mxu0 %v5878
    %6247 = vmatpush1.msra.mxu0 %v5877
    %6248 = vmatprep.subr.mxu0 %v5882
    %6249 = vmatpush1.msra.mxu0 %v5881
    %6250 = vmatprep.subr.mxu0 %v5886
    %6251 = vmatpush1.msra.mxu0 %v5885
    %6252 = vmatprep.subr.mxu0 %v5890
    %6253 = vmatpush1.msra.mxu0 %v5889
    %6254 = vmatprep.subr.mxu0 %v5894
    %6255 = vmatpush1.msra.mxu0 %v5893
    %6256 = vmatprep.subr.mxu0 %v5898
    %6257 = vmatpush1.msra.mxu0 %v5897
    %6258 = vmatprep.subr.mxu0 %v5902
    %6259 = vmatpush1.msra.mxu0 %v5901
    %6260 = vmatprep.subr.mxu0 %v5906
    %6261 = vmatpush1.msra.mxu0 %v5905
    %6262 = vmatprep.subr.mxu0 %v5910
    %6263 = vmatpush1.msra.mxu0 %v5909
    %6264 = vmatprep.subr.mxu0 %v5914
    %6265 = vmatpush1.msra.mxu0 %v5913
    %6266 = vmatprep.subr.mxu0 %v5918
    %6267 = vmatpush1.msra.mxu0 %v5917
    %6268 = vmatprep.subr.mxu0 %v5922
    %6269 = vmatpush1.msra.mxu0 %v5921
    %6270 = vmatprep.subr.mxu0 %v5926
    %6271 = vmatpush1.msra.mxu0 %v5925
    %6272 = vmatprep.subr.mxu0 %v5930
    %6273 = vmatpush1.msra.mxu0 %v5929
    %6274 = vmatprep.subr.mxu0 %v5934
    %6275 = vmatpush1.msra.mxu0 %v5933
    %6276 = vmatprep.subr.mxu0 %v5938
    %6277 = vmatpush1.msra.mxu0 %v5937
    %6278 = vmatprep.subr.mxu0 %v5942
    %6279 = vmatpush1.msra.mxu0 %v5941
    %6280 = vmatprep.subr.mxu0 %v5946
    %6281 = vmatpush1.msra.mxu0 %v5945
    %6282 = vmatprep.subr.mxu0 %v5950
    %6283 = vmatpush1.msra.mxu0 %v5949
    %6284 = vmatprep.subr.mxu0 %v5954
    %6285 = vmatpush1.msra.mxu0 %v5953
    %6286 = vmatprep.subr.mxu0 %v5958
    %6287 = vmatpush1.msra.mxu0 %v5957
    %6288 = vmatprep.subr.mxu0 %v5962
    %6289 = vmatpush1.msra.mxu0 %v5961
    %6290 = vmatprep.subr.mxu0 0.0
    %6291 = vmatpush1.msra.mxu0 0.0
    %6292 = vmatprep.subr.mxu0 0.0
    %6293 = vmatpush1.msra.mxu0 0.0
    %6294 = vmatprep.subr.mxu0 0.0
    %6295 = vmatpush1.msra.mxu0 0.0
    %6296 = vmatprep.subr.mxu0 0.0
    %6297 = vmatpush1.msra.mxu0 0.0
    %6298 = vmatprep.subr.mxu0 0.0
    %6299 = vmatpush1.msra.mxu0 0.0
    %6300 = vmatprep.subr.mxu0 0.0
    %6301 = vmatpush1.msra.mxu0 0.0
    %6302 = vmatprep.subr.mxu0 0.0
    %6303 = vmatpush1.msra.mxu0 0.0
    %6304 = vmatprep.subr.mxu0 0.0
    %6305 = vmatpush1.msra.mxu0 0.0
    %6306 = vmatprep.mubr.f32.mxu0 %v5964
    %6307 = vmatmul.mubr.f32.gmra.mrb[0].mxu0 %v5716
    %v6308 = vpop.f32.mrb[0].mxu0
    %v6309 = vadd.f32 %v6220, %v6308
    %v6310 = vpop.f32.mrb[0].mxu0
    %v6311 = vadd.f32 %v6222, %v6310
    %6312 = vmatprep.mubr.f32.mxu0 %v5967
    %6313 = vmatmul.mubr.f32.gmra.mrb[0].mxu0 %v5722
    %v6314 = vpop.f32.mrb[0].mxu0
    %v6315 = vadd.f32 %v6226, %v6314
    %v6316 = vpop.f32.mrb[0].mxu0
    %v6317 = vadd.f32 %v6228, %v6316
    %6318 = vmatprep.mubr.f32.mxu0 %v5970
    %6319 = vmatmul.mubr.f32.gmra.mrb[0].mxu0 %v5728
    %v6320 = vpop.f32.mrb[0].mxu0
    %v6321 = vadd.f32 %v6232, %v6320
    %v6322 = vpop.f32.mrb[0].mxu0
    %v6323 = vadd.f32 %v6234, %v6322
    %6324 = vmatprep.mubr.f32.mxu0 %v5973
    %6325 = vmatmul.mubr.f32.gmra.mrb[0].mxu0 %v5734
    %v6326 = vpop.f32.mrb[0].mxu0
    %v6327 = vadd.f32 %v6238, %v6326
    %v6328 = vpop.f32.mrb[0].mxu0
    %v6329 = vadd.f32 %v6240, %v6328
    %6330 = vdwg.mxu0
    %v6331 = vadd.f32 %v5343, %v6131
    %v6332 = vadd.f32 %v5345, %v6133
    %v6333 = vadd.f32 %v5521, %v6309
    %v6334 = vadd.f32 %v5523, %v6311
    %v6335 = vadd.f32 %v5349, %v6137
    %v6336 = vadd.f32 %v5351, %v6139
    %v6337 = vadd.f32 %v5527, %v6315
    %v6338 = vadd.f32 %v5529, %v6317
    %v6339 = vadd.f32 %v5355, %v6143
    %v6340 = vadd.f32 %v5357, %v6145
    %v6341 = vadd.f32 %v5533, %v6321
    %v6342 = vadd.f32 %v5535, %v6323
    %v6343 = vadd.f32 %v5361, %v6149
    %v6344 = vadd.f32 %v5363, %v6151
    %v6345 = vadd.f32 %v5539, %v6327
    %v6346 = vadd.f32 %v5541, %v6329
    %v6347 = vld [vmem:[%s17] sm:$0xf]
    %v6349 = vlaneseq
    %v6350 = vshrl.u32 %v6349, 7
    %v6351 = vsub.s32 0, %v6350
    %v6352 = vrot.slane %v6347, %v6351
    %v6353 = vlaneseq
    %v6354 = vshrl.u32 %v6353, 7
    %v6355 = vsub.s32 1, %v6354
    %v6356 = vrot.slane %v6347, %v6355
    %v6357 = vlaneseq
    %v6358 = vshrl.u32 %v6357, 7
    %v6359 = vsub.s32 2, %v6358
    %v6360 = vrot.slane %v6347, %v6359
    %v6361 = vlaneseq
    %v6362 = vshrl.u32 %v6361, 7
    %v6363 = vsub.s32 3, %v6362
    %v6364 = vrot.slane %v6347, %v6363
    %v6369 = vadd.f32 %v6331, %v6352
    %v6370 = vadd.f32 %v6332, %v6356
    %v6371 = vadd.f32 %v6333, %v6360
    %v6372 = vadd.f32 %v6334, %v6364
    %v6373 = vadd.f32 %v6335, %v6352
    %v6374 = vadd.f32 %v6336, %v6356
    %v6375 = vadd.f32 %v6337, %v6360
    %v6376 = vadd.f32 %v6338, %v6364
    %v6377 = vadd.f32 %v6339, %v6352
    %v6378 = vadd.f32 %v6340, %v6356
    %v6379 = vadd.f32 %v6341, %v6360
    %v6380 = vadd.f32 %v6342, %v6364
    %v6381 = vadd.f32 %v6343, %v6352
    %v6382 = vadd.f32 %v6344, %v6356
    %v6383 = vadd.f32 %v6345, %v6360
    %v6384 = vadd.f32 %v6346, %v6364
    %v6385 = vmax.f32 %v6369, 0.0
    %v6386 = vmax.f32 %v6370, 0.0
    %v6387 = vmax.f32 %v6371, 0.0
    %v6388 = vmax.f32 %v6372, 0.0
    %v6389 = vmax.f32 %v6373, 0.0
    %v6390 = vmax.f32 %v6374, 0.0
    %v6391 = vmax.f32 %v6375, 0.0
    %v6392 = vmax.f32 %v6376, 0.0
    %v6393 = vmax.f32 %v6377, 0.0
    %v6394 = vmax.f32 %v6378, 0.0
    %v6395 = vmax.f32 %v6379, 0.0
    %v6396 = vmax.f32 %v6380, 0.0
    %v6397 = vmax.f32 %v6381, 0.0
    %v6398 = vmax.f32 %v6382, 0.0
    %v6399 = vmax.f32 %v6383, 0.0
    %v6400 = vmax.f32 %v6384, 0.0
    %v6401 = vld [vmem:[%s18] sm:$0xff]
    %v6402 = vld [vmem:[%s18 + $0x8] sm:$0xff]
    %v6403 = vld [vmem:[%s18 + $0x10] sm:$0xff]
    %v6404 = vld [vmem:[%s18 + $0x18] sm:$0xff]
    %v6405 = vld [vmem:[%s18 + $0x20] sm:$0xff]
    %v6406 = vld [vmem:[%s18 + $0x28] sm:$0xff]
    %v6407 = vld [vmem:[%s18 + $0x30] sm:$0xff]
    %vm6408 = vcmask 228352
    %v6410 = vsel %vm6408, %v6401, 0
    %v6413 = vsel %vm6408, %v6402, 0
    %v6416 = vsel %vm6408, %v6403, 0
    %v6419 = vsel %vm6408, %v6404, 0
    %v6422 = vsel %vm6408, %v6405, 0
    %v6425 = vsel %vm6408, %v6406, 0
    %v6428 = vsel %vm6408, %v6407, 0
    %v6431 = vsel %vm194, %v6397, 0
    %v6434 = vsel %vm194, %v6398, 0
    %v6437 = vsel %vm194, %v6399, 0
    %v6440 = vsel %vm194, %v6400, 0
    %6442 = vmatprep.subr.mxu0 %v6386
    %6443 = vmatpush1.msra.mxu0 %v6385
    %6444 = vmatprep.subr.mxu0 %v6390
    %6445 = vmatpush1.msra.mxu0 %v6389
    %6446 = vmatprep.subr.mxu0 %v6394
    %6447 = vmatpush1.msra.mxu0 %v6393
    %6448 = vmatprep.subr.mxu0 %v6434
    %6449 = vmatpush1.msra.mxu0 %v6431
    %6450 = vmatprep.subr.mxu0 0.0
    %6451 = vmatpush1.msra.mxu0 0.0
    %6452 = vmatprep.subr.mxu0 0.0
    %6453 = vmatpush1.msra.mxu0 0.0
    %6454 = vmatprep.subr.mxu0 0.0
    %6455 = vmatpush1.msra.mxu0 0.0
    %6456 = vmatprep.subr.mxu0 0.0
    %6457 = vmatpush1.msra.mxu0 0.0
    %6458 = vmatprep.subr.mxu0 0.0
    %6459 = vmatpush1.msra.mxu0 0.0
    %6460 = vmatprep.subr.mxu0 0.0
    %6461 = vmatpush1.msra.mxu0 0.0
    %6462 = vmatprep.subr.mxu0 0.0
    %6463 = vmatpush1.msra.mxu0 0.0
    %6464 = vmatprep.subr.mxu0 0.0
    %6465 = vmatpush1.msra.mxu0 0.0
    %6466 = vmatprep.subr.mxu0 0.0
    %6467 = vmatpush1.msra.mxu0 0.0
    %6468 = vmatprep.subr.mxu0 0.0
    %6469 = vmatpush1.msra.mxu0 0.0
    %6470 = vmatprep.subr.mxu0 0.0
    %6471 = vmatpush1.msra.mxu0 0.0
    %6472 = vmatprep.subr.mxu0 0.0
    %6473 = vmatpush1.msra.mxu0 0.0
    %6474 = vmatprep.subr.mxu0 0.0
    %6475 = vmatpush1.msra.mxu0 0.0
    %6476 = vmatprep.subr.mxu0 0.0
    %6477 = vmatpush1.msra.mxu0 0.0
    %6478 = vmatprep.subr.mxu0 0.0
    %6479 = vmatpush1.msra.mxu0 0.0
    %6480 = vmatprep.subr.mxu0 0.0
    %6481 = vmatpush1.msra.mxu0 0.0
    %6482 = vmatprep.subr.mxu0 0.0
    %6483 = vmatpush1.msra.mxu0 0.0
    %6484 = vmatprep.subr.mxu0 0.0
    %6485 = vmatpush1.msra.mxu0 0.0
    %6486 = vmatprep.subr.mxu0 0.0
    %6487 = vmatpush1.msra.mxu0 0.0
    %6488 = vmatprep.subr.mxu0 0.0
    %6489 = vmatpush1.msra.mxu0 0.0
    %6490 = vmatprep.subr.mxu0 0.0
    %6491 = vmatpush1.msra.mxu0 0.0
    %6492 = vmatprep.subr.mxu0 0.0
    %6493 = vmatpush1.msra.mxu0 0.0
    %6494 = vmatprep.subr.mxu0 0.0
    %6495 = vmatpush1.msra.mxu0 0.0
    %6496 = vmatprep.subr.mxu0 0.0
    %6497 = vmatpush1.msra.mxu0 0.0
    %6498 = vmatprep.subr.mxu0 0.0
    %6499 = vmatpush1.msra.mxu0 0.0
    %6500 = vmatprep.subr.mxu0 0.0
    %6501 = vmatpush1.msra.mxu0 0.0
    %6502 = vmatprep.subr.mxu0 0.0
    %6503 = vmatpush1.msra.mxu0 0.0
    %6504 = vmatprep.subr.mxu0 0.0
    %6505 = vmatpush1.msra.mxu0 0.0
    %6506 = vmatprep.mubr.f32.mxu0 0.0
    %6507 = vmatmul.mubr.f32.gmra.mrb[0].mxu0 %v6410
    %v6508 = vpop.f32.mrb[0].mxu0
    %v6509 = vadd.f32 0.0, %v6508
    %v6510 = vpop.f32.mrb[0].mxu0
    %v6511 = vadd.f32 0.0, %v6510
    %6512 = vmatprep.mubr.f32.mxu0 0.0
    %6513 = vmatmul.mubr.f32.gmra.mrb[0].mxu0 %v6413
    %v6514 = vpop.f32.mrb[0].mxu0
    %v6515 = vadd.f32 0.0, %v6514
    %v6516 = vpop.f32.mrb[0].mxu0
    %v6517 = vadd.f32 0.0, %v6516
    %6518 = vmatprep.mubr.f32.mxu0 0.0
    %6519 = vmatmul.mubr.f32.gmra.mrb[0].mxu0 %v6416
    %v6520 = vpop.f32.mrb[0].mxu0
    %v6521 = vadd.f32 0.0, %v6520
    %v6522 = vpop.f32.mrb[0].mxu0
    %v6523 = vadd.f32 0.0, %v6522
    %6524 = vmatprep.mubr.f32.mxu0 0.0
    %6525 = vmatmul.mubr.f32.gmra.mrb[0].mxu0 %v6419
    %v6526 = vpop.f32.mrb[0].mxu0
    %v6527 = vadd.f32 0.0, %v6526
    %v6528 = vpop.f32.mrb[0].mxu0
    %v6529 = vadd.f32 0.0, %v6528
    %6530 = vmatprep.mubr.f32.mxu0 0.0
    %6531 = vmatmul.mubr.f32.gmra.mrb[0].mxu0 %v6422
    %v6532 = vpop.f32.mrb[0].mxu0
    %v6533 = vadd.f32 0.0, %v6532
    %v6534 = vpop.f32.mrb[0].mxu0
    %v6535 = vadd.f32 0.0, %v6534
    %6536 = vmatprep.mubr.f32.mxu0 0.0
    %6537 = vmatmul.mubr.f32.gmra.mrb[0].mxu0 %v6425
    %v6538 = vpop.f32.mrb[0].mxu0
    %v6539 = vadd.f32 0.0, %v6538
    %v6540 = vpop.f32.mrb[0].mxu0
    %v6541 = vadd.f32 0.0, %v6540
    %6542 = vmatprep.mubr.f32.mxu0 0.0
    %6543 = vmatmul.mubr.f32.gmra.mrb[0].mxu0 %v6428
    %v6544 = vpop.f32.mrb[0].mxu0
    %v6545 = vadd.f32 0.0, %v6544
    %v6546 = vpop.f32.mrb[0].mxu0
    %v6547 = vadd.f32 0.0, %v6546
    %6548 = vdwg.mxu0
    %6549 = vmatprep.subr.mxu0 %v6388
    %6550 = vmatpush1.msra.mxu0 %v6387
    %6551 = vmatprep.subr.mxu0 %v6392
    %6552 = vmatpush1.msra.mxu0 %v6391
    %6553 = vmatprep.subr.mxu0 %v6396
    %6554 = vmatpush1.msra.mxu0 %v6395
    %6555 = vmatprep.subr.mxu0 %v6440
    %6556 = vmatpush1.msra.mxu0 %v6437
    %6557 = vmatprep.subr.mxu0 0.0
    %6558 = vmatpush1.msra.mxu0 0.0
    %6559 = vmatprep.subr.mxu0 0.0
    %6560 = vmatpush1.msra.mxu0 0.0
    %6561 = vmatprep.subr.mxu0 0.0
    %6562 = vmatpush1.msra.mxu0 0.0
    %6563 = vmatprep.subr.mxu0 0.0
    %6564 = vmatpush1.msra.mxu0 0.0
    %6565 = vmatprep.subr.mxu0 0.0
    %6566 = vmatpush1.msra.mxu0 0.0
    %6567 = vmatprep.subr.mxu0 0.0
    %6568 = vmatpush1.msra.mxu0 0.0
    %6569 = vmatprep.subr.mxu0 0.0
    %6570 = vmatpush1.msra.mxu0 0.0
    %6571 = vmatprep.subr.mxu0 0.0
    %6572 = vmatpush1.msra.mxu0 0.0
    %6573 = vmatprep.subr.mxu0 0.0
    %6574 = vmatpush1.msra.mxu0 0.0
    %6575 = vmatprep.subr.mxu0 0.0
    %6576 = vmatpush1.msra.mxu0 0.0
    %6577 = vmatprep.subr.mxu0 0.0
    %6578 = vmatpush1.msra.mxu0 0.0
    %6579 = vmatprep.subr.mxu0 0.0
    %6580 = vmatpush1.msra.mxu0 0.0
    %6581 = vmatprep.subr.mxu0 0.0
    %6582 = vmatpush1.msra.mxu0 0.0
    %6583 = vmatprep.subr.mxu0 0.0
    %6584 = vmatpush1.msra.mxu0 0.0
    %6585 = vmatprep.subr.mxu0 0.0
    %6586 = vmatpush1.msra.mxu0 0.0
    %6587 = vmatprep.subr.mxu0 0.0
    %6588 = vmatpush1.msra.mxu0 0.0
    %6589 = vmatprep.subr.mxu0 0.0
    %6590 = vmatpush1.msra.mxu0 0.0
    %6591 = vmatprep.subr.mxu0 0.0
    %6592 = vmatpush1.msra.mxu0 0.0
    %6593 = vmatprep.subr.mxu0 0.0
    %6594 = vmatpush1.msra.mxu0 0.0
    %6595 = vmatprep.subr.mxu0 0.0
    %6596 = vmatpush1.msra.mxu0 0.0
    %6597 = vmatprep.subr.mxu0 0.0
    %6598 = vmatpush1.msra.mxu0 0.0
    %6599 = vmatprep.subr.mxu0 0.0
    %6600 = vmatpush1.msra.mxu0 0.0
    %6601 = vmatprep.subr.mxu0 0.0
    %6602 = vmatpush1.msra.mxu0 0.0
    %6603 = vmatprep.subr.mxu0 0.0
    %6604 = vmatpush1.msra.mxu0 0.0
    %6605 = vmatprep.subr.mxu0 0.0
    %6606 = vmatpush1.msra.mxu0 0.0
    %6607 = vmatprep.subr.mxu0 0.0
    %6608 = vmatpush1.msra.mxu0 0.0
    %6609 = vmatprep.subr.mxu0 0.0
    %6610 = vmatpush1.msra.mxu0 0.0
    %6611 = vmatprep.subr.mxu0 0.0
    %6612 = vmatpush1.msra.mxu0 0.0
    %6613 = vmatprep.mubr.f32.mxu0 0.0
    %6614 = vmatmul.mubr.f32.gmra.mrb[0].mxu0 %v6410
    %v6615 = vpop.f32.mrb[0].mxu0
    %v6616 = vadd.f32 0.0, %v6615
    %v6617 = vpop.f32.mrb[0].mxu0
    %v6618 = vadd.f32 0.0, %v6617
    %6619 = vmatprep.mubr.f32.mxu0 0.0
    %6620 = vmatmul.mubr.f32.gmra.mrb[0].mxu0 %v6413
    %v6621 = vpop.f32.mrb[0].mxu0
    %v6622 = vadd.f32 0.0, %v6621
    %v6623 = vpop.f32.mrb[0].mxu0
    %v6624 = vadd.f32 0.0, %v6623
    %6625 = vmatprep.mubr.f32.mxu0 0.0
    %6626 = vmatmul.mubr.f32.gmra.mrb[0].mxu0 %v6416
    %v6627 = vpop.f32.mrb[0].mxu0
    %v6628 = vadd.f32 0.0, %v6627
    %v6629 = vpop.f32.mrb[0].mxu0
    %v6630 = vadd.f32 0.0, %v6629
    %6631 = vmatprep.mubr.f32.mxu0 0.0
    %6632 = vmatmul.mubr.f32.gmra.mrb[0].mxu0 %v6419
    %v6633 = vpop.f32.mrb[0].mxu0
    %v6634 = vadd.f32 0.0, %v6633
    %v6635 = vpop.f32.mrb[0].mxu0
    %v6636 = vadd.f32 0.0, %v6635
    %6637 = vmatprep.mubr.f32.mxu0 0.0
    %6638 = vmatmul.mubr.f32.gmra.mrb[0].mxu0 %v6422
    %v6639 = vpop.f32.mrb[0].mxu0
    %v6640 = vadd.f32 0.0, %v6639
    %v6641 = vpop.f32.mrb[0].mxu0
    %v6642 = vadd.f32 0.0, %v6641
    %6643 = vmatprep.mubr.f32.mxu0 0.0
    %6644 = vmatmul.mubr.f32.gmra.mrb[0].mxu0 %v6425
    %v6645 = vpop.f32.mrb[0].mxu0
    %v6646 = vadd.f32 0.0, %v6645
    %v6647 = vpop.f32.mrb[0].mxu0
    %v6648 = vadd.f32 0.0, %v6647
    %6649 = vmatprep.mubr.f32.mxu0 0.0
    %6650 = vmatmul.mubr.f32.gmra.mrb[0].mxu0 %v6428
    %v6651 = vpop.f32.mrb[0].mxu0
    %v6652 = vadd.f32 0.0, %v6651
    %v6653 = vpop.f32.mrb[0].mxu0
    %v6654 = vadd.f32 0.0, %v6653
    %6655 = vdwg.mxu0
    %v6656 = vld [vmem:[%s19] sm:$0xff]
    %v6657 = vld [vmem:[%s19 + $0x8] sm:$0xff]
    %v6658 = vld [vmem:[%s19 + $0x10] sm:$0xff]
    %v6659 = vld [vmem:[%s19 + $0x18] sm:$0xff]
    %v6660 = vld [vmem:[%s19 + $0x20] sm:$0xff]
    %v6661 = vld [vmem:[%s19 + $0x28] sm:$0xff]
    %v6662 = vld [vmem:[%s19 + $0x30] sm:$0xff]
    %v6663 = vld [vmem:[%s19 + $0x38] sm:$0xff]
    %v6664 = vld [vmem:[%s19 + $0x40] sm:$0xff]
    %v6665 = vld [vmem:[%s19 + $0x48] sm:$0xff]
    %v6666 = vld [vmem:[%s19 + $0x50] sm:$0xff]
    %v6667 = vld [vmem:[%s19 + $0x58] sm:$0xff]
    %v6668 = vld [vmem:[%s19 + $0x60] sm:$0xff]
    %v6669 = vld [vmem:[%s19 + $0x68] sm:$0xff]
    %v6670 = vld [vmem:[%s19 + $0x70] sm:$0xff]
    %v6671 = vld [vmem:[%s19 + $0x78] sm:$0xff]
    %v6672 = vld [vmem:[%s19 + $0x80] sm:$0xff]
    %v6673 = vld [vmem:[%s19 + $0x88] sm:$0xff]
    %v6674 = vld [vmem:[%s19 + $0x90] sm:$0xff]
    %v6675 = vld [vmem:[%s19 + $0x98] sm:$0xff]
    %v6676 = vld [vmem:[%s19 + $0xa0] sm:$0xff]
    %v6677 = vld [vmem:[%s19 + $0xa8] sm:$0xff]
    %v6678 = vld [vmem:[%s19 + $0xb0] sm:$0xff]
    %v6679 = vld [vmem:[%s19 + $0xb8] sm:$0xff]
    %v6680 = vld [vmem:[%s19 + $0xc0] sm:$0xff]
    %v6681 = vld [vmem:[%s19 + $0xc8] sm:$0xff]
    %v6682 = vld [vmem:[%s19 + $0xd0] sm:$0xff]
    %v6683 = vld [vmem:[%s19 + $0xd8] sm:$0xff]
    %v6684 = vld [vmem:[%s19 + $0xe0] sm:$0xff]
    %v6685 = vld [vmem:[%s19 + $0xe8] sm:$0xff]
    %v6686 = vld [vmem:[%s19 + $0xf0] sm:$0xff]
    %v6687 = vld [vmem:[%s19 + $0xf8] sm:$0xff]
    %v6688 = vld [vmem:[%s19 + $0x100] sm:$0xff]
    %v6689 = vld [vmem:[%s19 + $0x108] sm:$0xff]
    %v6690 = vld [vmem:[%s19 + $0x110] sm:$0xff]
    %v6691 = vld [vmem:[%s19 + $0x118] sm:$0xff]
    %v6692 = vld [vmem:[%s19 + $0x120] sm:$0xff]
    %v6693 = vld [vmem:[%s19 + $0x128] sm:$0xff]
    %v6694 = vld [vmem:[%s19 + $0x130] sm:$0xff]
    %v6695 = vld [vmem:[%s19 + $0x138] sm:$0xff]
    %v6696 = vld [vmem:[%s19 + $0x140] sm:$0xff]
    %v6697 = vld [vmem:[%s19 + $0x148] sm:$0xff]
    %v6698 = vld [vmem:[%s19 + $0x150] sm:$0xff]
    %v6699 = vld [vmem:[%s19 + $0x158] sm:$0xff]
    %v6700 = vld [vmem:[%s19 + $0x160] sm:$0xff]
    %v6701 = vld [vmem:[%s19 + $0x168] sm:$0xff]
    %v6702 = vld [vmem:[%s19 + $0x170] sm:$0xff]
    %v6703 = vld [vmem:[%s19 + $0x178] sm:$0xff]
    %v6704 = vld [vmem:[%s19 + $0x180] sm:$0xff]
    %v6705 = vld [vmem:[%s19 + $0x188] sm:$0xff]
    %v6706 = vld [vmem:[%s19 + $0x190] sm:$0xff]
    %v6707 = vld [vmem:[%s19 + $0x198] sm:$0xff]
    %v6708 = vld [vmem:[%s19 + $0x1a0] sm:$0xff]
    %v6709 = vld [vmem:[%s19 + $0x1a8] sm:$0xff]
    %v6710 = vld [vmem:[%s19 + $0x1b0] sm:$0xff]
    %v6711 = vld [vmem:[%s19 + $0x1b8] sm:$0xff]
    %s6712 = scalar_lea.vmem %s18, 56
    %v6713 = vld [vmem:[%s6712] sm:$0xff]
    %v6714 = vld [vmem:[%s6712 + $0x8] sm:$0xff]
    %v6715 = vld [vmem:[%s6712 + $0x10] sm:$0xff]
    %v6716 = vld [vmem:[%s6712 + $0x18] sm:$0xff]
    %v6717 = vld [vmem:[%s6712 + $0x20] sm:$0xff]
    %v6718 = vld [vmem:[%s6712 + $0x28] sm:$0xff]
    %v6719 = vld [vmem:[%s6712 + $0x30] sm:$0xff]
    %v6721 = vsel %vm6408, %v6713, 0
    %v6724 = vsel %vm6408, %v6714, 0
    %v6727 = vsel %vm6408, %v6715, 0
    %v6730 = vsel %vm6408, %v6716, 0
    %v6733 = vsel %vm6408, %v6717, 0
    %v6736 = vsel %vm6408, %v6718, 0
    %v6739 = vsel %vm6408, %v6719, 0
    %6741 = vmatprep.subr.mxu0 %v6386
    %6742 = vmatpush1.msra.mxu0 %v6385
    %6743 = vmatprep.subr.mxu0 %v6390
    %6744 = vmatpush1.msra.mxu0 %v6389
    %6745 = vmatprep.subr.mxu0 %v6394
    %6746 = vmatpush1.msra.mxu0 %v6393
    %6747 = vmatprep.subr.mxu0 %v6434
    %6748 = vmatpush1.msra.mxu0 %v6431
    %6749 = vmatprep.subr.mxu0 0.0
    %6750 = vmatpush1.msra.mxu0 0.0
    %6751 = vmatprep.subr.mxu0 0.0
    %6752 = vmatpush1.msra.mxu0 0.0
    %6753 = vmatprep.subr.mxu0 0.0
    %6754 = vmatpush1.msra.mxu0 0.0
    %6755 = vmatprep.subr.mxu0 0.0
    %6756 = vmatpush1.msra.mxu0 0.0
    %6757 = vmatprep.subr.mxu0 0.0
    %6758 = vmatpush1.msra.mxu0 0.0
    %6759 = vmatprep.subr.mxu0 0.0
    %6760 = vmatpush1.msra.mxu0 0.0
    %6761 = vmatprep.subr.mxu0 0.0
    %6762 = vmatpush1.msra.mxu0 0.0
    %6763 = vmatprep.subr.mxu0 0.0
    %6764 = vmatpush1.msra.mxu0 0.0
    %6765 = vmatprep.subr.mxu0 0.0
    %6766 = vmatpush1.msra.mxu0 0.0
    %6767 = vmatprep.subr.mxu0 0.0
    %6768 = vmatpush1.msra.mxu0 0.0
    %6769 = vmatprep.subr.mxu0 0.0
    %6770 = vmatpush1.msra.mxu0 0.0
    %6771 = vmatprep.subr.mxu0 0.0
    %6772 = vmatpush1.msra.mxu0 0.0
    %6773 = vmatprep.subr.mxu0 0.0
    %6774 = vmatpush1.msra.mxu0 0.0
    %6775 = vmatprep.subr.mxu0 0.0
    %6776 = vmatpush1.msra.mxu0 0.0
    %6777 = vmatprep.subr.mxu0 0.0
    %6778 = vmatpush1.msra.mxu0 0.0
    %6779 = vmatprep.subr.mxu0 0.0
    %6780 = vmatpush1.msra.mxu0 0.0
    %6781 = vmatprep.subr.mxu0 0.0
    %6782 = vmatpush1.msra.mxu0 0.0
    %6783 = vmatprep.subr.mxu0 0.0
    %6784 = vmatpush1.msra.mxu0 0.0
    %6785 = vmatprep.subr.mxu0 0.0
    %6786 = vmatpush1.msra.mxu0 0.0
    %6787 = vmatprep.subr.mxu0 0.0
    %6788 = vmatpush1.msra.mxu0 0.0
    %6789 = vmatprep.subr.mxu0 0.0
    %6790 = vmatpush1.msra.mxu0 0.0
    %6791 = vmatprep.subr.mxu0 0.0
    %6792 = vmatpush1.msra.mxu0 0.0
    %6793 = vmatprep.subr.mxu0 0.0
    %6794 = vmatpush1.msra.mxu0 0.0
    %6795 = vmatprep.subr.mxu0 0.0
    %6796 = vmatpush1.msra.mxu0 0.0
    %6797 = vmatprep.subr.mxu0 0.0
    %6798 = vmatpush1.msra.mxu0 0.0
    %6799 = vmatprep.subr.mxu0 0.0
    %6800 = vmatpush1.msra.mxu0 0.0
    %6801 = vmatprep.subr.mxu0 0.0
    %6802 = vmatpush1.msra.mxu0 0.0
    %6803 = vmatprep.subr.mxu0 0.0
    %6804 = vmatpush1.msra.mxu0 0.0
    %6805 = vmatprep.mubr.f32.mxu0 0.0
    %6806 = vmatmul.mubr.f32.gmra.mrb[0].mxu0 %v6721
    %v6807 = vpop.f32.mrb[0].mxu0
    %v6808 = vadd.f32 0.0, %v6807
    %v6809 = vpop.f32.mrb[0].mxu0
    %v6810 = vadd.f32 0.0, %v6809
    %6811 = vmatprep.mubr.f32.mxu0 0.0
    %6812 = vmatmul.mubr.f32.gmra.mrb[0].mxu0 %v6724
    %v6813 = vpop.f32.mrb[0].mxu0
    %v6814 = vadd.f32 0.0, %v6813
    %v6815 = vpop.f32.mrb[0].mxu0
    %v6816 = vadd.f32 0.0, %v6815
    %6817 = vmatprep.mubr.f32.mxu0 0.0
    %6818 = vmatmul.mubr.f32.gmra.mrb[0].mxu0 %v6727
    %v6819 = vpop.f32.mrb[0].mxu0
    %v6820 = vadd.f32 0.0, %v6819
    %v6821 = vpop.f32.mrb[0].mxu0
    %v6822 = vadd.f32 0.0, %v6821
    %6823 = vmatprep.mubr.f32.mxu0 0.0
    %6824 = vmatmul.mubr.f32.gmra.mrb[0].mxu0 %v6730
    %v6825 = vpop.f32.mrb[0].mxu0
    %v6826 = vadd.f32 0.0, %v6825
    %v6827 = vpop.f32.mrb[0].mxu0
    %v6828 = vadd.f32 0.0, %v6827
    %6829 = vmatprep.mubr.f32.mxu0 0.0
    %6830 = vmatmul.mubr.f32.gmra.mrb[0].mxu0 %v6733
    %v6831 = vpop.f32.mrb[0].mxu0
    %v6832 = vadd.f32 0.0, %v6831
    %v6833 = vpop.f32.mrb[0].mxu0
    %v6834 = vadd.f32 0.0, %v6833
    %6835 = vmatprep.mubr.f32.mxu0 0.0
    %6836 = vmatmul.mubr.f32.gmra.mrb[0].mxu0 %v6736
    %v6837 = vpop.f32.mrb[0].mxu0
    %v6838 = vadd.f32 0.0, %v6837
    %v6839 = vpop.f32.mrb[0].mxu0
    %v6840 = vadd.f32 0.0, %v6839
    %6841 = vmatprep.mubr.f32.mxu0 0.0
    %6842 = vmatmul.mubr.f32.gmra.mrb[0].mxu0 %v6739
    %v6843 = vpop.f32.mrb[0].mxu0
    %v6844 = vadd.f32 0.0, %v6843
    %v6845 = vpop.f32.mrb[0].mxu0
    %v6846 = vadd.f32 0.0, %v6845
    %6847 = vdwg.mxu0
    %6848 = vmatprep.subr.mxu0 %v6388
    %6849 = vmatpush1.msra.mxu0 %v6387
    %6850 = vmatprep.subr.mxu0 %v6392
    %6851 = vmatpush1.msra.mxu0 %v6391
    %6852 = vmatprep.subr.mxu0 %v6396
    %6853 = vmatpush1.msra.mxu0 %v6395
    %6854 = vmatprep.subr.mxu0 %v6440
    %6855 = vmatpush1.msra.mxu0 %v6437
    %6856 = vmatprep.subr.mxu0 0.0
    %6857 = vmatpush1.msra.mxu0 0.0
    %6858 = vmatprep.subr.mxu0 0.0
    %6859 = vmatpush1.msra.mxu0 0.0
    %6860 = vmatprep.subr.mxu0 0.0
    %6861 = vmatpush1.msra.mxu0 0.0
    %6862 = vmatprep.subr.mxu0 0.0
    %6863 = vmatpush1.msra.mxu0 0.0
    %6864 = vmatprep.subr.mxu0 0.0
    %6865 = vmatpush1.msra.mxu0 0.0
    %6866 = vmatprep.subr.mxu0 0.0
    %6867 = vmatpush1.msra.mxu0 0.0
    %6868 = vmatprep.subr.mxu0 0.0
    %6869 = vmatpush1.msra.mxu0 0.0
    %6870 = vmatprep.subr.mxu0 0.0
    %6871 = vmatpush1.msra.mxu0 0.0
    %6872 = vmatprep.subr.mxu0 0.0
    %6873 = vmatpush1.msra.mxu0 0.0
    %6874 = vmatprep.subr.mxu0 0.0
    %6875 = vmatpush1.msra.mxu0 0.0
    %6876 = vmatprep.subr.mxu0 0.0
    %6877 = vmatpush1.msra.mxu0 0.0
    %6878 = vmatprep.subr.mxu0 0.0
    %6879 = vmatpush1.msra.mxu0 0.0
    %6880 = vmatprep.subr.mxu0 0.0
    %6881 = vmatpush1.msra.mxu0 0.0
    %6882 = vmatprep.subr.mxu0 0.0
    %6883 = vmatpush1.msra.mxu0 0.0
    %6884 = vmatprep.subr.mxu0 0.0
    %6885 = vmatpush1.msra.mxu0 0.0
    %6886 = vmatprep.subr.mxu0 0.0
    %6887 = vmatpush1.msra.mxu0 0.0
    %6888 = vmatprep.subr.mxu0 0.0
    %6889 = vmatpush1.msra.mxu0 0.0
    %6890 = vmatprep.subr.mxu0 0.0
    %6891 = vmatpush1.msra.mxu0 0.0
    %6892 = vmatprep.subr.mxu0 0.0
    %6893 = vmatpush1.msra.mxu0 0.0
    %6894 = vmatprep.subr.mxu0 0.0
    %6895 = vmatpush1.msra.mxu0 0.0
    %6896 = vmatprep.subr.mxu0 0.0
    %6897 = vmatpush1.msra.mxu0 0.0
    %6898 = vmatprep.subr.mxu0 0.0
    %6899 = vmatpush1.msra.mxu0 0.0
    %6900 = vmatprep.subr.mxu0 0.0
    %6901 = vmatpush1.msra.mxu0 0.0
    %6902 = vmatprep.subr.mxu0 0.0
    %6903 = vmatpush1.msra.mxu0 0.0
    %6904 = vmatprep.subr.mxu0 0.0
    %6905 = vmatpush1.msra.mxu0 0.0
    %6906 = vmatprep.subr.mxu0 0.0
    %6907 = vmatpush1.msra.mxu0 0.0
    %6908 = vmatprep.subr.mxu0 0.0
    %6909 = vmatpush1.msra.mxu0 0.0
    %6910 = vmatprep.subr.mxu0 0.0
    %6911 = vmatpush1.msra.mxu0 0.0
    %6912 = vmatprep.mubr.f32.mxu0 0.0
    %6913 = vmatmul.mubr.f32.gmra.mrb[0].mxu0 %v6721
    %v6914 = vpop.f32.mrb[0].mxu0
    %v6915 = vadd.f32 0.0, %v6914
    %v6916 = vpop.f32.mrb[0].mxu0
    %v6917 = vadd.f32 0.0, %v6916
    %6918 = vmatprep.mubr.f32.mxu0 0.0
    %6919 = vmatmul.mubr.f32.gmra.mrb[0].mxu0 %v6724
    %v6920 = vpop.f32.mrb[0].mxu0
    %v6921 = vadd.f32 0.0, %v6920
    %v6922 = vpop.f32.mrb[0].mxu0
    %v6923 = vadd.f32 0.0, %v6922
    %6924 = vmatprep.mubr.f32.mxu0 0.0
    %6925 = vmatmul.mubr.f32.gmra.mrb[0].mxu0 %v6727
    %v6926 = vpop.f32.mrb[0].mxu0
    %v6927 = vadd.f32 0.0, %v6926
    %v6928 = vpop.f32.mrb[0].mxu0
    %v6929 = vadd.f32 0.0, %v6928
    %6930 = vmatprep.mubr.f32.mxu0 0.0
    %6931 = vmatmul.mubr.f32.gmra.mrb[0].mxu0 %v6730
    %v6932 = vpop.f32.mrb[0].mxu0
    %v6933 = vadd.f32 0.0, %v6932
    %v6934 = vpop.f32.mrb[0].mxu0
    %v6935 = vadd.f32 0.0, %v6934
    %6936 = vmatprep.mubr.f32.mxu0 0.0
    %6937 = vmatmul.mubr.f32.gmra.mrb[0].mxu0 %v6733
    %v6938 = vpop.f32.mrb[0].mxu0
    %v6939 = vadd.f32 0.0, %v6938
    %v6940 = vpop.f32.mrb[0].mxu0
    %v6941 = vadd.f32 0.0, %v6940
    %6942 = vmatprep.mubr.f32.mxu0 0.0
    %6943 = vmatmul.mubr.f32.gmra.mrb[0].mxu0 %v6736
    %v6944 = vpop.f32.mrb[0].mxu0
    %v6945 = vadd.f32 0.0, %v6944
    %v6946 = vpop.f32.mrb[0].mxu0
    %v6947 = vadd.f32 0.0, %v6946
    %6948 = vmatprep.mubr.f32.mxu0 0.0
    %6949 = vmatmul.mubr.f32.gmra.mrb[0].mxu0 %v6739
    %v6950 = vpop.f32.mrb[0].mxu0
    %v6951 = vadd.f32 0.0, %v6950
    %v6952 = vpop.f32.mrb[0].mxu0
    %v6953 = vadd.f32 0.0, %v6952
    %6954 = vdwg.mxu0
    %s6955 = scalar_lea.vmem %s19, 448
    %v6956 = vld [vmem:[%s6955] sm:$0xff]
    %v6957 = vld [vmem:[%s6955 + $0x8] sm:$0xff]
    %v6958 = vld [vmem:[%s6955 + $0x10] sm:$0xff]
    %v6959 = vld [vmem:[%s6955 + $0x18] sm:$0xff]
    %v6960 = vld [vmem:[%s6955 + $0x20] sm:$0xff]
    %v6961 = vld [vmem:[%s6955 + $0x28] sm:$0xff]
    %v6962 = vld [vmem:[%s6955 + $0x30] sm:$0xff]
    %v6963 = vld [vmem:[%s6955 + $0x38] sm:$0xff]
    %v6964 = vld [vmem:[%s6955 + $0x40] sm:$0xff]
    %v6965 = vld [vmem:[%s6955 + $0x48] sm:$0xff]
    %v6966 = vld [vmem:[%s6955 + $0x50] sm:$0xff]
    %v6967 = vld [vmem:[%s6955 + $0x58] sm:$0xff]
    %v6968 = vld [vmem:[%s6955 + $0x60] sm:$0xff]
    %v6969 = vld [vmem:[%s6955 + $0x68] sm:$0xff]
    %v6970 = vld [vmem:[%s6955 + $0x70] sm:$0xff]
    %v6971 = vld [vmem:[%s6955 + $0x78] sm:$0xff]
    %v6972 = vld [vmem:[%s6955 + $0x80] sm:$0xff]
    %v6973 = vld [vmem:[%s6955 + $0x88] sm:$0xff]
    %v6974 = vld [vmem:[%s6955 + $0x90] sm:$0xff]
    %v6975 = vld [vmem:[%s6955 + $0x98] sm:$0xff]
    %v6976 = vld [vmem:[%s6955 + $0xa0] sm:$0xff]
    %v6977 = vld [vmem:[%s6955 + $0xa8] sm:$0xff]
    %v6978 = vld [vmem:[%s6955 + $0xb0] sm:$0xff]
    %v6979 = vld [vmem:[%s6955 + $0xb8] sm:$0xff]
    %v6980 = vld [vmem:[%s6955 + $0xc0] sm:$0xff]
    %v6981 = vld [vmem:[%s6955 + $0xc8] sm:$0xff]
    %v6982 = vld [vmem:[%s6955 + $0xd0] sm:$0xff]
    %v6983 = vld [vmem:[%s6955 + $0xd8] sm:$0xff]
    %v6984 = vld [vmem:[%s6955 + $0xe0] sm:$0xff]
    %v6985 = vld [vmem:[%s6955 + $0xe8] sm:$0xff]
    %v6986 = vld [vmem:[%s6955 + $0xf0] sm:$0xff]
    %v6987 = vld [vmem:[%s6955 + $0xf8] sm:$0xff]
    %v6988 = vld [vmem:[%s6955 + $0x100] sm:$0xff]
    %v6989 = vld [vmem:[%s6955 + $0x108] sm:$0xff]
    %v6990 = vld [vmem:[%s6955 + $0x110] sm:$0xff]
    %v6991 = vld [vmem:[%s6955 + $0x118] sm:$0xff]
    %v6992 = vld [vmem:[%s6955 + $0x120] sm:$0xff]
    %v6993 = vld [vmem:[%s6955 + $0x128] sm:$0xff]
    %v6994 = vld [vmem:[%s6955 + $0x130] sm:$0xff]
    %v6995 = vld [vmem:[%s6955 + $0x138] sm:$0xff]
    %v6996 = vld [vmem:[%s6955 + $0x140] sm:$0xff]
    %v6997 = vld [vmem:[%s6955 + $0x148] sm:$0xff]
    %v6998 = vld [vmem:[%s6955 + $0x150] sm:$0xff]
    %v6999 = vld [vmem:[%s6955 + $0x158] sm:$0xff]
    %v7000 = vld [vmem:[%s6955 + $0x160] sm:$0xff]
    %v7001 = vld [vmem:[%s6955 + $0x168] sm:$0xff]
    %v7002 = vld [vmem:[%s6955 + $0x170] sm:$0xff]
    %v7003 = vld [vmem:[%s6955 + $0x178] sm:$0xff]
    %v7004 = vld [vmem:[%s6955 + $0x180] sm:$0xff]
    %v7005 = vld [vmem:[%s6955 + $0x188] sm:$0xff]
    %v7006 = vld [vmem:[%s6955 + $0x190] sm:$0xff]
    %v7007 = vld [vmem:[%s6955 + $0x198] sm:$0xff]
    %v7008 = vld [vmem:[%s6955 + $0x1a0] sm:$0xff]
    %v7009 = vld [vmem:[%s6955 + $0x1a8] sm:$0xff]
    %v7010 = vld [vmem:[%s6955 + $0x1b0] sm:$0xff]
    %v7011 = vld [vmem:[%s6955 + $0x1b8] sm:$0xff]
    %v7013 = vsel %vm4806, %v6917, 0
    %v7016 = vsel %vm4806, %v6923, 0
    %v7019 = vsel %vm4806, %v6929, 0
    %v7022 = vsel %vm4806, %v6935, 0
    %v7025 = vsel %vm4806, %v6941, 0
    %v7028 = vsel %vm4806, %v6947, 0
    %v7031 = vsel %vm4806, %v6953, 0
    %7033 = vmatprep.subr.mxu0 0.0
    %7034 = vmatpush1.msra.mxu0 %v6956
    %7035 = vmatprep.subr.mxu0 0.0
    %7036 = vmatpush1.msra.mxu0 %v6957
    %7037 = vmatprep.subr.mxu0 0.0
    %7038 = vmatpush1.msra.mxu0 %v6958
    %7039 = vmatprep.subr.mxu0 0.0
    %7040 = vmatpush1.msra.mxu0 %v6959
    %7041 = vmatprep.subr.mxu0 0.0
    %7042 = vmatpush1.msra.mxu0 %v6960
    %7043 = vmatprep.subr.mxu0 0.0
    %7044 = vmatpush1.msra.mxu0 %v6961
    %7045 = vmatprep.subr.mxu0 0.0
    %7046 = vmatpush1.msra.mxu0 %v6962
    %7047 = vmatprep.subr.mxu0 0.0
    %7048 = vmatpush1.msra.mxu0 %v6963
    %7049 = vmatprep.subr.mxu0 0.0
    %7050 = vmatpush1.msra.mxu0 %v6964
    %7051 = vmatprep.subr.mxu0 0.0
    %7052 = vmatpush1.msra.mxu0 %v6965
    %7053 = vmatprep.subr.mxu0 0.0
    %7054 = vmatpush1.msra.mxu0 %v6966
    %7055 = vmatprep.subr.mxu0 0.0
    %7056 = vmatpush1.msra.mxu0 %v6967
    %7057 = vmatprep.subr.mxu0 0.0
    %7058 = vmatpush1.msra.mxu0 %v6968
    %7059 = vmatprep.subr.mxu0 0.0
    %7060 = vmatpush1.msra.mxu0 %v6969
    %7061 = vmatprep.subr.mxu0 0.0
    %7062 = vmatpush1.msra.mxu0 %v6970
    %7063 = vmatprep.subr.mxu0 0.0
    %7064 = vmatpush1.msra.mxu0 %v6971
    %7065 = vmatprep.subr.mxu0 0.0
    %7066 = vmatpush1.msra.mxu0 %v6972
    %7067 = vmatprep.subr.mxu0 0.0
    %7068 = vmatpush1.msra.mxu0 %v6973
    %7069 = vmatprep.subr.mxu0 0.0
    %7070 = vmatpush1.msra.mxu0 %v6974
    %7071 = vmatprep.subr.mxu0 0.0
    %7072 = vmatpush1.msra.mxu0 %v6975
    %7073 = vmatprep.subr.mxu0 0.0
    %7074 = vmatpush1.msra.mxu0 %v6976
    %7075 = vmatprep.subr.mxu0 0.0
    %7076 = vmatpush1.msra.mxu0 %v6977
    %7077 = vmatprep.subr.mxu0 0.0
    %7078 = vmatpush1.msra.mxu0 %v6978
    %7079 = vmatprep.subr.mxu0 0.0
    %7080 = vmatpush1.msra.mxu0 %v6979
    %7081 = vmatprep.subr.mxu0 0.0
    %7082 = vmatpush1.msra.mxu0 %v6980
    %7083 = vmatprep.subr.mxu0 0.0
    %7084 = vmatpush1.msra.mxu0 %v6981
    %7085 = vmatprep.subr.mxu0 0.0
    %7086 = vmatpush1.msra.mxu0 %v6982
    %7087 = vmatprep.subr.mxu0 0.0
    %7088 = vmatpush1.msra.mxu0 %v6983
    %7089 = vmatprep.subr.mxu0 0.0
    %7090 = vmatpush1.msra.mxu0 %v6984
    %7091 = vmatprep.subr.mxu0 0.0
    %7092 = vmatpush1.msra.mxu0 %v6985
    %7093 = vmatprep.subr.mxu0 0.0
    %7094 = vmatpush1.msra.mxu0 %v6986
    %7095 = vmatprep.subr.mxu0 0.0
    %7096 = vmatpush1.msra.mxu0 %v6987
    %7097 = vmatprep.mubr.f32.mxu0 %v6810
    %7098 = vmatmul.mubr.f32.gmra.mrb[0].mxu0 %v6808
    %v7099 = vpop.f32.mrb[0].mxu0
    %v7100 = vadd.f32 0.0, %v7099
    %v7101 = vpop.f32.mrb[0].mxu0
    %7102 = vmatprep.mubr.f32.mxu0 %v6816
    %7103 = vmatmul.mubr.f32.gmra.mrb[0].mxu0 %v6814
    %v7104 = vpop.f32.mrb[0].mxu0
    %v7105 = vadd.f32 0.0, %v7104
    %v7106 = vpop.f32.mrb[0].mxu0
    %7107 = vmatprep.mubr.f32.mxu0 %v6822
    %7108 = vmatmul.mubr.f32.gmra.mrb[0].mxu0 %v6820
    %v7109 = vpop.f32.mrb[0].mxu0
    %v7110 = vadd.f32 0.0, %v7109
    %v7111 = vpop.f32.mrb[0].mxu0
    %7112 = vmatprep.mubr.f32.mxu0 %v6828
    %7113 = vmatmul.mubr.f32.gmra.mrb[0].mxu0 %v6826
    %v7114 = vpop.f32.mrb[0].mxu0
    %v7115 = vadd.f32 0.0, %v7114
    %v7116 = vpop.f32.mrb[0].mxu0
    %7117 = vmatprep.mubr.f32.mxu0 %v6834
    %7118 = vmatmul.mubr.f32.gmra.mrb[0].mxu0 %v6832
    %v7119 = vpop.f32.mrb[0].mxu0
    %v7120 = vadd.f32 0.0, %v7119
    %v7121 = vpop.f32.mrb[0].mxu0
    %7122 = vmatprep.mubr.f32.mxu0 %v6840
    %7123 = vmatmul.mubr.f32.gmra.mrb[0].mxu0 %v6838
    %v7124 = vpop.f32.mrb[0].mxu0
    %v7125 = vadd.f32 0.0, %v7124
    %v7126 = vpop.f32.mrb[0].mxu0
    %7127 = vmatprep.mubr.f32.mxu0 %v6846
    %7128 = vmatmul.mubr.f32.gmra.mrb[0].mxu0 %v6844
    %v7129 = vpop.f32.mrb[0].mxu0
    %v7130 = vadd.f32 0.0, %v7129
    %v7131 = vpop.f32.mrb[0].mxu0
    %7132 = vdwg.mxu0
    %7133 = vmatprep.subr.mxu0 0.0
    %7134 = vmatpush1.msra.mxu0 %v6988
    %7135 = vmatprep.subr.mxu0 0.0
    %7136 = vmatpush1.msra.mxu0 %v6989
    %7137 = vmatprep.subr.mxu0 0.0
    %7138 = vmatpush1.msra.mxu0 %v6990
    %7139 = vmatprep.subr.mxu0 0.0
    %7140 = vmatpush1.msra.mxu0 %v6991
    %7141 = vmatprep.subr.mxu0 0.0
    %7142 = vmatpush1.msra.mxu0 %v6992
    %7143 = vmatprep.subr.mxu0 0.0
    %7144 = vmatpush1.msra.mxu0 %v6993
    %7145 = vmatprep.subr.mxu0 0.0
    %7146 = vmatpush1.msra.mxu0 %v6994
    %7147 = vmatprep.subr.mxu0 0.0
    %7148 = vmatpush1.msra.mxu0 %v6995
    %7149 = vmatprep.subr.mxu0 0.0
    %7150 = vmatpush1.msra.mxu0 %v6996
    %7151 = vmatprep.subr.mxu0 0.0
    %7152 = vmatpush1.msra.mxu0 %v6997
    %7153 = vmatprep.subr.mxu0 0.0
    %7154 = vmatpush1.msra.mxu0 %v6998
    %7155 = vmatprep.subr.mxu0 0.0
    %7156 = vmatpush1.msra.mxu0 %v6999
    %7157 = vmatprep.subr.mxu0 0.0
    %7158 = vmatpush1.msra.mxu0 %v7000
    %7159 = vmatprep.subr.mxu0 0.0
    %7160 = vmatpush1.msra.mxu0 %v7001
    %7161 = vmatprep.subr.mxu0 0.0
    %7162 = vmatpush1.msra.mxu0 %v7002
    %7163 = vmatprep.subr.mxu0 0.0
    %7164 = vmatpush1.msra.mxu0 %v7003
    %7165 = vmatprep.subr.mxu0 0.0
    %7166 = vmatpush1.msra.mxu0 %v7004
    %7167 = vmatprep.subr.mxu0 0.0
    %7168 = vmatpush1.msra.mxu0 %v7005
    %7169 = vmatprep.subr.mxu0 0.0
    %7170 = vmatpush1.msra.mxu0 %v7006
    %7171 = vmatprep.subr.mxu0 0.0
    %7172 = vmatpush1.msra.mxu0 %v7007
    %7173 = vmatprep.subr.mxu0 0.0
    %7174 = vmatpush1.msra.mxu0 %v7008
    %7175 = vmatprep.subr.mxu0 0.0
    %7176 = vmatpush1.msra.mxu0 %v7009
    %7177 = vmatprep.subr.mxu0 0.0
    %7178 = vmatpush1.msra.mxu0 %v7010
    %7179 = vmatprep.subr.mxu0 0.0
    %7180 = vmatpush1.msra.mxu0 %v7011
    %7181 = vmatprep.subr.mxu0 0.0
    %7182 = vmatpush1.msra.mxu0 0.0
    %7183 = vmatprep.subr.mxu0 0.0
    %7184 = vmatpush1.msra.mxu0 0.0
    %7185 = vmatprep.subr.mxu0 0.0
    %7186 = vmatpush1.msra.mxu0 0.0
    %7187 = vmatprep.subr.mxu0 0.0
    %7188 = vmatpush1.msra.mxu0 0.0
    %7189 = vmatprep.subr.mxu0 0.0
    %7190 = vmatpush1.msra.mxu0 0.0
    %7191 = vmatprep.subr.mxu0 0.0
    %7192 = vmatpush1.msra.mxu0 0.0
    %7193 = vmatprep.subr.mxu0 0.0
    %7194 = vmatpush1.msra.mxu0 0.0
    %7195 = vmatprep.subr.mxu0 0.0
    %7196 = vmatpush1.msra.mxu0 0.0
    %7197 = vmatprep.mubr.f32.mxu0 %v7013
    %7198 = vmatmul.mubr.f32.gmra.mrb[0].mxu0 %v6915
    %v7199 = vpop.f32.mrb[0].mxu0
    %v7200 = vadd.f32 %v7100, %v7199
    %v7201 = vpop.f32.mrb[0].mxu0
    %7202 = vmatprep.mubr.f32.mxu0 %v7016
    %7203 = vmatmul.mubr.f32.gmra.mrb[0].mxu0 %v6921
    %v7204 = vpop.f32.mrb[0].mxu0
    %v7205 = vadd.f32 %v7105, %v7204
    %v7206 = vpop.f32.mrb[0].mxu0
    %7207 = vmatprep.mubr.f32.mxu0 %v7019
    %7208 = vmatmul.mubr.f32.gmra.mrb[0].mxu0 %v6927
    %v7209 = vpop.f32.mrb[0].mxu0
    %v7210 = vadd.f32 %v7110, %v7209
    %v7211 = vpop.f32.mrb[0].mxu0
    %7212 = vmatprep.mubr.f32.mxu0 %v7022
    %7213 = vmatmul.mubr.f32.gmra.mrb[0].mxu0 %v6933
    %v7214 = vpop.f32.mrb[0].mxu0
    %v7215 = vadd.f32 %v7115, %v7214
    %v7216 = vpop.f32.mrb[0].mxu0
    %7217 = vmatprep.mubr.f32.mxu0 %v7025
    %7218 = vmatmul.mubr.f32.gmra.mrb[0].mxu0 %v6939
    %v7219 = vpop.f32.mrb[0].mxu0
    %v7220 = vadd.f32 %v7120, %v7219
    %v7221 = vpop.f32.mrb[0].mxu0
    %7222 = vmatprep.mubr.f32.mxu0 %v7028
    %7223 = vmatmul.mubr.f32.gmra.mrb[0].mxu0 %v6945
    %v7224 = vpop.f32.mrb[0].mxu0
    %v7225 = vadd.f32 %v7125, %v7224
    %v7226 = vpop.f32.mrb[0].mxu0
    %7227 = vmatprep.mubr.f32.mxu0 %v7031
    %7228 = vmatmul.mubr.f32.gmra.mrb[0].mxu0 %v6951
    %v7229 = vpop.f32.mrb[0].mxu0
    %v7230 = vadd.f32 %v7130, %v7229
    %v7231 = vpop.f32.mrb[0].mxu0
    %7232 = vdwg.mxu0
    %v7234 = vsel %vm4806, %v6618, 0
    %v7237 = vsel %vm4806, %v6624, 0
    %v7240 = vsel %vm4806, %v6630, 0
    %v7243 = vsel %vm4806, %v6636, 0
    %v7246 = vsel %vm4806, %v6642, 0
    %v7249 = vsel %vm4806, %v6648, 0
    %v7252 = vsel %vm4806, %v6654, 0
    %7254 = vmatprep.subr.mxu0 0.0
    %7255 = vmatpush1.msra.mxu0 %v6656
    %7256 = vmatprep.subr.mxu0 0.0
    %7257 = vmatpush1.msra.mxu0 %v6657
    %7258 = vmatprep.subr.mxu0 0.0
    %7259 = vmatpush1.msra.mxu0 %v6658
    %7260 = vmatprep.subr.mxu0 0.0
    %7261 = vmatpush1.msra.mxu0 %v6659
    %7262 = vmatprep.subr.mxu0 0.0
    %7263 = vmatpush1.msra.mxu0 %v6660
    %7264 = vmatprep.subr.mxu0 0.0
    %7265 = vmatpush1.msra.mxu0 %v6661
    %7266 = vmatprep.subr.mxu0 0.0
    %7267 = vmatpush1.msra.mxu0 %v6662
    %7268 = vmatprep.subr.mxu0 0.0
    %7269 = vmatpush1.msra.mxu0 %v6663
    %7270 = vmatprep.subr.mxu0 0.0
    %7271 = vmatpush1.msra.mxu0 %v6664
    %7272 = vmatprep.subr.mxu0 0.0
    %7273 = vmatpush1.msra.mxu0 %v6665
    %7274 = vmatprep.subr.mxu0 0.0
    %7275 = vmatpush1.msra.mxu0 %v6666
    %7276 = vmatprep.subr.mxu0 0.0
    %7277 = vmatpush1.msra.mxu0 %v6667
    %7278 = vmatprep.subr.mxu0 0.0
    %7279 = vmatpush1.msra.mxu0 %v6668
    %7280 = vmatprep.subr.mxu0 0.0
    %7281 = vmatpush1.msra.mxu0 %v6669
    %7282 = vmatprep.subr.mxu0 0.0
    %7283 = vmatpush1.msra.mxu0 %v6670
    %7284 = vmatprep.subr.mxu0 0.0
    %7285 = vmatpush1.msra.mxu0 %v6671
    %7286 = vmatprep.subr.mxu0 0.0
    %7287 = vmatpush1.msra.mxu0 %v6672
    %7288 = vmatprep.subr.mxu0 0.0
    %7289 = vmatpush1.msra.mxu0 %v6673
    %7290 = vmatprep.subr.mxu0 0.0
    %7291 = vmatpush1.msra.mxu0 %v6674
    %7292 = vmatprep.subr.mxu0 0.0
    %7293 = vmatpush1.msra.mxu0 %v6675
    %7294 = vmatprep.subr.mxu0 0.0
    %7295 = vmatpush1.msra.mxu0 %v6676
    %7296 = vmatprep.subr.mxu0 0.0
    %7297 = vmatpush1.msra.mxu0 %v6677
    %7298 = vmatprep.subr.mxu0 0.0
    %7299 = vmatpush1.msra.mxu0 %v6678
    %7300 = vmatprep.subr.mxu0 0.0
    %7301 = vmatpush1.msra.mxu0 %v6679
    %7302 = vmatprep.subr.mxu0 0.0
    %7303 = vmatpush1.msra.mxu0 %v6680
    %7304 = vmatprep.subr.mxu0 0.0
    %7305 = vmatpush1.msra.mxu0 %v6681
    %7306 = vmatprep.subr.mxu0 0.0
    %7307 = vmatpush1.msra.mxu0 %v6682
    %7308 = vmatprep.subr.mxu0 0.0
    %7309 = vmatpush1.msra.mxu0 %v6683
    %7310 = vmatprep.subr.mxu0 0.0
    %7311 = vmatpush1.msra.mxu0 %v6684
    %7312 = vmatprep.subr.mxu0 0.0
    %7313 = vmatpush1.msra.mxu0 %v6685
    %7314 = vmatprep.subr.mxu0 0.0
    %7315 = vmatpush1.msra.mxu0 %v6686
    %7316 = vmatprep.subr.mxu0 0.0
    %7317 = vmatpush1.msra.mxu0 %v6687
    %7318 = vmatprep.mubr.f32.mxu0 %v6511
    %7319 = vmatmul.mubr.f32.gmra.mrb[0].mxu0 %v6509
    %v7320 = vpop.f32.mrb[0].mxu0
    %v7321 = vadd.f32 %v7200, %v7320
    %v7322 = vpop.f32.mrb[0].mxu0
    %7323 = vmatprep.mubr.f32.mxu0 %v6517
    %7324 = vmatmul.mubr.f32.gmra.mrb[0].mxu0 %v6515
    %v7325 = vpop.f32.mrb[0].mxu0
    %v7326 = vadd.f32 %v7205, %v7325
    %v7327 = vpop.f32.mrb[0].mxu0
    %7328 = vmatprep.mubr.f32.mxu0 %v6523
    %7329 = vmatmul.mubr.f32.gmra.mrb[0].mxu0 %v6521
    %v7330 = vpop.f32.mrb[0].mxu0
    %v7331 = vadd.f32 %v7210, %v7330
    %v7332 = vpop.f32.mrb[0].mxu0
    %7333 = vmatprep.mubr.f32.mxu0 %v6529
    %7334 = vmatmul.mubr.f32.gmra.mrb[0].mxu0 %v6527
    %v7335 = vpop.f32.mrb[0].mxu0
    %v7336 = vadd.f32 %v7215, %v7335
    %v7337 = vpop.f32.mrb[0].mxu0
    %7338 = vmatprep.mubr.f32.mxu0 %v6535
    %7339 = vmatmul.mubr.f32.gmra.mrb[0].mxu0 %v6533
    %v7340 = vpop.f32.mrb[0].mxu0
    %v7341 = vadd.f32 %v7220, %v7340
    %v7342 = vpop.f32.mrb[0].mxu0
    %7343 = vmatprep.mubr.f32.mxu0 %v6541
    %7344 = vmatmul.mubr.f32.gmra.mrb[0].mxu0 %v6539
    %v7345 = vpop.f32.mrb[0].mxu0
    %v7346 = vadd.f32 %v7225, %v7345
    %v7347 = vpop.f32.mrb[0].mxu0
    %7348 = vmatprep.mubr.f32.mxu0 %v6547
    %7349 = vmatmul.mubr.f32.gmra.mrb[0].mxu0 %v6545
    %v7350 = vpop.f32.mrb[0].mxu0
    %v7351 = vadd.f32 %v7230, %v7350
    %v7352 = vpop.f32.mrb[0].mxu0
    %7353 = vdwg.mxu0
    %7354 = vmatprep.subr.mxu0 0.0
    %7355 = vmatpush1.msra.mxu0 %v6688
    %7356 = vmatprep.subr.mxu0 0.0
    %7357 = vmatpush1.msra.mxu0 %v6689
    %7358 = vmatprep.subr.mxu0 0.0
    %7359 = vmatpush1.msra.mxu0 %v6690
    %7360 = vmatprep.subr.mxu0 0.0
    %7361 = vmatpush1.msra.mxu0 %v6691
    %7362 = vmatprep.subr.mxu0 0.0
    %7363 = vmatpush1.msra.mxu0 %v6692
    %7364 = vmatprep.subr.mxu0 0.0
    %7365 = vmatpush1.msra.mxu0 %v6693
    %7366 = vmatprep.subr.mxu0 0.0
    %7367 = vmatpush1.msra.mxu0 %v6694
    %7368 = vmatprep.subr.mxu0 0.0
    %7369 = vmatpush1.msra.mxu0 %v6695
    %7370 = vmatprep.subr.mxu0 0.0
    %7371 = vmatpush1.msra.mxu0 %v6696
    %7372 = vmatprep.subr.mxu0 0.0
    %7373 = vmatpush1.msra.mxu0 %v6697
    %7374 = vmatprep.subr.mxu0 0.0
    %7375 = vmatpush1.msra.mxu0 %v6698
    %7376 = vmatprep.subr.mxu0 0.0
    %7377 = vmatpush1.msra.mxu0 %v6699
    %7378 = vmatprep.subr.mxu0 0.0
    %7379 = vmatpush1.msra.mxu0 %v6700
    %7380 = vmatprep.subr.mxu0 0.0
    %7381 = vmatpush1.msra.mxu0 %v6701
    %7382 = vmatprep.subr.mxu0 0.0
    %7383 = vmatpush1.msra.mxu0 %v6702
    %7384 = vmatprep.subr.mxu0 0.0
    %7385 = vmatpush1.msra.mxu0 %v6703
    %7386 = vmatprep.subr.mxu0 0.0
    %7387 = vmatpush1.msra.mxu0 %v6704
    %7388 = vmatprep.subr.mxu0 0.0
    %7389 = vmatpush1.msra.mxu0 %v6705
    %7390 = vmatprep.subr.mxu0 0.0
    %7391 = vmatpush1.msra.mxu0 %v6706
    %7392 = vmatprep.subr.mxu0 0.0
    %7393 = vmatpush1.msra.mxu0 %v6707
    %7394 = vmatprep.subr.mxu0 0.0
    %7395 = vmatpush1.msra.mxu0 %v6708
    %7396 = vmatprep.subr.mxu0 0.0
    %7397 = vmatpush1.msra.mxu0 %v6709
    %7398 = vmatprep.subr.mxu0 0.0
    %7399 = vmatpush1.msra.mxu0 %v6710
    %7400 = vmatprep.subr.mxu0 0.0
    %7401 = vmatpush1.msra.mxu0 %v6711
    %7402 = vmatprep.subr.mxu0 0.0
    %7403 = vmatpush1.msra.mxu0 0.0
    %7404 = vmatprep.subr.mxu0 0.0
    %7405 = vmatpush1.msra.mxu0 0.0
    %7406 = vmatprep.subr.mxu0 0.0
    %7407 = vmatpush1.msra.mxu0 0.0
    %7408 = vmatprep.subr.mxu0 0.0
    %7409 = vmatpush1.msra.mxu0 0.0
    %7410 = vmatprep.subr.mxu0 0.0
    %7411 = vmatpush1.msra.mxu0 0.0
    %7412 = vmatprep.subr.mxu0 0.0
    %7413 = vmatpush1.msra.mxu0 0.0
    %7414 = vmatprep.subr.mxu0 0.0
    %7415 = vmatpush1.msra.mxu0 0.0
    %7416 = vmatprep.subr.mxu0 0.0
    %7417 = vmatpush1.msra.mxu0 0.0
    %7418 = vmatprep.mubr.f32.mxu0 %v7234
    %7419 = vmatmul.mubr.f32.gmra.mrb[0].mxu0 %v6616
    %v7420 = vpop.f32.mrb[0].mxu0
    %v7421 = vadd.f32 %v7321, %v7420
    %v7422 = vpop.f32.mrb[0].mxu0
    %7423 = vmatprep.mubr.f32.mxu0 %v7237
    %7424 = vmatmul.mubr.f32.gmra.mrb[0].mxu0 %v6622
    %v7425 = vpop.f32.mrb[0].mxu0
    %v7426 = vadd.f32 %v7326, %v7425
    %v7427 = vpop.f32.mrb[0].mxu0
    %7428 = vmatprep.mubr.f32.mxu0 %v7240
    %7429 = vmatmul.mubr.f32.gmra.mrb[0].mxu0 %v6628
    %v7430 = vpop.f32.mrb[0].mxu0
    %v7431 = vadd.f32 %v7331, %v7430
    %v7432 = vpop.f32.mrb[0].mxu0
    %7433 = vmatprep.mubr.f32.mxu0 %v7243
    %7434 = vmatmul.mubr.f32.gmra.mrb[0].mxu0 %v6634
    %v7435 = vpop.f32.mrb[0].mxu0
    %v7436 = vadd.f32 %v7336, %v7435
    %v7437 = vpop.f32.mrb[0].mxu0
    %7438 = vmatprep.mubr.f32.mxu0 %v7246
    %7439 = vmatmul.mubr.f32.gmra.mrb[0].mxu0 %v6640
    %v7440 = vpop.f32.mrb[0].mxu0
    %v7441 = vadd.f32 %v7341, %v7440
    %v7442 = vpop.f32.mrb[0].mxu0
    %7443 = vmatprep.mubr.f32.mxu0 %v7249
    %7444 = vmatmul.mubr.f32.gmra.mrb[0].mxu0 %v6646
    %v7445 = vpop.f32.mrb[0].mxu0
    %v7446 = vadd.f32 %v7346, %v7445
    %v7447 = vpop.f32.mrb[0].mxu0
    %7448 = vmatprep.mubr.f32.mxu0 %v7252
    %7449 = vmatmul.mubr.f32.gmra.mrb[0].mxu0 %v6652
    %v7450 = vpop.f32.mrb[0].mxu0
    %v7451 = vadd.f32 %v7351, %v7450
    %v7452 = vpop.f32.mrb[0].mxu0
    %7453 = vdwg.mxu0
    %s7454 = scalar_lea.vmem %s18, 112
    %v7455 = vld [vmem:[%s7454] sm:$0xff]
    %v7456 = vld [vmem:[%s7454 + $0x8] sm:$0xff]
    %v7457 = vld [vmem:[%s7454 + $0x10] sm:$0xff]
    %v7458 = vld [vmem:[%s7454 + $0x18] sm:$0xff]
    %v7459 = vld [vmem:[%s7454 + $0x20] sm:$0xff]
    %v7460 = vld [vmem:[%s7454 + $0x28] sm:$0xff]
    %v7461 = vld [vmem:[%s7454 + $0x30] sm:$0xff]
    %v7463 = vsel %vm6408, %v7455, 0
    %v7466 = vsel %vm6408, %v7456, 0
    %v7469 = vsel %vm6408, %v7457, 0
    %v7472 = vsel %vm6408, %v7458, 0
    %v7475 = vsel %vm6408, %v7459, 0
    %v7478 = vsel %vm6408, %v7460, 0
    %v7481 = vsel %vm6408, %v7461, 0
    %7483 = vmatprep.subr.mxu0 %v6386
    %7484 = vmatpush1.msra.mxu0 %v6385
    %7485 = vmatprep.subr.mxu0 %v6390
    %7486 = vmatpush1.msra.mxu0 %v6389
    %7487 = vmatprep.subr.mxu0 %v6394
    %7488 = vmatpush1.msra.mxu0 %v6393
    %7489 = vmatprep.subr.mxu0 %v6434
    %7490 = vmatpush1.msra.mxu0 %v6431
    %7491 = vmatprep.subr.mxu0 0.0
    %7492 = vmatpush1.msra.mxu0 0.0
    %7493 = vmatprep.subr.mxu0 0.0
    %7494 = vmatpush1.msra.mxu0 0.0
    %7495 = vmatprep.subr.mxu0 0.0
    %7496 = vmatpush1.msra.mxu0 0.0
    %7497 = vmatprep.subr.mxu0 0.0
    %7498 = vmatpush1.msra.mxu0 0.0
    %7499 = vmatprep.subr.mxu0 0.0
    %7500 = vmatpush1.msra.mxu0 0.0
    %7501 = vmatprep.subr.mxu0 0.0
    %7502 = vmatpush1.msra.mxu0 0.0
    %7503 = vmatprep.subr.mxu0 0.0
    %7504 = vmatpush1.msra.mxu0 0.0
    %7505 = vmatprep.subr.mxu0 0.0
    %7506 = vmatpush1.msra.mxu0 0.0
    %7507 = vmatprep.subr.mxu0 0.0
    %7508 = vmatpush1.msra.mxu0 0.0
    %7509 = vmatprep.subr.mxu0 0.0
    %7510 = vmatpush1.msra.mxu0 0.0
    %7511 = vmatprep.subr.mxu0 0.0
    %7512 = vmatpush1.msra.mxu0 0.0
    %7513 = vmatprep.subr.mxu0 0.0
    %7514 = vmatpush1.msra.mxu0 0.0
    %7515 = vmatprep.subr.mxu0 0.0
    %7516 = vmatpush1.msra.mxu0 0.0
    %7517 = vmatprep.subr.mxu0 0.0
    %7518 = vmatpush1.msra.mxu0 0.0
    %7519 = vmatprep.subr.mxu0 0.0
    %7520 = vmatpush1.msra.mxu0 0.0
    %7521 = vmatprep.subr.mxu0 0.0
    %7522 = vmatpush1.msra.mxu0 0.0
    %7523 = vmatprep.subr.mxu0 0.0
    %7524 = vmatpush1.msra.mxu0 0.0
    %7525 = vmatprep.subr.mxu0 0.0
    %7526 = vmatpush1.msra.mxu0 0.0
    %7527 = vmatprep.subr.mxu0 0.0
    %7528 = vmatpush1.msra.mxu0 0.0
    %7529 = vmatprep.subr.mxu0 0.0
    %7530 = vmatpush1.msra.mxu0 0.0
    %7531 = vmatprep.subr.mxu0 0.0
    %7532 = vmatpush1.msra.mxu0 0.0
    %7533 = vmatprep.subr.mxu0 0.0
    %7534 = vmatpush1.msra.mxu0 0.0
    %7535 = vmatprep.subr.mxu0 0.0
    %7536 = vmatpush1.msra.mxu0 0.0
    %7537 = vmatprep.subr.mxu0 0.0
    %7538 = vmatpush1.msra.mxu0 0.0
    %7539 = vmatprep.subr.mxu0 0.0
    %7540 = vmatpush1.msra.mxu0 0.0
    %7541 = vmatprep.subr.mxu0 0.0
    %7542 = vmatpush1.msra.mxu0 0.0
    %7543 = vmatprep.subr.mxu0 0.0
    %7544 = vmatpush1.msra.mxu0 0.0
    %7545 = vmatprep.subr.mxu0 0.0
    %7546 = vmatpush1.msra.mxu0 0.0
    %7547 = vmatprep.mubr.f32.mxu0 0.0
    %7548 = vmatmul.mubr.f32.gmra.mrb[0].mxu0 %v7463
    %v7549 = vpop.f32.mrb[0].mxu0
    %v7550 = vadd.f32 0.0, %v7549
    %v7551 = vpop.f32.mrb[0].mxu0
    %v7552 = vadd.f32 0.0, %v7551
    %7553 = vmatprep.mubr.f32.mxu0 0.0
    %7554 = vmatmul.mubr.f32.gmra.mrb[0].mxu0 %v7466
    %v7555 = vpop.f32.mrb[0].mxu0
    %v7556 = vadd.f32 0.0, %v7555
    %v7557 = vpop.f32.mrb[0].mxu0
    %v7558 = vadd.f32 0.0, %v7557
    %7559 = vmatprep.mubr.f32.mxu0 0.0
    %7560 = vmatmul.mubr.f32.gmra.mrb[0].mxu0 %v7469
    %v7561 = vpop.f32.mrb[0].mxu0
    %v7562 = vadd.f32 0.0, %v7561
    %v7563 = vpop.f32.mrb[0].mxu0
    %v7564 = vadd.f32 0.0, %v7563
    %7565 = vmatprep.mubr.f32.mxu0 0.0
    %7566 = vmatmul.mubr.f32.gmra.mrb[0].mxu0 %v7472
    %v7567 = vpop.f32.mrb[0].mxu0
    %v7568 = vadd.f32 0.0, %v7567
    %v7569 = vpop.f32.mrb[0].mxu0
    %v7570 = vadd.f32 0.0, %v7569
    %7571 = vmatprep.mubr.f32.mxu0 0.0
    %7572 = vmatmul.mubr.f32.gmra.mrb[0].mxu0 %v7475
    %v7573 = vpop.f32.mrb[0].mxu0
    %v7574 = vadd.f32 0.0, %v7573
    %v7575 = vpop.f32.mrb[0].mxu0
    %v7576 = vadd.f32 0.0, %v7575
    %7577 = vmatprep.mubr.f32.mxu0 0.0
    %7578 = vmatmul.mubr.f32.gmra.mrb[0].mxu0 %v7478
    %v7579 = vpop.f32.mrb[0].mxu0
    %v7580 = vadd.f32 0.0, %v7579
    %v7581 = vpop.f32.mrb[0].mxu0
    %v7582 = vadd.f32 0.0, %v7581
    %7583 = vmatprep.mubr.f32.mxu0 0.0
    %7584 = vmatmul.mubr.f32.gmra.mrb[0].mxu0 %v7481
    %v7585 = vpop.f32.mrb[0].mxu0
    %v7586 = vadd.f32 0.0, %v7585
    %v7587 = vpop.f32.mrb[0].mxu0
    %v7588 = vadd.f32 0.0, %v7587
    %7589 = vdwg.mxu0
    %7590 = vmatprep.subr.mxu0 %v6388
    %7591 = vmatpush1.msra.mxu0 %v6387
    %7592 = vmatprep.subr.mxu0 %v6392
    %7593 = vmatpush1.msra.mxu0 %v6391
    %7594 = vmatprep.subr.mxu0 %v6396
    %7595 = vmatpush1.msra.mxu0 %v6395
    %7596 = vmatprep.subr.mxu0 %v6440
    %7597 = vmatpush1.msra.mxu0 %v6437
    %7598 = vmatprep.subr.mxu0 0.0
    %7599 = vmatpush1.msra.mxu0 0.0
    %7600 = vmatprep.subr.mxu0 0.0
    %7601 = vmatpush1.msra.mxu0 0.0
    %7602 = vmatprep.subr.mxu0 0.0
    %7603 = vmatpush1.msra.mxu0 0.0
    %7604 = vmatprep.subr.mxu0 0.0
    %7605 = vmatpush1.msra.mxu0 0.0
    %7606 = vmatprep.subr.mxu0 0.0
    %7607 = vmatpush1.msra.mxu0 0.0
    %7608 = vmatprep.subr.mxu0 0.0
    %7609 = vmatpush1.msra.mxu0 0.0
    %7610 = vmatprep.subr.mxu0 0.0
    %7611 = vmatpush1.msra.mxu0 0.0
    %7612 = vmatprep.subr.mxu0 0.0
    %7613 = vmatpush1.msra.mxu0 0.0
    %7614 = vmatprep.subr.mxu0 0.0
    %7615 = vmatpush1.msra.mxu0 0.0
    %7616 = vmatprep.subr.mxu0 0.0
    %7617 = vmatpush1.msra.mxu0 0.0
    %7618 = vmatprep.subr.mxu0 0.0
    %7619 = vmatpush1.msra.mxu0 0.0
    %7620 = vmatprep.subr.mxu0 0.0
    %7621 = vmatpush1.msra.mxu0 0.0
    %7622 = vmatprep.subr.mxu0 0.0
    %7623 = vmatpush1.msra.mxu0 0.0
    %7624 = vmatprep.subr.mxu0 0.0
    %7625 = vmatpush1.msra.mxu0 0.0
    %7626 = vmatprep.subr.mxu0 0.0
    %7627 = vmatpush1.msra.mxu0 0.0
    %7628 = vmatprep.subr.mxu0 0.0
    %7629 = vmatpush1.msra.mxu0 0.0
    %7630 = vmatprep.subr.mxu0 0.0
    %7631 = vmatpush1.msra.mxu0 0.0
    %7632 = vmatprep.subr.mxu0 0.0
    %7633 = vmatpush1.msra.mxu0 0.0
    %7634 = vmatprep.subr.mxu0 0.0
    %7635 = vmatpush1.msra.mxu0 0.0
    %7636 = vmatprep.subr.mxu0 0.0
    %7637 = vmatpush1.msra.mxu0 0.0
    %7638 = vmatprep.subr.mxu0 0.0
    %7639 = vmatpush1.msra.mxu0 0.0
    %7640 = vmatprep.subr.mxu0 0.0
    %7641 = vmatpush1.msra.mxu0 0.0
    %7642 = vmatprep.subr.mxu0 0.0
    %7643 = vmatpush1.msra.mxu0 0.0
    %7644 = vmatprep.subr.mxu0 0.0
    %7645 = vmatpush1.msra.mxu0 0.0
    %7646 = vmatprep.subr.mxu0 0.0
    %7647 = vmatpush1.msra.mxu0 0.0
    %7648 = vmatprep.subr.mxu0 0.0
    %7649 = vmatpush1.msra.mxu0 0.0
    %7650 = vmatprep.subr.mxu0 0.0
    %7651 = vmatpush1.msra.mxu0 0.0
    %7652 = vmatprep.subr.mxu0 0.0
    %7653 = vmatpush1.msra.mxu0 0.0
    %7654 = vmatprep.mubr.f32.mxu0 0.0
    %7655 = vmatmul.mubr.f32.gmra.mrb[0].mxu0 %v7463
    %v7656 = vpop.f32.mrb[0].mxu0
    %v7657 = vadd.f32 0.0, %v7656
    %v7658 = vpop.f32.mrb[0].mxu0
    %v7659 = vadd.f32 0.0, %v7658
    %7660 = vmatprep.mubr.f32.mxu0 0.0
    %7661 = vmatmul.mubr.f32.gmra.mrb[0].mxu0 %v7466
    %v7662 = vpop.f32.mrb[0].mxu0
    %v7663 = vadd.f32 0.0, %v7662
    %v7664 = vpop.f32.mrb[0].mxu0
    %v7665 = vadd.f32 0.0, %v7664
    %7666 = vmatprep.mubr.f32.mxu0 0.0
    %7667 = vmatmul.mubr.f32.gmra.mrb[0].mxu0 %v7469
    %v7668 = vpop.f32.mrb[0].mxu0
    %v7669 = vadd.f32 0.0, %v7668
    %v7670 = vpop.f32.mrb[0].mxu0
    %v7671 = vadd.f32 0.0, %v7670
    %7672 = vmatprep.mubr.f32.mxu0 0.0
    %7673 = vmatmul.mubr.f32.gmra.mrb[0].mxu0 %v7472
    %v7674 = vpop.f32.mrb[0].mxu0
    %v7675 = vadd.f32 0.0, %v7674
    %v7676 = vpop.f32.mrb[0].mxu0
    %v7677 = vadd.f32 0.0, %v7676
    %7678 = vmatprep.mubr.f32.mxu0 0.0
    %7679 = vmatmul.mubr.f32.gmra.mrb[0].mxu0 %v7475
    %v7680 = vpop.f32.mrb[0].mxu0
    %v7681 = vadd.f32 0.0, %v7680
    %v7682 = vpop.f32.mrb[0].mxu0
    %v7683 = vadd.f32 0.0, %v7682
    %7684 = vmatprep.mubr.f32.mxu0 0.0
    %7685 = vmatmul.mubr.f32.gmra.mrb[0].mxu0 %v7478
    %v7686 = vpop.f32.mrb[0].mxu0
    %v7687 = vadd.f32 0.0, %v7686
    %v7688 = vpop.f32.mrb[0].mxu0
    %v7689 = vadd.f32 0.0, %v7688
    %7690 = vmatprep.mubr.f32.mxu0 0.0
    %7691 = vmatmul.mubr.f32.gmra.mrb[0].mxu0 %v7481
    %v7692 = vpop.f32.mrb[0].mxu0
    %v7693 = vadd.f32 0.0, %v7692
    %v7694 = vpop.f32.mrb[0].mxu0
    %v7695 = vadd.f32 0.0, %v7694
    %7696 = vdwg.mxu0
    %s7697 = scalar_lea.vmem %s19, 896
    %v7698 = vld [vmem:[%s7697] sm:$0xff]
    %v7699 = vld [vmem:[%s7697 + $0x8] sm:$0xff]
    %v7700 = vld [vmem:[%s7697 + $0x10] sm:$0xff]
    %v7701 = vld [vmem:[%s7697 + $0x18] sm:$0xff]
    %v7702 = vld [vmem:[%s7697 + $0x20] sm:$0xff]
    %v7703 = vld [vmem:[%s7697 + $0x28] sm:$0xff]
    %v7704 = vld [vmem:[%s7697 + $0x30] sm:$0xff]
    %v7705 = vld [vmem:[%s7697 + $0x38] sm:$0xff]
    %v7706 = vld [vmem:[%s7697 + $0x40] sm:$0xff]
    %v7707 = vld [vmem:[%s7697 + $0x48] sm:$0xff]
    %v7708 = vld [vmem:[%s7697 + $0x50] sm:$0xff]
    %v7709 = vld [vmem:[%s7697 + $0x58] sm:$0xff]
    %v7710 = vld [vmem:[%s7697 + $0x60] sm:$0xff]
    %v7711 = vld [vmem:[%s7697 + $0x68] sm:$0xff]
    %v7712 = vld [vmem:[%s7697 + $0x70] sm:$0xff]
    %v7713 = vld [vmem:[%s7697 + $0x78] sm:$0xff]
    %v7714 = vld [vmem:[%s7697 + $0x80] sm:$0xff]
    %v7715 = vld [vmem:[%s7697 + $0x88] sm:$0xff]
    %v7716 = vld [vmem:[%s7697 + $0x90] sm:$0xff]
    %v7717 = vld [vmem:[%s7697 + $0x98] sm:$0xff]
    %v7718 = vld [vmem:[%s7697 + $0xa0] sm:$0xff]
    %v7719 = vld [vmem:[%s7697 + $0xa8] sm:$0xff]
    %v7720 = vld [vmem:[%s7697 + $0xb0] sm:$0xff]
    %v7721 = vld [vmem:[%s7697 + $0xb8] sm:$0xff]
    %v7722 = vld [vmem:[%s7697 + $0xc0] sm:$0xff]
    %v7723 = vld [vmem:[%s7697 + $0xc8] sm:$0xff]
    %v7724 = vld [vmem:[%s7697 + $0xd0] sm:$0xff]
    %v7725 = vld [vmem:[%s7697 + $0xd8] sm:$0xff]
    %v7726 = vld [vmem:[%s7697 + $0xe0] sm:$0xff]
    %v7727 = vld [vmem:[%s7697 + $0xe8] sm:$0xff]
    %v7728 = vld [vmem:[%s7697 + $0xf0] sm:$0xff]
    %v7729 = vld [vmem:[%s7697 + $0xf8] sm:$0xff]
    %v7730 = vld [vmem:[%s7697 + $0x100] sm:$0xff]
    %v7731 = vld [vmem:[%s7697 + $0x108] sm:$0xff]
    %v7732 = vld [vmem:[%s7697 + $0x110] sm:$0xff]
    %v7733 = vld [vmem:[%s7697 + $0x118] sm:$0xff]
    %v7734 = vld [vmem:[%s7697 + $0x120] sm:$0xff]
    %v7735 = vld [vmem:[%s7697 + $0x128] sm:$0xff]
    %v7736 = vld [vmem:[%s7697 + $0x130] sm:$0xff]
    %v7737 = vld [vmem:[%s7697 + $0x138] sm:$0xff]
    %v7738 = vld [vmem:[%s7697 + $0x140] sm:$0xff]
    %v7739 = vld [vmem:[%s7697 + $0x148] sm:$0xff]
    %v7740 = vld [vmem:[%s7697 + $0x150] sm:$0xff]
    %v7741 = vld [vmem:[%s7697 + $0x158] sm:$0xff]
    %v7742 = vld [vmem:[%s7697 + $0x160] sm:$0xff]
    %v7743 = vld [vmem:[%s7697 + $0x168] sm:$0xff]
    %v7744 = vld [vmem:[%s7697 + $0x170] sm:$0xff]
    %v7745 = vld [vmem:[%s7697 + $0x178] sm:$0xff]
    %v7746 = vld [vmem:[%s7697 + $0x180] sm:$0xff]
    %v7747 = vld [vmem:[%s7697 + $0x188] sm:$0xff]
    %v7748 = vld [vmem:[%s7697 + $0x190] sm:$0xff]
    %v7749 = vld [vmem:[%s7697 + $0x198] sm:$0xff]
    %v7750 = vld [vmem:[%s7697 + $0x1a0] sm:$0xff]
    %v7751 = vld [vmem:[%s7697 + $0x1a8] sm:$0xff]
    %v7752 = vld [vmem:[%s7697 + $0x1b0] sm:$0xff]
    %v7753 = vld [vmem:[%s7697 + $0x1b8] sm:$0xff]
    %v7755 = vsel %vm4806, %v7659, 0
    %v7758 = vsel %vm4806, %v7665, 0
    %v7761 = vsel %vm4806, %v7671, 0
    %v7764 = vsel %vm4806, %v7677, 0
    %v7767 = vsel %vm4806, %v7683, 0
    %v7770 = vsel %vm4806, %v7689, 0
    %v7773 = vsel %vm4806, %v7695, 0
    %7775 = vmatprep.subr.mxu0 0.0
    %7776 = vmatpush1.msra.mxu0 %v7698
    %7777 = vmatprep.subr.mxu0 0.0
    %7778 = vmatpush1.msra.mxu0 %v7699
    %7779 = vmatprep.subr.mxu0 0.0
    %7780 = vmatpush1.msra.mxu0 %v7700
    %7781 = vmatprep.subr.mxu0 0.0
    %7782 = vmatpush1.msra.mxu0 %v7701
    %7783 = vmatprep.subr.mxu0 0.0
    %7784 = vmatpush1.msra.mxu0 %v7702
    %7785 = vmatprep.subr.mxu0 0.0
    %7786 = vmatpush1.msra.mxu0 %v7703
    %7787 = vmatprep.subr.mxu0 0.0
    %7788 = vmatpush1.msra.mxu0 %v7704
    %7789 = vmatprep.subr.mxu0 0.0
    %7790 = vmatpush1.msra.mxu0 %v7705
    %7791 = vmatprep.subr.mxu0 0.0
    %7792 = vmatpush1.msra.mxu0 %v7706
    %7793 = vmatprep.subr.mxu0 0.0
    %7794 = vmatpush1.msra.mxu0 %v7707
    %7795 = vmatprep.subr.mxu0 0.0
    %7796 = vmatpush1.msra.mxu0 %v7708
    %7797 = vmatprep.subr.mxu0 0.0
    %7798 = vmatpush1.msra.mxu0 %v7709
    %7799 = vmatprep.subr.mxu0 0.0
    %7800 = vmatpush1.msra.mxu0 %v7710
    %7801 = vmatprep.subr.mxu0 0.0
    %7802 = vmatpush1.msra.mxu0 %v7711
    %7803 = vmatprep.subr.mxu0 0.0
    %7804 = vmatpush1.msra.mxu0 %v7712
    %7805 = vmatprep.subr.mxu0 0.0
    %7806 = vmatpush1.msra.mxu0 %v7713
    %7807 = vmatprep.subr.mxu0 0.0
    %7808 = vmatpush1.msra.mxu0 %v7714
    %7809 = vmatprep.subr.mxu0 0.0
    %7810 = vmatpush1.msra.mxu0 %v7715
    %7811 = vmatprep.subr.mxu0 0.0
    %7812 = vmatpush1.msra.mxu0 %v7716
    %7813 = vmatprep.subr.mxu0 0.0
    %7814 = vmatpush1.msra.mxu0 %v7717
    %7815 = vmatprep.subr.mxu0 0.0
    %7816 = vmatpush1.msra.mxu0 %v7718
    %7817 = vmatprep.subr.mxu0 0.0
    %7818 = vmatpush1.msra.mxu0 %v7719
    %7819 = vmatprep.subr.mxu0 0.0
    %7820 = vmatpush1.msra.mxu0 %v7720
    %7821 = vmatprep.subr.mxu0 0.0
    %7822 = vmatpush1.msra.mxu0 %v7721
    %7823 = vmatprep.subr.mxu0 0.0
    %7824 = vmatpush1.msra.mxu0 %v7722
    %7825 = vmatprep.subr.mxu0 0.0
    %7826 = vmatpush1.msra.mxu0 %v7723
    %7827 = vmatprep.subr.mxu0 0.0
    %7828 = vmatpush1.msra.mxu0 %v7724
    %7829 = vmatprep.subr.mxu0 0.0
    %7830 = vmatpush1.msra.mxu0 %v7725
    %7831 = vmatprep.subr.mxu0 0.0
    %7832 = vmatpush1.msra.mxu0 %v7726
    %7833 = vmatprep.subr.mxu0 0.0
    %7834 = vmatpush1.msra.mxu0 %v7727
    %7835 = vmatprep.subr.mxu0 0.0
    %7836 = vmatpush1.msra.mxu0 %v7728
    %7837 = vmatprep.subr.mxu0 0.0
    %7838 = vmatpush1.msra.mxu0 %v7729
    %7839 = vmatprep.mubr.f32.mxu0 %v7552
    %7840 = vmatmul.mubr.f32.gmra.mrb[0].mxu0 %v7550
    %v7841 = vpop.f32.mrb[0].mxu0
    %v7842 = vadd.f32 0.0, %v7841
    %v7843 = vpop.f32.mrb[0].mxu0
    %7844 = vmatprep.mubr.f32.mxu0 %v7558
    %7845 = vmatmul.mubr.f32.gmra.mrb[0].mxu0 %v7556
    %v7846 = vpop.f32.mrb[0].mxu0
    %v7847 = vadd.f32 0.0, %v7846
    %v7848 = vpop.f32.mrb[0].mxu0
    %7849 = vmatprep.mubr.f32.mxu0 %v7564
    %7850 = vmatmul.mubr.f32.gmra.mrb[0].mxu0 %v7562
    %v7851 = vpop.f32.mrb[0].mxu0
    %v7852 = vadd.f32 0.0, %v7851
    %v7853 = vpop.f32.mrb[0].mxu0
    %7854 = vmatprep.mubr.f32.mxu0 %v7570
    %7855 = vmatmul.mubr.f32.gmra.mrb[0].mxu0 %v7568
    %v7856 = vpop.f32.mrb[0].mxu0
    %v7857 = vadd.f32 0.0, %v7856
    %v7858 = vpop.f32.mrb[0].mxu0
    %7859 = vmatprep.mubr.f32.mxu0 %v7576
    %7860 = vmatmul.mubr.f32.gmra.mrb[0].mxu0 %v7574
    %v7861 = vpop.f32.mrb[0].mxu0
    %v7862 = vadd.f32 0.0, %v7861
    %v7863 = vpop.f32.mrb[0].mxu0
    %7864 = vmatprep.mubr.f32.mxu0 %v7582
    %7865 = vmatmul.mubr.f32.gmra.mrb[0].mxu0 %v7580
    %v7866 = vpop.f32.mrb[0].mxu0
    %v7867 = vadd.f32 0.0, %v7866
    %v7868 = vpop.f32.mrb[0].mxu0
    %7869 = vmatprep.mubr.f32.mxu0 %v7588
    %7870 = vmatmul.mubr.f32.gmra.mrb[0].mxu0 %v7586
    %v7871 = vpop.f32.mrb[0].mxu0
    %v7872 = vadd.f32 0.0, %v7871
    %v7873 = vpop.f32.mrb[0].mxu0
    %7874 = vdwg.mxu0
    %7875 = vmatprep.subr.mxu0 0.0
    %7876 = vmatpush1.msra.mxu0 %v7730
    %7877 = vmatprep.subr.mxu0 0.0
    %7878 = vmatpush1.msra.mxu0 %v7731
    %7879 = vmatprep.subr.mxu0 0.0
    %7880 = vmatpush1.msra.mxu0 %v7732
    %7881 = vmatprep.subr.mxu0 0.0
    %7882 = vmatpush1.msra.mxu0 %v7733
    %7883 = vmatprep.subr.mxu0 0.0
    %7884 = vmatpush1.msra.mxu0 %v7734
    %7885 = vmatprep.subr.mxu0 0.0
    %7886 = vmatpush1.msra.mxu0 %v7735
    %7887 = vmatprep.subr.mxu0 0.0
    %7888 = vmatpush1.msra.mxu0 %v7736
    %7889 = vmatprep.subr.mxu0 0.0
    %7890 = vmatpush1.msra.mxu0 %v7737
    %7891 = vmatprep.subr.mxu0 0.0
    %7892 = vmatpush1.msra.mxu0 %v7738
    %7893 = vmatprep.subr.mxu0 0.0
    %7894 = vmatpush1.msra.mxu0 %v7739
    %7895 = vmatprep.subr.mxu0 0.0
    %7896 = vmatpush1.msra.mxu0 %v7740
    %7897 = vmatprep.subr.mxu0 0.0
    %7898 = vmatpush1.msra.mxu0 %v7741
    %7899 = vmatprep.subr.mxu0 0.0
    %7900 = vmatpush1.msra.mxu0 %v7742
    %7901 = vmatprep.subr.mxu0 0.0
    %7902 = vmatpush1.msra.mxu0 %v7743
    %7903 = vmatprep.subr.mxu0 0.0
    %7904 = vmatpush1.msra.mxu0 %v7744
    %7905 = vmatprep.subr.mxu0 0.0
    %7906 = vmatpush1.msra.mxu0 %v7745
    %7907 = vmatprep.subr.mxu0 0.0
    %7908 = vmatpush1.msra.mxu0 %v7746
    %7909 = vmatprep.subr.mxu0 0.0
    %7910 = vmatpush1.msra.mxu0 %v7747
    %7911 = vmatprep.subr.mxu0 0.0
    %7912 = vmatpush1.msra.mxu0 %v7748
    %7913 = vmatprep.subr.mxu0 0.0
    %7914 = vmatpush1.msra.mxu0 %v7749
    %7915 = vmatprep.subr.mxu0 0.0
    %7916 = vmatpush1.msra.mxu0 %v7750
    %7917 = vmatprep.subr.mxu0 0.0
    %7918 = vmatpush1.msra.mxu0 %v7751
    %7919 = vmatprep.subr.mxu0 0.0
    %7920 = vmatpush1.msra.mxu0 %v7752
    %7921 = vmatprep.subr.mxu0 0.0
    %7922 = vmatpush1.msra.mxu0 %v7753
    %7923 = vmatprep.subr.mxu0 0.0
    %7924 = vmatpush1.msra.mxu0 0.0
    %7925 = vmatprep.subr.mxu0 0.0
    %7926 = vmatpush1.msra.mxu0 0.0
    %7927 = vmatprep.subr.mxu0 0.0
    %7928 = vmatpush1.msra.mxu0 0.0
    %7929 = vmatprep.subr.mxu0 0.0
    %7930 = vmatpush1.msra.mxu0 0.0
    %7931 = vmatprep.subr.mxu0 0.0
    %7932 = vmatpush1.msra.mxu0 0.0
    %7933 = vmatprep.subr.mxu0 0.0
    %7934 = vmatpush1.msra.mxu0 0.0
    %7935 = vmatprep.subr.mxu0 0.0
    %7936 = vmatpush1.msra.mxu0 0.0
    %7937 = vmatprep.subr.mxu0 0.0
    %7938 = vmatpush1.msra.mxu0 0.0
    %7939 = vmatprep.mubr.f32.mxu0 %v7755
    %7940 = vmatmul.mubr.f32.gmra.mrb[0].mxu0 %v7657
    %v7941 = vpop.f32.mrb[0].mxu0
    %v7942 = vadd.f32 %v7842, %v7941
    %v7943 = vpop.f32.mrb[0].mxu0
    %7944 = vmatprep.mubr.f32.mxu0 %v7758
    %7945 = vmatmul.mubr.f32.gmra.mrb[0].mxu0 %v7663
    %v7946 = vpop.f32.mrb[0].mxu0
    %v7947 = vadd.f32 %v7847, %v7946
    %v7948 = vpop.f32.mrb[0].mxu0
    %7949 = vmatprep.mubr.f32.mxu0 %v7761
    %7950 = vmatmul.mubr.f32.gmra.mrb[0].mxu0 %v7669
    %v7951 = vpop.f32.mrb[0].mxu0
    %v7952 = vadd.f32 %v7852, %v7951
    %v7953 = vpop.f32.mrb[0].mxu0
    %7954 = vmatprep.mubr.f32.mxu0 %v7764
    %7955 = vmatmul.mubr.f32.gmra.mrb[0].mxu0 %v7675
    %v7956 = vpop.f32.mrb[0].mxu0
    %v7957 = vadd.f32 %v7857, %v7956
    %v7958 = vpop.f32.mrb[0].mxu0
    %7959 = vmatprep.mubr.f32.mxu0 %v7767
    %7960 = vmatmul.mubr.f32.gmra.mrb[0].mxu0 %v7681
    %v7961 = vpop.f32.mrb[0].mxu0
    %v7962 = vadd.f32 %v7862, %v7961
    %v7963 = vpop.f32.mrb[0].mxu0
    %7964 = vmatprep.mubr.f32.mxu0 %v7770
    %7965 = vmatmul.mubr.f32.gmra.mrb[0].mxu0 %v7687
    %v7966 = vpop.f32.mrb[0].mxu0
    %v7967 = vadd.f32 %v7867, %v7966
    %v7968 = vpop.f32.mrb[0].mxu0
    %7969 = vmatprep.mubr.f32.mxu0 %v7773
    %7970 = vmatmul.mubr.f32.gmra.mrb[0].mxu0 %v7693
    %v7971 = vpop.f32.mrb[0].mxu0
    %v7972 = vadd.f32 %v7872, %v7971
    %v7973 = vpop.f32.mrb[0].mxu0
    %7974 = vdwg.mxu0
    %v7975 = vadd.f32 %v7421, %v7942
    %v7976 = vadd.f32 %v7426, %v7947
    %v7977 = vadd.f32 %v7431, %v7952
    %v7978 = vadd.f32 %v7436, %v7957
    %v7979 = vadd.f32 %v7441, %v7962
    %v7980 = vadd.f32 %v7446, %v7967
    %v7981 = vadd.f32 %v7451, %v7972
    %v7982 = vld [vmem:[%s20] sm:$0x1]
    %v7984 = vlaneseq
    %v7985 = vshrl.u32 %v7984, 7
    %v7986 = vsub.s32 0, %v7985
    %v7987 = vrot.slane %v7982, %v7986
    %v7989 = vadd.f32 %v7975, %v7987
    %v7990 = vadd.f32 %v7976, %v7987
    %v7991 = vadd.f32 %v7977, %v7987
    %v7992 = vadd.f32 %v7978, %v7987
    %v7993 = vadd.f32 %v7979, %v7987
    %v7994 = vadd.f32 %v7980, %v7987
    %v7995 = vadd.f32 %v7981, %v7987
    %7996 = vst.msk [vmem:[#allocation6] sm:$0xff] %vm6408, %v7989
    %7997 = vst.msk [vmem:[#allocation6 + $0x8] sm:$0xff] %vm6408, %v7990
    %7998 = vst.msk [vmem:[#allocation6 + $0x10] sm:$0xff] %vm6408, %v7991
    %7999 = vst.msk [vmem:[#allocation6 + $0x18] sm:$0xff] %vm6408, %v7992
    %8000 = vst.msk [vmem:[#allocation6 + $0x20] sm:$0xff] %vm6408, %v7993
    %8001 = vst.msk [vmem:[#allocation6 + $0x28] sm:$0xff] %vm6408, %v7994
    %8002 = vst.msk [vmem:[#allocation6 + $0x30] sm:$0xff] %vm6408, %v7995
    // Predicated region
    $region86: #{latent_vae_forward.1} parent=1 // pred_check
      _
    $region87: #{latent_vae_forward.1} parent=1 // pred_check_branch
      %8004 = sbr.rel (0) target = $region89
    $region88: #{latent_vae_forward.1} parent=1 // pred_region
      %s8006 = ssub.s32 32, 32
      %8007 = vsyncadd [#allocation3], %s8006
      %s8009 = sshll.u32 [#allocation2], 4
      %s8010 = int_to_ptr.vmem [resolvable:$true] %s8009
      %8012 = dma.vmem_to_hbm [thread:$0]  %s8010, 32, %s21, [#allocation3]
    $region89: #{latent_vae_forward.1} parent=1 // pred_fallthru
      _
    // Predicated region
    $region90: #{latent_vae_forward.1} parent=1 // pred_check
      _
    $region91: #{latent_vae_forward.1} parent=1 // pred_check_branch
      %8014 = sbr.rel (0) target = $region93
    $region92: #{latent_vae_forward.1} parent=1 // pred_region
      %s8016 = ssub.s32 32, 32
      %8017 = vsyncadd [#allocation5], %s8016
      %s8019 = sshll.u32 [#allocation4], 4
      %s8020 = int_to_ptr.vmem [resolvable:$true] %s8019
      %8022 = dma.vmem_to_hbm [thread:$0]  %s8020, 32, %s22, [#allocation5]
    $region93: #{latent_vae_forward.1} parent=1 // pred_fallthru
      _
    // Predicated region
    $region94: #{latent_vae_forward.1} parent=1 // pred_check
      _
    $region95: #{latent_vae_forward.1} parent=1 // pred_check_branch
      %8024 = sbr.rel (0) target = $region97
    $region96: #{latent_vae_forward.1} parent=1 // pred_region
      %s8026 = ssub.s32 896, 896
      %8027 = vsyncadd [#allocation5], %s8026
      %s8028 = sshll.u32 [#allocation6], 4
      %s8029 = int_to_ptr.vmem [resolvable:$true] %s8028
      %8034 = dma.vmem_to_hbm [thread:$0]  %s8029, 896, %s23, [#allocation5], 128, 128, 8
    $region97: #{latent_vae_forward.1} parent=1 // pred_fallthru
      _
    // Predicated region
    $region98: #{latent_vae_forward.1} parent=1 // pred_check
      _
    $region99: #{latent_vae_forward.1} parent=1 // pred_check_branch
      %8036 = sbr.rel (0) target = $region101
    $region100: #{latent_vae_forward.1} parent=1 // pred_region
      %8037 = dma.done [#allocation3], 32
    $region101: #{latent_vae_forward.1} parent=1 // pred_fallthru
      _
    // Predicated region
    $region102: #{latent_vae_forward.1} parent=1 // pred_check
      _
    $region103: #{latent_vae_forward.1} parent=1 // pred_check_branch
      %8039 = sbr.rel (0) target = $region105
    $region104: #{latent_vae_forward.1} parent=1 // pred_region
      %8040 = dma.done [#allocation5], 32
    $region105: #{latent_vae_forward.1} parent=1 // pred_fallthru
      _
    // Predicated region
    $region106: #{latent_vae_forward.1} parent=1 // pred_check
      _
    $region107: #{latent_vae_forward.1} parent=1 // pred_check_branch
      %8042 = sbr.rel (0) target = $region109
    $region108: #{latent_vae_forward.1} parent=1 // pred_region
      %8043 = dma.done [#allocation5], 896
    $region109: #{latent_vae_forward.1} parent=1 // pred_fallthru
      _
    %8044 = vsyncpa [#allocation3], 1
    %8045 = vsyncpa [#allocation5], 1

</llo_original>
